<compile_context>
chip_gen: v6e
topology: v6e:2x2x1
jax: 0.10.0
libtpu: 0.0.40
codegen_flags: <defaults>
</compile_context>

<pallas_src>
import jax
import jax.numpy as jnp
from jax.experimental import pallas as pl
from jax.experimental.pallas import tpu as pltpu


def _make_resblock_kernel(bb, H, W, Cin, Cout, Cmax, eps, has_proj):
    taps = [(dy, dx) for dy in range(3) for dx in range(3)]
    HW = H * W

    def _gn_silu(v, a_ref, gamma_ref, beta_ref):
        # v: (bb, H*W, C) f32.  a_ref: (C, C) group-averaging matrix with
        # a[i, j] = 1/(group_size*H*W) iff channels i and j share a group.
        # Two-pass (shifted) variance for numerical robustness.
        s = jnp.sum(v, axis=1)                                       # (bb, C)
        mean = jnp.dot(s, a_ref[...], preferred_element_type=jnp.float32)
        vc = v - mean[:, None, :]
        q = jnp.sum(vc * vc, axis=1)                                 # (bb, C)
        var = jnp.dot(q, a_ref[...], preferred_element_type=jnp.float32)
        inv = jax.lax.rsqrt(var + eps)
        h = vc * (inv * gamma_ref[...])[:, None, :] + beta_ref[...][None, :, :]
        return h * jax.nn.sigmoid(h)                                 # SiLU

    def kernel(x_ref, g1_ref, be1_ref, a1_ref, w1_ref, b1_ref,
               g2_ref, be2_ref, a2_ref, w2_ref, b2_ref, out_ref, pad_ref):
        # Zero only the 1-pixel border of the shared pad scratch each step
        # (interior is always fully overwritten; per-step keeps it megacore-safe).
        # TODO(synk): zero once per core if a reliable per-core first-iteration
        # predicate becomes available.
        pad_ref[:, 0:1, :, :] = jnp.zeros((bb, 1, W + 2, Cmax), jnp.bfloat16)
        pad_ref[:, H + 1:H + 2, :, :] = jnp.zeros((bb, 1, W + 2, Cmax), jnp.bfloat16)
        pad_ref[:, :, 0:1, :] = jnp.zeros((bb, H + 2, 1, Cmax), jnp.bfloat16)
        pad_ref[:, :, W + 1:W + 2, :] = jnp.zeros((bb, H + 2, 1, Cmax), jnp.bfloat16)

        x = x_ref[...]                                               # (bb,H,W,Cin) bf16
        x2d = jnp.reshape(x, (bb, HW, Cin))
        x2d_f32 = x2d.astype(jnp.float32)

        # ---- groupnorm_1 -> SiLU -> conv_1 (bias already includes temb proj) ----
        h1 = _gn_silu(x2d_f32, a1_ref, g1_ref, be1_ref)              # (bb,HW,Cin) f32
        pad_ref[:, 1:H + 1, 1:W + 1, :Cin] = jnp.reshape(
            h1.astype(jnp.bfloat16), (bb, H, W, Cin))
        cols1 = jnp.concatenate(
            [pad_ref[:, dy:dy + H, dx:dx + W, :Cin] for (dy, dx) in taps], axis=-1)
        y1 = jnp.dot(jnp.reshape(cols1, (bb * HW, 9 * Cin)), w1_ref[...],
                     preferred_element_type=jnp.float32)             # (bb*HW,Cout)
        y1 = jnp.reshape(y1, (bb, HW, Cout)) + b1_ref[...]           # per-image bias

        # ---- groupnorm_2 -> SiLU -> dropout(identity) -> conv_2 (+fused residual) ----
        h2 = _gn_silu(y1, a2_ref, g2_ref, be2_ref)                   # (bb,HW,Cout) f32
        pad_ref[:, 1:H + 1, 1:W + 1, :Cout] = jnp.reshape(
            h2.astype(jnp.bfloat16), (bb, H, W, Cout))
        taps2 = [pad_ref[:, dy:dy + H, dx:dx + W, :Cout] for (dy, dx) in taps]
        if has_proj:
            # 1x1 residual conv fused into conv_2's K dimension (weight stacked
            # under w2 in the wrapper; res_b folded into b2).
            taps2 = taps2 + [x]
            k2 = 9 * Cout + Cin
        else:
            k2 = 9 * Cout
        cols2 = jnp.concatenate(taps2, axis=-1)
        y2 = jnp.dot(jnp.reshape(cols2, (bb * HW, k2)), w2_ref[...],
                     preferred_element_type=jnp.float32)
        y2 = jnp.reshape(y2, (bb, HW, Cout)) + b2_ref[...]
        if not has_proj:
            y2 = y2 + x2d_f32                                        # identity residual

        out_ref[...] = jnp.reshape(y2, (bb, H, W, Cout)).astype(out_ref.dtype)

    return kernel


def _pick_batch_block(B, H, W, Cmax):
    """Images per grid step: amortize per-step overhead, but keep >= 2 grid
    steps (both v7x TensorCores busy) and bound the live intermediate set."""
    budget = 6 * 1024 * 1024
    per_img = ((H + 2) * (W + 2) * Cmax * 2      # zero-padded bf16 scratch
               + H * W * 9 * Cmax * 2            # im2col columns (bf16)
               + H * W * Cmax * 4 * 3)           # f32 activation temporaries
    for cand in (8, 4, 2):
        if B % cand == 0 and B // cand >= 2 and cand * per_img <= budget:
            return cand
    return 1


def _vmem_limit_bytes():
    # Raise the scoped-VMEM cap toward the chip's capacity (v5e/v6e: 128 MiB),
    # stay conservative on v7x (64 MiB physical per TensorCore).
    try:
        cap = int(pltpu.get_tpu_info().vmem_capacity_bytes)
    except Exception:
        cap = 64 * 1024 * 1024
    if cap <= 0:
        cap = 64 * 1024 * 1024
    return int(max(32 * 1024 * 1024, min(cap * 3 // 4, 100 * 1024 * 1024)))


def resblock_forward_nhwc(x_nhwc, params, temb=None, n_groups=32, eps=1e-6):
    """NHWC entry point (preferred: no NCHW<->NHWC HBM round trips).

    x_nhwc: (B, H, W, Cin). Conv weights in PyTorch OIHW layout. Returns NHWC.
    """
    B, H, W, Cin = x_nhwc.shape
    conv1_w = params["conv1_w"]
    Cout = conv1_w.shape[0]
    assert Cin % n_groups == 0 and Cout % n_groups == 0
    has_proj = "res_w" in params
    Cmax = max(Cin, Cout)
    bb = _pick_batch_block(B, H, W, Cmax)
    out_dtype = x_nhwc.dtype

    # ---- plain-JAX glue: tiny parameter preprocessing only ----
    x_bf16 = x_nhwc.astype(jnp.bfloat16)   # halve activation HBM traffic in

    def group_avg_matrix(C):
        cs = C // n_groups
        m = jnp.kron(jnp.eye(n_groups, dtype=jnp.float32),
                     jnp.ones((cs, cs), jnp.float32))
        return m / jnp.float32(cs * H * W)

    a1 = group_avg_matrix(Cin)
    a2 = group_avg_matrix(Cout)
    g1 = params["gn1_w"].astype(jnp.float32).reshape(1, Cin)
    be1 = params["gn1_b"].astype(jnp.float32).reshape(1, Cin)
    g2 = params["gn2_w"].astype(jnp.float32).reshape(1, Cout)
    be2 = params["gn2_b"].astype(jnp.float32).reshape(1, Cout)

    # OIHW -> (ky,kx,Cin,Cout) -> (9*Cin, Cout) im2col layout, bf16 for the MXU.
    w1p = jnp.transpose(conv1_w, (2, 3, 1, 0)).reshape(9 * Cin, Cout).astype(jnp.bfloat16)
    w2p = jnp.transpose(params["conv2_w"], (2, 3, 1, 0)).reshape(9 * Cout, Cout)
    b2 = params["conv2_b"].astype(jnp.float32)
    if has_proj:
        # Fuse the 1x1 residual conv into conv_2: stack its weight along K and
        # fold res_b into conv_2's bias.
        wr = params["res_w"].reshape(Cout, Cin).T.astype(jnp.float32)   # (Cin, Cout)
        w2p = jnp.concatenate([w2p.astype(jnp.float32), wr], axis=0)
        b2 = b2 + params["res_b"].astype(jnp.float32)
    w2p = w2p.astype(jnp.bfloat16)
    K2 = w2p.shape[0]
    b2 = b2.reshape(1, Cout)

    # conv_1 bias (+ optional per-image time-embedding projection), (B, 1, Cout).
    b1 = jnp.broadcast_to(params["conv1_b"].astype(jnp.float32), (B, Cout))
    if temb is not None:
        st = temb.astype(jnp.float32)
        st = st * jax.nn.sigmoid(st)                                 # silu(temb)
        b1 = b1 + st @ params["temb_w"].astype(jnp.float32).T \
                 + params["temb_b"].astype(jnp.float32)
    b1 = b1.reshape(B, 1, Cout)

    kernel = _make_resblock_kernel(bb, H, W, Cin, Cout, Cmax, float(eps), has_proj)

    inputs = [x_bf16, g1, be1, a1, w1p, b1, g2, be2, a2, w2p, b2]
    in_specs = [
        pl.BlockSpec((bb, H, W, Cin), lambda b: (b, 0, 0, 0)),
        pl.BlockSpec((1, Cin), lambda b: (0, 0)),
        pl.BlockSpec((1, Cin), lambda b: (0, 0)),
        pl.BlockSpec((Cin, Cin), lambda b: (0, 0)),
        pl.BlockSpec((9 * Cin, Cout), lambda b: (0, 0)),
        pl.BlockSpec((bb, 1, Cout), lambda b: (b, 0, 0)),
        pl.BlockSpec((1, Cout), lambda b: (0, 0)),
        pl.BlockSpec((1, Cout), lambda b: (0, 0)),
        pl.BlockSpec((Cout, Cout), lambda b: (0, 0)),
        pl.BlockSpec((K2, Cout), lambda b: (0, 0)),
        pl.BlockSpec((1, Cout), lambda b: (0, 0)),
    ]

    flops = 2 * B * H * W * Cout * (9 * Cin + K2)
    bytes_accessed = (2 * B * H * W * Cin
                      + jnp.dtype(out_dtype).itemsize * B * H * W * Cout
                      + 2 * (w1p.size + w2p.size)
                      + 4 * (a1.size + a2.size + b1.size + b2.size))

    out_nhwc = pl.pallas_call(
        kernel,
        out_shape=jax.ShapeDtypeStruct((B, H, W, Cout), out_dtype),
        grid=(B // bb,),
        in_specs=in_specs,
        out_specs=pl.BlockSpec((bb, H, W, Cout), lambda b: (b, 0, 0, 0)),
        scratch_shapes=[pltpu.VMEM((bb, H + 2, W + 2, Cmax), jnp.bfloat16)],
        compiler_params=pltpu.CompilerParams(
            dimension_semantics=("parallel",),
            vmem_limit_bytes=_vmem_limit_bytes()),
        cost_estimate=pl.CostEstimate(
            flops=int(flops),
            transcendentals=int(B * H * W * (Cin + Cout)),
            bytes_accessed=int(bytes_accessed)),
    )(*inputs)
    return out_nhwc


def resblock_forward(x_nchw, params, temb=None, n_groups=32, eps=1e-6):
    """PyTorch-layout wrapper: (B, Cin, H, W) -> (B, Cout, H, W).

    If the surrounding model runs NHWC end-to-end, call `resblock_forward_nhwc`
    directly and skip these two transposes (pure extra HBM read+write)."""
    x_nhwc = jnp.transpose(x_nchw, (0, 2, 3, 1))
    out_nhwc = resblock_forward_nhwc(x_nhwc, params, temb=temb,
                                     n_groups=n_groups, eps=eps)
    return jnp.transpose(out_nhwc, (0, 3, 1, 2))


def _reference(x, params, temb, n_groups, eps):
    """Pure-JAX (f32) reference of the PyTorch ResBlock forward."""
    def gn(v, w, b):
        Bn, C, Hh, Ww = v.shape
        vg = v.reshape(Bn, n_groups, C // n_groups, Hh, Ww)
        m = vg.mean(axis=(2, 3, 4), keepdims=True)
        var = ((vg - m) ** 2).mean(axis=(2, 3, 4), keepdims=True)
        vn = ((vg - m) * jax.lax.rsqrt(var + eps)).reshape(Bn, C, Hh, Ww)
        return vn * w[None, :, None, None] + b[None, :, None, None]

    def conv(v, w, b, pad):
        y = jax.lax.conv_general_dilated(
            v, w, window_strides=(1, 1), padding=((pad, pad), (pad, pad)),
            dimension_numbers=("NCHW", "OIHW", "NCHW"))
        return y + b[None, :, None, None]

    silu = lambda t: t * jax.nn.sigmoid(t)

    residue = conv(x, params["res_w"], params["res_b"], 0) if "res_w" in params else x
    h = conv(silu(gn(x, params["gn1_w"], params["gn1_b"])),
             params["conv1_w"], params["conv1_b"], 1)
    if temb is not None:
        tb = silu(temb) @ params["temb_w"].T + params["temb_b"]
        h = h + tb[:, :, None, None]
    h = conv(silu(gn(h, params["gn2_w"], params["gn2_b"])),
             params["conv2_w"], params["conv2_b"], 1)
    return h + residue


if __name__ == "__main__":
    key = jax.random.PRNGKey(0)
    ks = jax.random.split(key, 20)

    B, Cin, Cout, H, W = 2, 32, 64, 16, 16
    n_groups, temb_ch, eps = 32, 16, 1e-6

    def conv_init(k, co, ci, kh, kw):
        bound = 1.0 / (ci * kh * kw) ** 0.5
        kw_, kb_ = jax.random.split(k)
        return (jax.random.uniform(kw_, (co, ci, kh, kw), jnp.float32, -bound, bound),
                jax.random.uniform(kb_, (co,), jnp.float32, -bound, bound))

    x = jax.random.normal(ks[0], (B, Cin, H, W), jnp.float32)
    temb = jax.random.normal(ks[1], (B, temb_ch), jnp.float32)

    conv1_w, conv1_b = conv_init(ks[2], Cout, Cin, 3, 3)
    conv2_w, conv2_b = conv_init(ks[3], Cout, Cout, 3, 3)
    res_w, res_b = conv_init(ks[4], Cout, Cin, 1, 1)
    tbound = 1.0 / temb_ch ** 0.5
    temb_w = jax.random.uniform(ks[5], (Cout, temb_ch), jnp.float32, -tbound, tbound)
    temb_b = jax.random.uniform(ks[6], (Cout,), jnp.float32, -tbound, tbound)

    params = dict(
        gn1_w=1.0 + 0.1 * jax.random.normal(ks[7], (Cin,), jnp.float32),
        gn1_b=0.1 * jax.random.normal(ks[8], (Cin,), jnp.float32),
        conv1_w=conv1_w, conv1_b=conv1_b,
        gn2_w=1.0 + 0.1 * jax.random.normal(ks[9], (Cout,), jnp.float32),
        gn2_b=0.1 * jax.random.normal(ks[10], (Cout,), jnp.float32),
        conv2_w=conv2_w, conv2_b=conv2_b,
        res_w=res_w, res_b=res_b,
        temb_w=temb_w, temb_b=temb_b,
    )

    # Case 1: in_channels != out_channels (fused 1x1 residual) + time embedding.
    out = jax.block_until_ready(
        resblock_forward(x, params, temb=temb, n_groups=n_groups, eps=eps))
    assert out.shape == (B, Cout, H, W)
    ref = _reference(x, params, temb, n_groups, eps)
    assert bool(jnp.allclose(out, ref, atol=3e-2, rtol=3e-2)), \
        float(jnp.max(jnp.abs(out - ref)))

    # Case 2: in_channels == out_channels (identity residual), no temb.
    c1w, c1b = conv_init(ks[11], Cin, Cin, 3, 3)
    c2w, c2b = conv_init(ks[12], Cin, Cin, 3, 3)
    params_id = dict(
        gn1_w=params["gn1_w"], gn1_b=params["gn1_b"],
        conv1_w=c1w, conv1_b=c1b,
        gn2_w=1.0 + 0.1 * jax.random.normal(ks[13], (Cin,), jnp.float32),
        gn2_b=0.1 * jax.random.normal(ks[14], (Cin,), jnp.float32),
        conv2_w=c2w, conv2_b=c2b,
    )
    out2 = jax.block_until_ready(
        resblock_forward(x, params_id, temb=None, n_groups=n_groups, eps=eps))
    assert out2.shape == (B, Cin, H, W)
    ref2 = _reference(x, params_id, None, n_groups, eps)
    assert bool(jnp.allclose(out2, ref2, atol=3e-2, rtol=3e-2)), \
        float(jnp.max(jnp.abs(out2 - ref2)))

    # Case 3: B=4 exercises the multi-image-per-grid-step path (bb=2).
    x4 = jax.random.normal(ks[15], (4, Cin, H, W), jnp.float32)
    temb4 = jax.random.normal(ks[16], (4, temb_ch), jnp.float32)
    out3 = jax.block_until_ready(
        resblock_forward(x4, params, temb=temb4, n_groups=n_groups, eps=eps))
    assert out3.shape == (4, Cout, H, W)
    ref3 = _reference(x4, params, temb4, n_groups, eps)
    assert bool(jnp.allclose(out3, ref3, atol=3e-2, rtol=3e-2)), \
        float(jnp.max(jnp.abs(out3 - ref3)))

    print("KERNEL_OK")
</pallas_src>

<mosaic_0001>
module attributes {stable_mosaic.version = 11 : i64} {
  func.func @kernel(%arg0: i32, %arg1: memref<1x16x16x32xbf16, #tpu.memory_space<vmem>>, %arg2: memref<1x32xf32, #tpu.memory_space<vmem>>, %arg3: memref<1x32xf32, #tpu.memory_space<vmem>>, %arg4: memref<32x32xf32, #tpu.memory_space<vmem>>, %arg5: memref<288x64xbf16, #tpu.memory_space<vmem>>, %arg6: memref<1x1x64xf32, #tpu.memory_space<vmem>>, %arg7: memref<1x64xf32, #tpu.memory_space<vmem>>, %arg8: memref<1x64xf32, #tpu.memory_space<vmem>>, %arg9: memref<64x64xf32, #tpu.memory_space<vmem>>, %arg10: memref<608x64xbf16, #tpu.memory_space<vmem>>, %arg11: memref<1x64xf32, #tpu.memory_space<vmem>>, %arg12: memref<1x16x16x64xf32, #tpu.memory_space<vmem>>, %arg13: memref<1x18x18x64xbf16, #tpu.memory_space<vmem>>) attributes {dimension_semantics = [#tpu.dimension_semantics<parallel>], iteration_bounds = array<i64: 2>, scalar_prefetch = 0 : i64, scratch_operands = 1 : i64, tpu.core_type = #tpu.core_type<tc>, window_params = [{transform_indices = @transform_0, window_bounds = array<i64: 1, 16, 16, 32>}, {pipeline_mode = #tpu.pipeline_mode<synchronous>, transform_indices = @transform_1, window_bounds = array<i64: 1, 32>}, {pipeline_mode = #tpu.pipeline_mode<synchronous>, transform_indices = @transform_2, window_bounds = array<i64: 1, 32>}, {pipeline_mode = #tpu.pipeline_mode<synchronous>, transform_indices = @transform_3, window_bounds = array<i64: 32, 32>}, {pipeline_mode = #tpu.pipeline_mode<synchronous>, transform_indices = @transform_4, window_bounds = array<i64: 288, 64>}, {transform_indices = @transform_5, window_bounds = array<i64: 1, 1, 64>}, {pipeline_mode = #tpu.pipeline_mode<synchronous>, transform_indices = @transform_6, window_bounds = array<i64: 1, 64>}, {pipeline_mode = #tpu.pipeline_mode<synchronous>, transform_indices = @transform_7, window_bounds = array<i64: 1, 64>}, {pipeline_mode = #tpu.pipeline_mode<synchronous>, transform_indices = @transform_8, window_bounds = array<i64: 64, 64>}, {pipeline_mode = #tpu.pipeline_mode<synchronous>, transform_indices = @transform_9, window_bounds = array<i64: 608, 64>}, {pipeline_mode = #tpu.pipeline_mode<synchronous>, transform_indices = @transform_10, window_bounds = array<i64: 1, 64>}, {transform_indices = @transform_11, window_bounds = array<i64: 1, 16, 16, 64>}]} {
    %cst = arith.constant 0.000000e+00 : bf16
    %0 = vector.broadcast %cst : bf16 to vector<1x1x18x64xbf16>
    %c0 = arith.constant 0 : index
    %c0_0 = arith.constant 0 : index
    %c0_1 = arith.constant 0 : index
    %c0_2 = arith.constant 0 : index
    %1 = vector.load %arg13[%c0, %c0_0, %c0_1, %c0_2] : memref<1x18x18x64xbf16, #tpu.memory_space<vmem>>, vector<1x1x18x64xbf16>
    tpu.vector_store %arg13[%c0, %c0_0, %c0_1, %c0_2], %0 {strides = array<i32>} : memref<1x18x18x64xbf16, #tpu.memory_space<vmem>>, vector<1x1x18x64xbf16>,
    %cst_3 = arith.constant 0.000000e+00 : bf16
    %2 = vector.broadcast %cst_3 : bf16 to vector<1x1x18x64xbf16>
    %c0_4 = arith.constant 0 : index
    %c17 = arith.constant 17 : index
    %c0_5 = arith.constant 0 : index
    %c0_6 = arith.constant 0 : index
    %3 = vector.load %arg13[%c0_4, %c17, %c0_5, %c0_6] : memref<1x18x18x64xbf16, #tpu.memory_space<vmem>>, vector<1x1x18x64xbf16>
    tpu.vector_store %arg13[%c0_4, %c17, %c0_5, %c0_6], %2 {strides = array<i32>} : memref<1x18x18x64xbf16, #tpu.memory_space<vmem>>, vector<1x1x18x64xbf16>,
    %cst_7 = arith.constant 0.000000e+00 : bf16
    %4 = vector.broadcast %cst_7 : bf16 to vector<1x18x1x64xbf16>
    %c0_8 = arith.constant 0 : index
    %c0_9 = arith.constant 0 : index
    %c0_10 = arith.constant 0 : index
    %c0_11 = arith.constant 0 : index
    %5 = vector.load %arg13[%c0_8, %c0_9, %c0_10, %c0_11] : memref<1x18x18x64xbf16, #tpu.memory_space<vmem>>, vector<1x18x1x64xbf16>
    tpu.vector_store %arg13[%c0_8, %c0_9, %c0_10, %c0_11], %4 {strides = array<i32>} : memref<1x18x18x64xbf16, #tpu.memory_space<vmem>>, vector<1x18x1x64xbf16>,
    %cst_12 = arith.constant 0.000000e+00 : bf16
    %6 = vector.broadcast %cst_12 : bf16 to vector<1x18x1x64xbf16>
    %c0_13 = arith.constant 0 : index
    %c0_14 = arith.constant 0 : index
    %c17_15 = arith.constant 17 : index
    %c0_16 = arith.constant 0 : index
    %7 = vector.load %arg13[%c0_13, %c0_14, %c17_15, %c0_16] : memref<1x18x18x64xbf16, #tpu.memory_space<vmem>>, vector<1x18x1x64xbf16>
    tpu.vector_store %arg13[%c0_13, %c0_14, %c17_15, %c0_16], %6 {strides = array<i32>} : memref<1x18x18x64xbf16, #tpu.memory_space<vmem>>, vector<1x18x1x64xbf16>,
    %c0_17 = arith.constant 0 : index
    %c0_18 = arith.constant 0 : index
    %c0_19 = arith.constant 0 : index
    %c0_20 = arith.constant 0 : index
    %8 = vector.load %arg1[%c0_17, %c0_18, %c0_19, %c0_20] : memref<1x16x16x32xbf16, #tpu.memory_space<vmem>>, vector<1x16x16x32xbf16>
    %9 = vector.shape_cast %8 : vector<1x16x16x32xbf16> to vector<1x256x32xbf16>
    %10 = arith.extf %9 : vector<1x256x32xbf16> to vector<1x256x32xf32>
    %cst_21 = arith.constant dense<0.000000e+00> : vector<1x32xf32>
    %11 = vector.multi_reduction <add>, %10, %cst_21 [1] : vector<1x256x32xf32> to vector<1x32xf32>
    %c0_22 = arith.constant 0 : index
    %c0_23 = arith.constant 0 : index
    %12 = vector.load %arg4[%c0_22, %c0_23] : memref<32x32xf32, #tpu.memory_space<vmem>>, vector<32x32xf32>
    %cst_24 = arith.constant dense<0.000000e+00> : vector<1x32xf32>
    %13 = tpu.matmul %11, %12, %cst_24 {dimension_numbers = #tpu.dot_dimension_numbers<[1], [0], [0], [1], [0, 0, 1, 1], [], []>} : vector<1x32xf32>, vector<32x32xf32>, vector<1x32xf32> -> vector<1x32xf32>
    %14 = vector.shape_cast %13 : vector<1x32xf32> to vector<1x1x32xf32>
    %15 = vector.broadcast %14 : vector<1x1x32xf32> to vector<1x256x32xf32>
    %16 = arith.subf %10, %15 : vector<1x256x32xf32>
    %17 = arith.mulf %16, %16 : vector<1x256x32xf32>
    %cst_25 = arith.constant dense<0.000000e+00> : vector<1x32xf32>
    %18 = vector.multi_reduction <add>, %17, %cst_25 [1] : vector<1x256x32xf32> to vector<1x32xf32>
    %c0_26 = arith.constant 0 : index
    %c0_27 = arith.constant 0 : index
    %19 = vector.load %arg4[%c0_26, %c0_27] : memref<32x32xf32, #tpu.memory_space<vmem>>, vector<32x32xf32>
    %cst_28 = arith.constant dense<0.000000e+00> : vector<1x32xf32>
    %20 = tpu.matmul %18, %19, %cst_28 {dimension_numbers = #tpu.dot_dimension_numbers<[1], [0], [0], [1], [0, 0, 1, 1], [], []>} : vector<1x32xf32>, vector<32x32xf32>, vector<1x32xf32> -> vector<1x32xf32>
    %cst_29 = arith.constant 9.99999997E-7 : f32
    %21 = vector.broadcast %cst_29 : f32 to vector<1x32xf32>
    %22 = arith.addf %20, %21 : vector<1x32xf32>
    %23 = math.rsqrt %22 : vector<1x32xf32>
    %c0_30 = arith.constant 0 : index
    %c0_31 = arith.constant 0 : index
    %24 = vector.load %arg2[%c0_30, %c0_31] : memref<1x32xf32, #tpu.memory_space<vmem>>, vector<1x32xf32>
    %25 = arith.mulf %23, %24 : vector<1x32xf32>
    %26 = vector.shape_cast %25 : vector<1x32xf32> to vector<1x1x32xf32>
    %27 = vector.broadcast %26 : vector<1x1x32xf32> to vector<1x256x32xf32>
    %28 = arith.mulf %16, %27 : vector<1x256x32xf32>
    %c0_32 = arith.constant 0 : index
    %c0_33 = arith.constant 0 : index
    %29 = vector.load %arg3[%c0_32, %c0_33] : memref<1x32xf32, #tpu.memory_space<vmem>>, vector<1x32xf32>
    %30 = vector.shape_cast %29 : vector<1x32xf32> to vector<1x1x32xf32>
    %31 = vector.broadcast %30 : vector<1x1x32xf32> to vector<1x256x32xf32>
    %32 = arith.addf %28, %31 : vector<1x256x32xf32>
    %33 = arith.negf %32 : vector<1x256x32xf32>
    %34 = math.exp %33 : vector<1x256x32xf32>
    %cst_34 = arith.constant 1.000000e+00 : f32
    %35 = vector.broadcast %cst_34 : f32 to vector<1x256x32xf32>
    %36 = arith.addf %35, %34 : vector<1x256x32xf32>
    %37 = arith.divf %35, %36 : vector<1x256x32xf32>
    %38 = arith.mulf %32, %37 : vector<1x256x32xf32>
    %39 = arith.truncf %38 : vector<1x256x32xf32> to vector<1x256x32xbf16>
    %40 = vector.shape_cast %39 : vector<1x256x32xbf16> to vector<1x16x16x32xbf16>
    %c0_35 = arith.constant 0 : index
    %c1 = arith.constant 1 : index
    %c1_36 = arith.constant 1 : index
    %c0_37 = arith.constant 0 : index
    %41 = vector.load %arg13[%c0_35, %c1, %c1_36, %c0_37] : memref<1x18x18x64xbf16, #tpu.memory_space<vmem>>, vector<1x16x16x32xbf16>
    tpu.vector_store %arg13[%c0_35, %c1, %c1_36, %c0_37], %40 {strides = array<i32>} : memref<1x18x18x64xbf16, #tpu.memory_space<vmem>>, vector<1x16x16x32xbf16>,
    %c0_38 = arith.constant 0 : index
    %c0_39 = arith.constant 0 : index
    %c0_40 = arith.constant 0 : index
    %c0_41 = arith.constant 0 : index
    %42 = vector.load %arg13[%c0_38, %c0_39, %c0_40, %c0_41] : memref<1x18x18x64xbf16, #tpu.memory_space<vmem>>, vector<1x16x16x32xbf16>
    %c0_42 = arith.constant 0 : index
    %c0_43 = arith.constant 0 : index
    %c1_44 = arith.constant 1 : index
    %c0_45 = arith.constant 0 : index
    %43 = vector.load %arg13[%c0_42, %c0_43, %c1_44, %c0_45] : memref<1x18x18x64xbf16, #tpu.memory_space<vmem>>, vector<1x16x16x32xbf16>
    %c0_46 = arith.constant 0 : index
    %c0_47 = arith.constant 0 : index
    %c2 = arith.constant 2 : index
    %c0_48 = arith.constant 0 : index
    %44 = vector.load %arg13[%c0_46, %c0_47, %c2, %c0_48] : memref<1x18x18x64xbf16, #tpu.memory_space<vmem>>, vector<1x16x16x32xbf16>
    %c0_49 = arith.constant 0 : index
    %c1_50 = arith.constant 1 : index
    %c0_51 = arith.constant 0 : index
    %c0_52 = arith.constant 0 : index
    %45 = vector.load %arg13[%c0_49, %c1_50, %c0_51, %c0_52] : memref<1x18x18x64xbf16, #tpu.memory_space<vmem>>, vector<1x16x16x32xbf16>
    %c0_53 = arith.constant 0 : index
    %c1_54 = arith.constant 1 : index
    %c1_55 = arith.constant 1 : index
    %c0_56 = arith.constant 0 : index
    %46 = vector.load %arg13[%c0_53, %c1_54, %c1_55, %c0_56] : memref<1x18x18x64xbf16, #tpu.memory_space<vmem>>, vector<1x16x16x32xbf16>
    %c0_57 = arith.constant 0 : index
    %c1_58 = arith.constant 1 : index
    %c2_59 = arith.constant 2 : index
    %c0_60 = arith.constant 0 : index
    %47 = vector.load %arg13[%c0_57, %c1_58, %c2_59, %c0_60] : memref<1x18x18x64xbf16, #tpu.memory_space<vmem>>, vector<1x16x16x32xbf16>
    %c0_61 = arith.constant 0 : index
    %c2_62 = arith.constant 2 : index
    %c0_63 = arith.constant 0 : index
    %c0_64 = arith.constant 0 : index
    %48 = vector.load %arg13[%c0_61, %c2_62, %c0_63, %c0_64] : memref<1x18x18x64xbf16, #tpu.memory_space<vmem>>, vector<1x16x16x32xbf16>
    %c0_65 = arith.constant 0 : index
    %c2_66 = arith.constant 2 : index
    %c1_67 = arith.constant 1 : index
    %c0_68 = arith.constant 0 : index
    %49 = vector.load %arg13[%c0_65, %c2_66, %c1_67, %c0_68] : memref<1x18x18x64xbf16, #tpu.memory_space<vmem>>, vector<1x16x16x32xbf16>
    %c0_69 = arith.constant 0 : index
    %c2_70 = arith.constant 2 : index
    %c2_71 = arith.constant 2 : index
    %c0_72 = arith.constant 0 : index
    %50 = vector.load %arg13[%c0_69, %c2_70, %c2_71, %c0_72] : memref<1x18x18x64xbf16, #tpu.memory_space<vmem>>, vector<1x16x16x32xbf16>
    %51 = tpu.concatenate %42, %43, %44, %45, %46, %47, %48, %49, %50 in 3 : vector<1x16x16x32xbf16>, vector<1x16x16x32xbf16>, vector<1x16x16x32xbf16>, vector<1x16x16x32xbf16>, vector<1x16x16x32xbf16>, vector<1x16x16x32xbf16>, vector<1x16x16x32xbf16>, vector<1x16x16x32xbf16>, vector<1x16x16x32xbf16> -> vector<1x16x16x288xbf16>
    %52 = vector.shape_cast %51 : vector<1x16x16x288xbf16> to vector<256x288xbf16>
    %c0_73 = arith.constant 0 : index
    %c0_74 = arith.constant 0 : index
    %53 = vector.load %arg5[%c0_73, %c0_74] : memref<288x64xbf16, #tpu.memory_space<vmem>>, vector<288x64xbf16>
    %cst_75 = arith.constant dense<0.000000e+00> : vector<256x64xf32>
    %54 = tpu.matmul %52, %53, %cst_75 {dimension_numbers = #tpu.dot_dimension_numbers<[1], [0], [0], [1], [0, 0, 1, 1], [], []>} : vector<256x288xbf16>, vector<288x64xbf16>, vector<256x64xf32> -> vector<256x64xf32>
    %55 = vector.shape_cast %54 : vector<256x64xf32> to vector<1x256x64xf32>
    %c0_76 = arith.constant 0 : index
    %c0_77 = arith.constant 0 : index
    %c0_78 = arith.constant 0 : index
    %56 = vector.load %arg6[%c0_76, %c0_77, %c0_78] : memref<1x1x64xf32, #tpu.memory_space<vmem>>, vector<1x1x64xf32>
    %57 = vector.broadcast %56 : vector<1x1x64xf32> to vector<1x256x64xf32>
    %58 = arith.addf %55, %57 : vector<1x256x64xf32>
    %cst_79 = arith.constant dense<0.000000e+00> : vector<1x64xf32>
    %59 = vector.multi_reduction <add>, %58, %cst_79 [1] : vector<1x256x64xf32> to vector<1x64xf32>
    %c0_80 = arith.constant 0 : index
    %c0_81 = arith.constant 0 : index
    %60 = vector.load %arg9[%c0_80, %c0_81] : memref<64x64xf32, #tpu.memory_space<vmem>>, vector<64x64xf32>
    %cst_82 = arith.constant dense<0.000000e+00> : vector<1x64xf32>
    %61 = tpu.matmul %59, %60, %cst_82 {dimension_numbers = #tpu.dot_dimension_numbers<[1], [0], [0], [1], [0, 0, 1, 1], [], []>} : vector<1x64xf32>, vector<64x64xf32>, vector<1x64xf32> -> vector<1x64xf32>
    %62 = vector.shape_cast %61 : vector<1x64xf32> to vector<1x1x64xf32>
    %63 = vector.broadcast %62 : vector<1x1x64xf32> to vector<1x256x64xf32>
    %64 = arith.subf %58, %63 : vector<1x256x64xf32>
    %65 = arith.mulf %64, %64 : vector<1x256x64xf32>
    %cst_83 = arith.constant dense<0.000000e+00> : vector<1x64xf32>
    %66 = vector.multi_reduction <add>, %65, %cst_83 [1] : vector<1x256x64xf32> to vector<1x64xf32>
    %c0_84 = arith.constant 0 : index
    %c0_85 = arith.constant 0 : index
    %67 = vector.load %arg9[%c0_84, %c0_85] : memref<64x64xf32, #tpu.memory_space<vmem>>, vector<64x64xf32>
    %cst_86 = arith.constant dense<0.000000e+00> : vector<1x64xf32>
    %68 = tpu.matmul %66, %67, %cst_86 {dimension_numbers = #tpu.dot_dimension_numbers<[1], [0], [0], [1], [0, 0, 1, 1], [], []>} : vector<1x64xf32>, vector<64x64xf32>, vector<1x64xf32> -> vector<1x64xf32>
    %cst_87 = arith.constant 9.99999997E-7 : f32
    %69 = vector.broadcast %cst_87 : f32 to vector<1x64xf32>
    %70 = arith.addf %68, %69 : vector<1x64xf32>
    %71 = math.rsqrt %70 : vector<1x64xf32>
    %c0_88 = arith.constant 0 : index
    %c0_89 = arith.constant 0 : index
    %72 = vector.load %arg7[%c0_88, %c0_89] : memref<1x64xf32, #tpu.memory_space<vmem>>, vector<1x64xf32>
    %73 = arith.mulf %71, %72 : vector<1x64xf32>
    %74 = vector.shape_cast %73 : vector<1x64xf32> to vector<1x1x64xf32>
    %75 = vector.broadcast %74 : vector<1x1x64xf32> to vector<1x256x64xf32>
    %76 = arith.mulf %64, %75 : vector<1x256x64xf32>
    %c0_90 = arith.constant 0 : index
    %c0_91 = arith.constant 0 : index
    %77 = vector.load %arg8[%c0_90, %c0_91] : memref<1x64xf32, #tpu.memory_space<vmem>>, vector<1x64xf32>
    %78 = vector.shape_cast %77 : vector<1x64xf32> to vector<1x1x64xf32>
    %79 = vector.broadcast %78 : vector<1x1x64xf32> to vector<1x256x64xf32>
    %80 = arith.addf %76, %79 : vector<1x256x64xf32>
    %81 = arith.negf %80 : vector<1x256x64xf32>
    %82 = math.exp %81 : vector<1x256x64xf32>
    %cst_92 = arith.constant 1.000000e+00 : f32
    %83 = vector.broadcast %cst_92 : f32 to vector<1x256x64xf32>
    %84 = arith.addf %83, %82 : vector<1x256x64xf32>
    %85 = arith.divf %83, %84 : vector<1x256x64xf32>
    %86 = arith.mulf %80, %85 : vector<1x256x64xf32>
    %87 = arith.truncf %86 : vector<1x256x64xf32> to vector<1x256x64xbf16>
    %88 = vector.shape_cast %87 : vector<1x256x64xbf16> to vector<1x16x16x64xbf16>
    %c0_93 = arith.constant 0 : index
    %c1_94 = arith.constant 1 : index
    %c1_95 = arith.constant 1 : index
    %c0_96 = arith.constant 0 : index
    %89 = vector.load %arg13[%c0_93, %c1_94, %c1_95, %c0_96] : memref<1x18x18x64xbf16, #tpu.memory_space<vmem>>, vector<1x16x16x64xbf16>
    tpu.vector_store %arg13[%c0_93, %c1_94, %c1_95, %c0_96], %88 {strides = array<i32>} : memref<1x18x18x64xbf16, #tpu.memory_space<vmem>>, vector<1x16x16x64xbf16>,
    %c0_97 = arith.constant 0 : index
    %c0_98 = arith.constant 0 : index
    %c0_99 = arith.constant 0 : index
    %c0_100 = arith.constant 0 : index
    %90 = vector.load %arg13[%c0_97, %c0_98, %c0_99, %c0_100] : memref<1x18x18x64xbf16, #tpu.memory_space<vmem>>, vector<1x16x16x64xbf16>
    %c0_101 = arith.constant 0 : index
    %c0_102 = arith.constant 0 : index
    %c1_103 = arith.constant 1 : index
    %c0_104 = arith.constant 0 : index
    %91 = vector.load %arg13[%c0_101, %c0_102, %c1_103, %c0_104] : memref<1x18x18x64xbf16, #tpu.memory_space<vmem>>, vector<1x16x16x64xbf16>
    %c0_105 = arith.constant 0 : index
    %c0_106 = arith.constant 0 : index
    %c2_107 = arith.constant 2 : index
    %c0_108 = arith.constant 0 : index
    %92 = vector.load %arg13[%c0_105, %c0_106, %c2_107, %c0_108] : memref<1x18x18x64xbf16, #tpu.memory_space<vmem>>, vector<1x16x16x64xbf16>
    %c0_109 = arith.constant 0 : index
    %c1_110 = arith.constant 1 : index
    %c0_111 = arith.constant 0 : index
    %c0_112 = arith.constant 0 : index
    %93 = vector.load %arg13[%c0_109, %c1_110, %c0_111, %c0_112] : memref<1x18x18x64xbf16, #tpu.memory_space<vmem>>, vector<1x16x16x64xbf16>
    %c0_113 = arith.constant 0 : index
    %c1_114 = arith.constant 1 : index
    %c1_115 = arith.constant 1 : index
    %c0_116 = arith.constant 0 : index
    %94 = vector.load %arg13[%c0_113, %c1_114, %c1_115, %c0_116] : memref<1x18x18x64xbf16, #tpu.memory_space<vmem>>, vector<1x16x16x64xbf16>
    %c0_117 = arith.constant 0 : index
    %c1_118 = arith.constant 1 : index
    %c2_119 = arith.constant 2 : index
    %c0_120 = arith.constant 0 : index
    %95 = vector.load %arg13[%c0_117, %c1_118, %c2_119, %c0_120] : memref<1x18x18x64xbf16, #tpu.memory_space<vmem>>, vector<1x16x16x64xbf16>
    %c0_121 = arith.constant 0 : index
    %c2_122 = arith.constant 2 : index
    %c0_123 = arith.constant 0 : index
    %c0_124 = arith.constant 0 : index
    %96 = vector.load %arg13[%c0_121, %c2_122, %c0_123, %c0_124] : memref<1x18x18x64xbf16, #tpu.memory_space<vmem>>, vector<1x16x16x64xbf16>
    %c0_125 = arith.constant 0 : index
    %c2_126 = arith.constant 2 : index
    %c1_127 = arith.constant 1 : index
    %c0_128 = arith.constant 0 : index
    %97 = vector.load %arg13[%c0_125, %c2_126, %c1_127, %c0_128] : memref<1x18x18x64xbf16, #tpu.memory_space<vmem>>, vector<1x16x16x64xbf16>
    %c0_129 = arith.constant 0 : index
    %c2_130 = arith.constant 2 : index
    %c2_131 = arith.constant 2 : index
    %c0_132 = arith.constant 0 : index
    %98 = vector.load %arg13[%c0_129, %c2_130, %c2_131, %c0_132] : memref<1x18x18x64xbf16, #tpu.memory_space<vmem>>, vector<1x16x16x64xbf16>
    %99 = tpu.concatenate %90, %91, %92, %93, %94, %95, %96, %97, %98, %8 in 3 : vector<1x16x16x64xbf16>, vector<1x16x16x64xbf16>, vector<1x16x16x64xbf16>, vector<1x16x16x64xbf16>, vector<1x16x16x64xbf16>, vector<1x16x16x64xbf16>, vector<1x16x16x64xbf16>, vector<1x16x16x64xbf16>, vector<1x16x16x64xbf16>, vector<1x16x16x32xbf16> -> vector<1x16x16x608xbf16>
    %100 = vector.shape_cast %99 : vector<1x16x16x608xbf16> to vector<256x608xbf16>
    %c0_133 = arith.constant 0 : index
    %c0_134 = arith.constant 0 : index
    %101 = vector.load %arg10[%c0_133, %c0_134] : memref<608x64xbf16, #tpu.memory_space<vmem>>, vector<608x64xbf16>
    %cst_135 = arith.constant dense<0.000000e+00> : vector<256x64xf32>
    %102 = tpu.matmul %100, %101, %cst_135 {dimension_numbers = #tpu.dot_dimension_numbers<[1], [0], [0], [1], [0, 0, 1, 1], [], []>} : vector<256x608xbf16>, vector<608x64xbf16>, vector<256x64xf32> -> vector<256x64xf32>
    %103 = vector.shape_cast %102 : vector<256x64xf32> to vector<1x256x64xf32>
    %c0_136 = arith.constant 0 : index
    %c0_137 = arith.constant 0 : index
    %104 = vector.load %arg11[%c0_136, %c0_137] : memref<1x64xf32, #tpu.memory_space<vmem>>, vector<1x64xf32>
    %105 = vector.shape_cast %104 : vector<1x64xf32> to vector<1x1x64xf32>
    %106 = vector.broadcast %105 : vector<1x1x64xf32> to vector<1x256x64xf32>
    %107 = arith.addf %103, %106 : vector<1x256x64xf32>
    %108 = vector.shape_cast %107 : vector<1x256x64xf32> to vector<1x16x16x64xf32>
    %c0_138 = arith.constant 0 : index
    %c0_139 = arith.constant 0 : index
    %c0_140 = arith.constant 0 : index
    %c0_141 = arith.constant 0 : index
    %109 = vector.load %arg12[%c0_138, %c0_139, %c0_140, %c0_141] : memref<1x16x16x64xf32, #tpu.memory_space<vmem>>, vector<1x16x16x64xf32>
    tpu.vector_store %arg12[%c0_138, %c0_139, %c0_140, %c0_141], %108 {strides = array<i32>} : memref<1x16x16x64xf32, #tpu.memory_space<vmem>>, vector<1x16x16x64xf32>,
    return
  }
  func.func @transform_0(%arg0: i32) -> (i32, i32, i32, i32) {
    %c0_i32 = arith.constant 0 : i32
    %c0_i32_0 = arith.constant 0 : i32
    %c0_i32_1 = arith.constant 0 : i32
    %c0_i32_2 = arith.constant 0 : i32
    return %arg0, %c0_i32, %c0_i32_0, %c0_i32_1 : i32, i32, i32, i32
  }
  func.func @transform_1(%arg0: i32) -> (i32, i32) {
    %c0_i32 = arith.constant 0 : i32
    %c0_i32_0 = arith.constant 0 : i32
    %c0_i32_1 = arith.constant 0 : i32
    return %c0_i32, %c0_i32_0 : i32, i32
  }
  func.func @transform_2(%arg0: i32) -> (i32, i32) {
    %c0_i32 = arith.constant 0 : i32
    %c0_i32_0 = arith.constant 0 : i32
    %c0_i32_1 = arith.constant 0 : i32
    return %c0_i32, %c0_i32_0 : i32, i32
  }
  func.func @transform_3(%arg0: i32) -> (i32, i32) {
    %c0_i32 = arith.constant 0 : i32
    %c0_i32_0 = arith.constant 0 : i32
    %c0_i32_1 = arith.constant 0 : i32
    return %c0_i32, %c0_i32_0 : i32, i32
  }
  func.func @transform_4(%arg0: i32) -> (i32, i32) {
    %c0_i32 = arith.constant 0 : i32
    %c0_i32_0 = arith.constant 0 : i32
    %c0_i32_1 = arith.constant 0 : i32
    return %c0_i32, %c0_i32_0 : i32, i32
  }
  func.func @transform_5(%arg0: i32) -> (i32, i32, i32) {
    %c0_i32 = arith.constant 0 : i32
    %c0_i32_0 = arith.constant 0 : i32
    %c0_i32_1 = arith.constant 0 : i32
    return %arg0, %c0_i32, %c0_i32_0 : i32, i32, i32
  }
  func.func @transform_6(%arg0: i32) -> (i32, i32) {
    %c0_i32 = arith.constant 0 : i32
    %c0_i32_0 = arith.constant 0 : i32
    %c0_i32_1 = arith.constant 0 : i32
    return %c0_i32, %c0_i32_0 : i32, i32
  }
  func.func @transform_7(%arg0: i32) -> (i32, i32) {
    %c0_i32 = arith.constant 0 : i32
    %c0_i32_0 = arith.constant 0 : i32
    %c0_i32_1 = arith.constant 0 : i32
    return %c0_i32, %c0_i32_0 : i32, i32
  }
  func.func @transform_8(%arg0: i32) -> (i32, i32) {
    %c0_i32 = arith.constant 0 : i32
    %c0_i32_0 = arith.constant 0 : i32
    %c0_i32_1 = arith.constant 0 : i32
    return %c0_i32, %c0_i32_0 : i32, i32
  }
  func.func @transform_9(%arg0: i32) -> (i32, i32) {
    %c0_i32 = arith.constant 0 : i32
    %c0_i32_0 = arith.constant 0 : i32
    %c0_i32_1 = arith.constant 0 : i32
    return %c0_i32, %c0_i32_0 : i32, i32
  }
  func.func @transform_10(%arg0: i32) -> (i32, i32) {
    %c0_i32 = arith.constant 0 : i32
    %c0_i32_0 = arith.constant 0 : i32
    %c0_i32_1 = arith.constant 0 : i32
    return %c0_i32, %c0_i32_0 : i32, i32
  }
  func.func @transform_11(%arg0: i32) -> (i32, i32, i32, i32) {
    %c0_i32 = arith.constant 0 : i32
    %c0_i32_0 = arith.constant 0 : i32
    %c0_i32_1 = arith.constant 0 : i32
    %c0_i32_2 = arith.constant 0 : i32
    return %arg0, %c0_i32, %c0_i32_0, %c0_i32_1 : i32, i32, i32, i32
  }
}

</mosaic_0001>

<llo_original>
// kernel: tpu_custom_call.1
$region0: #{tpu_custom_call.1}
  #allocation0 [shape = 'u32[]', space=smem, size = 0x4, offset = 0x4, fixed_abs, tag = 'smem constant byte address 0x4 - core index']
  #allocation1 [shape = 'u32[144,128]{1,0:T(1,128)}', space=vmem, size = 0x12000, scoped, tag = 'internal scratch']
  #allocation2 [shape = 'bf16[1,18,18,64]{3,2,1,0:T(8,128)(2,1)}', space=vmem, size = 0x1b000, scoped, tag = 'scratch operand']
  %s0 = inlined_call_operand.vmem [shape: bf16[2,16,16,32], index: 0, kind: input, shape index: {}]
  %s1 = inlined_call_operand.vmem [shape: f32[1,32], index: 1, kind: input, shape index: {}]
  %s2 = inlined_call_operand.vmem [shape: f32[1,32], index: 2, kind: input, shape index: {}]
  %s3 = inlined_call_operand.vmem [shape: f32[32,32], index: 3, kind: input, shape index: {}]
  %s4 = inlined_call_operand.vmem [shape: bf16[288,64], index: 4, kind: input, shape index: {}]
  %s5 = inlined_call_operand.vmem [shape: f32[2,1,64], index: 5, kind: input, shape index: {}]
  %s6 = inlined_call_operand.vmem [shape: f32[1,64], index: 6, kind: input, shape index: {}]
  %s7 = inlined_call_operand.vmem [shape: f32[1,64], index: 7, kind: input, shape index: {}]
  %s8 = inlined_call_operand.vmem [shape: f32[64,64], index: 8, kind: input, shape index: {}]
  %s9 = inlined_call_operand.vmem [shape: bf16[608,64], index: 9, kind: input, shape index: {}]
  %s10 = inlined_call_operand.vmem [shape: f32[1,64], index: 10, kind: input, shape index: {}]
  %s11 = inlined_call_operand.hbm [shape: f32[2,16,16,64], index: 11, kind: output, shape index: {}]
  %s12 = sld [smem:[#allocation0]]
  $region77: #{tpu_custom_call.1} parent=0
    _
  %s14 = ssub.s32 1, %s12
  %s15 = scalar_select 0, %s14, %s12
  $region1: #{tpu_custom_call.1} parent=0
    #allocation3 [shape = 'u8[262144]{0}', space=vmem, size = 0x40000, scoped, tag = 'output window, operand 0']
    #allocation4 [shape = 's32[2]{0}', space=sflag, size = 0x8, scoped, tag = 'scoped memory for tpu_custom_call.1']
    %16 = vsyncpa [#allocation4], 0
    %s17 = scalar_lea.sflag [#allocation4], 1
    %18 = vsyncpa %s17, 0
    loop: start=0, step=1, limit=4
    $region2: #{tpu_custom_call.1} parent=1 // loop_pre_header
      _
    $region3: #{tpu_custom_call.1} parent=1 // loop_header
      %s20 = sphi 0, %s24
      %p21 = scmp.ge.s32.totalorder %s20, 4
      %s30 = sphi 0, %s32
      %s33 = sphi 0, %s30
      %s34 = sphi 0, %s33
      %s50 = sphi 0, %s34
      %s54 = sphi 0, %s54
      %s56 = sphi 0, %s54
      %s57 = sphi 0, %s56
      %s71 = sphi 0, %s57
      %s75 = sphi 0, %s75
      %s77 = sphi 0, %s75
      %s78 = sphi 0, %s77
      %s92 = sphi 0, %s78
      %s96 = sphi 0, %s96
      %s98 = sphi 0, %s96
      %s99 = sphi 0, %s98
      %s113 = sphi 0, %s99
      %s117 = sphi 0, %s117
      %s119 = sphi 0, %s117
      %s120 = sphi 0, %s119
      %s134 = sphi 0, %s120
      %s140 = sphi 0, %s142
      %s143 = sphi 0, %s140
      %s144 = sphi 0, %s143
      %s160 = sphi 0, %s144
      %s164 = sphi 0, %s164
      %s166 = sphi 0, %s164
      %s167 = sphi 0, %s166
      %s181 = sphi 0, %s167
      %s185 = sphi 0, %s185
      %s187 = sphi 0, %s185
      %s188 = sphi 0, %s187
      %s202 = sphi 0, %s188
      %s206 = sphi 0, %s206
      %s208 = sphi 0, %s206
      %s209 = sphi 0, %s208
      %s223 = sphi 0, %s209
      %s227 = sphi 0, %s227
      %s229 = sphi 0, %s227
      %s230 = sphi 0, %s229
      %s244 = sphi 0, %s230
      %s248 = sphi 0, %s248
      %s250 = sphi 0, %s248
      %s251 = sphi 0, %s250
      %s265 = sphi 0, %s251
      %s271 = sphi 0, %s273
      %s274 = sphi 0, %s271
      %s275 = sphi 0, %s274
      %s291 = sphi 0, %s275
    $region4: #{tpu_custom_call.1} parent=1 // loop_header_branch
      %23 = sbr.rel (%p21) target = $region8
    $region5: #{tpu_custom_call.1} parent=1 // loop_body
      %s25 = ssub.s32 %s20, 1
      %s26 = ssub.s32 %s20, 2
      %s27 = sadd.s32 %s20, 1
      %s28 = ssub.s32 %s20, %s27
      %p29 = scmp.eq.s32.totalorder %s28, 0
      %s31 = sadd.s32 %s30, 1
      %s32 = scalar_select %p29, %s30, %s31
      %p35 = pneg %p29
      %p36 = scmp.eq.s32.totalorder %s20, 1
      %p37 = por %p35, %p36
      %p38 = scmp.ne.s32.totalorder %s30, %s33
      %p39 = scmp.eq.s32.totalorder %s20, 0
      %p40 = por %p38, %p39
      %p41 = scmp.ne.s32.totalorder %s30, %s33
      %p42 = scmp.eq.s32.totalorder %s25, 1
      %p43 = por %p41, %p42
      %p44 = scmp.ne.s32.totalorder %s33, %s34
      %p45 = scmp.eq.s32.totalorder %s25, 0
      %p46 = por %p44, %p45
      %p47 = scmp.ne.s32.totalorder %s33, %s34
      %p48 = scmp.eq.s32.totalorder %s26, 1
      %p49 = por %p47, %p48
      %p51 = scmp.ne.s32.totalorder %s34, %s50
      %p52 = scmp.eq.s32.totalorder %s26, 0
      %p53 = por %p51, %p52
      %s55 = sadd.s32 %s54, 1
      %p58 = scmp.eq.s32.totalorder %s20, 1
      %p59 = scmp.ne.s32.totalorder %s54, %s56
      %p60 = scmp.eq.s32.totalorder %s20, 0
      %p61 = por %p59, %p60
      %p62 = scmp.ne.s32.totalorder %s54, %s56
      %p63 = scmp.eq.s32.totalorder %s25, 1
      %p64 = por %p62, %p63
      %p65 = scmp.ne.s32.totalorder %s56, %s57
      %p66 = scmp.eq.s32.totalorder %s25, 0
      %p67 = por %p65, %p66
      %p68 = scmp.ne.s32.totalorder %s56, %s57
      %p69 = scmp.eq.s32.totalorder %s26, 1
      %p70 = por %p68, %p69
      %p72 = scmp.ne.s32.totalorder %s57, %s71
      %p73 = scmp.eq.s32.totalorder %s26, 0
      %p74 = por %p72, %p73
      %s76 = sadd.s32 %s75, 1
      %p79 = scmp.eq.s32.totalorder %s20, 1
      %p80 = scmp.ne.s32.totalorder %s75, %s77
      %p81 = scmp.eq.s32.totalorder %s20, 0
      %p82 = por %p80, %p81
      %p83 = scmp.ne.s32.totalorder %s75, %s77
      %p84 = scmp.eq.s32.totalorder %s25, 1
      %p85 = por %p83, %p84
      %p86 = scmp.ne.s32.totalorder %s77, %s78
      %p87 = scmp.eq.s32.totalorder %s25, 0
      %p88 = por %p86, %p87
      %p89 = scmp.ne.s32.totalorder %s77, %s78
      %p90 = scmp.eq.s32.totalorder %s26, 1
      %p91 = por %p89, %p90
      %p93 = scmp.ne.s32.totalorder %s78, %s92
      %p94 = scmp.eq.s32.totalorder %s26, 0
      %p95 = por %p93, %p94
      %s97 = sadd.s32 %s96, 1
      %p100 = scmp.eq.s32.totalorder %s20, 1
      %p101 = scmp.ne.s32.totalorder %s96, %s98
      %p102 = scmp.eq.s32.totalorder %s20, 0
      %p103 = por %p101, %p102
      %p104 = scmp.ne.s32.totalorder %s96, %s98
      %p105 = scmp.eq.s32.totalorder %s25, 1
      %p106 = por %p104, %p105
      %p107 = scmp.ne.s32.totalorder %s98, %s99
      %p108 = scmp.eq.s32.totalorder %s25, 0
      %p109 = por %p107, %p108
      %p110 = scmp.ne.s32.totalorder %s98, %s99
      %p111 = scmp.eq.s32.totalorder %s26, 1
      %p112 = por %p110, %p111
      %p114 = scmp.ne.s32.totalorder %s99, %s113
      %p115 = scmp.eq.s32.totalorder %s26, 0
      %p116 = por %p114, %p115
      %s118 = sadd.s32 %s117, 1
      %p121 = scmp.eq.s32.totalorder %s20, 1
      %p122 = scmp.ne.s32.totalorder %s117, %s119
      %p123 = scmp.eq.s32.totalorder %s20, 0
      %p124 = por %p122, %p123
      %p125 = scmp.ne.s32.totalorder %s117, %s119
      %p126 = scmp.eq.s32.totalorder %s25, 1
      %p127 = por %p125, %p126
      %p128 = scmp.ne.s32.totalorder %s119, %s120
      %p129 = scmp.eq.s32.totalorder %s25, 0
      %p130 = por %p128, %p129
      %p131 = scmp.ne.s32.totalorder %s119, %s120
      %p132 = scmp.eq.s32.totalorder %s26, 1
      %p133 = por %p131, %p132
      %p135 = scmp.ne.s32.totalorder %s120, %s134
      %p136 = scmp.eq.s32.totalorder %s26, 0
      %p137 = por %p135, %p136
      %s138 = ssub.s32 %s20, %s27
      %p139 = scmp.eq.s32.totalorder %s138, 0
      %s141 = sadd.s32 %s140, 1
      %s142 = scalar_select %p139, %s140, %s141
      %p145 = pneg %p139
      %p146 = scmp.eq.s32.totalorder %s20, 1
      %p147 = por %p145, %p146
      %p148 = scmp.ne.s32.totalorder %s140, %s143
      %p149 = scmp.eq.s32.totalorder %s20, 0
      %p150 = por %p148, %p149
      %p151 = scmp.ne.s32.totalorder %s140, %s143
      %p152 = scmp.eq.s32.totalorder %s25, 1
      %p153 = por %p151, %p152
      %p154 = scmp.ne.s32.totalorder %s143, %s144
      %p155 = scmp.eq.s32.totalorder %s25, 0
      %p156 = por %p154, %p155
      %p157 = scmp.ne.s32.totalorder %s143, %s144
      %p158 = scmp.eq.s32.totalorder %s26, 1
      %p159 = por %p157, %p158
      %p161 = scmp.ne.s32.totalorder %s144, %s160
      %p162 = scmp.eq.s32.totalorder %s26, 0
      %p163 = por %p161, %p162
      %s165 = sadd.s32 %s164, 1
      %p168 = scmp.eq.s32.totalorder %s20, 1
      %p169 = scmp.ne.s32.totalorder %s164, %s166
      %p170 = scmp.eq.s32.totalorder %s20, 0
      %p171 = por %p169, %p170
      %p172 = scmp.ne.s32.totalorder %s164, %s166
      %p173 = scmp.eq.s32.totalorder %s25, 1
      %p174 = por %p172, %p173
      %p175 = scmp.ne.s32.totalorder %s166, %s167
      %p176 = scmp.eq.s32.totalorder %s25, 0
      %p177 = por %p175, %p176
      %p178 = scmp.ne.s32.totalorder %s166, %s167
      %p179 = scmp.eq.s32.totalorder %s26, 1
      %p180 = por %p178, %p179
      %p182 = scmp.ne.s32.totalorder %s167, %s181
      %p183 = scmp.eq.s32.totalorder %s26, 0
      %p184 = por %p182, %p183
      %s186 = sadd.s32 %s185, 1
      %p189 = scmp.eq.s32.totalorder %s20, 1
      %p190 = scmp.ne.s32.totalorder %s185, %s187
      %p191 = scmp.eq.s32.totalorder %s20, 0
      %p192 = por %p190, %p191
      %p193 = scmp.ne.s32.totalorder %s185, %s187
      %p194 = scmp.eq.s32.totalorder %s25, 1
      %p195 = por %p193, %p194
      %p196 = scmp.ne.s32.totalorder %s187, %s188
      %p197 = scmp.eq.s32.totalorder %s25, 0
      %p198 = por %p196, %p197
      %p199 = scmp.ne.s32.totalorder %s187, %s188
      %p200 = scmp.eq.s32.totalorder %s26, 1
      %p201 = por %p199, %p200
      %p203 = scmp.ne.s32.totalorder %s188, %s202
      %p204 = scmp.eq.s32.totalorder %s26, 0
      %p205 = por %p203, %p204
      %s207 = sadd.s32 %s206, 1
      %p210 = scmp.eq.s32.totalorder %s20, 1
      %p211 = scmp.ne.s32.totalorder %s206, %s208
      %p212 = scmp.eq.s32.totalorder %s20, 0
      %p213 = por %p211, %p212
      %p214 = scmp.ne.s32.totalorder %s206, %s208
      %p215 = scmp.eq.s32.totalorder %s25, 1
      %p216 = por %p214, %p215
      %p217 = scmp.ne.s32.totalorder %s208, %s209
      %p218 = scmp.eq.s32.totalorder %s25, 0
      %p219 = por %p217, %p218
      %p220 = scmp.ne.s32.totalorder %s208, %s209
      %p221 = scmp.eq.s32.totalorder %s26, 1
      %p222 = por %p220, %p221
      %p224 = scmp.ne.s32.totalorder %s209, %s223
      %p225 = scmp.eq.s32.totalorder %s26, 0
      %p226 = por %p224, %p225
      %s228 = sadd.s32 %s227, 1
      %p231 = scmp.eq.s32.totalorder %s20, 1
      %p232 = scmp.ne.s32.totalorder %s227, %s229
      %p233 = scmp.eq.s32.totalorder %s20, 0
      %p234 = por %p232, %p233
      %p235 = scmp.ne.s32.totalorder %s227, %s229
      %p236 = scmp.eq.s32.totalorder %s25, 1
      %p237 = por %p235, %p236
      %p238 = scmp.ne.s32.totalorder %s229, %s230
      %p239 = scmp.eq.s32.totalorder %s25, 0
      %p240 = por %p238, %p239
      %p241 = scmp.ne.s32.totalorder %s229, %s230
      %p242 = scmp.eq.s32.totalorder %s26, 1
      %p243 = por %p241, %p242
      %p245 = scmp.ne.s32.totalorder %s230, %s244
      %p246 = scmp.eq.s32.totalorder %s26, 0
      %p247 = por %p245, %p246
      %s249 = sadd.s32 %s248, 1
      %p252 = scmp.eq.s32.totalorder %s20, 1
      %p253 = scmp.ne.s32.totalorder %s248, %s250
      %p254 = scmp.eq.s32.totalorder %s20, 0
      %p255 = por %p253, %p254
      %p256 = scmp.ne.s32.totalorder %s248, %s250
      %p257 = scmp.eq.s32.totalorder %s25, 1
      %p258 = por %p256, %p257
      %p259 = scmp.ne.s32.totalorder %s250, %s251
      %p260 = scmp.eq.s32.totalorder %s25, 0
      %p261 = por %p259, %p260
      %p262 = scmp.ne.s32.totalorder %s250, %s251
      %p263 = scmp.eq.s32.totalorder %s26, 1
      %p264 = por %p262, %p263
      %p266 = scmp.ne.s32.totalorder %s251, %s265
      %p267 = scmp.eq.s32.totalorder %s26, 0
      %p268 = por %p266, %p267
      %s269 = ssub.s32 %s20, %s27
      %p270 = scmp.eq.s32.totalorder %s269, 0
      %s272 = sadd.s32 %s271, 1
      %s273 = scalar_select %p270, %s271, %s272
      %p276 = pneg %p270
      %p277 = scmp.eq.s32.totalorder %s20, 1
      %p278 = por %p276, %p277
      %p279 = scmp.ne.s32.totalorder %s271, %s274
      %p280 = scmp.eq.s32.totalorder %s20, 0
      %p281 = por %p279, %p280
      %p282 = scmp.ne.s32.totalorder %s271, %s274
      %p283 = scmp.eq.s32.totalorder %s25, 1
      %p284 = por %p282, %p283
      %p285 = scmp.ne.s32.totalorder %s274, %s275
      %p286 = scmp.eq.s32.totalorder %s25, 0
      %p287 = por %p285, %p286
      %p288 = scmp.ne.s32.totalorder %s274, %s275
      %p289 = scmp.eq.s32.totalorder %s26, 1
      %p290 = por %p288, %p289
      %p292 = scmp.ne.s32.totalorder %s275, %s291
      %p293 = scmp.eq.s32.totalorder %s26, 0
      %p294 = por %p292, %p293
      %p295 = scmp.le.s32.totalorder 1, %s20
      %p296 = scmp.lt.s32.totalorder %s20, 3
      %p297 = pnand %p295, %p296
      %p298 = pneg %p297
      // Predicated region
      $region9: #{tpu_custom_call.1} parent=5 // pred_check
        _
      $region10: #{tpu_custom_call.1} parent=5 // pred_check_branch
        %300 = sbr.rel (%p297) target = $region12
      $region11: #{tpu_custom_call.1} parent=5 // pred_region
        %s301 = ssub.s32 %s20, 1
        // Predicated region
        $region13: #{tpu_custom_call.1} parent=11 // pred_check
          %p302 = pneg %p67
        $region14: #{tpu_custom_call.1} parent=11 // pred_check_branch
          %304 = sbr.rel (%p302) target = $region16
        $region15: #{tpu_custom_call.1} parent=11 // pred_region
          _
        $region16: #{tpu_custom_call.1} parent=11 // pred_fallthru
          _
        // Predicated region
        $region17: #{tpu_custom_call.1} parent=11 // pred_check
          %p305 = pneg %p88
        $region18: #{tpu_custom_call.1} parent=11 // pred_check_branch
          %307 = sbr.rel (%p305) target = $region20
        $region19: #{tpu_custom_call.1} parent=11 // pred_region
          _
        $region20: #{tpu_custom_call.1} parent=11 // pred_fallthru
          _
        // Predicated region
        $region21: #{tpu_custom_call.1} parent=11 // pred_check
          %p308 = pneg %p109
        $region22: #{tpu_custom_call.1} parent=11 // pred_check_branch
          %310 = sbr.rel (%p308) target = $region24
        $region23: #{tpu_custom_call.1} parent=11 // pred_region
          _
        $region24: #{tpu_custom_call.1} parent=11 // pred_fallthru
          _
        // Predicated region
        $region25: #{tpu_custom_call.1} parent=11 // pred_check
          %p311 = pneg %p130
        $region26: #{tpu_custom_call.1} parent=11 // pred_check_branch
          %313 = sbr.rel (%p311) target = $region28
        $region27: #{tpu_custom_call.1} parent=11 // pred_region
          _
        $region28: #{tpu_custom_call.1} parent=11 // pred_fallthru
          _
        // Predicated region
        $region29: #{tpu_custom_call.1} parent=11 // pred_check
          %p314 = pneg %p177
        $region30: #{tpu_custom_call.1} parent=11 // pred_check_branch
          %316 = sbr.rel (%p314) target = $region32
        $region31: #{tpu_custom_call.1} parent=11 // pred_region
          _
        $region32: #{tpu_custom_call.1} parent=11 // pred_fallthru
          _
        // Predicated region
        $region33: #{tpu_custom_call.1} parent=11 // pred_check
          %p317 = pneg %p198
        $region34: #{tpu_custom_call.1} parent=11 // pred_check_branch
          %319 = sbr.rel (%p317) target = $region36
        $region35: #{tpu_custom_call.1} parent=11 // pred_region
          _
        $region36: #{tpu_custom_call.1} parent=11 // pred_fallthru
          _
        // Predicated region
        $region37: #{tpu_custom_call.1} parent=11 // pred_check
          %p320 = pneg %p219
        $region38: #{tpu_custom_call.1} parent=11 // pred_check_branch
          %322 = sbr.rel (%p320) target = $region40
        $region39: #{tpu_custom_call.1} parent=11 // pred_region
          _
        $region40: #{tpu_custom_call.1} parent=11 // pred_fallthru
          _
        // Predicated region
        $region41: #{tpu_custom_call.1} parent=11 // pred_check
          %p323 = pneg %p240
        $region42: #{tpu_custom_call.1} parent=11 // pred_check_branch
          %325 = sbr.rel (%p323) target = $region44
        $region43: #{tpu_custom_call.1} parent=11 // pred_region
          _
        $region44: #{tpu_custom_call.1} parent=11 // pred_fallthru
          _
        // Predicated region
        $region45: #{tpu_custom_call.1} parent=11 // pred_check
          %p326 = pneg %p261
        $region46: #{tpu_custom_call.1} parent=11 // pred_check_branch
          %328 = sbr.rel (%p326) target = $region48
        $region47: #{tpu_custom_call.1} parent=11 // pred_region
          _
        $region48: #{tpu_custom_call.1} parent=11 // pred_fallthru
          _
      $region12: #{tpu_custom_call.1} parent=5 // pred_fallthru
        _
      %p329 = scmp.lt.s32.totalorder %s20, 2
      // Predicated region
      $region49: #{tpu_custom_call.1} parent=5 // pred_check
        %p330 = pneg %p329
      $region50: #{tpu_custom_call.1} parent=5 // pred_check_branch
        %332 = sbr.rel (%p330) target = $region52
      $region51: #{tpu_custom_call.1} parent=5 // pred_region
        // Predicated region
        $region53: #{tpu_custom_call.1} parent=51 // pred_check
          %p333 = pneg %p40
        $region54: #{tpu_custom_call.1} parent=51 // pred_check_branch
          %335 = sbr.rel (%p333) target = $region56
        $region55: #{tpu_custom_call.1} parent=51 // pred_region
          %p336 = scmp.lt.s32.totalorder %s20, 1
          %s337 = scalar_select %p336, %s20, 1
          %s338 = smul.addr %s337, 32
          %s339 = smul.addr %s338, 4
          %s340 = scalar_lea.vmem %s0, %s339
        $region56: #{tpu_custom_call.1} parent=51 // pred_fallthru
          _
        // Predicated region
        $region57: #{tpu_custom_call.1} parent=51 // pred_check
          %p341 = pneg %p150
        $region58: #{tpu_custom_call.1} parent=51 // pred_check_branch
          %343 = sbr.rel (%p341) target = $region60
        $region59: #{tpu_custom_call.1} parent=51 // pred_region
          %p344 = scmp.lt.s32.totalorder %s20, 1
          %s345 = scalar_select %p344, %s20, 1
          %s346 = scalar_lea.vmem %s5, %s345
        $region60: #{tpu_custom_call.1} parent=51 // pred_fallthru
          _
      $region52: #{tpu_custom_call.1} parent=5 // pred_fallthru
        _
      %p347 = scmp.le.s32.totalorder 1, %s20
      %p348 = scmp.lt.s32.totalorder %s20, 3
      %p349 = pnand %p347, %p348
      %p350 = pneg %p349
      // Predicated region
      $region61: #{tpu_custom_call.1} parent=5 // pred_check
        _
      $region62: #{tpu_custom_call.1} parent=5 // pred_check_branch
        %352 = sbr.rel (%p349) target = $region64
      $region63: #{tpu_custom_call.1} parent=5 // pred_region
        %s353 = ssub.s32 %s20, 1
        %p354 = scmp.lt.s32.totalorder %s25, 1
        %s355 = scalar_select %p354, %s25, 1
        %s356 = smul.addr %s355, 32
        %s357 = smul.addr %s356, 4
        %s358 = scalar_lea.vmem %s0, %s357
        %p359 = pneg %p46
        %p360 = pneg %p43
        %p361 = pneg %p67
        %p362 = pneg %p64
        %p363 = pneg %p88
        %p364 = pneg %p85
        %p365 = pneg %p109
        %p366 = pneg %p106
        %p367 = pneg %p130
        %p368 = pneg %p127
        %p369 = scmp.lt.s32.totalorder %s25, 1
        %s370 = scalar_select %p369, %s25, 1
        %s371 = scalar_lea.vmem %s5, %s370
        %p372 = pneg %p156
        %p373 = pneg %p153
        %p374 = pneg %p177
        %p375 = pneg %p174
        %p376 = pneg %p198
        %p377 = pneg %p195
        %p378 = pneg %p219
        %p379 = pneg %p216
        %p380 = pneg %p240
        %p381 = pneg %p237
        %p382 = pneg %p261
        %p383 = pneg %p258
        %p384 = pneg %p287
        %p385 = pneg %p284
        %s386 = sand.u32 %s274, 1
        %s387 = scalar_lea.sflag [#allocation4], %s386
        %s388 = sand.u32 %s274, 1
        %s389 = smul.addr %s388, 256
        %s390 = scalar_lea.vmem [#allocation3], %s389
        %p391 = scmp.lt.s32.totalorder %s25, 1
        %s392 = scalar_select %p391, %s25, 1
        %s393 = smul.addr %s392, 32
        %s394 = smul.addr %s393, 4
        %s395 = scalar_lea.vmem %s0, %s394
        %p396 = scmp.lt.s32.totalorder %s25, 1
        %s397 = scalar_select %p396, %s25, 1
        %s398 = scalar_lea.vmem %s5, %s397
        %vm400 = vcmask 519168
        %401 = vst.msk [vmem:[#allocation2] sm:$0xf] %vm400, 0
        %402 = vst.msk [vmem:[#allocation2 + $0x4] sm:$0xf] %vm400, 0
        %vm403 = vcmask 516096
        %404 = vst.msk [vmem:[#allocation2 + $0x8] sm:$0x1] %vm403, 0
        %s405 = scalar_lea.vmem [#allocation2], 204
        %406 = vst.msk [vmem:[%s405] sm:$0xf] %vm400, 0
        %407 = vst.msk [vmem:[%s405 + $0x4] sm:$0xf] %vm400, 0
        %408 = vst.msk [vmem:[%s405 + $0x8] sm:$0x1] %vm403, 0
        %vm409 = vcmask 516096
        %vm410 = vsmask.f32 256
        %vm411 = vmand %vm409, %vm410
        %v412 = vld [vmem:[#allocation2] sm:$0x1]
        %v413 = vsel %vm411, 0, %v412
        %414 = vst [vmem:[#allocation2] sm:$0x1] %v413
        %v415 = vld [vmem:[#allocation2 + $0xc] sm:$0x1]
        %v416 = vsel %vm411, 0, %v415
        %417 = vst [vmem:[#allocation2 + $0xc] sm:$0x1] %v416
        %v418 = vld [vmem:[#allocation2 + $0x18] sm:$0x1]
        %v419 = vsel %vm411, 0, %v418
        %420 = vst [vmem:[#allocation2 + $0x18] sm:$0x1] %v419
        %v421 = vld [vmem:[#allocation2 + $0x24] sm:$0x1]
        %v422 = vsel %vm411, 0, %v421
        %423 = vst [vmem:[#allocation2 + $0x24] sm:$0x1] %v422
        %v424 = vld [vmem:[#allocation2 + $0x30] sm:$0x1]
        %v425 = vsel %vm411, 0, %v424
        %426 = vst [vmem:[#allocation2 + $0x30] sm:$0x1] %v425
        %v427 = vld [vmem:[#allocation2 + $0x3c] sm:$0x1]
        %v428 = vsel %vm411, 0, %v427
        %429 = vst [vmem:[#allocation2 + $0x3c] sm:$0x1] %v428
        %v430 = vld [vmem:[#allocation2 + $0x48] sm:$0x1]
        %v431 = vsel %vm411, 0, %v430
        %432 = vst [vmem:[#allocation2 + $0x48] sm:$0x1] %v431
        %v433 = vld [vmem:[#allocation2 + $0x54] sm:$0x1]
        %v434 = vsel %vm411, 0, %v433
        %435 = vst [vmem:[#allocation2 + $0x54] sm:$0x1] %v434
        %v436 = vld [vmem:[#allocation2 + $0x60] sm:$0x1]
        %v437 = vsel %vm411, 0, %v436
        %438 = vst [vmem:[#allocation2 + $0x60] sm:$0x1] %v437
        %v439 = vld [vmem:[#allocation2 + $0x6c] sm:$0x1]
        %v440 = vsel %vm411, 0, %v439
        %441 = vst [vmem:[#allocation2 + $0x6c] sm:$0x1] %v440
        %v442 = vld [vmem:[#allocation2 + $0x78] sm:$0x1]
        %v443 = vsel %vm411, 0, %v442
        %444 = vst [vmem:[#allocation2 + $0x78] sm:$0x1] %v443
        %v445 = vld [vmem:[#allocation2 + $0x84] sm:$0x1]
        %v446 = vsel %vm411, 0, %v445
        %447 = vst [vmem:[#allocation2 + $0x84] sm:$0x1] %v446
        %v448 = vld [vmem:[#allocation2 + $0x90] sm:$0x1]
        %v449 = vsel %vm411, 0, %v448
        %450 = vst [vmem:[#allocation2 + $0x90] sm:$0x1] %v449
        %v451 = vld [vmem:[#allocation2 + $0x9c] sm:$0x1]
        %v452 = vsel %vm411, 0, %v451
        %453 = vst [vmem:[#allocation2 + $0x9c] sm:$0x1] %v452
        %v454 = vld [vmem:[#allocation2 + $0xa8] sm:$0x1]
        %v455 = vsel %vm411, 0, %v454
        %456 = vst [vmem:[#allocation2 + $0xa8] sm:$0x1] %v455
        %v457 = vld [vmem:[#allocation2 + $0xb4] sm:$0x1]
        %v458 = vsel %vm411, 0, %v457
        %459 = vst [vmem:[#allocation2 + $0xb4] sm:$0x1] %v458
        %v460 = vld [vmem:[#allocation2 + $0xc0] sm:$0x1]
        %v461 = vsel %vm411, 0, %v460
        %462 = vst [vmem:[#allocation2 + $0xc0] sm:$0x1] %v461
        %v463 = vld [vmem:[#allocation2 + $0xcc] sm:$0x1]
        %v464 = vsel %vm411, 0, %v463
        %465 = vst [vmem:[#allocation2 + $0xcc] sm:$0x1] %v464
        %vm466 = vsmask.f32 7938
        %vm467 = vmand %vm409, %vm466
        %v468 = vld [vmem:[#allocation2 + $0x8] sm:$0x1]
        %v469 = vsel %vm467, 0, %v468
        %470 = vst [vmem:[#allocation2 + $0x8] sm:$0x1] %v469
        %v471 = vld [vmem:[#allocation2 + $0x14] sm:$0x1]
        %v472 = vsel %vm467, 0, %v471
        %473 = vst [vmem:[#allocation2 + $0x14] sm:$0x1] %v472
        %v474 = vld [vmem:[#allocation2 + $0x20] sm:$0x1]
        %v475 = vsel %vm467, 0, %v474
        %476 = vst [vmem:[#allocation2 + $0x20] sm:$0x1] %v475
        %v477 = vld [vmem:[#allocation2 + $0x2c] sm:$0x1]
        %v478 = vsel %vm467, 0, %v477
        %479 = vst [vmem:[#allocation2 + $0x2c] sm:$0x1] %v478
        %v480 = vld [vmem:[#allocation2 + $0x38] sm:$0x1]
        %v481 = vsel %vm467, 0, %v480
        %482 = vst [vmem:[#allocation2 + $0x38] sm:$0x1] %v481
        %v483 = vld [vmem:[#allocation2 + $0x44] sm:$0x1]
        %v484 = vsel %vm467, 0, %v483
        %485 = vst [vmem:[#allocation2 + $0x44] sm:$0x1] %v484
        %v486 = vld [vmem:[#allocation2 + $0x50] sm:$0x1]
        %v487 = vsel %vm467, 0, %v486
        %488 = vst [vmem:[#allocation2 + $0x50] sm:$0x1] %v487
        %v489 = vld [vmem:[#allocation2 + $0x5c] sm:$0x1]
        %v490 = vsel %vm467, 0, %v489
        %491 = vst [vmem:[#allocation2 + $0x5c] sm:$0x1] %v490
        %v492 = vld [vmem:[#allocation2 + $0x68] sm:$0x1]
        %v493 = vsel %vm467, 0, %v492
        %494 = vst [vmem:[#allocation2 + $0x68] sm:$0x1] %v493
        %v495 = vld [vmem:[#allocation2 + $0x74] sm:$0x1]
        %v496 = vsel %vm467, 0, %v495
        %497 = vst [vmem:[#allocation2 + $0x74] sm:$0x1] %v496
        %v498 = vld [vmem:[#allocation2 + $0x80] sm:$0x1]
        %v499 = vsel %vm467, 0, %v498
        %500 = vst [vmem:[#allocation2 + $0x80] sm:$0x1] %v499
        %v501 = vld [vmem:[#allocation2 + $0x8c] sm:$0x1]
        %v502 = vsel %vm467, 0, %v501
        %503 = vst [vmem:[#allocation2 + $0x8c] sm:$0x1] %v502
        %v504 = vld [vmem:[#allocation2 + $0x98] sm:$0x1]
        %v505 = vsel %vm467, 0, %v504
        %506 = vst [vmem:[#allocation2 + $0x98] sm:$0x1] %v505
        %v507 = vld [vmem:[#allocation2 + $0xa4] sm:$0x1]
        %v508 = vsel %vm467, 0, %v507
        %509 = vst [vmem:[#allocation2 + $0xa4] sm:$0x1] %v508
        %v510 = vld [vmem:[#allocation2 + $0xb0] sm:$0x1]
        %v511 = vsel %vm467, 0, %v510
        %512 = vst [vmem:[#allocation2 + $0xb0] sm:$0x1] %v511
        %v513 = vld [vmem:[#allocation2 + $0xbc] sm:$0x1]
        %v514 = vsel %vm467, 0, %v513
        %515 = vst [vmem:[#allocation2 + $0xbc] sm:$0x1] %v514
        %v516 = vld [vmem:[#allocation2 + $0xc8] sm:$0x1]
        %v517 = vsel %vm467, 0, %v516
        %518 = vst [vmem:[#allocation2 + $0xc8] sm:$0x1] %v517
        %v519 = vld [vmem:[#allocation2 + $0xd4] sm:$0x1]
        %v520 = vsel %vm467, 0, %v519
        %521 = vst [vmem:[#allocation2 + $0xd4] sm:$0x1] %v520
        %v522 = vld [vmem:[%s395] sm:$0xf]
        %v523 = vld [vmem:[%s395 + $0x4] sm:$0xf]
        %v524 = vld [vmem:[%s395 + $0x8] sm:$0xf]
        %v525 = vld [vmem:[%s395 + $0xc] sm:$0xf]
        %v526 = vld [vmem:[%s395 + $0x10] sm:$0xf]
        %v527 = vld [vmem:[%s395 + $0x14] sm:$0xf]
        %v528 = vld [vmem:[%s395 + $0x18] sm:$0xf]
        %v529 = vld [vmem:[%s395 + $0x1c] sm:$0xf]
        %v530 = vld [vmem:[%s395 + $0x20] sm:$0xf]
        %v531 = vld [vmem:[%s395 + $0x24] sm:$0xf]
        %v532 = vld [vmem:[%s395 + $0x28] sm:$0xf]
        %v533 = vld [vmem:[%s395 + $0x2c] sm:$0xf]
        %v534 = vld [vmem:[%s395 + $0x30] sm:$0xf]
        %v535 = vld [vmem:[%s395 + $0x34] sm:$0xf]
        %v536 = vld [vmem:[%s395 + $0x38] sm:$0xf]
        %v537 = vld [vmem:[%s395 + $0x3c] sm:$0xf]
        %v538 = vld [vmem:[%s395 + $0x40] sm:$0xf]
        %v539 = vld [vmem:[%s395 + $0x44] sm:$0xf]
        %v540 = vld [vmem:[%s395 + $0x48] sm:$0xf]
        %v541 = vld [vmem:[%s395 + $0x4c] sm:$0xf]
        %v542 = vld [vmem:[%s395 + $0x50] sm:$0xf]
        %v543 = vld [vmem:[%s395 + $0x54] sm:$0xf]
        %v544 = vld [vmem:[%s395 + $0x58] sm:$0xf]
        %v545 = vld [vmem:[%s395 + $0x5c] sm:$0xf]
        %v546 = vld [vmem:[%s395 + $0x60] sm:$0xf]
        %v547 = vld [vmem:[%s395 + $0x64] sm:$0xf]
        %v548 = vld [vmem:[%s395 + $0x68] sm:$0xf]
        %v549 = vld [vmem:[%s395 + $0x6c] sm:$0xf]
        %v550 = vld [vmem:[%s395 + $0x70] sm:$0xf]
        %v551 = vld [vmem:[%s395 + $0x74] sm:$0xf]
        %v552 = vld [vmem:[%s395 + $0x78] sm:$0xf]
        %v553 = vld [vmem:[%s395 + $0x7c] sm:$0xf]
        %v554 = vunpack.c.l.bf16 %v522
        %v555 = vunpack.c.l.bf16 %v523
        %v556 = vunpack.c.l.bf16 %v524
        %v557 = vunpack.c.l.bf16 %v525
        %v558 = vunpack.c.l.bf16 %v526
        %v559 = vunpack.c.l.bf16 %v527
        %v560 = vunpack.c.l.bf16 %v528
        %v561 = vunpack.c.l.bf16 %v529
        %v562 = vunpack.c.l.bf16 %v530
        %v563 = vunpack.c.l.bf16 %v531
        %v564 = vunpack.c.l.bf16 %v532
        %v565 = vunpack.c.l.bf16 %v533
        %v566 = vunpack.c.l.bf16 %v534
        %v567 = vunpack.c.l.bf16 %v535
        %v568 = vunpack.c.l.bf16 %v536
        %v569 = vunpack.c.l.bf16 %v537
        %v570 = vunpack.c.l.bf16 %v538
        %v571 = vunpack.c.l.bf16 %v539
        %v572 = vunpack.c.l.bf16 %v540
        %v573 = vunpack.c.l.bf16 %v541
        %v574 = vunpack.c.l.bf16 %v542
        %v575 = vunpack.c.l.bf16 %v543
        %v576 = vunpack.c.l.bf16 %v544
        %v577 = vunpack.c.l.bf16 %v545
        %v578 = vunpack.c.l.bf16 %v546
        %v579 = vunpack.c.l.bf16 %v547
        %v580 = vunpack.c.l.bf16 %v548
        %v581 = vunpack.c.l.bf16 %v549
        %v582 = vunpack.c.l.bf16 %v550
        %v583 = vunpack.c.l.bf16 %v551
        %v584 = vunpack.c.l.bf16 %v552
        %v585 = vunpack.c.l.bf16 %v553
        %vm586 = vcmask 261120
        %v587 = vsel %vm586, %v554, 0.0
        %v588 = vsel %vm586, %v555, 0.0
        %v589 = vadd.f32 %v587, %v588
        %v590 = vsel %vm586, %v556, 0.0
        %v591 = vadd.f32 %v589, %v590
        %v592 = vsel %vm586, %v557, 0.0
        %v593 = vadd.f32 %v591, %v592
        %v594 = vsel %vm586, %v558, 0.0
        %v595 = vadd.f32 %v593, %v594
        %v596 = vsel %vm586, %v559, 0.0
        %v597 = vadd.f32 %v595, %v596
        %v598 = vsel %vm586, %v560, 0.0
        %v599 = vadd.f32 %v597, %v598
        %v600 = vsel %vm586, %v561, 0.0
        %v601 = vadd.f32 %v599, %v600
        %v602 = vsel %vm586, %v562, 0.0
        %v603 = vadd.f32 %v601, %v602
        %v604 = vsel %vm586, %v563, 0.0
        %v605 = vadd.f32 %v603, %v604
        %v606 = vsel %vm586, %v564, 0.0
        %v607 = vadd.f32 %v605, %v606
        %v608 = vsel %vm586, %v565, 0.0
        %v609 = vadd.f32 %v607, %v608
        %v610 = vsel %vm586, %v566, 0.0
        %v611 = vadd.f32 %v609, %v610
        %v612 = vsel %vm586, %v567, 0.0
        %v613 = vadd.f32 %v611, %v612
        %v614 = vsel %vm586, %v568, 0.0
        %v615 = vadd.f32 %v613, %v614
        %v616 = vsel %vm586, %v569, 0.0
        %v617 = vadd.f32 %v615, %v616
        %v618 = vsel %vm586, %v570, 0.0
        %v619 = vadd.f32 %v617, %v618
        %v620 = vsel %vm586, %v571, 0.0
        %v621 = vadd.f32 %v619, %v620
        %v622 = vsel %vm586, %v572, 0.0
        %v623 = vadd.f32 %v621, %v622
        %v624 = vsel %vm586, %v573, 0.0
        %v625 = vadd.f32 %v623, %v624
        %v626 = vsel %vm586, %v574, 0.0
        %v627 = vadd.f32 %v625, %v626
        %v628 = vsel %vm586, %v575, 0.0
        %v629 = vadd.f32 %v627, %v628
        %v630 = vsel %vm586, %v576, 0.0
        %v631 = vadd.f32 %v629, %v630
        %v632 = vsel %vm586, %v577, 0.0
        %v633 = vadd.f32 %v631, %v632
        %v634 = vsel %vm586, %v578, 0.0
        %v635 = vadd.f32 %v633, %v634
        %v636 = vsel %vm586, %v579, 0.0
        %v637 = vadd.f32 %v635, %v636
        %v638 = vsel %vm586, %v580, 0.0
        %v639 = vadd.f32 %v637, %v638
        %v640 = vsel %vm586, %v581, 0.0
        %v641 = vadd.f32 %v639, %v640
        %v642 = vsel %vm586, %v582, 0.0
        %v643 = vadd.f32 %v641, %v642
        %v644 = vsel %vm586, %v583, 0.0
        %v645 = vadd.f32 %v643, %v644
        %v646 = vsel %vm586, %v584, 0.0
        %v647 = vadd.f32 %v645, %v646
        %v648 = vsel %vm586, %v585, 0.0
        %v649 = vadd.f32 %v647, %v648
        %v650 = vrot.slane %v649, 4
        %v651 = vadd.f32 %v649, %v650
        %v652 = vrot.slane %v651, 2
        %v653 = vadd.f32 %v651, %v652
        %v654 = vrot.slane %v653, 1
        %v655 = vadd.f32 %v653, %v654
        %v656 = vld [vmem:[%s3] sm:$0xff]
        %v657 = vld [vmem:[%s3 + $0x8] sm:$0xff]
        %v658 = vld [vmem:[%s3 + $0x10] sm:$0xff]
        %v659 = vld [vmem:[%s3 + $0x18] sm:$0xff]
        %v661 = vsel %vm586, %v655, 0
        %663 = vmatprep.subr.mxu0 0.0
        %664 = vmatpush1.msra.mxu0 0.0
        %665 = vmatprep.subr.mxu0 0.0
        %666 = vmatpush1.msra.mxu0 0.0
        %667 = vmatprep.subr.mxu0 0.0
        %668 = vmatpush1.msra.mxu0 0.0
        %669 = vmatprep.subr.mxu0 0.0
        %670 = vmatpush1.msra.mxu0 0.0
        %671 = vmatprep.subr.mxu0 0.0
        %672 = vmatpush1.msra.mxu0 0.0
        %673 = vmatprep.subr.mxu0 0.0
        %674 = vmatpush1.msra.mxu0 0.0
        %675 = vmatprep.subr.mxu0 0.0
        %676 = vmatpush1.msra.mxu0 0.0
        %677 = vmatprep.subr.mxu0 0.0
        %678 = vmatpush1.msra.mxu0 0.0
        %679 = vmatprep.subr.mxu0 0.0
        %680 = vmatpush1.msra.mxu0 0.0
        %681 = vmatprep.subr.mxu0 0.0
        %682 = vmatpush1.msra.mxu0 0.0
        %683 = vmatprep.subr.mxu0 0.0
        %684 = vmatpush1.msra.mxu0 0.0
        %685 = vmatprep.subr.mxu0 0.0
        %686 = vmatpush1.msra.mxu0 0.0
        %687 = vmatprep.subr.mxu0 0.0
        %688 = vmatpush1.msra.mxu0 %v659
        %689 = vmatprep.subr.mxu0 0.0
        %690 = vmatpush1.msra.mxu0 %v658
        %691 = vmatprep.subr.mxu0 0.0
        %692 = vmatpush1.msra.mxu0 %v657
        %693 = vmatprep.subr.mxu0 0.0
        %694 = vmatpush1.msra.mxu0 %v656
        %695 = vmatprep.subr.mxu0 0.0
        %696 = vmatpush2.msra.mxu0 0.0
        %697 = vmatprep.subr.mxu0 0.0
        %698 = vmatpush2.msra.mxu0 0.0
        %699 = vmatprep.subr.mxu0 0.0
        %700 = vmatpush2.msra.mxu0 0.0
        %701 = vmatprep.subr.mxu0 0.0
        %702 = vmatpush2.msra.mxu0 0.0
        %703 = vmatprep.subr.mxu0 0.0
        %704 = vmatpush2.msra.mxu0 0.0
        %705 = vmatprep.subr.mxu0 0.0
        %706 = vmatpush2.msra.mxu0 0.0
        %707 = vmatprep.subr.mxu0 0.0
        %708 = vmatpush2.msra.mxu0 0.0
        %709 = vmatprep.subr.mxu0 0.0
        %710 = vmatpush2.msra.mxu0 0.0
        %711 = vmatprep.subr.mxu0 0.0
        %712 = vmatpush2.msra.mxu0 0.0
        %713 = vmatprep.subr.mxu0 0.0
        %714 = vmatpush2.msra.mxu0 0.0
        %715 = vmatprep.subr.mxu0 0.0
        %716 = vmatpush2.msra.mxu0 0.0
        %717 = vmatprep.subr.mxu0 0.0
        %718 = vmatpush2.msra.mxu0 0.0
        %719 = vmatprep.subr.mxu0 0.0
        %720 = vmatpush2.msra.mxu0 0.0
        %721 = vmatprep.subr.mxu0 0.0
        %722 = vmatpush2.msra.mxu0 0.0
        %723 = vmatprep.subr.mxu0 0.0
        %724 = vmatpush2.msra.mxu0 0.0
        %725 = vmatprep.subr.mxu0 0.0
        %726 = vmatpush2.msra.mxu0 0.0
        %727 = vmatprep.mubr.f32.mxu0 0.0
        %728 = vmatmul.mubr.f32.gmra.mxu0 %v661
        %v729 = vpop.f32.mrf.mxu0
        %v730 = vadd.f32 0.0, %v729
        %v731 = vpop.f32.mrf.mxu0
        %732 = vdwg.mxu0
        %v733 = vlaneseq
        %v734 = vshrl.u32 %v733, 7
        %v735 = vsub.s32 0, %v734
        %v736 = vrot.slane %v730, %v735
        %v737 = vsub.f32 %v554, %v736
        %v738 = vsub.f32 %v555, %v736
        %v739 = vsub.f32 %v556, %v736
        %v740 = vsub.f32 %v557, %v736
        %v741 = vsub.f32 %v558, %v736
        %v742 = vsub.f32 %v559, %v736
        %v743 = vsub.f32 %v560, %v736
        %v744 = vsub.f32 %v561, %v736
        %v745 = vsub.f32 %v562, %v736
        %v746 = vsub.f32 %v563, %v736
        %v747 = vsub.f32 %v564, %v736
        %v748 = vsub.f32 %v565, %v736
        %v749 = vsub.f32 %v566, %v736
        %v750 = vsub.f32 %v567, %v736
        %v751 = vsub.f32 %v568, %v736
        %v752 = vsub.f32 %v569, %v736
        %v753 = vsub.f32 %v570, %v736
        %v754 = vsub.f32 %v571, %v736
        %v755 = vsub.f32 %v572, %v736
        %v756 = vsub.f32 %v573, %v736
        %v757 = vsub.f32 %v574, %v736
        %v758 = vsub.f32 %v575, %v736
        %v759 = vsub.f32 %v576, %v736
        %v760 = vsub.f32 %v577, %v736
        %v761 = vsub.f32 %v578, %v736
        %v762 = vsub.f32 %v579, %v736
        %v763 = vsub.f32 %v580, %v736
        %v764 = vsub.f32 %v581, %v736
        %v765 = vsub.f32 %v582, %v736
        %v766 = vsub.f32 %v583, %v736
        %v767 = vsub.f32 %v584, %v736
        %v768 = vsub.f32 %v585, %v736
        %v769 = vmul.f32 %v737, %v737
        %v770 = vmul.f32 %v738, %v738
        %v771 = vmul.f32 %v739, %v739
        %v772 = vmul.f32 %v740, %v740
        %v773 = vmul.f32 %v741, %v741
        %v774 = vmul.f32 %v742, %v742
        %v775 = vmul.f32 %v743, %v743
        %v776 = vmul.f32 %v744, %v744
        %v777 = vmul.f32 %v745, %v745
        %v778 = vmul.f32 %v746, %v746
        %v779 = vmul.f32 %v747, %v747
        %v780 = vmul.f32 %v748, %v748
        %v781 = vmul.f32 %v749, %v749
        %v782 = vmul.f32 %v750, %v750
        %v783 = vmul.f32 %v751, %v751
        %v784 = vmul.f32 %v752, %v752
        %v785 = vmul.f32 %v753, %v753
        %v786 = vmul.f32 %v754, %v754
        %v787 = vmul.f32 %v755, %v755
        %v788 = vmul.f32 %v756, %v756
        %v789 = vmul.f32 %v757, %v757
        %v790 = vmul.f32 %v758, %v758
        %v791 = vmul.f32 %v759, %v759
        %v792 = vmul.f32 %v760, %v760
        %v793 = vmul.f32 %v761, %v761
        %v794 = vmul.f32 %v762, %v762
        %v795 = vmul.f32 %v763, %v763
        %v796 = vmul.f32 %v764, %v764
        %v797 = vmul.f32 %v765, %v765
        %v798 = vmul.f32 %v766, %v766
        %v799 = vmul.f32 %v767, %v767
        %v800 = vmul.f32 %v768, %v768
        %v801 = vsel %vm586, %v769, 0.0
        %v802 = vsel %vm586, %v770, 0.0
        %v803 = vadd.f32 %v801, %v802
        %v804 = vsel %vm586, %v771, 0.0
        %v805 = vadd.f32 %v803, %v804
        %v806 = vsel %vm586, %v772, 0.0
        %v807 = vadd.f32 %v805, %v806
        %v808 = vsel %vm586, %v773, 0.0
        %v809 = vadd.f32 %v807, %v808
        %v810 = vsel %vm586, %v774, 0.0
        %v811 = vadd.f32 %v809, %v810
        %v812 = vsel %vm586, %v775, 0.0
        %v813 = vadd.f32 %v811, %v812
        %v814 = vsel %vm586, %v776, 0.0
        %v815 = vadd.f32 %v813, %v814
        %v816 = vsel %vm586, %v777, 0.0
        %v817 = vadd.f32 %v815, %v816
        %v818 = vsel %vm586, %v778, 0.0
        %v819 = vadd.f32 %v817, %v818
        %v820 = vsel %vm586, %v779, 0.0
        %v821 = vadd.f32 %v819, %v820
        %v822 = vsel %vm586, %v780, 0.0
        %v823 = vadd.f32 %v821, %v822
        %v824 = vsel %vm586, %v781, 0.0
        %v825 = vadd.f32 %v823, %v824
        %v826 = vsel %vm586, %v782, 0.0
        %v827 = vadd.f32 %v825, %v826
        %v828 = vsel %vm586, %v783, 0.0
        %v829 = vadd.f32 %v827, %v828
        %v830 = vsel %vm586, %v784, 0.0
        %v831 = vadd.f32 %v829, %v830
        %v832 = vsel %vm586, %v785, 0.0
        %v833 = vadd.f32 %v831, %v832
        %v834 = vsel %vm586, %v786, 0.0
        %v835 = vadd.f32 %v833, %v834
        %v836 = vsel %vm586, %v787, 0.0
        %v837 = vadd.f32 %v835, %v836
        %v838 = vsel %vm586, %v788, 0.0
        %v839 = vadd.f32 %v837, %v838
        %v840 = vsel %vm586, %v789, 0.0
        %v841 = vadd.f32 %v839, %v840
        %v842 = vsel %vm586, %v790, 0.0
        %v843 = vadd.f32 %v841, %v842
        %v844 = vsel %vm586, %v791, 0.0
        %v845 = vadd.f32 %v843, %v844
        %v846 = vsel %vm586, %v792, 0.0
        %v847 = vadd.f32 %v845, %v846
        %v848 = vsel %vm586, %v793, 0.0
        %v849 = vadd.f32 %v847, %v848
        %v850 = vsel %vm586, %v794, 0.0
        %v851 = vadd.f32 %v849, %v850
        %v852 = vsel %vm586, %v795, 0.0
        %v853 = vadd.f32 %v851, %v852
        %v854 = vsel %vm586, %v796, 0.0
        %v855 = vadd.f32 %v853, %v854
        %v856 = vsel %vm586, %v797, 0.0
        %v857 = vadd.f32 %v855, %v856
        %v858 = vsel %vm586, %v798, 0.0
        %v859 = vadd.f32 %v857, %v858
        %v860 = vsel %vm586, %v799, 0.0
        %v861 = vadd.f32 %v859, %v860
        %v862 = vsel %vm586, %v800, 0.0
        %v863 = vadd.f32 %v861, %v862
        %v864 = vrot.slane %v863, 4
        %v865 = vadd.f32 %v863, %v864
        %v866 = vrot.slane %v865, 2
        %v867 = vadd.f32 %v865, %v866
        %v868 = vrot.slane %v867, 1
        %v869 = vadd.f32 %v867, %v868
        %v871 = vsel %vm586, %v869, 0
        %873 = vmatprep.subr.mxu0 0.0
        %874 = vmatpush1.msra.mxu0 0.0
        %875 = vmatprep.subr.mxu0 0.0
        %876 = vmatpush1.msra.mxu0 0.0
        %877 = vmatprep.subr.mxu0 0.0
        %878 = vmatpush1.msra.mxu0 0.0
        %879 = vmatprep.subr.mxu0 0.0
        %880 = vmatpush1.msra.mxu0 0.0
        %881 = vmatprep.subr.mxu0 0.0
        %882 = vmatpush1.msra.mxu0 0.0
        %883 = vmatprep.subr.mxu0 0.0
        %884 = vmatpush1.msra.mxu0 0.0
        %885 = vmatprep.subr.mxu0 0.0
        %886 = vmatpush1.msra.mxu0 0.0
        %887 = vmatprep.subr.mxu0 0.0
        %888 = vmatpush1.msra.mxu0 0.0
        %889 = vmatprep.subr.mxu0 0.0
        %890 = vmatpush1.msra.mxu0 0.0
        %891 = vmatprep.subr.mxu0 0.0
        %892 = vmatpush1.msra.mxu0 0.0
        %893 = vmatprep.subr.mxu0 0.0
        %894 = vmatpush1.msra.mxu0 0.0
        %895 = vmatprep.subr.mxu0 0.0
        %896 = vmatpush1.msra.mxu0 0.0
        %897 = vmatprep.subr.mxu0 0.0
        %898 = vmatpush1.msra.mxu0 %v659
        %899 = vmatprep.subr.mxu0 0.0
        %900 = vmatpush1.msra.mxu0 %v658
        %901 = vmatprep.subr.mxu0 0.0
        %902 = vmatpush1.msra.mxu0 %v657
        %903 = vmatprep.subr.mxu0 0.0
        %904 = vmatpush1.msra.mxu0 %v656
        %905 = vmatprep.subr.mxu0 0.0
        %906 = vmatpush2.msra.mxu0 0.0
        %907 = vmatprep.subr.mxu0 0.0
        %908 = vmatpush2.msra.mxu0 0.0
        %909 = vmatprep.subr.mxu0 0.0
        %910 = vmatpush2.msra.mxu0 0.0
        %911 = vmatprep.subr.mxu0 0.0
        %912 = vmatpush2.msra.mxu0 0.0
        %913 = vmatprep.subr.mxu0 0.0
        %914 = vmatpush2.msra.mxu0 0.0
        %915 = vmatprep.subr.mxu0 0.0
        %916 = vmatpush2.msra.mxu0 0.0
        %917 = vmatprep.subr.mxu0 0.0
        %918 = vmatpush2.msra.mxu0 0.0
        %919 = vmatprep.subr.mxu0 0.0
        %920 = vmatpush2.msra.mxu0 0.0
        %921 = vmatprep.subr.mxu0 0.0
        %922 = vmatpush2.msra.mxu0 0.0
        %923 = vmatprep.subr.mxu0 0.0
        %924 = vmatpush2.msra.mxu0 0.0
        %925 = vmatprep.subr.mxu0 0.0
        %926 = vmatpush2.msra.mxu0 0.0
        %927 = vmatprep.subr.mxu0 0.0
        %928 = vmatpush2.msra.mxu0 0.0
        %929 = vmatprep.subr.mxu0 0.0
        %930 = vmatpush2.msra.mxu0 0.0
        %931 = vmatprep.subr.mxu0 0.0
        %932 = vmatpush2.msra.mxu0 0.0
        %933 = vmatprep.subr.mxu0 0.0
        %934 = vmatpush2.msra.mxu0 0.0
        %935 = vmatprep.subr.mxu0 0.0
        %936 = vmatpush2.msra.mxu0 0.0
        %937 = vmatprep.mubr.f32.mxu0 0.0
        %938 = vmatmul.mubr.f32.gmra.mxu0 %v871
        %v939 = vpop.f32.mrf.mxu0
        %v940 = vadd.f32 1e-06, %v939
        %v941 = vpop.f32.mrf.mxu0
        %942 = vdwg.mxu0
        %v943 = vrsqrt.pop %v940
        %v944 = vld [vmem:[%s1] sm:$0x1]
        %v945 = vmul.f32 %v943, %v944
        %v946 = vlaneseq
        %v947 = vshrl.u32 %v946, 7
        %v948 = vsub.s32 0, %v947
        %v949 = vrot.slane %v945, %v948
        %v950 = vmul.f32 %v737, %v949
        %v951 = vmul.f32 %v738, %v949
        %v952 = vmul.f32 %v739, %v949
        %v953 = vmul.f32 %v740, %v949
        %v954 = vmul.f32 %v741, %v949
        %v955 = vmul.f32 %v742, %v949
        %v956 = vmul.f32 %v743, %v949
        %v957 = vmul.f32 %v744, %v949
        %v958 = vmul.f32 %v745, %v949
        %v959 = vmul.f32 %v746, %v949
        %v960 = vmul.f32 %v747, %v949
        %v961 = vmul.f32 %v748, %v949
        %v962 = vmul.f32 %v749, %v949
        %v963 = vmul.f32 %v750, %v949
        %v964 = vmul.f32 %v751, %v949
        %v965 = vmul.f32 %v752, %v949
        %v966 = vmul.f32 %v753, %v949
        %v967 = vmul.f32 %v754, %v949
        %v968 = vmul.f32 %v755, %v949
        %v969 = vmul.f32 %v756, %v949
        %v970 = vmul.f32 %v757, %v949
        %v971 = vmul.f32 %v758, %v949
        %v972 = vmul.f32 %v759, %v949
        %v973 = vmul.f32 %v760, %v949
        %v974 = vmul.f32 %v761, %v949
        %v975 = vmul.f32 %v762, %v949
        %v976 = vmul.f32 %v763, %v949
        %v977 = vmul.f32 %v764, %v949
        %v978 = vmul.f32 %v765, %v949
        %v979 = vmul.f32 %v766, %v949
        %v980 = vmul.f32 %v767, %v949
        %v981 = vmul.f32 %v768, %v949
        %v982 = vld [vmem:[%s2] sm:$0x1]
        %v984 = vlaneseq
        %v985 = vshrl.u32 %v984, 7
        %v986 = vsub.s32 0, %v985
        %v987 = vrot.slane %v982, %v986
        %v989 = vadd.f32 %v950, %v987
        %v990 = vadd.f32 %v951, %v987
        %v991 = vadd.f32 %v952, %v987
        %v992 = vadd.f32 %v953, %v987
        %v993 = vadd.f32 %v954, %v987
        %v994 = vadd.f32 %v955, %v987
        %v995 = vadd.f32 %v956, %v987
        %v996 = vadd.f32 %v957, %v987
        %v997 = vadd.f32 %v958, %v987
        %v998 = vadd.f32 %v959, %v987
        %v999 = vadd.f32 %v960, %v987
        %v1000 = vadd.f32 %v961, %v987
        %v1001 = vadd.f32 %v962, %v987
        %v1002 = vadd.f32 %v963, %v987
        %v1003 = vadd.f32 %v964, %v987
        %v1004 = vadd.f32 %v965, %v987
        %v1005 = vadd.f32 %v966, %v987
        %v1006 = vadd.f32 %v967, %v987
        %v1007 = vadd.f32 %v968, %v987
        %v1008 = vadd.f32 %v969, %v987
        %v1009 = vadd.f32 %v970, %v987
        %v1010 = vadd.f32 %v971, %v987
        %v1011 = vadd.f32 %v972, %v987
        %v1012 = vadd.f32 %v973, %v987
        %v1013 = vadd.f32 %v974, %v987
        %v1014 = vadd.f32 %v975, %v987
        %v1015 = vadd.f32 %v976, %v987
        %v1016 = vadd.f32 %v977, %v987
        %v1017 = vadd.f32 %v978, %v987
        %v1018 = vadd.f32 %v979, %v987
        %v1019 = vadd.f32 %v980, %v987
        %v1020 = vadd.f32 %v981, %v987
        %v1021 = vxor.u32 %v989, 2147483648
        %v1022 = vxor.u32 %v990, 2147483648
        %v1023 = vxor.u32 %v991, 2147483648
        %v1024 = vxor.u32 %v992, 2147483648
        %v1025 = vxor.u32 %v993, 2147483648
        %v1026 = vxor.u32 %v994, 2147483648
        %v1027 = vxor.u32 %v995, 2147483648
        %v1028 = vxor.u32 %v996, 2147483648
        %v1029 = vxor.u32 %v997, 2147483648
        %v1030 = vxor.u32 %v998, 2147483648
        %v1031 = vxor.u32 %v999, 2147483648
        %v1032 = vxor.u32 %v1000, 2147483648
        %v1033 = vxor.u32 %v1001, 2147483648
        %v1034 = vxor.u32 %v1002, 2147483648
        %v1035 = vxor.u32 %v1003, 2147483648
        %v1036 = vxor.u32 %v1004, 2147483648
        %v1037 = vxor.u32 %v1005, 2147483648
        %v1038 = vxor.u32 %v1006, 2147483648
        %v1039 = vxor.u32 %v1007, 2147483648
        %v1040 = vxor.u32 %v1008, 2147483648
        %v1041 = vxor.u32 %v1009, 2147483648
        %v1042 = vxor.u32 %v1010, 2147483648
        %v1043 = vxor.u32 %v1011, 2147483648
        %v1044 = vxor.u32 %v1012, 2147483648
        %v1045 = vxor.u32 %v1013, 2147483648
        %v1046 = vxor.u32 %v1014, 2147483648
        %v1047 = vxor.u32 %v1015, 2147483648
        %v1048 = vxor.u32 %v1016, 2147483648
        %v1049 = vxor.u32 %v1017, 2147483648
        %v1050 = vxor.u32 %v1018, 2147483648
        %v1051 = vxor.u32 %v1019, 2147483648
        %v1052 = vxor.u32 %v1020, 2147483648
        %v1053 = vmul.f32 %v1021, 1.442695
        %v1054 = vpow.pop %v1053
        %v1055 = vmul.f32 %v1022, 1.442695
        %v1056 = vpow.pop %v1055
        %v1057 = vmul.f32 %v1023, 1.442695
        %v1058 = vpow.pop %v1057
        %v1059 = vmul.f32 %v1024, 1.442695
        %v1060 = vpow.pop %v1059
        %v1061 = vmul.f32 %v1025, 1.442695
        %v1062 = vpow.pop %v1061
        %v1063 = vmul.f32 %v1026, 1.442695
        %v1064 = vpow.pop %v1063
        %v1065 = vmul.f32 %v1027, 1.442695
        %v1066 = vpow.pop %v1065
        %v1067 = vmul.f32 %v1028, 1.442695
        %v1068 = vpow.pop %v1067
        %v1069 = vmul.f32 %v1029, 1.442695
        %v1070 = vpow.pop %v1069
        %v1071 = vmul.f32 %v1030, 1.442695
        %v1072 = vpow.pop %v1071
        %v1073 = vmul.f32 %v1031, 1.442695
        %v1074 = vpow.pop %v1073
        %v1075 = vmul.f32 %v1032, 1.442695
        %v1076 = vpow.pop %v1075
        %v1077 = vmul.f32 %v1033, 1.442695
        %v1078 = vpow.pop %v1077
        %v1079 = vmul.f32 %v1034, 1.442695
        %v1080 = vpow.pop %v1079
        %v1081 = vmul.f32 %v1035, 1.442695
        %v1082 = vpow.pop %v1081
        %v1083 = vmul.f32 %v1036, 1.442695
        %v1084 = vpow.pop %v1083
        %v1085 = vmul.f32 %v1037, 1.442695
        %v1086 = vpow.pop %v1085
        %v1087 = vmul.f32 %v1038, 1.442695
        %v1088 = vpow.pop %v1087
        %v1089 = vmul.f32 %v1039, 1.442695
        %v1090 = vpow.pop %v1089
        %v1091 = vmul.f32 %v1040, 1.442695
        %v1092 = vpow.pop %v1091
        %v1093 = vmul.f32 %v1041, 1.442695
        %v1094 = vpow.pop %v1093
        %v1095 = vmul.f32 %v1042, 1.442695
        %v1096 = vpow.pop %v1095
        %v1097 = vmul.f32 %v1043, 1.442695
        %v1098 = vpow.pop %v1097
        %v1099 = vmul.f32 %v1044, 1.442695
        %v1100 = vpow.pop %v1099
        %v1101 = vmul.f32 %v1045, 1.442695
        %v1102 = vpow.pop %v1101
        %v1103 = vmul.f32 %v1046, 1.442695
        %v1104 = vpow.pop %v1103
        %v1105 = vmul.f32 %v1047, 1.442695
        %v1106 = vpow.pop %v1105
        %v1107 = vmul.f32 %v1048, 1.442695
        %v1108 = vpow.pop %v1107
        %v1109 = vmul.f32 %v1049, 1.442695
        %v1110 = vpow.pop %v1109
        %v1111 = vmul.f32 %v1050, 1.442695
        %v1112 = vpow.pop %v1111
        %v1113 = vmul.f32 %v1051, 1.442695
        %v1114 = vpow.pop %v1113
        %v1115 = vmul.f32 %v1052, 1.442695
        %v1116 = vpow.pop %v1115
        %v1117 = vadd.f32 %v1054, 1.0
        %v1118 = vadd.f32 %v1056, 1.0
        %v1119 = vadd.f32 %v1058, 1.0
        %v1120 = vadd.f32 %v1060, 1.0
        %v1121 = vadd.f32 %v1062, 1.0
        %v1122 = vadd.f32 %v1064, 1.0
        %v1123 = vadd.f32 %v1066, 1.0
        %v1124 = vadd.f32 %v1068, 1.0
        %v1125 = vadd.f32 %v1070, 1.0
        %v1126 = vadd.f32 %v1072, 1.0
        %v1127 = vadd.f32 %v1074, 1.0
        %v1128 = vadd.f32 %v1076, 1.0
        %v1129 = vadd.f32 %v1078, 1.0
        %v1130 = vadd.f32 %v1080, 1.0
        %v1131 = vadd.f32 %v1082, 1.0
        %v1132 = vadd.f32 %v1084, 1.0
        %v1133 = vadd.f32 %v1086, 1.0
        %v1134 = vadd.f32 %v1088, 1.0
        %v1135 = vadd.f32 %v1090, 1.0
        %v1136 = vadd.f32 %v1092, 1.0
        %v1137 = vadd.f32 %v1094, 1.0
        %v1138 = vadd.f32 %v1096, 1.0
        %v1139 = vadd.f32 %v1098, 1.0
        %v1140 = vadd.f32 %v1100, 1.0
        %v1141 = vadd.f32 %v1102, 1.0
        %v1142 = vadd.f32 %v1104, 1.0
        %v1143 = vadd.f32 %v1106, 1.0
        %v1144 = vadd.f32 %v1108, 1.0
        %v1145 = vadd.f32 %v1110, 1.0
        %v1146 = vadd.f32 %v1112, 1.0
        %v1147 = vadd.f32 %v1114, 1.0
        %v1148 = vadd.f32 %v1116, 1.0
        %v1149 = vrcp.pop %v1117
        %v1150 = vmul.f32 1.0, %v1149
        %v1151 = vrcp.pop %v1118
        %v1152 = vmul.f32 1.0, %v1151
        %v1153 = vrcp.pop %v1119
        %v1154 = vmul.f32 1.0, %v1153
        %v1155 = vrcp.pop %v1120
        %v1156 = vmul.f32 1.0, %v1155
        %v1157 = vrcp.pop %v1121
        %v1158 = vmul.f32 1.0, %v1157
        %v1159 = vrcp.pop %v1122
        %v1160 = vmul.f32 1.0, %v1159
        %v1161 = vrcp.pop %v1123
        %v1162 = vmul.f32 1.0, %v1161
        %v1163 = vrcp.pop %v1124
        %v1164 = vmul.f32 1.0, %v1163
        %v1165 = vrcp.pop %v1125
        %v1166 = vmul.f32 1.0, %v1165
        %v1167 = vrcp.pop %v1126
        %v1168 = vmul.f32 1.0, %v1167
        %v1169 = vrcp.pop %v1127
        %v1170 = vmul.f32 1.0, %v1169
        %v1171 = vrcp.pop %v1128
        %v1172 = vmul.f32 1.0, %v1171
        %v1173 = vrcp.pop %v1129
        %v1174 = vmul.f32 1.0, %v1173
        %v1175 = vrcp.pop %v1130
        %v1176 = vmul.f32 1.0, %v1175
        %v1177 = vrcp.pop %v1131
        %v1178 = vmul.f32 1.0, %v1177
        %v1179 = vrcp.pop %v1132
        %v1180 = vmul.f32 1.0, %v1179
        %v1181 = vrcp.pop %v1133
        %v1182 = vmul.f32 1.0, %v1181
        %v1183 = vrcp.pop %v1134
        %v1184 = vmul.f32 1.0, %v1183
        %v1185 = vrcp.pop %v1135
        %v1186 = vmul.f32 1.0, %v1185
        %v1187 = vrcp.pop %v1136
        %v1188 = vmul.f32 1.0, %v1187
        %v1189 = vrcp.pop %v1137
        %v1190 = vmul.f32 1.0, %v1189
        %v1191 = vrcp.pop %v1138
        %v1192 = vmul.f32 1.0, %v1191
        %v1193 = vrcp.pop %v1139
        %v1194 = vmul.f32 1.0, %v1193
        %v1195 = vrcp.pop %v1140
        %v1196 = vmul.f32 1.0, %v1195
        %v1197 = vrcp.pop %v1141
        %v1198 = vmul.f32 1.0, %v1197
        %v1199 = vrcp.pop %v1142
        %v1200 = vmul.f32 1.0, %v1199
        %v1201 = vrcp.pop %v1143
        %v1202 = vmul.f32 1.0, %v1201
        %v1203 = vrcp.pop %v1144
        %v1204 = vmul.f32 1.0, %v1203
        %v1205 = vrcp.pop %v1145
        %v1206 = vmul.f32 1.0, %v1205
        %v1207 = vrcp.pop %v1146
        %v1208 = vmul.f32 1.0, %v1207
        %v1209 = vrcp.pop %v1147
        %v1210 = vmul.f32 1.0, %v1209
        %v1211 = vrcp.pop %v1148
        %v1212 = vmul.f32 1.0, %v1211
        %v1213 = vmul.f32 %v989, %v1150
        %v1214 = vmul.f32 %v990, %v1152
        %v1215 = vmul.f32 %v991, %v1154
        %v1216 = vmul.f32 %v992, %v1156
        %v1217 = vmul.f32 %v993, %v1158
        %v1218 = vmul.f32 %v994, %v1160
        %v1219 = vmul.f32 %v995, %v1162
        %v1220 = vmul.f32 %v996, %v1164
        %v1221 = vmul.f32 %v997, %v1166
        %v1222 = vmul.f32 %v998, %v1168
        %v1223 = vmul.f32 %v999, %v1170
        %v1224 = vmul.f32 %v1000, %v1172
        %v1225 = vmul.f32 %v1001, %v1174
        %v1226 = vmul.f32 %v1002, %v1176
        %v1227 = vmul.f32 %v1003, %v1178
        %v1228 = vmul.f32 %v1004, %v1180
        %v1229 = vmul.f32 %v1005, %v1182
        %v1230 = vmul.f32 %v1006, %v1184
        %v1231 = vmul.f32 %v1007, %v1186
        %v1232 = vmul.f32 %v1008, %v1188
        %v1233 = vmul.f32 %v1009, %v1190
        %v1234 = vmul.f32 %v1010, %v1192
        %v1235 = vmul.f32 %v1011, %v1194
        %v1236 = vmul.f32 %v1012, %v1196
        %v1237 = vmul.f32 %v1013, %v1198
        %v1238 = vmul.f32 %v1014, %v1200
        %v1239 = vmul.f32 %v1015, %v1202
        %v1240 = vmul.f32 %v1016, %v1204
        %v1241 = vmul.f32 %v1017, %v1206
        %v1242 = vmul.f32 %v1018, %v1208
        %v1243 = vmul.f32 %v1019, %v1210
        %v1244 = vmul.f32 %v1020, %v1212
        %v1245 = vpack.c.bf16 %v1214, %v1213
        %v1246 = vpack.c.bf16 %v1216, %v1215
        %v1247 = vpack.c.bf16 %v1218, %v1217
        %v1248 = vpack.c.bf16 %v1220, %v1219
        %v1249 = vpack.c.bf16 %v1222, %v1221
        %v1250 = vpack.c.bf16 %v1224, %v1223
        %v1251 = vpack.c.bf16 %v1226, %v1225
        %v1252 = vpack.c.bf16 %v1228, %v1227
        %v1253 = vpack.c.bf16 %v1230, %v1229
        %v1254 = vpack.c.bf16 %v1232, %v1231
        %v1255 = vpack.c.bf16 %v1234, %v1233
        %v1256 = vpack.c.bf16 %v1236, %v1235
        %v1257 = vpack.c.bf16 %v1238, %v1237
        %v1258 = vpack.c.bf16 %v1240, %v1239
        %v1259 = vpack.c.bf16 %v1242, %v1241
        %v1260 = vpack.c.bf16 %v1244, %v1243
        %v1277 = vunpack.c.l.b16 %v1245
        %v1278 = vunpack.c.h.b16 %v1245
        %v1279 = vunpack.c.l.b16 %v1246
        %v1280 = vunpack.c.h.b16 %v1246
        %v1281 = vunpack.c.l.b16 %v1247
        %v1282 = vunpack.c.h.b16 %v1247
        %v1283 = vunpack.c.l.b16 %v1248
        %v1284 = vunpack.c.h.b16 %v1248
        %v1285 = vunpack.c.l.b16 %v1249
        %v1286 = vunpack.c.h.b16 %v1249
        %v1287 = vunpack.c.l.b16 %v1250
        %v1288 = vunpack.c.h.b16 %v1250
        %v1289 = vunpack.c.l.b16 %v1251
        %v1290 = vunpack.c.h.b16 %v1251
        %v1291 = vunpack.c.l.b16 %v1252
        %v1292 = vunpack.c.h.b16 %v1252
        %v1293 = vunpack.c.l.b16 %v1253
        %v1294 = vunpack.c.h.b16 %v1253
        %v1295 = vunpack.c.l.b16 %v1254
        %v1296 = vunpack.c.h.b16 %v1254
        %v1297 = vunpack.c.l.b16 %v1255
        %v1298 = vunpack.c.h.b16 %v1255
        %v1299 = vunpack.c.l.b16 %v1256
        %v1300 = vunpack.c.h.b16 %v1256
        %v1301 = vunpack.c.l.b16 %v1257
        %v1302 = vunpack.c.h.b16 %v1257
        %v1303 = vunpack.c.l.b16 %v1258
        %v1304 = vunpack.c.h.b16 %v1258
        %v1305 = vunpack.c.l.b16 %v1259
        %v1306 = vunpack.c.h.b16 %v1259
        %v1307 = vunpack.c.l.b16 %v1260
        %v1308 = vunpack.c.h.b16 %v1260
        %v1309 = vpack.c.b16 %v1277, %v1277
        %v1310 = vpack.c.b16 %v1278, %v1278
        %v1311 = vpack.c.b16 %v1279, %v1279
        %v1312 = vpack.c.b16 %v1280, %v1280
        %v1313 = vpack.c.b16 %v1281, %v1281
        %v1314 = vpack.c.b16 %v1282, %v1282
        %v1315 = vpack.c.b16 %v1283, %v1283
        %v1316 = vpack.c.b16 %v1284, %v1284
        %v1317 = vpack.c.b16 %v1285, %v1285
        %v1318 = vpack.c.b16 %v1286, %v1286
        %v1319 = vpack.c.b16 %v1287, %v1287
        %v1320 = vpack.c.b16 %v1288, %v1288
        %v1321 = vpack.c.b16 %v1289, %v1289
        %v1322 = vpack.c.b16 %v1290, %v1290
        %v1323 = vpack.c.b16 %v1291, %v1291
        %v1324 = vpack.c.b16 %v1292, %v1292
        %v1325 = vpack.c.b16 %v1293, %v1293
        %v1326 = vpack.c.b16 %v1294, %v1294
        %v1327 = vpack.c.b16 %v1295, %v1295
        %v1328 = vpack.c.b16 %v1296, %v1296
        %v1329 = vpack.c.b16 %v1297, %v1297
        %v1330 = vpack.c.b16 %v1298, %v1298
        %v1331 = vpack.c.b16 %v1299, %v1299
        %v1332 = vpack.c.b16 %v1300, %v1300
        %v1333 = vpack.c.b16 %v1301, %v1301
        %v1334 = vpack.c.b16 %v1302, %v1302
        %v1335 = vpack.c.b16 %v1303, %v1303
        %v1336 = vpack.c.b16 %v1304, %v1304
        %v1337 = vpack.c.b16 %v1305, %v1305
        %v1338 = vpack.c.b16 %v1306, %v1306
        %v1339 = vpack.c.b16 %v1307, %v1307
        %v1340 = vpack.c.b16 %v1308, %v1308
        %vm1341 = vsmask.f32 4368
        %vm1342 = vmor %vm410, %vm1341
        %v1344 = vshrl.u32 %v1309, 16
        %v1346 = vrot.slane %v1344, 7
        %v1347 = vshll.u32 %v1309, 16
        %v1349 = vor.u32 %v1346, %v1347
        %v1350 = vrot.slane %v1346, 4
        %v1352 = vshrl.u32 %v1310, 16
        %v1354 = vrot.slane %v1352, 7
        %v1355 = vshll.u32 %v1310, 16
        %v1357 = vor.u32 %v1354, %v1355
        %v1358 = vsel %vm1342, %v1350, %v1357
        %v1359 = vrot.slane %v1354, 4
        %v1361 = vshrl.u32 %v1311, 16
        %v1363 = vrot.slane %v1361, 7
        %v1364 = vshll.u32 %v1311, 16
        %v1366 = vor.u32 %v1363, %v1364
        %v1367 = vrot.slane %v1363, 4
        %v1369 = vshrl.u32 %v1312, 16
        %v1371 = vrot.slane %v1369, 7
        %v1372 = vshll.u32 %v1312, 16
        %v1374 = vor.u32 %v1371, %v1372
        %v1375 = vsel %vm1342, %v1367, %v1374
        %v1376 = vrot.slane %v1371, 4
        %v1378 = vshrl.u32 %v1313, 16
        %v1380 = vrot.slane %v1378, 7
        %v1381 = vshll.u32 %v1313, 16
        %v1383 = vor.u32 %v1380, %v1381
        %v1384 = vrot.slane %v1380, 4
        %v1386 = vshrl.u32 %v1314, 16
        %v1388 = vrot.slane %v1386, 7
        %v1389 = vshll.u32 %v1314, 16
        %v1391 = vor.u32 %v1388, %v1389
        %v1392 = vsel %vm1342, %v1384, %v1391
        %v1393 = vrot.slane %v1388, 4
        %v1395 = vshrl.u32 %v1315, 16
        %v1397 = vrot.slane %v1395, 7
        %v1398 = vshll.u32 %v1315, 16
        %v1400 = vor.u32 %v1397, %v1398
        %v1401 = vrot.slane %v1397, 4
        %v1403 = vshrl.u32 %v1316, 16
        %v1405 = vrot.slane %v1403, 7
        %v1406 = vshll.u32 %v1316, 16
        %v1408 = vor.u32 %v1405, %v1406
        %v1409 = vsel %vm1342, %v1401, %v1408
        %v1410 = vrot.slane %v1405, 4
        %v1412 = vshrl.u32 %v1317, 16
        %v1414 = vrot.slane %v1412, 7
        %v1415 = vshll.u32 %v1317, 16
        %v1417 = vor.u32 %v1414, %v1415
        %v1418 = vrot.slane %v1414, 4
        %v1420 = vshrl.u32 %v1318, 16
        %v1422 = vrot.slane %v1420, 7
        %v1423 = vshll.u32 %v1318, 16
        %v1425 = vor.u32 %v1422, %v1423
        %v1426 = vsel %vm1342, %v1418, %v1425
        %v1427 = vrot.slane %v1422, 4
        %v1429 = vshrl.u32 %v1319, 16
        %v1431 = vrot.slane %v1429, 7
        %v1432 = vshll.u32 %v1319, 16
        %v1434 = vor.u32 %v1431, %v1432
        %v1435 = vrot.slane %v1431, 4
        %v1437 = vshrl.u32 %v1320, 16
        %v1439 = vrot.slane %v1437, 7
        %v1440 = vshll.u32 %v1320, 16
        %v1442 = vor.u32 %v1439, %v1440
        %v1443 = vsel %vm1342, %v1435, %v1442
        %v1444 = vrot.slane %v1439, 4
        %v1446 = vshrl.u32 %v1321, 16
        %v1448 = vrot.slane %v1446, 7
        %v1449 = vshll.u32 %v1321, 16
        %v1451 = vor.u32 %v1448, %v1449
        %v1452 = vrot.slane %v1448, 4
        %v1454 = vshrl.u32 %v1322, 16
        %v1456 = vrot.slane %v1454, 7
        %v1457 = vshll.u32 %v1322, 16
        %v1459 = vor.u32 %v1456, %v1457
        %v1460 = vsel %vm1342, %v1452, %v1459
        %v1461 = vrot.slane %v1456, 4
        %v1463 = vshrl.u32 %v1323, 16
        %v1465 = vrot.slane %v1463, 7
        %v1466 = vshll.u32 %v1323, 16
        %v1468 = vor.u32 %v1465, %v1466
        %v1469 = vrot.slane %v1465, 4
        %v1471 = vshrl.u32 %v1324, 16
        %v1473 = vrot.slane %v1471, 7
        %v1474 = vshll.u32 %v1324, 16
        %v1476 = vor.u32 %v1473, %v1474
        %v1477 = vsel %vm1342, %v1469, %v1476
        %v1478 = vrot.slane %v1473, 4
        %v1480 = vshrl.u32 %v1325, 16
        %v1482 = vrot.slane %v1480, 7
        %v1483 = vshll.u32 %v1325, 16
        %v1485 = vor.u32 %v1482, %v1483
        %v1486 = vrot.slane %v1482, 4
        %v1488 = vshrl.u32 %v1326, 16
        %v1490 = vrot.slane %v1488, 7
        %v1491 = vshll.u32 %v1326, 16
        %v1493 = vor.u32 %v1490, %v1491
        %v1494 = vsel %vm1342, %v1486, %v1493
        %v1495 = vrot.slane %v1490, 4
        %v1497 = vshrl.u32 %v1327, 16
        %v1499 = vrot.slane %v1497, 7
        %v1500 = vshll.u32 %v1327, 16
        %v1502 = vor.u32 %v1499, %v1500
        %v1503 = vrot.slane %v1499, 4
        %v1505 = vshrl.u32 %v1328, 16
        %v1507 = vrot.slane %v1505, 7
        %v1508 = vshll.u32 %v1328, 16
        %v1510 = vor.u32 %v1507, %v1508
        %v1511 = vsel %vm1342, %v1503, %v1510
        %v1512 = vrot.slane %v1507, 4
        %v1514 = vshrl.u32 %v1329, 16
        %v1516 = vrot.slane %v1514, 7
        %v1517 = vshll.u32 %v1329, 16
        %v1519 = vor.u32 %v1516, %v1517
        %v1520 = vrot.slane %v1516, 4
        %v1522 = vshrl.u32 %v1330, 16
        %v1524 = vrot.slane %v1522, 7
        %v1525 = vshll.u32 %v1330, 16
        %v1527 = vor.u32 %v1524, %v1525
        %v1528 = vsel %vm1342, %v1520, %v1527
        %v1529 = vrot.slane %v1524, 4
        %v1531 = vshrl.u32 %v1331, 16
        %v1533 = vrot.slane %v1531, 7
        %v1534 = vshll.u32 %v1331, 16
        %v1536 = vor.u32 %v1533, %v1534
        %v1537 = vrot.slane %v1533, 4
        %v1539 = vshrl.u32 %v1332, 16
        %v1541 = vrot.slane %v1539, 7
        %v1542 = vshll.u32 %v1332, 16
        %v1544 = vor.u32 %v1541, %v1542
        %v1545 = vsel %vm1342, %v1537, %v1544
        %v1546 = vrot.slane %v1541, 4
        %v1548 = vshrl.u32 %v1333, 16
        %v1550 = vrot.slane %v1548, 7
        %v1551 = vshll.u32 %v1333, 16
        %v1553 = vor.u32 %v1550, %v1551
        %v1554 = vrot.slane %v1550, 4
        %v1556 = vshrl.u32 %v1334, 16
        %v1558 = vrot.slane %v1556, 7
        %v1559 = vshll.u32 %v1334, 16
        %v1561 = vor.u32 %v1558, %v1559
        %v1562 = vsel %vm1342, %v1554, %v1561
        %v1563 = vrot.slane %v1558, 4
        %v1565 = vshrl.u32 %v1335, 16
        %v1567 = vrot.slane %v1565, 7
        %v1568 = vshll.u32 %v1335, 16
        %v1570 = vor.u32 %v1567, %v1568
        %v1571 = vrot.slane %v1567, 4
        %v1573 = vshrl.u32 %v1336, 16
        %v1575 = vrot.slane %v1573, 7
        %v1576 = vshll.u32 %v1336, 16
        %v1578 = vor.u32 %v1575, %v1576
        %v1579 = vsel %vm1342, %v1571, %v1578
        %v1580 = vrot.slane %v1575, 4
        %v1582 = vshrl.u32 %v1337, 16
        %v1584 = vrot.slane %v1582, 7
        %v1585 = vshll.u32 %v1337, 16
        %v1587 = vor.u32 %v1584, %v1585
        %v1588 = vrot.slane %v1584, 4
        %v1590 = vshrl.u32 %v1338, 16
        %v1592 = vrot.slane %v1590, 7
        %v1593 = vshll.u32 %v1338, 16
        %v1595 = vor.u32 %v1592, %v1593
        %v1596 = vsel %vm1342, %v1588, %v1595
        %v1597 = vrot.slane %v1592, 4
        %v1599 = vshrl.u32 %v1339, 16
        %v1601 = vrot.slane %v1599, 7
        %v1602 = vshll.u32 %v1339, 16
        %v1604 = vor.u32 %v1601, %v1602
        %v1605 = vrot.slane %v1601, 4
        %v1607 = vshrl.u32 %v1340, 16
        %v1609 = vrot.slane %v1607, 7
        %v1610 = vshll.u32 %v1340, 16
        %v1612 = vor.u32 %v1609, %v1610
        %v1613 = vsel %vm1342, %v1605, %v1612
        %v1614 = vrot.slane %v1609, 4
        %s1663 = scalar_lea.vmem [#allocation2], 12
        %vm1664 = vcmask 257024
        %vm1665 = vmand %vm1664, %vm466
        %v1666 = vld [vmem:[%s1663] sm:$0xf]
        %v1667 = vsel %vm1665, %v1349, %v1666
        %1668 = vst [vmem:[%s1663] sm:$0xf] %v1667
        %vm1669 = vcmask 257024
        %1670 = vst.msk [vmem:[%s1663 + $0x4] sm:$0xf] %vm1669, %v1358
        %vm1671 = vcmask 253952
        %vm1672 = vmand %vm1671, %vm410
        %v1673 = vld [vmem:[%s1663 + $0x8] sm:$0x1]
        %v1674 = vsel %vm1672, %v1359, %v1673
        %1675 = vst [vmem:[%s1663 + $0x8] sm:$0x1] %v1674
        %v1676 = vld [vmem:[%s1663 + $0xc] sm:$0xf]
        %v1677 = vsel %vm1665, %v1366, %v1676
        %1678 = vst [vmem:[%s1663 + $0xc] sm:$0xf] %v1677
        %1679 = vst.msk [vmem:[%s1663 + $0x10] sm:$0xf] %vm1669, %v1375
        %v1680 = vld [vmem:[%s1663 + $0x14] sm:$0x1]
        %v1681 = vsel %vm1672, %v1376, %v1680
        %1682 = vst [vmem:[%s1663 + $0x14] sm:$0x1] %v1681
        %v1683 = vld [vmem:[%s1663 + $0x18] sm:$0xf]
        %v1684 = vsel %vm1665, %v1383, %v1683
        %1685 = vst [vmem:[%s1663 + $0x18] sm:$0xf] %v1684
        %1686 = vst.msk [vmem:[%s1663 + $0x1c] sm:$0xf] %vm1669, %v1392
        %v1687 = vld [vmem:[%s1663 + $0x20] sm:$0x1]
        %v1688 = vsel %vm1672, %v1393, %v1687
        %1689 = vst [vmem:[%s1663 + $0x20] sm:$0x1] %v1688
        %v1690 = vld [vmem:[%s1663 + $0x24] sm:$0xf]
        %v1691 = vsel %vm1665, %v1400, %v1690
        %1692 = vst [vmem:[%s1663 + $0x24] sm:$0xf] %v1691
        %1693 = vst.msk [vmem:[%s1663 + $0x28] sm:$0xf] %vm1669, %v1409
        %v1694 = vld [vmem:[%s1663 + $0x2c] sm:$0x1]
        %v1695 = vsel %vm1672, %v1410, %v1694
        %1696 = vst [vmem:[%s1663 + $0x2c] sm:$0x1] %v1695
        %v1697 = vld [vmem:[%s1663 + $0x30] sm:$0xf]
        %v1698 = vsel %vm1665, %v1417, %v1697
        %1699 = vst [vmem:[%s1663 + $0x30] sm:$0xf] %v1698
        %1700 = vst.msk [vmem:[%s1663 + $0x34] sm:$0xf] %vm1669, %v1426
        %v1701 = vld [vmem:[%s1663 + $0x38] sm:$0x1]
        %v1702 = vsel %vm1672, %v1427, %v1701
        %1703 = vst [vmem:[%s1663 + $0x38] sm:$0x1] %v1702
        %v1704 = vld [vmem:[%s1663 + $0x3c] sm:$0xf]
        %v1705 = vsel %vm1665, %v1434, %v1704
        %1706 = vst [vmem:[%s1663 + $0x3c] sm:$0xf] %v1705
        %1707 = vst.msk [vmem:[%s1663 + $0x40] sm:$0xf] %vm1669, %v1443
        %v1708 = vld [vmem:[%s1663 + $0x44] sm:$0x1]
        %v1709 = vsel %vm1672, %v1444, %v1708
        %1710 = vst [vmem:[%s1663 + $0x44] sm:$0x1] %v1709
        %v1711 = vld [vmem:[%s1663 + $0x48] sm:$0xf]
        %v1712 = vsel %vm1665, %v1451, %v1711
        %1713 = vst [vmem:[%s1663 + $0x48] sm:$0xf] %v1712
        %1714 = vst.msk [vmem:[%s1663 + $0x4c] sm:$0xf] %vm1669, %v1460
        %v1715 = vld [vmem:[%s1663 + $0x50] sm:$0x1]
        %v1716 = vsel %vm1672, %v1461, %v1715
        %1717 = vst [vmem:[%s1663 + $0x50] sm:$0x1] %v1716
        %v1718 = vld [vmem:[%s1663 + $0x54] sm:$0xf]
        %v1719 = vsel %vm1665, %v1468, %v1718
        %1720 = vst [vmem:[%s1663 + $0x54] sm:$0xf] %v1719
        %1721 = vst.msk [vmem:[%s1663 + $0x58] sm:$0xf] %vm1669, %v1477
        %v1722 = vld [vmem:[%s1663 + $0x5c] sm:$0x1]
        %v1723 = vsel %vm1672, %v1478, %v1722
        %1724 = vst [vmem:[%s1663 + $0x5c] sm:$0x1] %v1723
        %v1725 = vld [vmem:[%s1663 + $0x60] sm:$0xf]
        %v1726 = vsel %vm1665, %v1485, %v1725
        %1727 = vst [vmem:[%s1663 + $0x60] sm:$0xf] %v1726
        %1728 = vst.msk [vmem:[%s1663 + $0x64] sm:$0xf] %vm1669, %v1494
        %v1729 = vld [vmem:[%s1663 + $0x68] sm:$0x1]
        %v1730 = vsel %vm1672, %v1495, %v1729
        %1731 = vst [vmem:[%s1663 + $0x68] sm:$0x1] %v1730
        %v1732 = vld [vmem:[%s1663 + $0x6c] sm:$0xf]
        %v1733 = vsel %vm1665, %v1502, %v1732
        %1734 = vst [vmem:[%s1663 + $0x6c] sm:$0xf] %v1733
        %1735 = vst.msk [vmem:[%s1663 + $0x70] sm:$0xf] %vm1669, %v1511
        %v1736 = vld [vmem:[%s1663 + $0x74] sm:$0x1]
        %v1737 = vsel %vm1672, %v1512, %v1736
        %1738 = vst [vmem:[%s1663 + $0x74] sm:$0x1] %v1737
        %v1739 = vld [vmem:[%s1663 + $0x78] sm:$0xf]
        %v1740 = vsel %vm1665, %v1519, %v1739
        %1741 = vst [vmem:[%s1663 + $0x78] sm:$0xf] %v1740
        %1742 = vst.msk [vmem:[%s1663 + $0x7c] sm:$0xf] %vm1669, %v1528
        %v1743 = vld [vmem:[%s1663 + $0x80] sm:$0x1]
        %v1744 = vsel %vm1672, %v1529, %v1743
        %1745 = vst [vmem:[%s1663 + $0x80] sm:$0x1] %v1744
        %v1746 = vld [vmem:[%s1663 + $0x84] sm:$0xf]
        %v1747 = vsel %vm1665, %v1536, %v1746
        %1748 = vst [vmem:[%s1663 + $0x84] sm:$0xf] %v1747
        %1749 = vst.msk [vmem:[%s1663 + $0x88] sm:$0xf] %vm1669, %v1545
        %v1750 = vld [vmem:[%s1663 + $0x8c] sm:$0x1]
        %v1751 = vsel %vm1672, %v1546, %v1750
        %1752 = vst [vmem:[%s1663 + $0x8c] sm:$0x1] %v1751
        %v1753 = vld [vmem:[%s1663 + $0x90] sm:$0xf]
        %v1754 = vsel %vm1665, %v1553, %v1753
        %1755 = vst [vmem:[%s1663 + $0x90] sm:$0xf] %v1754
        %1756 = vst.msk [vmem:[%s1663 + $0x94] sm:$0xf] %vm1669, %v1562
        %v1757 = vld [vmem:[%s1663 + $0x98] sm:$0x1]
        %v1758 = vsel %vm1672, %v1563, %v1757
        %1759 = vst [vmem:[%s1663 + $0x98] sm:$0x1] %v1758
        %v1760 = vld [vmem:[%s1663 + $0x9c] sm:$0xf]
        %v1761 = vsel %vm1665, %v1570, %v1760
        %1762 = vst [vmem:[%s1663 + $0x9c] sm:$0xf] %v1761
        %1763 = vst.msk [vmem:[%s1663 + $0xa0] sm:$0xf] %vm1669, %v1579
        %v1764 = vld [vmem:[%s1663 + $0xa4] sm:$0x1]
        %v1765 = vsel %vm1672, %v1580, %v1764
        %1766 = vst [vmem:[%s1663 + $0xa4] sm:$0x1] %v1765
        %v1767 = vld [vmem:[%s1663 + $0xa8] sm:$0xf]
        %v1768 = vsel %vm1665, %v1587, %v1767
        %1769 = vst [vmem:[%s1663 + $0xa8] sm:$0xf] %v1768
        %1770 = vst.msk [vmem:[%s1663 + $0xac] sm:$0xf] %vm1669, %v1596
        %v1771 = vld [vmem:[%s1663 + $0xb0] sm:$0x1]
        %v1772 = vsel %vm1672, %v1597, %v1771
        %1773 = vst [vmem:[%s1663 + $0xb0] sm:$0x1] %v1772
        %v1774 = vld [vmem:[%s1663 + $0xb4] sm:$0xf]
        %v1775 = vsel %vm1665, %v1604, %v1774
        %1776 = vst [vmem:[%s1663 + $0xb4] sm:$0xf] %v1775
        %1777 = vst.msk [vmem:[%s1663 + $0xb8] sm:$0xf] %vm1669, %v1613
        %v1778 = vld [vmem:[%s1663 + $0xbc] sm:$0x1]
        %v1779 = vsel %vm1672, %v1614, %v1778
        %1780 = vst [vmem:[%s1663 + $0xbc] sm:$0x1] %v1779
        %v1781 = vld [vmem:[#allocation2] sm:$0xf]
        %v1782 = vld [vmem:[#allocation2 + $0x4] sm:$0xf]
        %v1783 = vld [vmem:[#allocation2 + $0xc] sm:$0xf]
        %v1784 = vld [vmem:[#allocation2 + $0x10] sm:$0xf]
        %v1785 = vld [vmem:[#allocation2 + $0x18] sm:$0xf]
        %v1786 = vld [vmem:[#allocation2 + $0x1c] sm:$0xf]
        %v1787 = vld [vmem:[#allocation2 + $0x24] sm:$0xf]
        %v1788 = vld [vmem:[#allocation2 + $0x28] sm:$0xf]
        %v1789 = vld [vmem:[#allocation2 + $0x30] sm:$0xf]
        %v1790 = vld [vmem:[#allocation2 + $0x34] sm:$0xf]
        %v1791 = vld [vmem:[#allocation2 + $0x3c] sm:$0xf]
        %v1792 = vld [vmem:[#allocation2 + $0x40] sm:$0xf]
        %v1793 = vld [vmem:[#allocation2 + $0x48] sm:$0xf]
        %v1794 = vld [vmem:[#allocation2 + $0x4c] sm:$0xf]
        %v1795 = vld [vmem:[#allocation2 + $0x54] sm:$0xf]
        %v1796 = vld [vmem:[#allocation2 + $0x58] sm:$0xf]
        %v1797 = vld [vmem:[#allocation2 + $0x60] sm:$0xf]
        %v1798 = vld [vmem:[#allocation2 + $0x64] sm:$0xf]
        %v1799 = vld [vmem:[#allocation2 + $0x6c] sm:$0xf]
        %v1800 = vld [vmem:[#allocation2 + $0x70] sm:$0xf]
        %v1801 = vld [vmem:[#allocation2 + $0x78] sm:$0xf]
        %v1802 = vld [vmem:[#allocation2 + $0x7c] sm:$0xf]
        %v1803 = vld [vmem:[#allocation2 + $0x84] sm:$0xf]
        %v1804 = vld [vmem:[#allocation2 + $0x88] sm:$0xf]
        %v1805 = vld [vmem:[#allocation2 + $0x90] sm:$0xf]
        %v1806 = vld [vmem:[#allocation2 + $0x94] sm:$0xf]
        %v1807 = vld [vmem:[#allocation2 + $0x9c] sm:$0xf]
        %v1808 = vld [vmem:[#allocation2 + $0xa0] sm:$0xf]
        %v1809 = vld [vmem:[#allocation2 + $0xa8] sm:$0xf]
        %v1810 = vld [vmem:[#allocation2 + $0xac] sm:$0xf]
        %v1811 = vld [vmem:[#allocation2 + $0xb4] sm:$0xf]
        %v1812 = vld [vmem:[#allocation2 + $0xb8] sm:$0xf]
        %v1813 = vld [vmem:[#allocation2 + $0x8] sm:$0x1]
        %v1814 = vld [vmem:[#allocation2 + $0x14] sm:$0x1]
        %v1815 = vld [vmem:[#allocation2 + $0x20] sm:$0x1]
        %v1816 = vld [vmem:[#allocation2 + $0x2c] sm:$0x1]
        %v1817 = vld [vmem:[#allocation2 + $0x38] sm:$0x1]
        %v1818 = vld [vmem:[#allocation2 + $0x44] sm:$0x1]
        %v1819 = vld [vmem:[#allocation2 + $0x50] sm:$0x1]
        %v1820 = vld [vmem:[#allocation2 + $0x5c] sm:$0x1]
        %v1821 = vld [vmem:[#allocation2 + $0x68] sm:$0x1]
        %v1822 = vld [vmem:[#allocation2 + $0x74] sm:$0x1]
        %v1823 = vld [vmem:[#allocation2 + $0x80] sm:$0x1]
        %v1824 = vld [vmem:[#allocation2 + $0x8c] sm:$0x1]
        %v1825 = vld [vmem:[#allocation2 + $0x98] sm:$0x1]
        %v1826 = vld [vmem:[#allocation2 + $0xa4] sm:$0x1]
        %v1827 = vld [vmem:[#allocation2 + $0xb0] sm:$0x1]
        %v1828 = vld [vmem:[#allocation2 + $0xbc] sm:$0x1]
        %v1829 = vld [vmem:[#allocation2] sm:$0xe]
        %v1830 = vld [vmem:[#allocation2 + $0xc] sm:$0xe]
        %v1831 = vld [vmem:[#allocation2 + $0x18] sm:$0xe]
        %v1832 = vld [vmem:[#allocation2 + $0x24] sm:$0xe]
        %v1833 = vld [vmem:[#allocation2 + $0x30] sm:$0xe]
        %v1834 = vld [vmem:[#allocation2 + $0x3c] sm:$0xe]
        %v1835 = vld [vmem:[#allocation2 + $0x48] sm:$0xe]
        %v1836 = vld [vmem:[#allocation2 + $0x54] sm:$0xe]
        %v1837 = vld [vmem:[#allocation2 + $0x60] sm:$0xe]
        %v1838 = vld [vmem:[#allocation2 + $0x6c] sm:$0xe]
        %v1839 = vld [vmem:[#allocation2 + $0x78] sm:$0xe]
        %v1840 = vld [vmem:[#allocation2 + $0x84] sm:$0xe]
        %v1841 = vld [vmem:[#allocation2 + $0x90] sm:$0xe]
        %v1842 = vld [vmem:[#allocation2 + $0x9c] sm:$0xe]
        %v1843 = vld [vmem:[#allocation2 + $0xa8] sm:$0xe]
        %v1844 = vld [vmem:[#allocation2 + $0xb4] sm:$0xe]
        %v1845 = vld [vmem:[%s1663] sm:$0xf]
        %v1846 = vld [vmem:[%s1663 + $0x4] sm:$0xf]
        %v1847 = vld [vmem:[%s1663 + $0xc] sm:$0xf]
        %v1848 = vld [vmem:[%s1663 + $0x10] sm:$0xf]
        %v1849 = vld [vmem:[%s1663 + $0x18] sm:$0xf]
        %v1850 = vld [vmem:[%s1663 + $0x1c] sm:$0xf]
        %v1851 = vld [vmem:[%s1663 + $0x24] sm:$0xf]
        %v1852 = vld [vmem:[%s1663 + $0x28] sm:$0xf]
        %v1853 = vld [vmem:[%s1663 + $0x30] sm:$0xf]
        %v1854 = vld [vmem:[%s1663 + $0x34] sm:$0xf]
        %v1855 = vld [vmem:[%s1663 + $0x3c] sm:$0xf]
        %v1856 = vld [vmem:[%s1663 + $0x40] sm:$0xf]
        %v1857 = vld [vmem:[%s1663 + $0x48] sm:$0xf]
        %v1858 = vld [vmem:[%s1663 + $0x4c] sm:$0xf]
        %v1859 = vld [vmem:[%s1663 + $0x54] sm:$0xf]
        %v1860 = vld [vmem:[%s1663 + $0x58] sm:$0xf]
        %v1861 = vld [vmem:[%s1663 + $0x60] sm:$0xf]
        %v1862 = vld [vmem:[%s1663 + $0x64] sm:$0xf]
        %v1863 = vld [vmem:[%s1663 + $0x6c] sm:$0xf]
        %v1864 = vld [vmem:[%s1663 + $0x70] sm:$0xf]
        %v1865 = vld [vmem:[%s1663 + $0x78] sm:$0xf]
        %v1866 = vld [vmem:[%s1663 + $0x7c] sm:$0xf]
        %v1867 = vld [vmem:[%s1663 + $0x84] sm:$0xf]
        %v1868 = vld [vmem:[%s1663 + $0x88] sm:$0xf]
        %v1869 = vld [vmem:[%s1663 + $0x90] sm:$0xf]
        %v1870 = vld [vmem:[%s1663 + $0x94] sm:$0xf]
        %v1871 = vld [vmem:[%s1663 + $0x9c] sm:$0xf]
        %v1872 = vld [vmem:[%s1663 + $0xa0] sm:$0xf]
        %v1873 = vld [vmem:[%s1663 + $0xa8] sm:$0xf]
        %v1874 = vld [vmem:[%s1663 + $0xac] sm:$0xf]
        %v1875 = vld [vmem:[%s1663 + $0xb4] sm:$0xf]
        %v1876 = vld [vmem:[%s1663 + $0xb8] sm:$0xf]
        %v1877 = vld [vmem:[%s1663 + $0x8] sm:$0x1]
        %v1878 = vld [vmem:[%s1663 + $0x14] sm:$0x1]
        %v1879 = vld [vmem:[%s1663 + $0x20] sm:$0x1]
        %v1880 = vld [vmem:[%s1663 + $0x2c] sm:$0x1]
        %v1881 = vld [vmem:[%s1663 + $0x38] sm:$0x1]
        %v1882 = vld [vmem:[%s1663 + $0x44] sm:$0x1]
        %v1883 = vld [vmem:[%s1663 + $0x50] sm:$0x1]
        %v1884 = vld [vmem:[%s1663 + $0x5c] sm:$0x1]
        %v1885 = vld [vmem:[%s1663 + $0x68] sm:$0x1]
        %v1886 = vld [vmem:[%s1663 + $0x74] sm:$0x1]
        %v1887 = vld [vmem:[%s1663 + $0x80] sm:$0x1]
        %v1888 = vld [vmem:[%s1663 + $0x8c] sm:$0x1]
        %v1889 = vld [vmem:[%s1663 + $0x98] sm:$0x1]
        %v1890 = vld [vmem:[%s1663 + $0xa4] sm:$0x1]
        %v1891 = vld [vmem:[%s1663 + $0xb0] sm:$0x1]
        %v1892 = vld [vmem:[%s1663 + $0xbc] sm:$0x1]
        %v1893 = vld [vmem:[%s1663] sm:$0xe]
        %v1894 = vld [vmem:[%s1663 + $0xc] sm:$0xe]
        %v1895 = vld [vmem:[%s1663 + $0x18] sm:$0xe]
        %v1896 = vld [vmem:[%s1663 + $0x24] sm:$0xe]
        %v1897 = vld [vmem:[%s1663 + $0x30] sm:$0xe]
        %v1898 = vld [vmem:[%s1663 + $0x3c] sm:$0xe]
        %v1899 = vld [vmem:[%s1663 + $0x48] sm:$0xe]
        %v1900 = vld [vmem:[%s1663 + $0x54] sm:$0xe]
        %v1901 = vld [vmem:[%s1663 + $0x60] sm:$0xe]
        %v1902 = vld [vmem:[%s1663 + $0x6c] sm:$0xe]
        %v1903 = vld [vmem:[%s1663 + $0x78] sm:$0xe]
        %v1904 = vld [vmem:[%s1663 + $0x84] sm:$0xe]
        %v1905 = vld [vmem:[%s1663 + $0x90] sm:$0xe]
        %v1906 = vld [vmem:[%s1663 + $0x9c] sm:$0xe]
        %v1907 = vld [vmem:[%s1663 + $0xa8] sm:$0xe]
        %v1908 = vld [vmem:[%s1663 + $0xb4] sm:$0xe]
        %s1909 = scalar_lea.vmem [#allocation2], 24
        %v1910 = vld [vmem:[%s1909] sm:$0xf]
        %v1911 = vld [vmem:[%s1909 + $0x4] sm:$0xf]
        %v1912 = vld [vmem:[%s1909 + $0xc] sm:$0xf]
        %v1913 = vld [vmem:[%s1909 + $0x10] sm:$0xf]
        %v1914 = vld [vmem:[%s1909 + $0x18] sm:$0xf]
        %v1915 = vld [vmem:[%s1909 + $0x1c] sm:$0xf]
        %v1916 = vld [vmem:[%s1909 + $0x24] sm:$0xf]
        %v1917 = vld [vmem:[%s1909 + $0x28] sm:$0xf]
        %v1918 = vld [vmem:[%s1909 + $0x30] sm:$0xf]
        %v1919 = vld [vmem:[%s1909 + $0x34] sm:$0xf]
        %v1920 = vld [vmem:[%s1909 + $0x3c] sm:$0xf]
        %v1921 = vld [vmem:[%s1909 + $0x40] sm:$0xf]
        %v1922 = vld [vmem:[%s1909 + $0x48] sm:$0xf]
        %v1923 = vld [vmem:[%s1909 + $0x4c] sm:$0xf]
        %v1924 = vld [vmem:[%s1909 + $0x54] sm:$0xf]
        %v1925 = vld [vmem:[%s1909 + $0x58] sm:$0xf]
        %v1926 = vld [vmem:[%s1909 + $0x60] sm:$0xf]
        %v1927 = vld [vmem:[%s1909 + $0x64] sm:$0xf]
        %v1928 = vld [vmem:[%s1909 + $0x6c] sm:$0xf]
        %v1929 = vld [vmem:[%s1909 + $0x70] sm:$0xf]
        %v1930 = vld [vmem:[%s1909 + $0x78] sm:$0xf]
        %v1931 = vld [vmem:[%s1909 + $0x7c] sm:$0xf]
        %v1932 = vld [vmem:[%s1909 + $0x84] sm:$0xf]
        %v1933 = vld [vmem:[%s1909 + $0x88] sm:$0xf]
        %v1934 = vld [vmem:[%s1909 + $0x90] sm:$0xf]
        %v1935 = vld [vmem:[%s1909 + $0x94] sm:$0xf]
        %v1936 = vld [vmem:[%s1909 + $0x9c] sm:$0xf]
        %v1937 = vld [vmem:[%s1909 + $0xa0] sm:$0xf]
        %v1938 = vld [vmem:[%s1909 + $0xa8] sm:$0xf]
        %v1939 = vld [vmem:[%s1909 + $0xac] sm:$0xf]
        %v1940 = vld [vmem:[%s1909 + $0xb4] sm:$0xf]
        %v1941 = vld [vmem:[%s1909 + $0xb8] sm:$0xf]
        %v1942 = vld [vmem:[%s1909 + $0x8] sm:$0x1]
        %v1943 = vld [vmem:[%s1909 + $0x14] sm:$0x1]
        %v1944 = vld [vmem:[%s1909 + $0x20] sm:$0x1]
        %v1945 = vld [vmem:[%s1909 + $0x2c] sm:$0x1]
        %v1946 = vld [vmem:[%s1909 + $0x38] sm:$0x1]
        %v1947 = vld [vmem:[%s1909 + $0x44] sm:$0x1]
        %v1948 = vld [vmem:[%s1909 + $0x50] sm:$0x1]
        %v1949 = vld [vmem:[%s1909 + $0x5c] sm:$0x1]
        %v1950 = vld [vmem:[%s1909 + $0x68] sm:$0x1]
        %v1951 = vld [vmem:[%s1909 + $0x74] sm:$0x1]
        %v1952 = vld [vmem:[%s1909 + $0x80] sm:$0x1]
        %v1953 = vld [vmem:[%s1909 + $0x8c] sm:$0x1]
        %v1954 = vld [vmem:[%s1909 + $0x98] sm:$0x1]
        %v1955 = vld [vmem:[%s1909 + $0xa4] sm:$0x1]
        %v1956 = vld [vmem:[%s1909 + $0xb0] sm:$0x1]
        %v1957 = vld [vmem:[%s1909 + $0xbc] sm:$0x1]
        %v1958 = vld [vmem:[%s1909] sm:$0xe]
        %v1959 = vld [vmem:[%s1909 + $0xc] sm:$0xe]
        %v1960 = vld [vmem:[%s1909 + $0x18] sm:$0xe]
        %v1961 = vld [vmem:[%s1909 + $0x24] sm:$0xe]
        %v1962 = vld [vmem:[%s1909 + $0x30] sm:$0xe]
        %v1963 = vld [vmem:[%s1909 + $0x3c] sm:$0xe]
        %v1964 = vld [vmem:[%s1909 + $0x48] sm:$0xe]
        %v1965 = vld [vmem:[%s1909 + $0x54] sm:$0xe]
        %v1966 = vld [vmem:[%s1909 + $0x60] sm:$0xe]
        %v1967 = vld [vmem:[%s1909 + $0x6c] sm:$0xe]
        %v1968 = vld [vmem:[%s1909 + $0x78] sm:$0xe]
        %v1969 = vld [vmem:[%s1909 + $0x84] sm:$0xe]
        %v1970 = vld [vmem:[%s1909 + $0x90] sm:$0xe]
        %v1971 = vld [vmem:[%s1909 + $0x9c] sm:$0xe]
        %v1972 = vld [vmem:[%s1909 + $0xa8] sm:$0xe]
        %v1973 = vld [vmem:[%s1909 + $0xb4] sm:$0xe]
        %v2006 = vunpack.c.l.b16 %v1781
        %v2007 = vunpack.c.l.b16 %v1782
        %v2008 = vunpack.c.l.b16 %v1783
        %v2009 = vunpack.c.l.b16 %v1784
        %v2010 = vunpack.c.l.b16 %v1785
        %v2011 = vunpack.c.l.b16 %v1786
        %v2012 = vunpack.c.l.b16 %v1787
        %v2013 = vunpack.c.l.b16 %v1788
        %v2014 = vunpack.c.l.b16 %v1789
        %v2015 = vunpack.c.l.b16 %v1790
        %v2016 = vunpack.c.l.b16 %v1791
        %v2017 = vunpack.c.l.b16 %v1792
        %v2018 = vunpack.c.l.b16 %v1793
        %v2019 = vunpack.c.l.b16 %v1794
        %v2020 = vunpack.c.l.b16 %v1795
        %v2021 = vunpack.c.l.b16 %v1796
        %v2022 = vunpack.c.l.b16 %v1797
        %v2023 = vunpack.c.l.b16 %v1798
        %v2024 = vunpack.c.l.b16 %v1799
        %v2025 = vunpack.c.l.b16 %v1800
        %v2026 = vunpack.c.l.b16 %v1801
        %v2027 = vunpack.c.l.b16 %v1802
        %v2028 = vunpack.c.l.b16 %v1803
        %v2029 = vunpack.c.l.b16 %v1804
        %v2030 = vunpack.c.l.b16 %v1805
        %v2031 = vunpack.c.l.b16 %v1806
        %v2032 = vunpack.c.l.b16 %v1807
        %v2033 = vunpack.c.l.b16 %v1808
        %v2034 = vunpack.c.l.b16 %v1809
        %v2035 = vunpack.c.l.b16 %v1810
        %v2036 = vunpack.c.l.b16 %v1811
        %v2037 = vunpack.c.l.b16 %v1812
        %v2038 = vpack.c.b16 %v2007, %v2006
        %v2039 = vpack.c.b16 %v2009, %v2008
        %v2040 = vpack.c.b16 %v2011, %v2010
        %v2041 = vpack.c.b16 %v2013, %v2012
        %v2042 = vpack.c.b16 %v2015, %v2014
        %v2043 = vpack.c.b16 %v2017, %v2016
        %v2044 = vpack.c.b16 %v2019, %v2018
        %v2045 = vpack.c.b16 %v2021, %v2020
        %v2046 = vpack.c.b16 %v2023, %v2022
        %v2047 = vpack.c.b16 %v2025, %v2024
        %v2048 = vpack.c.b16 %v2027, %v2026
        %v2049 = vpack.c.b16 %v2029, %v2028
        %v2050 = vpack.c.b16 %v2031, %v2030
        %v2051 = vpack.c.b16 %v2033, %v2032
        %v2052 = vpack.c.b16 %v2035, %v2034
        %v2053 = vpack.c.b16 %v2037, %v2036
        %v2070 = vunpack.c.l.b16 %v1813
        %v2071 = vunpack.c.l.b16 %v1814
        %v2072 = vunpack.c.l.b16 %v1815
        %v2073 = vunpack.c.l.b16 %v1816
        %v2074 = vunpack.c.l.b16 %v1817
        %v2075 = vunpack.c.l.b16 %v1818
        %v2076 = vunpack.c.l.b16 %v1819
        %v2077 = vunpack.c.l.b16 %v1820
        %v2078 = vunpack.c.l.b16 %v1821
        %v2079 = vunpack.c.l.b16 %v1822
        %v2080 = vunpack.c.l.b16 %v1823
        %v2081 = vunpack.c.l.b16 %v1824
        %v2082 = vunpack.c.l.b16 %v1825
        %v2083 = vunpack.c.l.b16 %v1826
        %v2084 = vunpack.c.l.b16 %v1827
        %v2085 = vunpack.c.l.b16 %v1828
        %v2086 = vpack.c.b16 %v2070, %v2070
        %v2087 = vpack.c.b16 %v2071, %v2071
        %v2088 = vpack.c.b16 %v2072, %v2072
        %v2089 = vpack.c.b16 %v2073, %v2073
        %v2090 = vpack.c.b16 %v2074, %v2074
        %v2091 = vpack.c.b16 %v2075, %v2075
        %v2092 = vpack.c.b16 %v2076, %v2076
        %v2093 = vpack.c.b16 %v2077, %v2077
        %v2094 = vpack.c.b16 %v2078, %v2078
        %v2095 = vpack.c.b16 %v2079, %v2079
        %v2096 = vpack.c.b16 %v2080, %v2080
        %v2097 = vpack.c.b16 %v2081, %v2081
        %v2098 = vpack.c.b16 %v2082, %v2082
        %v2099 = vpack.c.b16 %v2083, %v2083
        %v2100 = vpack.c.b16 %v2084, %v2084
        %v2101 = vpack.c.b16 %v2085, %v2085
        %vm2102 = vsmask.f32 7424
        %v2104 = vshrl.u32 %v2038, 16
        %v2106 = vshll.u32 %v2038, 16
        %v2108 = vrot.slane %v2106, 1
        %v2109 = vor.u32 %v2104, %v2108
        %v2111 = vshll.u32 %v2086, 16
        %v2113 = vrot.slane %v2111, 1
        %v2114 = vsel %vm2102, %v2109, %v2113
        %v2116 = vshrl.u32 %v2039, 16
        %v2118 = vshll.u32 %v2039, 16
        %v2120 = vrot.slane %v2118, 1
        %v2121 = vor.u32 %v2116, %v2120
        %v2123 = vshll.u32 %v2087, 16
        %v2125 = vrot.slane %v2123, 1
        %v2126 = vsel %vm2102, %v2121, %v2125
        %v2128 = vshrl.u32 %v2040, 16
        %v2130 = vshll.u32 %v2040, 16
        %v2132 = vrot.slane %v2130, 1
        %v2133 = vor.u32 %v2128, %v2132
        %v2135 = vshll.u32 %v2088, 16
        %v2137 = vrot.slane %v2135, 1
        %v2138 = vsel %vm2102, %v2133, %v2137
        %v2140 = vshrl.u32 %v2041, 16
        %v2142 = vshll.u32 %v2041, 16
        %v2144 = vrot.slane %v2142, 1
        %v2145 = vor.u32 %v2140, %v2144
        %v2147 = vshll.u32 %v2089, 16
        %v2149 = vrot.slane %v2147, 1
        %v2150 = vsel %vm2102, %v2145, %v2149
        %v2152 = vshrl.u32 %v2042, 16
        %v2154 = vshll.u32 %v2042, 16
        %v2156 = vrot.slane %v2154, 1
        %v2157 = vor.u32 %v2152, %v2156
        %v2159 = vshll.u32 %v2090, 16
        %v2161 = vrot.slane %v2159, 1
        %v2162 = vsel %vm2102, %v2157, %v2161
        %v2164 = vshrl.u32 %v2043, 16
        %v2166 = vshll.u32 %v2043, 16
        %v2168 = vrot.slane %v2166, 1
        %v2169 = vor.u32 %v2164, %v2168
        %v2171 = vshll.u32 %v2091, 16
        %v2173 = vrot.slane %v2171, 1
        %v2174 = vsel %vm2102, %v2169, %v2173
        %v2176 = vshrl.u32 %v2044, 16
        %v2178 = vshll.u32 %v2044, 16
        %v2180 = vrot.slane %v2178, 1
        %v2181 = vor.u32 %v2176, %v2180
        %v2183 = vshll.u32 %v2092, 16
        %v2185 = vrot.slane %v2183, 1
        %v2186 = vsel %vm2102, %v2181, %v2185
        %v2188 = vshrl.u32 %v2045, 16
        %v2190 = vshll.u32 %v2045, 16
        %v2192 = vrot.slane %v2190, 1
        %v2193 = vor.u32 %v2188, %v2192
        %v2195 = vshll.u32 %v2093, 16
        %v2197 = vrot.slane %v2195, 1
        %v2198 = vsel %vm2102, %v2193, %v2197
        %v2200 = vshrl.u32 %v2046, 16
        %v2202 = vshll.u32 %v2046, 16
        %v2204 = vrot.slane %v2202, 1
        %v2205 = vor.u32 %v2200, %v2204
        %v2207 = vshll.u32 %v2094, 16
        %v2209 = vrot.slane %v2207, 1
        %v2210 = vsel %vm2102, %v2205, %v2209
        %v2212 = vshrl.u32 %v2047, 16
        %v2214 = vshll.u32 %v2047, 16
        %v2216 = vrot.slane %v2214, 1
        %v2217 = vor.u32 %v2212, %v2216
        %v2219 = vshll.u32 %v2095, 16
        %v2221 = vrot.slane %v2219, 1
        %v2222 = vsel %vm2102, %v2217, %v2221
        %v2224 = vshrl.u32 %v2048, 16
        %v2226 = vshll.u32 %v2048, 16
        %v2228 = vrot.slane %v2226, 1
        %v2229 = vor.u32 %v2224, %v2228
        %v2231 = vshll.u32 %v2096, 16
        %v2233 = vrot.slane %v2231, 1
        %v2234 = vsel %vm2102, %v2229, %v2233
        %v2236 = vshrl.u32 %v2049, 16
        %v2238 = vshll.u32 %v2049, 16
        %v2240 = vrot.slane %v2238, 1
        %v2241 = vor.u32 %v2236, %v2240
        %v2243 = vshll.u32 %v2097, 16
        %v2245 = vrot.slane %v2243, 1
        %v2246 = vsel %vm2102, %v2241, %v2245
        %v2248 = vshrl.u32 %v2050, 16
        %v2250 = vshll.u32 %v2050, 16
        %v2252 = vrot.slane %v2250, 1
        %v2253 = vor.u32 %v2248, %v2252
        %v2255 = vshll.u32 %v2098, 16
        %v2257 = vrot.slane %v2255, 1
        %v2258 = vsel %vm2102, %v2253, %v2257
        %v2260 = vshrl.u32 %v2051, 16
        %v2262 = vshll.u32 %v2051, 16
        %v2264 = vrot.slane %v2262, 1
        %v2265 = vor.u32 %v2260, %v2264
        %v2267 = vshll.u32 %v2099, 16
        %v2269 = vrot.slane %v2267, 1
        %v2270 = vsel %vm2102, %v2265, %v2269
        %v2272 = vshrl.u32 %v2052, 16
        %v2274 = vshll.u32 %v2052, 16
        %v2276 = vrot.slane %v2274, 1
        %v2277 = vor.u32 %v2272, %v2276
        %v2279 = vshll.u32 %v2100, 16
        %v2281 = vrot.slane %v2279, 1
        %v2282 = vsel %vm2102, %v2277, %v2281
        %v2284 = vshrl.u32 %v2053, 16
        %v2286 = vshll.u32 %v2053, 16
        %v2288 = vrot.slane %v2286, 1
        %v2289 = vor.u32 %v2284, %v2288
        %v2291 = vshll.u32 %v2101, 16
        %v2293 = vrot.slane %v2291, 1
        %v2294 = vsel %vm2102, %v2289, %v2293
        %2295 = vrot.lane.b32.xlu0 %v2114, 32
        %v2296 = vpop.permute.xlu0 %2295
        %2297 = vrot.lane.b32.xlu0 %v2126, 32
        %v2298 = vpop.permute.xlu0 %2297
        %2299 = vrot.lane.b32.xlu0 %v2138, 32
        %v2300 = vpop.permute.xlu0 %2299
        %2301 = vrot.lane.b32.xlu0 %v2150, 32
        %v2302 = vpop.permute.xlu0 %2301
        %2303 = vrot.lane.b32.xlu0 %v2162, 32
        %v2304 = vpop.permute.xlu0 %2303
        %2305 = vrot.lane.b32.xlu0 %v2174, 32
        %v2306 = vpop.permute.xlu0 %2305
        %2307 = vrot.lane.b32.xlu0 %v2186, 32
        %v2308 = vpop.permute.xlu0 %2307
        %2309 = vrot.lane.b32.xlu0 %v2198, 32
        %v2310 = vpop.permute.xlu0 %2309
        %2311 = vrot.lane.b32.xlu0 %v2210, 32
        %v2312 = vpop.permute.xlu0 %2311
        %2313 = vrot.lane.b32.xlu0 %v2222, 32
        %v2314 = vpop.permute.xlu0 %2313
        %2315 = vrot.lane.b32.xlu0 %v2234, 32
        %v2316 = vpop.permute.xlu0 %2315
        %2317 = vrot.lane.b32.xlu0 %v2246, 32
        %v2318 = vpop.permute.xlu0 %2317
        %2319 = vrot.lane.b32.xlu0 %v2258, 32
        %v2320 = vpop.permute.xlu0 %2319
        %2321 = vrot.lane.b32.xlu0 %v2270, 32
        %v2322 = vpop.permute.xlu0 %2321
        %2323 = vrot.lane.b32.xlu0 %v2282, 32
        %v2324 = vpop.permute.xlu0 %2323
        %2325 = vrot.lane.b32.xlu0 %v2294, 32
        %v2326 = vpop.permute.xlu0 %2325
        %v2343 = vunpack.c.l.b16 %v1829
        %v2344 = vunpack.c.l.b16 %v1830
        %v2345 = vunpack.c.l.b16 %v1831
        %v2346 = vunpack.c.l.b16 %v1832
        %v2347 = vunpack.c.l.b16 %v1833
        %v2348 = vunpack.c.l.b16 %v1834
        %v2349 = vunpack.c.l.b16 %v1835
        %v2350 = vunpack.c.l.b16 %v1836
        %v2351 = vunpack.c.l.b16 %v1837
        %v2352 = vunpack.c.l.b16 %v1838
        %v2353 = vunpack.c.l.b16 %v1839
        %v2354 = vunpack.c.l.b16 %v1840
        %v2355 = vunpack.c.l.b16 %v1841
        %v2356 = vunpack.c.l.b16 %v1842
        %v2357 = vunpack.c.l.b16 %v1843
        %v2358 = vunpack.c.l.b16 %v1844
        %v2359 = vpack.c.b16 %v2007, %v2343
        %v2360 = vpack.c.b16 %v2009, %v2344
        %v2361 = vpack.c.b16 %v2011, %v2345
        %v2362 = vpack.c.b16 %v2013, %v2346
        %v2363 = vpack.c.b16 %v2015, %v2347
        %v2364 = vpack.c.b16 %v2017, %v2348
        %v2365 = vpack.c.b16 %v2019, %v2349
        %v2366 = vpack.c.b16 %v2021, %v2350
        %v2367 = vpack.c.b16 %v2023, %v2351
        %v2368 = vpack.c.b16 %v2025, %v2352
        %v2369 = vpack.c.b16 %v2027, %v2353
        %v2370 = vpack.c.b16 %v2029, %v2354
        %v2371 = vpack.c.b16 %v2031, %v2355
        %v2372 = vpack.c.b16 %v2033, %v2356
        %v2373 = vpack.c.b16 %v2035, %v2357
        %v2374 = vpack.c.b16 %v2037, %v2358
        %vm2375 = vcmask 1046528
        %v2376 = vrot.slane %v2359, 1
        %v2377 = vrot.slane %v2086, 1
        %v2378 = vsel %vm2375, %v2376, %v2377
        %v2379 = vrot.slane %v2360, 1
        %v2380 = vrot.slane %v2087, 1
        %v2381 = vsel %vm2375, %v2379, %v2380
        %v2382 = vrot.slane %v2361, 1
        %v2383 = vrot.slane %v2088, 1
        %v2384 = vsel %vm2375, %v2382, %v2383
        %v2385 = vrot.slane %v2362, 1
        %v2386 = vrot.slane %v2089, 1
        %v2387 = vsel %vm2375, %v2385, %v2386
        %v2388 = vrot.slane %v2363, 1
        %v2389 = vrot.slane %v2090, 1
        %v2390 = vsel %vm2375, %v2388, %v2389
        %v2391 = vrot.slane %v2364, 1
        %v2392 = vrot.slane %v2091, 1
        %v2393 = vsel %vm2375, %v2391, %v2392
        %v2394 = vrot.slane %v2365, 1
        %v2395 = vrot.slane %v2092, 1
        %v2396 = vsel %vm2375, %v2394, %v2395
        %v2397 = vrot.slane %v2366, 1
        %v2398 = vrot.slane %v2093, 1
        %v2399 = vsel %vm2375, %v2397, %v2398
        %v2400 = vrot.slane %v2367, 1
        %v2401 = vrot.slane %v2094, 1
        %v2402 = vsel %vm2375, %v2400, %v2401
        %v2403 = vrot.slane %v2368, 1
        %v2404 = vrot.slane %v2095, 1
        %v2405 = vsel %vm2375, %v2403, %v2404
        %v2406 = vrot.slane %v2369, 1
        %v2407 = vrot.slane %v2096, 1
        %v2408 = vsel %vm2375, %v2406, %v2407
        %v2409 = vrot.slane %v2370, 1
        %v2410 = vrot.slane %v2097, 1
        %v2411 = vsel %vm2375, %v2409, %v2410
        %v2412 = vrot.slane %v2371, 1
        %v2413 = vrot.slane %v2098, 1
        %v2414 = vsel %vm2375, %v2412, %v2413
        %v2415 = vrot.slane %v2372, 1
        %v2416 = vrot.slane %v2099, 1
        %v2417 = vsel %vm2375, %v2415, %v2416
        %v2418 = vrot.slane %v2373, 1
        %v2419 = vrot.slane %v2100, 1
        %v2420 = vsel %vm2375, %v2418, %v2419
        %v2421 = vrot.slane %v2374, 1
        %v2422 = vrot.slane %v2101, 1
        %v2423 = vsel %vm2375, %v2421, %v2422
        %2424 = vrot.lane.b32.xlu0 %v2378, 64
        %v2425 = vpop.permute.xlu0 %2424
        %2426 = vrot.lane.b32.xlu0 %v2381, 64
        %v2427 = vpop.permute.xlu0 %2426
        %2428 = vrot.lane.b32.xlu0 %v2384, 64
        %v2429 = vpop.permute.xlu0 %2428
        %2430 = vrot.lane.b32.xlu0 %v2387, 64
        %v2431 = vpop.permute.xlu0 %2430
        %2432 = vrot.lane.b32.xlu0 %v2390, 64
        %v2433 = vpop.permute.xlu0 %2432
        %2434 = vrot.lane.b32.xlu0 %v2393, 64
        %v2435 = vpop.permute.xlu0 %2434
        %2436 = vrot.lane.b32.xlu0 %v2396, 64
        %v2437 = vpop.permute.xlu0 %2436
        %2438 = vrot.lane.b32.xlu0 %v2399, 64
        %v2439 = vpop.permute.xlu0 %2438
        %2440 = vrot.lane.b32.xlu0 %v2402, 64
        %v2441 = vpop.permute.xlu0 %2440
        %2442 = vrot.lane.b32.xlu0 %v2405, 64
        %v2443 = vpop.permute.xlu0 %2442
        %2444 = vrot.lane.b32.xlu0 %v2408, 64
        %v2445 = vpop.permute.xlu0 %2444
        %2446 = vrot.lane.b32.xlu0 %v2411, 64
        %v2447 = vpop.permute.xlu0 %2446
        %2448 = vrot.lane.b32.xlu0 %v2414, 64
        %v2449 = vpop.permute.xlu0 %2448
        %2450 = vrot.lane.b32.xlu0 %v2417, 64
        %v2451 = vpop.permute.xlu0 %2450
        %2452 = vrot.lane.b32.xlu0 %v2420, 64
        %v2453 = vpop.permute.xlu0 %2452
        %2454 = vrot.lane.b32.xlu0 %v2423, 64
        %v2455 = vpop.permute.xlu0 %2454
        %v2488 = vunpack.c.l.b16 %v1845
        %v2489 = vunpack.c.l.b16 %v1846
        %v2490 = vunpack.c.l.b16 %v1847
        %v2491 = vunpack.c.l.b16 %v1848
        %v2492 = vunpack.c.l.b16 %v1849
        %v2493 = vunpack.c.l.b16 %v1850
        %v2494 = vunpack.c.l.b16 %v1851
        %v2495 = vunpack.c.l.b16 %v1852
        %v2496 = vunpack.c.l.b16 %v1853
        %v2497 = vunpack.c.l.b16 %v1854
        %v2498 = vunpack.c.l.b16 %v1855
        %v2499 = vunpack.c.l.b16 %v1856
        %v2500 = vunpack.c.l.b16 %v1857
        %v2501 = vunpack.c.l.b16 %v1858
        %v2502 = vunpack.c.l.b16 %v1859
        %v2503 = vunpack.c.l.b16 %v1860
        %v2504 = vunpack.c.l.b16 %v1861
        %v2505 = vunpack.c.l.b16 %v1862
        %v2506 = vunpack.c.l.b16 %v1863
        %v2507 = vunpack.c.l.b16 %v1864
        %v2508 = vunpack.c.l.b16 %v1865
        %v2509 = vunpack.c.l.b16 %v1866
        %v2510 = vunpack.c.l.b16 %v1867
        %v2511 = vunpack.c.l.b16 %v1868
        %v2512 = vunpack.c.l.b16 %v1869
        %v2513 = vunpack.c.l.b16 %v1870
        %v2514 = vunpack.c.l.b16 %v1871
        %v2515 = vunpack.c.l.b16 %v1872
        %v2516 = vunpack.c.l.b16 %v1873
        %v2517 = vunpack.c.l.b16 %v1874
        %v2518 = vunpack.c.l.b16 %v1875
        %v2519 = vunpack.c.l.b16 %v1876
        %v2520 = vpack.c.b16 %v2489, %v2488
        %v2521 = vpack.c.b16 %v2491, %v2490
        %v2522 = vpack.c.b16 %v2493, %v2492
        %v2523 = vpack.c.b16 %v2495, %v2494
        %v2524 = vpack.c.b16 %v2497, %v2496
        %v2525 = vpack.c.b16 %v2499, %v2498
        %v2526 = vpack.c.b16 %v2501, %v2500
        %v2527 = vpack.c.b16 %v2503, %v2502
        %v2528 = vpack.c.b16 %v2505, %v2504
        %v2529 = vpack.c.b16 %v2507, %v2506
        %v2530 = vpack.c.b16 %v2509, %v2508
        %v2531 = vpack.c.b16 %v2511, %v2510
        %v2532 = vpack.c.b16 %v2513, %v2512
        %v2533 = vpack.c.b16 %v2515, %v2514
        %v2534 = vpack.c.b16 %v2517, %v2516
        %v2535 = vpack.c.b16 %v2519, %v2518
        %2536 = vrot.lane.b32.xlu0 %v2520, 96
        %v2537 = vpop.permute.xlu0 %2536
        %2538 = vrot.lane.b32.xlu0 %v2521, 96
        %v2539 = vpop.permute.xlu0 %2538
        %2540 = vrot.lane.b32.xlu0 %v2522, 96
        %v2541 = vpop.permute.xlu0 %2540
        %2542 = vrot.lane.b32.xlu0 %v2523, 96
        %v2543 = vpop.permute.xlu0 %2542
        %2544 = vrot.lane.b32.xlu0 %v2524, 96
        %v2545 = vpop.permute.xlu0 %2544
        %2546 = vrot.lane.b32.xlu0 %v2525, 96
        %v2547 = vpop.permute.xlu0 %2546
        %2548 = vrot.lane.b32.xlu0 %v2526, 96
        %v2549 = vpop.permute.xlu0 %2548
        %2550 = vrot.lane.b32.xlu0 %v2527, 96
        %v2551 = vpop.permute.xlu0 %2550
        %2552 = vrot.lane.b32.xlu0 %v2528, 96
        %v2553 = vpop.permute.xlu0 %2552
        %2554 = vrot.lane.b32.xlu0 %v2529, 96
        %v2555 = vpop.permute.xlu0 %2554
        %2556 = vrot.lane.b32.xlu0 %v2530, 96
        %v2557 = vpop.permute.xlu0 %2556
        %2558 = vrot.lane.b32.xlu0 %v2531, 96
        %v2559 = vpop.permute.xlu0 %2558
        %2560 = vrot.lane.b32.xlu0 %v2532, 96
        %v2561 = vpop.permute.xlu0 %2560
        %2562 = vrot.lane.b32.xlu0 %v2533, 96
        %v2563 = vpop.permute.xlu0 %2562
        %2564 = vrot.lane.b32.xlu0 %v2534, 96
        %v2565 = vpop.permute.xlu0 %2564
        %2566 = vrot.lane.b32.xlu0 %v2535, 96
        %v2567 = vpop.permute.xlu0 %2566
        %v2584 = vunpack.c.l.b16 %v1877
        %v2585 = vunpack.c.l.b16 %v1878
        %v2586 = vunpack.c.l.b16 %v1879
        %v2587 = vunpack.c.l.b16 %v1880
        %v2588 = vunpack.c.l.b16 %v1881
        %v2589 = vunpack.c.l.b16 %v1882
        %v2590 = vunpack.c.l.b16 %v1883
        %v2591 = vunpack.c.l.b16 %v1884
        %v2592 = vunpack.c.l.b16 %v1885
        %v2593 = vunpack.c.l.b16 %v1886
        %v2594 = vunpack.c.l.b16 %v1887
        %v2595 = vunpack.c.l.b16 %v1888
        %v2596 = vunpack.c.l.b16 %v1889
        %v2597 = vunpack.c.l.b16 %v1890
        %v2598 = vunpack.c.l.b16 %v1891
        %v2599 = vunpack.c.l.b16 %v1892
        %v2600 = vpack.c.b16 %v2584, %v2584
        %v2601 = vpack.c.b16 %v2585, %v2585
        %v2602 = vpack.c.b16 %v2586, %v2586
        %v2603 = vpack.c.b16 %v2587, %v2587
        %v2604 = vpack.c.b16 %v2588, %v2588
        %v2605 = vpack.c.b16 %v2589, %v2589
        %v2606 = vpack.c.b16 %v2590, %v2590
        %v2607 = vpack.c.b16 %v2591, %v2591
        %v2608 = vpack.c.b16 %v2592, %v2592
        %v2609 = vpack.c.b16 %v2593, %v2593
        %v2610 = vpack.c.b16 %v2594, %v2594
        %v2611 = vpack.c.b16 %v2595, %v2595
        %v2612 = vpack.c.b16 %v2596, %v2596
        %v2613 = vpack.c.b16 %v2597, %v2597
        %v2614 = vpack.c.b16 %v2598, %v2598
        %v2615 = vpack.c.b16 %v2599, %v2599
        %v2617 = vshrl.u32 %v2520, 16
        %v2619 = vshll.u32 %v2520, 16
        %v2621 = vrot.slane %v2619, 1
        %v2622 = vor.u32 %v2617, %v2621
        %v2624 = vshll.u32 %v2600, 16
        %v2626 = vrot.slane %v2624, 1
        %v2627 = vsel %vm2102, %v2622, %v2626
        %v2629 = vshrl.u32 %v2521, 16
        %v2631 = vshll.u32 %v2521, 16
        %v2633 = vrot.slane %v2631, 1
        %v2634 = vor.u32 %v2629, %v2633
        %v2636 = vshll.u32 %v2601, 16
        %v2638 = vrot.slane %v2636, 1
        %v2639 = vsel %vm2102, %v2634, %v2638
        %v2641 = vshrl.u32 %v2522, 16
        %v2643 = vshll.u32 %v2522, 16
        %v2645 = vrot.slane %v2643, 1
        %v2646 = vor.u32 %v2641, %v2645
        %v2648 = vshll.u32 %v2602, 16
        %v2650 = vrot.slane %v2648, 1
        %v2651 = vsel %vm2102, %v2646, %v2650
        %v2653 = vshrl.u32 %v2523, 16
        %v2655 = vshll.u32 %v2523, 16
        %v2657 = vrot.slane %v2655, 1
        %v2658 = vor.u32 %v2653, %v2657
        %v2660 = vshll.u32 %v2603, 16
        %v2662 = vrot.slane %v2660, 1
        %v2663 = vsel %vm2102, %v2658, %v2662
        %v2665 = vshrl.u32 %v2524, 16
        %v2667 = vshll.u32 %v2524, 16
        %v2669 = vrot.slane %v2667, 1
        %v2670 = vor.u32 %v2665, %v2669
        %v2672 = vshll.u32 %v2604, 16
        %v2674 = vrot.slane %v2672, 1
        %v2675 = vsel %vm2102, %v2670, %v2674
        %v2677 = vshrl.u32 %v2525, 16
        %v2679 = vshll.u32 %v2525, 16
        %v2681 = vrot.slane %v2679, 1
        %v2682 = vor.u32 %v2677, %v2681
        %v2684 = vshll.u32 %v2605, 16
        %v2686 = vrot.slane %v2684, 1
        %v2687 = vsel %vm2102, %v2682, %v2686
        %v2689 = vshrl.u32 %v2526, 16
        %v2691 = vshll.u32 %v2526, 16
        %v2693 = vrot.slane %v2691, 1
        %v2694 = vor.u32 %v2689, %v2693
        %v2696 = vshll.u32 %v2606, 16
        %v2698 = vrot.slane %v2696, 1
        %v2699 = vsel %vm2102, %v2694, %v2698
        %v2701 = vshrl.u32 %v2527, 16
        %v2703 = vshll.u32 %v2527, 16
        %v2705 = vrot.slane %v2703, 1
        %v2706 = vor.u32 %v2701, %v2705
        %v2708 = vshll.u32 %v2607, 16
        %v2710 = vrot.slane %v2708, 1
        %v2711 = vsel %vm2102, %v2706, %v2710
        %v2713 = vshrl.u32 %v2528, 16
        %v2715 = vshll.u32 %v2528, 16
        %v2717 = vrot.slane %v2715, 1
        %v2718 = vor.u32 %v2713, %v2717
        %v2720 = vshll.u32 %v2608, 16
        %v2722 = vrot.slane %v2720, 1
        %v2723 = vsel %vm2102, %v2718, %v2722
        %v2725 = vshrl.u32 %v2529, 16
        %v2727 = vshll.u32 %v2529, 16
        %v2729 = vrot.slane %v2727, 1
        %v2730 = vor.u32 %v2725, %v2729
        %v2732 = vshll.u32 %v2609, 16
        %v2734 = vrot.slane %v2732, 1
        %v2735 = vsel %vm2102, %v2730, %v2734
        %v2737 = vshrl.u32 %v2530, 16
        %v2739 = vshll.u32 %v2530, 16
        %v2741 = vrot.slane %v2739, 1
        %v2742 = vor.u32 %v2737, %v2741
        %v2744 = vshll.u32 %v2610, 16
        %v2746 = vrot.slane %v2744, 1
        %v2747 = vsel %vm2102, %v2742, %v2746
        %v2749 = vshrl.u32 %v2531, 16
        %v2751 = vshll.u32 %v2531, 16
        %v2753 = vrot.slane %v2751, 1
        %v2754 = vor.u32 %v2749, %v2753
        %v2756 = vshll.u32 %v2611, 16
        %v2758 = vrot.slane %v2756, 1
        %v2759 = vsel %vm2102, %v2754, %v2758
        %v2761 = vshrl.u32 %v2532, 16
        %v2763 = vshll.u32 %v2532, 16
        %v2765 = vrot.slane %v2763, 1
        %v2766 = vor.u32 %v2761, %v2765
        %v2768 = vshll.u32 %v2612, 16
        %v2770 = vrot.slane %v2768, 1
        %v2771 = vsel %vm2102, %v2766, %v2770
        %v2773 = vshrl.u32 %v2533, 16
        %v2775 = vshll.u32 %v2533, 16
        %v2777 = vrot.slane %v2775, 1
        %v2778 = vor.u32 %v2773, %v2777
        %v2780 = vshll.u32 %v2613, 16
        %v2782 = vrot.slane %v2780, 1
        %v2783 = vsel %vm2102, %v2778, %v2782
        %v2785 = vshrl.u32 %v2534, 16
        %v2787 = vshll.u32 %v2534, 16
        %v2789 = vrot.slane %v2787, 1
        %v2790 = vor.u32 %v2785, %v2789
        %v2792 = vshll.u32 %v2614, 16
        %v2794 = vrot.slane %v2792, 1
        %v2795 = vsel %vm2102, %v2790, %v2794
        %v2797 = vshrl.u32 %v2535, 16
        %v2799 = vshll.u32 %v2535, 16
        %v2801 = vrot.slane %v2799, 1
        %v2802 = vor.u32 %v2797, %v2801
        %v2804 = vshll.u32 %v2615, 16
        %v2806 = vrot.slane %v2804, 1
        %v2807 = vsel %vm2102, %v2802, %v2806
        %v2824 = vunpack.c.l.b16 %v1893
        %v2825 = vunpack.c.l.b16 %v1894
        %v2826 = vunpack.c.l.b16 %v1895
        %v2827 = vunpack.c.l.b16 %v1896
        %v2828 = vunpack.c.l.b16 %v1897
        %v2829 = vunpack.c.l.b16 %v1898
        %v2830 = vunpack.c.l.b16 %v1899
        %v2831 = vunpack.c.l.b16 %v1900
        %v2832 = vunpack.c.l.b16 %v1901
        %v2833 = vunpack.c.l.b16 %v1902
        %v2834 = vunpack.c.l.b16 %v1903
        %v2835 = vunpack.c.l.b16 %v1904
        %v2836 = vunpack.c.l.b16 %v1905
        %v2837 = vunpack.c.l.b16 %v1906
        %v2838 = vunpack.c.l.b16 %v1907
        %v2839 = vunpack.c.l.b16 %v1908
        %v2840 = vpack.c.b16 %v2489, %v2824
        %v2841 = vpack.c.b16 %v2491, %v2825
        %v2842 = vpack.c.b16 %v2493, %v2826
        %v2843 = vpack.c.b16 %v2495, %v2827
        %v2844 = vpack.c.b16 %v2497, %v2828
        %v2845 = vpack.c.b16 %v2499, %v2829
        %v2846 = vpack.c.b16 %v2501, %v2830
        %v2847 = vpack.c.b16 %v2503, %v2831
        %v2848 = vpack.c.b16 %v2505, %v2832
        %v2849 = vpack.c.b16 %v2507, %v2833
        %v2850 = vpack.c.b16 %v2509, %v2834
        %v2851 = vpack.c.b16 %v2511, %v2835
        %v2852 = vpack.c.b16 %v2513, %v2836
        %v2853 = vpack.c.b16 %v2515, %v2837
        %v2854 = vpack.c.b16 %v2517, %v2838
        %v2855 = vpack.c.b16 %v2519, %v2839
        %v2856 = vrot.slane %v2840, 1
        %v2857 = vrot.slane %v2600, 1
        %v2858 = vsel %vm2375, %v2856, %v2857
        %v2859 = vrot.slane %v2841, 1
        %v2860 = vrot.slane %v2601, 1
        %v2861 = vsel %vm2375, %v2859, %v2860
        %v2862 = vrot.slane %v2842, 1
        %v2863 = vrot.slane %v2602, 1
        %v2864 = vsel %vm2375, %v2862, %v2863
        %v2865 = vrot.slane %v2843, 1
        %v2866 = vrot.slane %v2603, 1
        %v2867 = vsel %vm2375, %v2865, %v2866
        %v2868 = vrot.slane %v2844, 1
        %v2869 = vrot.slane %v2604, 1
        %v2870 = vsel %vm2375, %v2868, %v2869
        %v2871 = vrot.slane %v2845, 1
        %v2872 = vrot.slane %v2605, 1
        %v2873 = vsel %vm2375, %v2871, %v2872
        %v2874 = vrot.slane %v2846, 1
        %v2875 = vrot.slane %v2606, 1
        %v2876 = vsel %vm2375, %v2874, %v2875
        %v2877 = vrot.slane %v2847, 1
        %v2878 = vrot.slane %v2607, 1
        %v2879 = vsel %vm2375, %v2877, %v2878
        %v2880 = vrot.slane %v2848, 1
        %v2881 = vrot.slane %v2608, 1
        %v2882 = vsel %vm2375, %v2880, %v2881
        %v2883 = vrot.slane %v2849, 1
        %v2884 = vrot.slane %v2609, 1
        %v2885 = vsel %vm2375, %v2883, %v2884
        %v2886 = vrot.slane %v2850, 1
        %v2887 = vrot.slane %v2610, 1
        %v2888 = vsel %vm2375, %v2886, %v2887
        %v2889 = vrot.slane %v2851, 1
        %v2890 = vrot.slane %v2611, 1
        %v2891 = vsel %vm2375, %v2889, %v2890
        %v2892 = vrot.slane %v2852, 1
        %v2893 = vrot.slane %v2612, 1
        %v2894 = vsel %vm2375, %v2892, %v2893
        %v2895 = vrot.slane %v2853, 1
        %v2896 = vrot.slane %v2613, 1
        %v2897 = vsel %vm2375, %v2895, %v2896
        %v2898 = vrot.slane %v2854, 1
        %v2899 = vrot.slane %v2614, 1
        %v2900 = vsel %vm2375, %v2898, %v2899
        %v2901 = vrot.slane %v2855, 1
        %v2902 = vrot.slane %v2615, 1
        %v2903 = vsel %vm2375, %v2901, %v2902
        %2904 = vrot.lane.b32.xlu0 %v2858, 32
        %v2905 = vpop.permute.xlu0 %2904
        %2906 = vrot.lane.b32.xlu0 %v2861, 32
        %v2907 = vpop.permute.xlu0 %2906
        %2908 = vrot.lane.b32.xlu0 %v2864, 32
        %v2909 = vpop.permute.xlu0 %2908
        %2910 = vrot.lane.b32.xlu0 %v2867, 32
        %v2911 = vpop.permute.xlu0 %2910
        %2912 = vrot.lane.b32.xlu0 %v2870, 32
        %v2913 = vpop.permute.xlu0 %2912
        %2914 = vrot.lane.b32.xlu0 %v2873, 32
        %v2915 = vpop.permute.xlu0 %2914
        %2916 = vrot.lane.b32.xlu0 %v2876, 32
        %v2917 = vpop.permute.xlu0 %2916
        %2918 = vrot.lane.b32.xlu0 %v2879, 32
        %v2919 = vpop.permute.xlu0 %2918
        %2920 = vrot.lane.b32.xlu0 %v2882, 32
        %v2921 = vpop.permute.xlu0 %2920
        %2922 = vrot.lane.b32.xlu0 %v2885, 32
        %v2923 = vpop.permute.xlu0 %2922
        %2924 = vrot.lane.b32.xlu0 %v2888, 32
        %v2925 = vpop.permute.xlu0 %2924
        %2926 = vrot.lane.b32.xlu0 %v2891, 32
        %v2927 = vpop.permute.xlu0 %2926
        %2928 = vrot.lane.b32.xlu0 %v2894, 32
        %v2929 = vpop.permute.xlu0 %2928
        %2930 = vrot.lane.b32.xlu0 %v2897, 32
        %v2931 = vpop.permute.xlu0 %2930
        %2932 = vrot.lane.b32.xlu0 %v2900, 32
        %v2933 = vpop.permute.xlu0 %2932
        %2934 = vrot.lane.b32.xlu0 %v2903, 32
        %v2935 = vpop.permute.xlu0 %2934
        %v2968 = vunpack.c.l.b16 %v1910
        %v2969 = vunpack.c.l.b16 %v1911
        %v2970 = vunpack.c.l.b16 %v1912
        %v2971 = vunpack.c.l.b16 %v1913
        %v2972 = vunpack.c.l.b16 %v1914
        %v2973 = vunpack.c.l.b16 %v1915
        %v2974 = vunpack.c.l.b16 %v1916
        %v2975 = vunpack.c.l.b16 %v1917
        %v2976 = vunpack.c.l.b16 %v1918
        %v2977 = vunpack.c.l.b16 %v1919
        %v2978 = vunpack.c.l.b16 %v1920
        %v2979 = vunpack.c.l.b16 %v1921
        %v2980 = vunpack.c.l.b16 %v1922
        %v2981 = vunpack.c.l.b16 %v1923
        %v2982 = vunpack.c.l.b16 %v1924
        %v2983 = vunpack.c.l.b16 %v1925
        %v2984 = vunpack.c.l.b16 %v1926
        %v2985 = vunpack.c.l.b16 %v1927
        %v2986 = vunpack.c.l.b16 %v1928
        %v2987 = vunpack.c.l.b16 %v1929
        %v2988 = vunpack.c.l.b16 %v1930
        %v2989 = vunpack.c.l.b16 %v1931
        %v2990 = vunpack.c.l.b16 %v1932
        %v2991 = vunpack.c.l.b16 %v1933
        %v2992 = vunpack.c.l.b16 %v1934
        %v2993 = vunpack.c.l.b16 %v1935
        %v2994 = vunpack.c.l.b16 %v1936
        %v2995 = vunpack.c.l.b16 %v1937
        %v2996 = vunpack.c.l.b16 %v1938
        %v2997 = vunpack.c.l.b16 %v1939
        %v2998 = vunpack.c.l.b16 %v1940
        %v2999 = vunpack.c.l.b16 %v1941
        %v3000 = vpack.c.b16 %v2969, %v2968
        %v3001 = vpack.c.b16 %v2971, %v2970
        %v3002 = vpack.c.b16 %v2973, %v2972
        %v3003 = vpack.c.b16 %v2975, %v2974
        %v3004 = vpack.c.b16 %v2977, %v2976
        %v3005 = vpack.c.b16 %v2979, %v2978
        %v3006 = vpack.c.b16 %v2981, %v2980
        %v3007 = vpack.c.b16 %v2983, %v2982
        %v3008 = vpack.c.b16 %v2985, %v2984
        %v3009 = vpack.c.b16 %v2987, %v2986
        %v3010 = vpack.c.b16 %v2989, %v2988
        %v3011 = vpack.c.b16 %v2991, %v2990
        %v3012 = vpack.c.b16 %v2993, %v2992
        %v3013 = vpack.c.b16 %v2995, %v2994
        %v3014 = vpack.c.b16 %v2997, %v2996
        %v3015 = vpack.c.b16 %v2999, %v2998
        %3016 = vrot.lane.b32.xlu0 %v3000, 64
        %v3017 = vpop.permute.xlu0 %3016
        %3018 = vrot.lane.b32.xlu0 %v3001, 64
        %v3019 = vpop.permute.xlu0 %3018
        %3020 = vrot.lane.b32.xlu0 %v3002, 64
        %v3021 = vpop.permute.xlu0 %3020
        %3022 = vrot.lane.b32.xlu0 %v3003, 64
        %v3023 = vpop.permute.xlu0 %3022
        %3024 = vrot.lane.b32.xlu0 %v3004, 64
        %v3025 = vpop.permute.xlu0 %3024
        %3026 = vrot.lane.b32.xlu0 %v3005, 64
        %v3027 = vpop.permute.xlu0 %3026
        %3028 = vrot.lane.b32.xlu0 %v3006, 64
        %v3029 = vpop.permute.xlu0 %3028
        %3030 = vrot.lane.b32.xlu0 %v3007, 64
        %v3031 = vpop.permute.xlu0 %3030
        %3032 = vrot.lane.b32.xlu0 %v3008, 64
        %v3033 = vpop.permute.xlu0 %3032
        %3034 = vrot.lane.b32.xlu0 %v3009, 64
        %v3035 = vpop.permute.xlu0 %3034
        %3036 = vrot.lane.b32.xlu0 %v3010, 64
        %v3037 = vpop.permute.xlu0 %3036
        %3038 = vrot.lane.b32.xlu0 %v3011, 64
        %v3039 = vpop.permute.xlu0 %3038
        %3040 = vrot.lane.b32.xlu0 %v3012, 64
        %v3041 = vpop.permute.xlu0 %3040
        %3042 = vrot.lane.b32.xlu0 %v3013, 64
        %v3043 = vpop.permute.xlu0 %3042
        %3044 = vrot.lane.b32.xlu0 %v3014, 64
        %v3045 = vpop.permute.xlu0 %3044
        %3046 = vrot.lane.b32.xlu0 %v3015, 64
        %v3047 = vpop.permute.xlu0 %3046
        %v3064 = vunpack.c.l.b16 %v1942
        %v3065 = vunpack.c.l.b16 %v1943
        %v3066 = vunpack.c.l.b16 %v1944
        %v3067 = vunpack.c.l.b16 %v1945
        %v3068 = vunpack.c.l.b16 %v1946
        %v3069 = vunpack.c.l.b16 %v1947
        %v3070 = vunpack.c.l.b16 %v1948
        %v3071 = vunpack.c.l.b16 %v1949
        %v3072 = vunpack.c.l.b16 %v1950
        %v3073 = vunpack.c.l.b16 %v1951
        %v3074 = vunpack.c.l.b16 %v1952
        %v3075 = vunpack.c.l.b16 %v1953
        %v3076 = vunpack.c.l.b16 %v1954
        %v3077 = vunpack.c.l.b16 %v1955
        %v3078 = vunpack.c.l.b16 %v1956
        %v3079 = vunpack.c.l.b16 %v1957
        %v3080 = vpack.c.b16 %v3064, %v3064
        %v3081 = vpack.c.b16 %v3065, %v3065
        %v3082 = vpack.c.b16 %v3066, %v3066
        %v3083 = vpack.c.b16 %v3067, %v3067
        %v3084 = vpack.c.b16 %v3068, %v3068
        %v3085 = vpack.c.b16 %v3069, %v3069
        %v3086 = vpack.c.b16 %v3070, %v3070
        %v3087 = vpack.c.b16 %v3071, %v3071
        %v3088 = vpack.c.b16 %v3072, %v3072
        %v3089 = vpack.c.b16 %v3073, %v3073
        %v3090 = vpack.c.b16 %v3074, %v3074
        %v3091 = vpack.c.b16 %v3075, %v3075
        %v3092 = vpack.c.b16 %v3076, %v3076
        %v3093 = vpack.c.b16 %v3077, %v3077
        %v3094 = vpack.c.b16 %v3078, %v3078
        %v3095 = vpack.c.b16 %v3079, %v3079
        %v3097 = vshrl.u32 %v3000, 16
        %v3099 = vshll.u32 %v3000, 16
        %v3101 = vrot.slane %v3099, 1
        %v3102 = vor.u32 %v3097, %v3101
        %v3104 = vshll.u32 %v3080, 16
        %v3106 = vrot.slane %v3104, 1
        %v3107 = vsel %vm2102, %v3102, %v3106
        %v3109 = vshrl.u32 %v3001, 16
        %v3111 = vshll.u32 %v3001, 16
        %v3113 = vrot.slane %v3111, 1
        %v3114 = vor.u32 %v3109, %v3113
        %v3116 = vshll.u32 %v3081, 16
        %v3118 = vrot.slane %v3116, 1
        %v3119 = vsel %vm2102, %v3114, %v3118
        %v3121 = vshrl.u32 %v3002, 16
        %v3123 = vshll.u32 %v3002, 16
        %v3125 = vrot.slane %v3123, 1
        %v3126 = vor.u32 %v3121, %v3125
        %v3128 = vshll.u32 %v3082, 16
        %v3130 = vrot.slane %v3128, 1
        %v3131 = vsel %vm2102, %v3126, %v3130
        %v3133 = vshrl.u32 %v3003, 16
        %v3135 = vshll.u32 %v3003, 16
        %v3137 = vrot.slane %v3135, 1
        %v3138 = vor.u32 %v3133, %v3137
        %v3140 = vshll.u32 %v3083, 16
        %v3142 = vrot.slane %v3140, 1
        %v3143 = vsel %vm2102, %v3138, %v3142
        %v3145 = vshrl.u32 %v3004, 16
        %v3147 = vshll.u32 %v3004, 16
        %v3149 = vrot.slane %v3147, 1
        %v3150 = vor.u32 %v3145, %v3149
        %v3152 = vshll.u32 %v3084, 16
        %v3154 = vrot.slane %v3152, 1
        %v3155 = vsel %vm2102, %v3150, %v3154
        %v3157 = vshrl.u32 %v3005, 16
        %v3159 = vshll.u32 %v3005, 16
        %v3161 = vrot.slane %v3159, 1
        %v3162 = vor.u32 %v3157, %v3161
        %v3164 = vshll.u32 %v3085, 16
        %v3166 = vrot.slane %v3164, 1
        %v3167 = vsel %vm2102, %v3162, %v3166
        %v3169 = vshrl.u32 %v3006, 16
        %v3171 = vshll.u32 %v3006, 16
        %v3173 = vrot.slane %v3171, 1
        %v3174 = vor.u32 %v3169, %v3173
        %v3176 = vshll.u32 %v3086, 16
        %v3178 = vrot.slane %v3176, 1
        %v3179 = vsel %vm2102, %v3174, %v3178
        %v3181 = vshrl.u32 %v3007, 16
        %v3183 = vshll.u32 %v3007, 16
        %v3185 = vrot.slane %v3183, 1
        %v3186 = vor.u32 %v3181, %v3185
        %v3188 = vshll.u32 %v3087, 16
        %v3190 = vrot.slane %v3188, 1
        %v3191 = vsel %vm2102, %v3186, %v3190
        %v3193 = vshrl.u32 %v3008, 16
        %v3195 = vshll.u32 %v3008, 16
        %v3197 = vrot.slane %v3195, 1
        %v3198 = vor.u32 %v3193, %v3197
        %v3200 = vshll.u32 %v3088, 16
        %v3202 = vrot.slane %v3200, 1
        %v3203 = vsel %vm2102, %v3198, %v3202
        %v3205 = vshrl.u32 %v3009, 16
        %v3207 = vshll.u32 %v3009, 16
        %v3209 = vrot.slane %v3207, 1
        %v3210 = vor.u32 %v3205, %v3209
        %v3212 = vshll.u32 %v3089, 16
        %v3214 = vrot.slane %v3212, 1
        %v3215 = vsel %vm2102, %v3210, %v3214
        %v3217 = vshrl.u32 %v3010, 16
        %v3219 = vshll.u32 %v3010, 16
        %v3221 = vrot.slane %v3219, 1
        %v3222 = vor.u32 %v3217, %v3221
        %v3224 = vshll.u32 %v3090, 16
        %v3226 = vrot.slane %v3224, 1
        %v3227 = vsel %vm2102, %v3222, %v3226
        %v3229 = vshrl.u32 %v3011, 16
        %v3231 = vshll.u32 %v3011, 16
        %v3233 = vrot.slane %v3231, 1
        %v3234 = vor.u32 %v3229, %v3233
        %v3236 = vshll.u32 %v3091, 16
        %v3238 = vrot.slane %v3236, 1
        %v3239 = vsel %vm2102, %v3234, %v3238
        %v3241 = vshrl.u32 %v3012, 16
        %v3243 = vshll.u32 %v3012, 16
        %v3245 = vrot.slane %v3243, 1
        %v3246 = vor.u32 %v3241, %v3245
        %v3248 = vshll.u32 %v3092, 16
        %v3250 = vrot.slane %v3248, 1
        %v3251 = vsel %vm2102, %v3246, %v3250
        %v3253 = vshrl.u32 %v3013, 16
        %v3255 = vshll.u32 %v3013, 16
        %v3257 = vrot.slane %v3255, 1
        %v3258 = vor.u32 %v3253, %v3257
        %v3260 = vshll.u32 %v3093, 16
        %v3262 = vrot.slane %v3260, 1
        %v3263 = vsel %vm2102, %v3258, %v3262
        %v3265 = vshrl.u32 %v3014, 16
        %v3267 = vshll.u32 %v3014, 16
        %v3269 = vrot.slane %v3267, 1
        %v3270 = vor.u32 %v3265, %v3269
        %v3272 = vshll.u32 %v3094, 16
        %v3274 = vrot.slane %v3272, 1
        %v3275 = vsel %vm2102, %v3270, %v3274
        %v3277 = vshrl.u32 %v3015, 16
        %v3279 = vshll.u32 %v3015, 16
        %v3281 = vrot.slane %v3279, 1
        %v3282 = vor.u32 %v3277, %v3281
        %v3284 = vshll.u32 %v3095, 16
        %v3286 = vrot.slane %v3284, 1
        %v3287 = vsel %vm2102, %v3282, %v3286
        %3288 = vrot.lane.b32.xlu0 %v3107, 96
        %v3289 = vpop.permute.xlu0 %3288
        %3290 = vrot.lane.b32.xlu0 %v3119, 96
        %v3291 = vpop.permute.xlu0 %3290
        %3292 = vrot.lane.b32.xlu0 %v3131, 96
        %v3293 = vpop.permute.xlu0 %3292
        %3294 = vrot.lane.b32.xlu0 %v3143, 96
        %v3295 = vpop.permute.xlu0 %3294
        %3296 = vrot.lane.b32.xlu0 %v3155, 96
        %v3297 = vpop.permute.xlu0 %3296
        %3298 = vrot.lane.b32.xlu0 %v3167, 96
        %v3299 = vpop.permute.xlu0 %3298
        %3300 = vrot.lane.b32.xlu0 %v3179, 96
        %v3301 = vpop.permute.xlu0 %3300
        %3302 = vrot.lane.b32.xlu0 %v3191, 96
        %v3303 = vpop.permute.xlu0 %3302
        %3304 = vrot.lane.b32.xlu0 %v3203, 96
        %v3305 = vpop.permute.xlu0 %3304
        %3306 = vrot.lane.b32.xlu0 %v3215, 96
        %v3307 = vpop.permute.xlu0 %3306
        %3308 = vrot.lane.b32.xlu0 %v3227, 96
        %v3309 = vpop.permute.xlu0 %3308
        %3310 = vrot.lane.b32.xlu0 %v3239, 96
        %v3311 = vpop.permute.xlu0 %3310
        %3312 = vrot.lane.b32.xlu0 %v3251, 96
        %v3313 = vpop.permute.xlu0 %3312
        %3314 = vrot.lane.b32.xlu0 %v3263, 96
        %v3315 = vpop.permute.xlu0 %3314
        %3316 = vrot.lane.b32.xlu0 %v3275, 96
        %v3317 = vpop.permute.xlu0 %3316
        %3318 = vrot.lane.b32.xlu0 %v3287, 96
        %v3319 = vpop.permute.xlu0 %3318
        %v3336 = vunpack.c.l.b16 %v1958
        %v3337 = vunpack.c.l.b16 %v1959
        %v3338 = vunpack.c.l.b16 %v1960
        %v3339 = vunpack.c.l.b16 %v1961
        %v3340 = vunpack.c.l.b16 %v1962
        %v3341 = vunpack.c.l.b16 %v1963
        %v3342 = vunpack.c.l.b16 %v1964
        %v3343 = vunpack.c.l.b16 %v1965
        %v3344 = vunpack.c.l.b16 %v1966
        %v3345 = vunpack.c.l.b16 %v1967
        %v3346 = vunpack.c.l.b16 %v1968
        %v3347 = vunpack.c.l.b16 %v1969
        %v3348 = vunpack.c.l.b16 %v1970
        %v3349 = vunpack.c.l.b16 %v1971
        %v3350 = vunpack.c.l.b16 %v1972
        %v3351 = vunpack.c.l.b16 %v1973
        %v3352 = vpack.c.b16 %v2969, %v3336
        %v3353 = vpack.c.b16 %v2971, %v3337
        %v3354 = vpack.c.b16 %v2973, %v3338
        %v3355 = vpack.c.b16 %v2975, %v3339
        %v3356 = vpack.c.b16 %v2977, %v3340
        %v3357 = vpack.c.b16 %v2979, %v3341
        %v3358 = vpack.c.b16 %v2981, %v3342
        %v3359 = vpack.c.b16 %v2983, %v3343
        %v3360 = vpack.c.b16 %v2985, %v3344
        %v3361 = vpack.c.b16 %v2987, %v3345
        %v3362 = vpack.c.b16 %v2989, %v3346
        %v3363 = vpack.c.b16 %v2991, %v3347
        %v3364 = vpack.c.b16 %v2993, %v3348
        %v3365 = vpack.c.b16 %v2995, %v3349
        %v3366 = vpack.c.b16 %v2997, %v3350
        %v3367 = vpack.c.b16 %v2999, %v3351
        %v3368 = vrot.slane %v3352, 1
        %v3369 = vrot.slane %v3080, 1
        %v3370 = vsel %vm2375, %v3368, %v3369
        %v3371 = vrot.slane %v3353, 1
        %v3372 = vrot.slane %v3081, 1
        %v3373 = vsel %vm2375, %v3371, %v3372
        %v3374 = vrot.slane %v3354, 1
        %v3375 = vrot.slane %v3082, 1
        %v3376 = vsel %vm2375, %v3374, %v3375
        %v3377 = vrot.slane %v3355, 1
        %v3378 = vrot.slane %v3083, 1
        %v3379 = vsel %vm2375, %v3377, %v3378
        %v3380 = vrot.slane %v3356, 1
        %v3381 = vrot.slane %v3084, 1
        %v3382 = vsel %vm2375, %v3380, %v3381
        %v3383 = vrot.slane %v3357, 1
        %v3384 = vrot.slane %v3085, 1
        %v3385 = vsel %vm2375, %v3383, %v3384
        %v3386 = vrot.slane %v3358, 1
        %v3387 = vrot.slane %v3086, 1
        %v3388 = vsel %vm2375, %v3386, %v3387
        %v3389 = vrot.slane %v3359, 1
        %v3390 = vrot.slane %v3087, 1
        %v3391 = vsel %vm2375, %v3389, %v3390
        %v3392 = vrot.slane %v3360, 1
        %v3393 = vrot.slane %v3088, 1
        %v3394 = vsel %vm2375, %v3392, %v3393
        %v3395 = vrot.slane %v3361, 1
        %v3396 = vrot.slane %v3089, 1
        %v3397 = vsel %vm2375, %v3395, %v3396
        %v3398 = vrot.slane %v3362, 1
        %v3399 = vrot.slane %v3090, 1
        %v3400 = vsel %vm2375, %v3398, %v3399
        %v3401 = vrot.slane %v3363, 1
        %v3402 = vrot.slane %v3091, 1
        %v3403 = vsel %vm2375, %v3401, %v3402
        %v3404 = vrot.slane %v3364, 1
        %v3405 = vrot.slane %v3092, 1
        %v3406 = vsel %vm2375, %v3404, %v3405
        %v3407 = vrot.slane %v3365, 1
        %v3408 = vrot.slane %v3093, 1
        %v3409 = vsel %vm2375, %v3407, %v3408
        %v3410 = vrot.slane %v3366, 1
        %v3411 = vrot.slane %v3094, 1
        %v3412 = vsel %vm2375, %v3410, %v3411
        %v3413 = vrot.slane %v3367, 1
        %v3414 = vrot.slane %v3095, 1
        %v3415 = vsel %vm2375, %v3413, %v3414
        %v3417 = vsel %vm586, %v2038, %v2296
        %v3419 = vsel %vm586, %v2039, %v2298
        %v3421 = vsel %vm586, %v2040, %v2300
        %v3423 = vsel %vm586, %v2041, %v2302
        %v3425 = vsel %vm586, %v2042, %v2304
        %v3427 = vsel %vm586, %v2043, %v2306
        %v3429 = vsel %vm586, %v2044, %v2308
        %v3431 = vsel %vm586, %v2045, %v2310
        %v3433 = vsel %vm586, %v2046, %v2312
        %v3435 = vsel %vm586, %v2047, %v2314
        %v3437 = vsel %vm586, %v2048, %v2316
        %v3439 = vsel %vm586, %v2049, %v2318
        %v3441 = vsel %vm586, %v2050, %v2320
        %v3443 = vsel %vm586, %v2051, %v2322
        %v3445 = vsel %vm586, %v2052, %v2324
        %v3447 = vsel %vm586, %v2053, %v2326
        %vm3448 = vcmask 523264
        %v3450 = vsel %vm3448, %v3417, %v2425
        %v3452 = vsel %vm3448, %v3419, %v2427
        %v3454 = vsel %vm3448, %v3421, %v2429
        %v3456 = vsel %vm3448, %v3423, %v2431
        %v3458 = vsel %vm3448, %v3425, %v2433
        %v3460 = vsel %vm3448, %v3427, %v2435
        %v3462 = vsel %vm3448, %v3429, %v2437
        %v3464 = vsel %vm3448, %v3431, %v2439
        %v3466 = vsel %vm3448, %v3433, %v2441
        %v3468 = vsel %vm3448, %v3435, %v2443
        %v3470 = vsel %vm3448, %v3437, %v2445
        %v3472 = vsel %vm3448, %v3439, %v2447
        %v3474 = vsel %vm3448, %v3441, %v2449
        %v3476 = vsel %vm3448, %v3443, %v2451
        %v3478 = vsel %vm3448, %v3445, %v2453
        %v3480 = vsel %vm3448, %v3447, %v2455
        %vm3481 = vcmask 785408
        %v3483 = vsel %vm3481, %v3450, %v2537
        %v3486 = vsel %vm3481, %v3452, %v2539
        %v3489 = vsel %vm3481, %v3454, %v2541
        %v3492 = vsel %vm3481, %v3456, %v2543
        %v3495 = vsel %vm3481, %v3458, %v2545
        %v3498 = vsel %vm3481, %v3460, %v2547
        %v3501 = vsel %vm3481, %v3462, %v2549
        %v3504 = vsel %vm3481, %v3464, %v2551
        %v3507 = vsel %vm3481, %v3466, %v2553
        %v3510 = vsel %vm3481, %v3468, %v2555
        %v3513 = vsel %vm3481, %v3470, %v2557
        %v3516 = vsel %vm3481, %v3472, %v2559
        %v3519 = vsel %vm3481, %v3474, %v2561
        %v3522 = vsel %vm3481, %v3476, %v2563
        %v3525 = vsel %vm3481, %v3478, %v2565
        %v3528 = vsel %vm3481, %v3480, %v2567
        %v3532 = vsel %vm586, %v2627, %v2905
        %v3535 = vsel %vm586, %v2639, %v2907
        %v3538 = vsel %vm586, %v2651, %v2909
        %v3541 = vsel %vm586, %v2663, %v2911
        %v3544 = vsel %vm586, %v2675, %v2913
        %v3547 = vsel %vm586, %v2687, %v2915
        %v3550 = vsel %vm586, %v2699, %v2917
        %v3553 = vsel %vm586, %v2711, %v2919
        %v3556 = vsel %vm586, %v2723, %v2921
        %v3559 = vsel %vm586, %v2735, %v2923
        %v3562 = vsel %vm586, %v2747, %v2925
        %v3565 = vsel %vm586, %v2759, %v2927
        %v3568 = vsel %vm586, %v2771, %v2929
        %v3571 = vsel %vm586, %v2783, %v2931
        %v3574 = vsel %vm586, %v2795, %v2933
        %v3577 = vsel %vm586, %v2807, %v2935
        %v3579 = vsel %vm3448, %v3532, %v3017
        %v3581 = vsel %vm3448, %v3535, %v3019
        %v3583 = vsel %vm3448, %v3538, %v3021
        %v3585 = vsel %vm3448, %v3541, %v3023
        %v3587 = vsel %vm3448, %v3544, %v3025
        %v3589 = vsel %vm3448, %v3547, %v3027
        %v3591 = vsel %vm3448, %v3550, %v3029
        %v3593 = vsel %vm3448, %v3553, %v3031
        %v3595 = vsel %vm3448, %v3556, %v3033
        %v3597 = vsel %vm3448, %v3559, %v3035
        %v3599 = vsel %vm3448, %v3562, %v3037
        %v3601 = vsel %vm3448, %v3565, %v3039
        %v3603 = vsel %vm3448, %v3568, %v3041
        %v3605 = vsel %vm3448, %v3571, %v3043
        %v3607 = vsel %vm3448, %v3574, %v3045
        %v3609 = vsel %vm3448, %v3577, %v3047
        %v3611 = vsel %vm3481, %v3579, %v3289
        %v3614 = vsel %vm3481, %v3581, %v3291
        %v3617 = vsel %vm3481, %v3583, %v3293
        %v3620 = vsel %vm3481, %v3585, %v3295
        %v3623 = vsel %vm3481, %v3587, %v3297
        %v3626 = vsel %vm3481, %v3589, %v3299
        %v3629 = vsel %vm3481, %v3591, %v3301
        %v3632 = vsel %vm3481, %v3593, %v3303
        %v3635 = vsel %vm3481, %v3595, %v3305
        %v3638 = vsel %vm3481, %v3597, %v3307
        %v3641 = vsel %vm3481, %v3599, %v3309
        %v3644 = vsel %vm3481, %v3601, %v3311
        %v3647 = vsel %vm3481, %v3603, %v3313
        %v3650 = vsel %vm3481, %v3605, %v3315
        %v3653 = vsel %vm3481, %v3607, %v3317
        %v3656 = vsel %vm3481, %v3609, %v3319
        %v3658 = vld [vmem:[%s4] sm:$0xf]
        %v3659 = vld [vmem:[%s4 + $0x4] sm:$0xf]
        %v3660 = vld [vmem:[%s4 + $0x8] sm:$0xf]
        %v3661 = vld [vmem:[%s4 + $0xc] sm:$0xf]
        %v3662 = vld [vmem:[%s4 + $0x10] sm:$0xf]
        %v3663 = vld [vmem:[%s4 + $0x14] sm:$0xf]
        %v3664 = vld [vmem:[%s4 + $0x18] sm:$0xf]
        %v3665 = vld [vmem:[%s4 + $0x1c] sm:$0xf]
        %v3666 = vld [vmem:[%s4 + $0x20] sm:$0xf]
        %v3667 = vld [vmem:[%s4 + $0x24] sm:$0xf]
        %v3668 = vld [vmem:[%s4 + $0x28] sm:$0xf]
        %v3669 = vld [vmem:[%s4 + $0x2c] sm:$0xf]
        %v3670 = vld [vmem:[%s4 + $0x30] sm:$0xf]
        %v3671 = vld [vmem:[%s4 + $0x34] sm:$0xf]
        %v3672 = vld [vmem:[%s4 + $0x38] sm:$0xf]
        %v3673 = vld [vmem:[%s4 + $0x3c] sm:$0xf]
        %v3674 = vld [vmem:[%s4 + $0x40] sm:$0xf]
        %v3675 = vld [vmem:[%s4 + $0x44] sm:$0xf]
        %v3676 = vld [vmem:[%s4 + $0x48] sm:$0xf]
        %v3677 = vld [vmem:[%s4 + $0x4c] sm:$0xf]
        %v3678 = vld [vmem:[%s4 + $0x50] sm:$0xf]
        %v3679 = vld [vmem:[%s4 + $0x54] sm:$0xf]
        %v3680 = vld [vmem:[%s4 + $0x58] sm:$0xf]
        %v3681 = vld [vmem:[%s4 + $0x5c] sm:$0xf]
        %v3682 = vld [vmem:[%s4 + $0x60] sm:$0xf]
        %v3683 = vld [vmem:[%s4 + $0x64] sm:$0xf]
        %v3684 = vld [vmem:[%s4 + $0x68] sm:$0xf]
        %v3685 = vld [vmem:[%s4 + $0x6c] sm:$0xf]
        %v3686 = vld [vmem:[%s4 + $0x70] sm:$0xf]
        %v3687 = vld [vmem:[%s4 + $0x74] sm:$0xf]
        %v3688 = vld [vmem:[%s4 + $0x78] sm:$0xf]
        %v3689 = vld [vmem:[%s4 + $0x7c] sm:$0xf]
        %v3690 = vld [vmem:[%s4 + $0x80] sm:$0xf]
        %v3691 = vld [vmem:[%s4 + $0x84] sm:$0xf]
        %v3692 = vld [vmem:[%s4 + $0x88] sm:$0xf]
        %v3693 = vld [vmem:[%s4 + $0x8c] sm:$0xf]
        %v3730 = vunpack.c.l.b16 %v3658
        %v3731 = vunpack.c.l.b16 %v3659
        %v3732 = vunpack.c.l.b16 %v3660
        %v3733 = vunpack.c.l.b16 %v3661
        %v3734 = vunpack.c.l.b16 %v3662
        %v3735 = vunpack.c.l.b16 %v3663
        %v3736 = vunpack.c.l.b16 %v3664
        %v3737 = vunpack.c.l.b16 %v3665
        %v3738 = vunpack.c.l.b16 %v3666
        %v3739 = vunpack.c.l.b16 %v3667
        %v3740 = vunpack.c.l.b16 %v3668
        %v3741 = vunpack.c.l.b16 %v3669
        %v3742 = vunpack.c.l.b16 %v3670
        %v3743 = vunpack.c.l.b16 %v3671
        %v3744 = vunpack.c.l.b16 %v3672
        %v3745 = vunpack.c.l.b16 %v3673
        %v3746 = vunpack.c.l.b16 %v3674
        %v3747 = vunpack.c.l.b16 %v3675
        %v3748 = vunpack.c.l.b16 %v3676
        %v3749 = vunpack.c.l.b16 %v3677
        %v3750 = vunpack.c.l.b16 %v3678
        %v3751 = vunpack.c.l.b16 %v3679
        %v3752 = vunpack.c.l.b16 %v3680
        %v3753 = vunpack.c.l.b16 %v3681
        %v3754 = vunpack.c.l.b16 %v3682
        %v3755 = vunpack.c.l.b16 %v3683
        %v3756 = vunpack.c.l.b16 %v3684
        %v3757 = vunpack.c.l.b16 %v3685
        %v3758 = vunpack.c.l.b16 %v3686
        %v3759 = vunpack.c.l.b16 %v3687
        %v3760 = vunpack.c.l.b16 %v3688
        %v3761 = vunpack.c.l.b16 %v3689
        %v3762 = vunpack.c.l.b16 %v3690
        %v3763 = vunpack.c.l.b16 %v3691
        %v3764 = vunpack.c.l.b16 %v3692
        %v3765 = vunpack.c.l.b16 %v3693
        %v3766 = vpack.c.b16 %v3731, %v3730
        %v3767 = vpack.c.b16 %v3733, %v3732
        %v3768 = vpack.c.b16 %v3735, %v3734
        %v3769 = vpack.c.b16 %v3737, %v3736
        %v3770 = vpack.c.b16 %v3739, %v3738
        %v3771 = vpack.c.b16 %v3741, %v3740
        %v3772 = vpack.c.b16 %v3743, %v3742
        %v3773 = vpack.c.b16 %v3745, %v3744
        %v3774 = vpack.c.b16 %v3747, %v3746
        %v3775 = vpack.c.b16 %v3749, %v3748
        %v3776 = vpack.c.b16 %v3751, %v3750
        %v3777 = vpack.c.b16 %v3753, %v3752
        %v3778 = vpack.c.b16 %v3755, %v3754
        %v3779 = vpack.c.b16 %v3757, %v3756
        %v3780 = vpack.c.b16 %v3759, %v3758
        %v3781 = vpack.c.b16 %v3761, %v3760
        %v3782 = vpack.c.b16 %v3763, %v3762
        %v3783 = vpack.c.b16 %v3765, %v3764
        %v3803 = vsel %vm586, %v3370, 0
        %v3806 = vsel %vm586, %v3373, 0
        %v3809 = vsel %vm586, %v3376, 0
        %v3812 = vsel %vm586, %v3379, 0
        %v3815 = vsel %vm586, %v3382, 0
        %v3818 = vsel %vm586, %v3385, 0
        %v3821 = vsel %vm586, %v3388, 0
        %v3824 = vsel %vm586, %v3391, 0
        %v3827 = vsel %vm586, %v3394, 0
        %v3830 = vsel %vm586, %v3397, 0
        %v3833 = vsel %vm586, %v3400, 0
        %v3836 = vsel %vm586, %v3403, 0
        %v3839 = vsel %vm586, %v3406, 0
        %v3842 = vsel %vm586, %v3409, 0
        %v3845 = vsel %vm586, %v3412, 0
        %v3848 = vsel %vm586, %v3415, 0
        %3850 = vmatprep.subr.bf16.mxu0 0
        %3851 = vmatpush1.bf16.msra.mxu0 %v3773
        %3852 = vmatprep.subr.bf16.mxu0 0
        %3853 = vmatpush1.bf16.msra.mxu0 %v3772
        %3854 = vmatprep.subr.bf16.mxu0 0
        %3855 = vmatpush1.bf16.msra.mxu0 %v3771
        %3856 = vmatprep.subr.bf16.mxu0 0
        %3857 = vmatpush1.bf16.msra.mxu0 %v3770
        %3858 = vmatprep.subr.bf16.mxu0 0
        %3859 = vmatpush1.bf16.msra.mxu0 %v3769
        %3860 = vmatprep.subr.bf16.mxu0 0
        %3861 = vmatpush1.bf16.msra.mxu0 %v3768
        %3862 = vmatprep.subr.bf16.mxu0 0
        %3863 = vmatpush1.bf16.msra.mxu0 %v3767
        %3864 = vmatprep.subr.bf16.mxu0 0
        %3865 = vmatpush1.bf16.msra.mxu0 %v3766
        %3866 = vmatprep.subr.bf16.mxu0 0
        %3867 = vmatpush2.bf16.msra.mxu0 %v3781
        %3868 = vmatprep.subr.bf16.mxu0 0
        %3869 = vmatpush2.bf16.msra.mxu0 %v3780
        %3870 = vmatprep.subr.bf16.mxu0 0
        %3871 = vmatpush2.bf16.msra.mxu0 %v3779
        %3872 = vmatprep.subr.bf16.mxu0 0
        %3873 = vmatpush2.bf16.msra.mxu0 %v3778
        %3874 = vmatprep.subr.bf16.mxu0 0
        %3875 = vmatpush2.bf16.msra.mxu0 %v3777
        %3876 = vmatprep.subr.bf16.mxu0 0
        %3877 = vmatpush2.bf16.msra.mxu0 %v3776
        %3878 = vmatprep.subr.bf16.mxu0 0
        %3879 = vmatpush2.bf16.msra.mxu0 %v3775
        %3880 = vmatprep.subr.bf16.mxu0 0
        %3881 = vmatpush2.bf16.msra.mxu0 %v3774
        %3882 = vmatprep.mubr.bf16.mxu0 %v3611
        %3883 = vmatmul.mubr.bf16.gmra.mxu0 %v3483
        %v3884 = vpop.f32.mrf.mxu0
        %v3885 = vadd.f32 0.0, %v3884
        %v3886 = vpop.f32.mrf.mxu0
        %v3887 = vpop.f32.mrf.mxu0
        %v3888 = vadd.f32 0.0, %v3887
        %v3889 = vpop.f32.mrf.mxu0
        %3890 = vmatprep.mubr.bf16.mxu0 %v3614
        %3891 = vmatmul.mubr.bf16.gmra.mxu0 %v3486
        %v3892 = vpop.f32.mrf.mxu0
        %v3893 = vadd.f32 0.0, %v3892
        %v3894 = vpop.f32.mrf.mxu0
        %v3895 = vpop.f32.mrf.mxu0
        %v3896 = vadd.f32 0.0, %v3895
        %v3897 = vpop.f32.mrf.mxu0
        %3898 = vmatprep.mubr.bf16.mxu0 %v3617
        %3899 = vmatmul.mubr.bf16.gmra.mxu0 %v3489
        %v3900 = vpop.f32.mrf.mxu0
        %v3901 = vadd.f32 0.0, %v3900
        %v3902 = vpop.f32.mrf.mxu0
        %v3903 = vpop.f32.mrf.mxu0
        %v3904 = vadd.f32 0.0, %v3903
        %v3905 = vpop.f32.mrf.mxu0
        %3906 = vmatprep.mubr.bf16.mxu0 %v3620
        %3907 = vmatmul.mubr.bf16.gmra.mxu0 %v3492
        %v3908 = vpop.f32.mrf.mxu0
        %v3909 = vadd.f32 0.0, %v3908
        %v3910 = vpop.f32.mrf.mxu0
        %v3911 = vpop.f32.mrf.mxu0
        %v3912 = vadd.f32 0.0, %v3911
        %v3913 = vpop.f32.mrf.mxu0
        %3914 = vmatprep.mubr.bf16.mxu0 %v3623
        %3915 = vmatmul.mubr.bf16.gmra.mxu0 %v3495
        %v3916 = vpop.f32.mrf.mxu0
        %v3917 = vadd.f32 0.0, %v3916
        %v3918 = vpop.f32.mrf.mxu0
        %v3919 = vpop.f32.mrf.mxu0
        %v3920 = vadd.f32 0.0, %v3919
        %v3921 = vpop.f32.mrf.mxu0
        %3922 = vmatprep.mubr.bf16.mxu0 %v3626
        %3923 = vmatmul.mubr.bf16.gmra.mxu0 %v3498
        %v3924 = vpop.f32.mrf.mxu0
        %v3925 = vadd.f32 0.0, %v3924
        %v3926 = vpop.f32.mrf.mxu0
        %v3927 = vpop.f32.mrf.mxu0
        %v3928 = vadd.f32 0.0, %v3927
        %v3929 = vpop.f32.mrf.mxu0
        %3930 = vmatprep.mubr.bf16.mxu0 %v3629
        %3931 = vmatmul.mubr.bf16.gmra.mxu0 %v3501
        %v3932 = vpop.f32.mrf.mxu0
        %v3933 = vadd.f32 0.0, %v3932
        %v3934 = vpop.f32.mrf.mxu0
        %v3935 = vpop.f32.mrf.mxu0
        %v3936 = vadd.f32 0.0, %v3935
        %v3937 = vpop.f32.mrf.mxu0
        %3938 = vmatprep.mubr.bf16.mxu0 %v3632
        %3939 = vmatmul.mubr.bf16.gmra.mxu0 %v3504
        %v3940 = vpop.f32.mrf.mxu0
        %v3941 = vadd.f32 0.0, %v3940
        %v3942 = vpop.f32.mrf.mxu0
        %v3943 = vpop.f32.mrf.mxu0
        %v3944 = vadd.f32 0.0, %v3943
        %v3945 = vpop.f32.mrf.mxu0
        %3946 = vmatprep.mubr.bf16.mxu0 %v3635
        %3947 = vmatmul.mubr.bf16.gmra.mxu0 %v3507
        %v3948 = vpop.f32.mrf.mxu0
        %v3949 = vadd.f32 0.0, %v3948
        %v3950 = vpop.f32.mrf.mxu0
        %v3951 = vpop.f32.mrf.mxu0
        %v3952 = vadd.f32 0.0, %v3951
        %v3953 = vpop.f32.mrf.mxu0
        %3954 = vmatprep.mubr.bf16.mxu0 %v3638
        %3955 = vmatmul.mubr.bf16.gmra.mxu0 %v3510
        %v3956 = vpop.f32.mrf.mxu0
        %v3957 = vadd.f32 0.0, %v3956
        %v3958 = vpop.f32.mrf.mxu0
        %v3959 = vpop.f32.mrf.mxu0
        %v3960 = vadd.f32 0.0, %v3959
        %v3961 = vpop.f32.mrf.mxu0
        %3962 = vmatprep.mubr.bf16.mxu0 %v3641
        %3963 = vmatmul.mubr.bf16.gmra.mxu0 %v3513
        %v3964 = vpop.f32.mrf.mxu0
        %v3965 = vadd.f32 0.0, %v3964
        %v3966 = vpop.f32.mrf.mxu0
        %v3967 = vpop.f32.mrf.mxu0
        %v3968 = vadd.f32 0.0, %v3967
        %v3969 = vpop.f32.mrf.mxu0
        %3970 = vmatprep.mubr.bf16.mxu0 %v3644
        %3971 = vmatmul.mubr.bf16.gmra.mxu0 %v3516
        %v3972 = vpop.f32.mrf.mxu0
        %v3973 = vadd.f32 0.0, %v3972
        %v3974 = vpop.f32.mrf.mxu0
        %v3975 = vpop.f32.mrf.mxu0
        %v3976 = vadd.f32 0.0, %v3975
        %v3977 = vpop.f32.mrf.mxu0
        %3978 = vmatprep.mubr.bf16.mxu0 %v3647
        %3979 = vmatmul.mubr.bf16.gmra.mxu0 %v3519
        %v3980 = vpop.f32.mrf.mxu0
        %v3981 = vadd.f32 0.0, %v3980
        %v3982 = vpop.f32.mrf.mxu0
        %v3983 = vpop.f32.mrf.mxu0
        %v3984 = vadd.f32 0.0, %v3983
        %v3985 = vpop.f32.mrf.mxu0
        %3986 = vmatprep.mubr.bf16.mxu0 %v3650
        %3987 = vmatmul.mubr.bf16.gmra.mxu0 %v3522
        %v3988 = vpop.f32.mrf.mxu0
        %v3989 = vadd.f32 0.0, %v3988
        %v3990 = vpop.f32.mrf.mxu0
        %v3991 = vpop.f32.mrf.mxu0
        %v3992 = vadd.f32 0.0, %v3991
        %v3993 = vpop.f32.mrf.mxu0
        %3994 = vmatprep.mubr.bf16.mxu0 %v3653
        %3995 = vmatmul.mubr.bf16.gmra.mxu0 %v3525
        %v3996 = vpop.f32.mrf.mxu0
        %v3997 = vadd.f32 0.0, %v3996
        %v3998 = vpop.f32.mrf.mxu0
        %v3999 = vpop.f32.mrf.mxu0
        %v4000 = vadd.f32 0.0, %v3999
        %v4001 = vpop.f32.mrf.mxu0
        %4002 = vmatprep.mubr.bf16.mxu0 %v3656
        %4003 = vmatmul.mubr.bf16.gmra.mxu0 %v3528
        %v4004 = vpop.f32.mrf.mxu0
        %v4005 = vadd.f32 0.0, %v4004
        %v4006 = vpop.f32.mrf.mxu0
        %v4007 = vpop.f32.mrf.mxu0
        %v4008 = vadd.f32 0.0, %v4007
        %v4009 = vpop.f32.mrf.mxu0
        %4010 = vdwg.mxu0
        %4011 = vmatprep.subr.bf16.mxu0 0
        %4012 = vmatpush1.bf16.msra.mxu0 0
        %4013 = vmatprep.subr.bf16.mxu0 0
        %4014 = vmatpush1.bf16.msra.mxu0 0
        %4015 = vmatprep.subr.bf16.mxu0 0
        %4016 = vmatpush1.bf16.msra.mxu0 0
        %4017 = vmatprep.subr.bf16.mxu0 0
        %4018 = vmatpush1.bf16.msra.mxu0 0
        %4019 = vmatprep.subr.bf16.mxu0 0
        %4020 = vmatpush1.bf16.msra.mxu0 0
        %4021 = vmatprep.subr.bf16.mxu0 0
        %4022 = vmatpush1.bf16.msra.mxu0 0
        %4023 = vmatprep.subr.bf16.mxu0 0
        %4024 = vmatpush1.bf16.msra.mxu0 %v3783
        %4025 = vmatprep.subr.bf16.mxu0 0
        %4026 = vmatpush1.bf16.msra.mxu0 %v3782
        %4027 = vmatprep.subr.bf16.mxu0 0
        %4028 = vmatpush2.bf16.msra.mxu0 0
        %4029 = vmatprep.subr.bf16.mxu0 0
        %4030 = vmatpush2.bf16.msra.mxu0 0
        %4031 = vmatprep.subr.bf16.mxu0 0
        %4032 = vmatpush2.bf16.msra.mxu0 0
        %4033 = vmatprep.subr.bf16.mxu0 0
        %4034 = vmatpush2.bf16.msra.mxu0 0
        %4035 = vmatprep.subr.bf16.mxu0 0
        %4036 = vmatpush2.bf16.msra.mxu0 0
        %4037 = vmatprep.subr.bf16.mxu0 0
        %4038 = vmatpush2.bf16.msra.mxu0 0
        %4039 = vmatprep.subr.bf16.mxu0 0
        %4040 = vmatpush2.bf16.msra.mxu0 0
        %4041 = vmatprep.subr.bf16.mxu0 0
        %4042 = vmatpush2.bf16.msra.mxu0 0
        %4043 = vmatprep.mubr.bf16.mxu0 0
        %4044 = vmatmul.mubr.bf16.gmra.mxu0 %v3803
        %v4045 = vpop.f32.mrf.mxu0
        %v4046 = vadd.f32 %v3885, %v4045
        %v4047 = vpop.f32.mrf.mxu0
        %v4048 = vpop.f32.mrf.mxu0
        %v4049 = vadd.f32 %v3888, %v4048
        %v4050 = vpop.f32.mrf.mxu0
        %4051 = vmatprep.mubr.bf16.mxu0 0
        %4052 = vmatmul.mubr.bf16.gmra.mxu0 %v3806
        %v4053 = vpop.f32.mrf.mxu0
        %v4054 = vadd.f32 %v3893, %v4053
        %v4055 = vpop.f32.mrf.mxu0
        %v4056 = vpop.f32.mrf.mxu0
        %v4057 = vadd.f32 %v3896, %v4056
        %v4058 = vpop.f32.mrf.mxu0
        %4059 = vmatprep.mubr.bf16.mxu0 0
        %4060 = vmatmul.mubr.bf16.gmra.mxu0 %v3809
        %v4061 = vpop.f32.mrf.mxu0
        %v4062 = vadd.f32 %v3901, %v4061
        %v4063 = vpop.f32.mrf.mxu0
        %v4064 = vpop.f32.mrf.mxu0
        %v4065 = vadd.f32 %v3904, %v4064
        %v4066 = vpop.f32.mrf.mxu0
        %4067 = vmatprep.mubr.bf16.mxu0 0
        %4068 = vmatmul.mubr.bf16.gmra.mxu0 %v3812
        %v4069 = vpop.f32.mrf.mxu0
        %v4070 = vadd.f32 %v3909, %v4069
        %v4071 = vpop.f32.mrf.mxu0
        %v4072 = vpop.f32.mrf.mxu0
        %v4073 = vadd.f32 %v3912, %v4072
        %v4074 = vpop.f32.mrf.mxu0
        %4075 = vmatprep.mubr.bf16.mxu0 0
        %4076 = vmatmul.mubr.bf16.gmra.mxu0 %v3815
        %v4077 = vpop.f32.mrf.mxu0
        %v4078 = vadd.f32 %v3917, %v4077
        %v4079 = vpop.f32.mrf.mxu0
        %v4080 = vpop.f32.mrf.mxu0
        %v4081 = vadd.f32 %v3920, %v4080
        %v4082 = vpop.f32.mrf.mxu0
        %4083 = vmatprep.mubr.bf16.mxu0 0
        %4084 = vmatmul.mubr.bf16.gmra.mxu0 %v3818
        %v4085 = vpop.f32.mrf.mxu0
        %v4086 = vadd.f32 %v3925, %v4085
        %v4087 = vpop.f32.mrf.mxu0
        %v4088 = vpop.f32.mrf.mxu0
        %v4089 = vadd.f32 %v3928, %v4088
        %v4090 = vpop.f32.mrf.mxu0
        %4091 = vmatprep.mubr.bf16.mxu0 0
        %4092 = vmatmul.mubr.bf16.gmra.mxu0 %v3821
        %v4093 = vpop.f32.mrf.mxu0
        %v4094 = vadd.f32 %v3933, %v4093
        %v4095 = vpop.f32.mrf.mxu0
        %v4096 = vpop.f32.mrf.mxu0
        %v4097 = vadd.f32 %v3936, %v4096
        %v4098 = vpop.f32.mrf.mxu0
        %4099 = vmatprep.mubr.bf16.mxu0 0
        %4100 = vmatmul.mubr.bf16.gmra.mxu0 %v3824
        %v4101 = vpop.f32.mrf.mxu0
        %v4102 = vadd.f32 %v3941, %v4101
        %v4103 = vpop.f32.mrf.mxu0
        %v4104 = vpop.f32.mrf.mxu0
        %v4105 = vadd.f32 %v3944, %v4104
        %v4106 = vpop.f32.mrf.mxu0
        %4107 = vmatprep.mubr.bf16.mxu0 0
        %4108 = vmatmul.mubr.bf16.gmra.mxu0 %v3827
        %v4109 = vpop.f32.mrf.mxu0
        %v4110 = vadd.f32 %v3949, %v4109
        %v4111 = vpop.f32.mrf.mxu0
        %v4112 = vpop.f32.mrf.mxu0
        %v4113 = vadd.f32 %v3952, %v4112
        %v4114 = vpop.f32.mrf.mxu0
        %4115 = vmatprep.mubr.bf16.mxu0 0
        %4116 = vmatmul.mubr.bf16.gmra.mxu0 %v3830
        %v4117 = vpop.f32.mrf.mxu0
        %v4118 = vadd.f32 %v3957, %v4117
        %v4119 = vpop.f32.mrf.mxu0
        %v4120 = vpop.f32.mrf.mxu0
        %v4121 = vadd.f32 %v3960, %v4120
        %v4122 = vpop.f32.mrf.mxu0
        %4123 = vmatprep.mubr.bf16.mxu0 0
        %4124 = vmatmul.mubr.bf16.gmra.mxu0 %v3833
        %v4125 = vpop.f32.mrf.mxu0
        %v4126 = vadd.f32 %v3965, %v4125
        %v4127 = vpop.f32.mrf.mxu0
        %v4128 = vpop.f32.mrf.mxu0
        %v4129 = vadd.f32 %v3968, %v4128
        %v4130 = vpop.f32.mrf.mxu0
        %4131 = vmatprep.mubr.bf16.mxu0 0
        %4132 = vmatmul.mubr.bf16.gmra.mxu0 %v3836
        %v4133 = vpop.f32.mrf.mxu0
        %v4134 = vadd.f32 %v3973, %v4133
        %v4135 = vpop.f32.mrf.mxu0
        %v4136 = vpop.f32.mrf.mxu0
        %v4137 = vadd.f32 %v3976, %v4136
        %v4138 = vpop.f32.mrf.mxu0
        %4139 = vmatprep.mubr.bf16.mxu0 0
        %4140 = vmatmul.mubr.bf16.gmra.mxu0 %v3839
        %v4141 = vpop.f32.mrf.mxu0
        %v4142 = vadd.f32 %v3981, %v4141
        %v4143 = vpop.f32.mrf.mxu0
        %v4144 = vpop.f32.mrf.mxu0
        %v4145 = vadd.f32 %v3984, %v4144
        %v4146 = vpop.f32.mrf.mxu0
        %4147 = vmatprep.mubr.bf16.mxu0 0
        %4148 = vmatmul.mubr.bf16.gmra.mxu0 %v3842
        %v4149 = vpop.f32.mrf.mxu0
        %v4150 = vadd.f32 %v3989, %v4149
        %v4151 = vpop.f32.mrf.mxu0
        %v4152 = vpop.f32.mrf.mxu0
        %v4153 = vadd.f32 %v3992, %v4152
        %v4154 = vpop.f32.mrf.mxu0
        %4155 = vmatprep.mubr.bf16.mxu0 0
        %4156 = vmatmul.mubr.bf16.gmra.mxu0 %v3845
        %v4157 = vpop.f32.mrf.mxu0
        %v4158 = vadd.f32 %v3997, %v4157
        %v4159 = vpop.f32.mrf.mxu0
        %v4160 = vpop.f32.mrf.mxu0
        %v4161 = vadd.f32 %v4000, %v4160
        %v4162 = vpop.f32.mrf.mxu0
        %4163 = vmatprep.mubr.bf16.mxu0 0
        %4164 = vmatmul.mubr.bf16.gmra.mxu0 %v3848
        %v4165 = vpop.f32.mrf.mxu0
        %v4166 = vadd.f32 %v4005, %v4165
        %v4167 = vpop.f32.mrf.mxu0
        %v4168 = vpop.f32.mrf.mxu0
        %v4169 = vadd.f32 %v4008, %v4168
        %v4170 = vpop.f32.mrf.mxu0
        %4171 = vdwg.mxu0
        %v4172 = vld [vmem:[%s398] sm:$0x1]
        %v4174 = vlaneseq
        %v4175 = vshrl.u32 %v4174, 7
        %v4176 = vsub.s32 0, %v4175
        %v4177 = vrot.slane %v4172, %v4176
        %v4179 = vadd.f32 %v4046, %v4177
        %v4180 = vadd.f32 %v4049, %v4177
        %v4181 = vadd.f32 %v4054, %v4177
        %v4182 = vadd.f32 %v4057, %v4177
        %v4183 = vadd.f32 %v4062, %v4177
        %v4184 = vadd.f32 %v4065, %v4177
        %v4185 = vadd.f32 %v4070, %v4177
        %v4186 = vadd.f32 %v4073, %v4177
        %v4187 = vadd.f32 %v4078, %v4177
        %v4188 = vadd.f32 %v4081, %v4177
        %v4189 = vadd.f32 %v4086, %v4177
        %v4190 = vadd.f32 %v4089, %v4177
        %v4191 = vadd.f32 %v4094, %v4177
        %v4192 = vadd.f32 %v4097, %v4177
        %v4193 = vadd.f32 %v4102, %v4177
        %v4194 = vadd.f32 %v4105, %v4177
        %v4195 = vadd.f32 %v4110, %v4177
        %v4196 = vadd.f32 %v4113, %v4177
        %v4197 = vadd.f32 %v4118, %v4177
        %v4198 = vadd.f32 %v4121, %v4177
        %v4199 = vadd.f32 %v4126, %v4177
        %v4200 = vadd.f32 %v4129, %v4177
        %v4201 = vadd.f32 %v4134, %v4177
        %v4202 = vadd.f32 %v4137, %v4177
        %v4203 = vadd.f32 %v4142, %v4177
        %v4204 = vadd.f32 %v4145, %v4177
        %v4205 = vadd.f32 %v4150, %v4177
        %v4206 = vadd.f32 %v4153, %v4177
        %v4207 = vadd.f32 %v4158, %v4177
        %v4208 = vadd.f32 %v4161, %v4177
        %v4209 = vadd.f32 %v4166, %v4177
        %v4210 = vadd.f32 %v4169, %v4177
        %v4211 = vsel %vm3448, %v4179, 0.0
        %v4212 = vsel %vm3448, %v4180, 0.0
        %v4213 = vadd.f32 %v4211, %v4212
        %v4214 = vsel %vm3448, %v4181, 0.0
        %v4215 = vadd.f32 %v4213, %v4214
        %v4216 = vsel %vm3448, %v4182, 0.0
        %v4217 = vadd.f32 %v4215, %v4216
        %v4218 = vsel %vm3448, %v4183, 0.0
        %v4219 = vadd.f32 %v4217, %v4218
        %v4220 = vsel %vm3448, %v4184, 0.0
        %v4221 = vadd.f32 %v4219, %v4220
        %v4222 = vsel %vm3448, %v4185, 0.0
        %v4223 = vadd.f32 %v4221, %v4222
        %v4224 = vsel %vm3448, %v4186, 0.0
        %v4225 = vadd.f32 %v4223, %v4224
        %v4226 = vsel %vm3448, %v4187, 0.0
        %v4227 = vadd.f32 %v4225, %v4226
        %v4228 = vsel %vm3448, %v4188, 0.0
        %v4229 = vadd.f32 %v4227, %v4228
        %v4230 = vsel %vm3448, %v4189, 0.0
        %v4231 = vadd.f32 %v4229, %v4230
        %v4232 = vsel %vm3448, %v4190, 0.0
        %v4233 = vadd.f32 %v4231, %v4232
        %v4234 = vsel %vm3448, %v4191, 0.0
        %v4235 = vadd.f32 %v4233, %v4234
        %v4236 = vsel %vm3448, %v4192, 0.0
        %v4237 = vadd.f32 %v4235, %v4236
        %v4238 = vsel %vm3448, %v4193, 0.0
        %v4239 = vadd.f32 %v4237, %v4238
        %v4240 = vsel %vm3448, %v4194, 0.0
        %v4241 = vadd.f32 %v4239, %v4240
        %v4242 = vsel %vm3448, %v4195, 0.0
        %v4243 = vadd.f32 %v4241, %v4242
        %v4244 = vsel %vm3448, %v4196, 0.0
        %v4245 = vadd.f32 %v4243, %v4244
        %v4246 = vsel %vm3448, %v4197, 0.0
        %v4247 = vadd.f32 %v4245, %v4246
        %v4248 = vsel %vm3448, %v4198, 0.0
        %v4249 = vadd.f32 %v4247, %v4248
        %v4250 = vsel %vm3448, %v4199, 0.0
        %v4251 = vadd.f32 %v4249, %v4250
        %v4252 = vsel %vm3448, %v4200, 0.0
        %v4253 = vadd.f32 %v4251, %v4252
        %v4254 = vsel %vm3448, %v4201, 0.0
        %v4255 = vadd.f32 %v4253, %v4254
        %v4256 = vsel %vm3448, %v4202, 0.0
        %v4257 = vadd.f32 %v4255, %v4256
        %v4258 = vsel %vm3448, %v4203, 0.0
        %v4259 = vadd.f32 %v4257, %v4258
        %v4260 = vsel %vm3448, %v4204, 0.0
        %v4261 = vadd.f32 %v4259, %v4260
        %v4262 = vsel %vm3448, %v4205, 0.0
        %v4263 = vadd.f32 %v4261, %v4262
        %v4264 = vsel %vm3448, %v4206, 0.0
        %v4265 = vadd.f32 %v4263, %v4264
        %v4266 = vsel %vm3448, %v4207, 0.0
        %v4267 = vadd.f32 %v4265, %v4266
        %v4268 = vsel %vm3448, %v4208, 0.0
        %v4269 = vadd.f32 %v4267, %v4268
        %v4270 = vsel %vm3448, %v4209, 0.0
        %v4271 = vadd.f32 %v4269, %v4270
        %v4272 = vsel %vm3448, %v4210, 0.0
        %v4273 = vadd.f32 %v4271, %v4272
        %v4274 = vrot.slane %v4273, 4
        %v4275 = vadd.f32 %v4273, %v4274
        %v4276 = vrot.slane %v4275, 2
        %v4277 = vadd.f32 %v4275, %v4276
        %v4278 = vrot.slane %v4277, 1
        %v4279 = vadd.f32 %v4277, %v4278
        %v4280 = vld [vmem:[%s8] sm:$0xff]
        %v4281 = vld [vmem:[%s8 + $0x8] sm:$0xff]
        %v4282 = vld [vmem:[%s8 + $0x10] sm:$0xff]
        %v4283 = vld [vmem:[%s8 + $0x18] sm:$0xff]
        %v4284 = vld [vmem:[%s8 + $0x20] sm:$0xff]
        %v4285 = vld [vmem:[%s8 + $0x28] sm:$0xff]
        %v4286 = vld [vmem:[%s8 + $0x30] sm:$0xff]
        %v4287 = vld [vmem:[%s8 + $0x38] sm:$0xff]
        %v4289 = vsel %vm3448, %v4279, 0
        %4291 = vmatprep.subr.mxu0 0.0
        %4292 = vmatpush1.msra.mxu0 0.0
        %4293 = vmatprep.subr.mxu0 0.0
        %4294 = vmatpush1.msra.mxu0 0.0
        %4295 = vmatprep.subr.mxu0 0.0
        %4296 = vmatpush1.msra.mxu0 0.0
        %4297 = vmatprep.subr.mxu0 0.0
        %4298 = vmatpush1.msra.mxu0 0.0
        %4299 = vmatprep.subr.mxu0 0.0
        %4300 = vmatpush1.msra.mxu0 0.0
        %4301 = vmatprep.subr.mxu0 0.0
        %4302 = vmatpush1.msra.mxu0 0.0
        %4303 = vmatprep.subr.mxu0 0.0
        %4304 = vmatpush1.msra.mxu0 0.0
        %4305 = vmatprep.subr.mxu0 0.0
        %4306 = vmatpush1.msra.mxu0 0.0
        %4307 = vmatprep.subr.mxu0 0.0
        %4308 = vmatpush1.msra.mxu0 %v4287
        %4309 = vmatprep.subr.mxu0 0.0
        %4310 = vmatpush1.msra.mxu0 %v4286
        %4311 = vmatprep.subr.mxu0 0.0
        %4312 = vmatpush1.msra.mxu0 %v4285
        %4313 = vmatprep.subr.mxu0 0.0
        %4314 = vmatpush1.msra.mxu0 %v4284
        %4315 = vmatprep.subr.mxu0 0.0
        %4316 = vmatpush1.msra.mxu0 %v4283
        %4317 = vmatprep.subr.mxu0 0.0
        %4318 = vmatpush1.msra.mxu0 %v4282
        %4319 = vmatprep.subr.mxu0 0.0
        %4320 = vmatpush1.msra.mxu0 %v4281
        %4321 = vmatprep.subr.mxu0 0.0
        %4322 = vmatpush1.msra.mxu0 %v4280
        %4323 = vmatprep.subr.mxu0 0.0
        %4324 = vmatpush2.msra.mxu0 0.0
        %4325 = vmatprep.subr.mxu0 0.0
        %4326 = vmatpush2.msra.mxu0 0.0
        %4327 = vmatprep.subr.mxu0 0.0
        %4328 = vmatpush2.msra.mxu0 0.0
        %4329 = vmatprep.subr.mxu0 0.0
        %4330 = vmatpush2.msra.mxu0 0.0
        %4331 = vmatprep.subr.mxu0 0.0
        %4332 = vmatpush2.msra.mxu0 0.0
        %4333 = vmatprep.subr.mxu0 0.0
        %4334 = vmatpush2.msra.mxu0 0.0
        %4335 = vmatprep.subr.mxu0 0.0
        %4336 = vmatpush2.msra.mxu0 0.0
        %4337 = vmatprep.subr.mxu0 0.0
        %4338 = vmatpush2.msra.mxu0 0.0
        %4339 = vmatprep.subr.mxu0 0.0
        %4340 = vmatpush2.msra.mxu0 0.0
        %4341 = vmatprep.subr.mxu0 0.0
        %4342 = vmatpush2.msra.mxu0 0.0
        %4343 = vmatprep.subr.mxu0 0.0
        %4344 = vmatpush2.msra.mxu0 0.0
        %4345 = vmatprep.subr.mxu0 0.0
        %4346 = vmatpush2.msra.mxu0 0.0
        %4347 = vmatprep.subr.mxu0 0.0
        %4348 = vmatpush2.msra.mxu0 0.0
        %4349 = vmatprep.subr.mxu0 0.0
        %4350 = vmatpush2.msra.mxu0 0.0
        %4351 = vmatprep.subr.mxu0 0.0
        %4352 = vmatpush2.msra.mxu0 0.0
        %4353 = vmatprep.subr.mxu0 0.0
        %4354 = vmatpush2.msra.mxu0 0.0
        %4355 = vmatprep.mubr.f32.mxu0 0.0
        %4356 = vmatmul.mubr.f32.gmra.mxu0 %v4289
        %v4357 = vpop.f32.mrf.mxu0
        %v4358 = vadd.f32 0.0, %v4357
        %v4359 = vpop.f32.mrf.mxu0
        %4360 = vdwg.mxu0
        %v4361 = vlaneseq
        %v4362 = vshrl.u32 %v4361, 7
        %v4363 = vsub.s32 0, %v4362
        %v4364 = vrot.slane %v4358, %v4363
        %v4365 = vsub.f32 %v4179, %v4364
        %v4366 = vsub.f32 %v4180, %v4364
        %v4367 = vsub.f32 %v4181, %v4364
        %v4368 = vsub.f32 %v4182, %v4364
        %v4369 = vsub.f32 %v4183, %v4364
        %v4370 = vsub.f32 %v4184, %v4364
        %v4371 = vsub.f32 %v4185, %v4364
        %v4372 = vsub.f32 %v4186, %v4364
        %v4373 = vsub.f32 %v4187, %v4364
        %v4374 = vsub.f32 %v4188, %v4364
        %v4375 = vsub.f32 %v4189, %v4364
        %v4376 = vsub.f32 %v4190, %v4364
        %v4377 = vsub.f32 %v4191, %v4364
        %v4378 = vsub.f32 %v4192, %v4364
        %v4379 = vsub.f32 %v4193, %v4364
        %v4380 = vsub.f32 %v4194, %v4364
        %v4381 = vsub.f32 %v4195, %v4364
        %v4382 = vsub.f32 %v4196, %v4364
        %v4383 = vsub.f32 %v4197, %v4364
        %v4384 = vsub.f32 %v4198, %v4364
        %v4385 = vsub.f32 %v4199, %v4364
        %v4386 = vsub.f32 %v4200, %v4364
        %v4387 = vsub.f32 %v4201, %v4364
        %v4388 = vsub.f32 %v4202, %v4364
        %v4389 = vsub.f32 %v4203, %v4364
        %v4390 = vsub.f32 %v4204, %v4364
        %v4391 = vsub.f32 %v4205, %v4364
        %v4392 = vsub.f32 %v4206, %v4364
        %v4393 = vsub.f32 %v4207, %v4364
        %v4394 = vsub.f32 %v4208, %v4364
        %v4395 = vsub.f32 %v4209, %v4364
        %v4396 = vsub.f32 %v4210, %v4364
        %v4397 = vmul.f32 %v4365, %v4365
        %v4398 = vmul.f32 %v4366, %v4366
        %v4399 = vmul.f32 %v4367, %v4367
        %v4400 = vmul.f32 %v4368, %v4368
        %v4401 = vmul.f32 %v4369, %v4369
        %v4402 = vmul.f32 %v4370, %v4370
        %v4403 = vmul.f32 %v4371, %v4371
        %v4404 = vmul.f32 %v4372, %v4372
        %v4405 = vmul.f32 %v4373, %v4373
        %v4406 = vmul.f32 %v4374, %v4374
        %v4407 = vmul.f32 %v4375, %v4375
        %v4408 = vmul.f32 %v4376, %v4376
        %v4409 = vmul.f32 %v4377, %v4377
        %v4410 = vmul.f32 %v4378, %v4378
        %v4411 = vmul.f32 %v4379, %v4379
        %v4412 = vmul.f32 %v4380, %v4380
        %v4413 = vmul.f32 %v4381, %v4381
        %v4414 = vmul.f32 %v4382, %v4382
        %v4415 = vmul.f32 %v4383, %v4383
        %v4416 = vmul.f32 %v4384, %v4384
        %v4417 = vmul.f32 %v4385, %v4385
        %v4418 = vmul.f32 %v4386, %v4386
        %v4419 = vmul.f32 %v4387, %v4387
        %v4420 = vmul.f32 %v4388, %v4388
        %v4421 = vmul.f32 %v4389, %v4389
        %v4422 = vmul.f32 %v4390, %v4390
        %v4423 = vmul.f32 %v4391, %v4391
        %v4424 = vmul.f32 %v4392, %v4392
        %v4425 = vmul.f32 %v4393, %v4393
        %v4426 = vmul.f32 %v4394, %v4394
        %v4427 = vmul.f32 %v4395, %v4395
        %v4428 = vmul.f32 %v4396, %v4396
        %v4429 = vsel %vm3448, %v4397, 0.0
        %v4430 = vsel %vm3448, %v4398, 0.0
        %v4431 = vadd.f32 %v4429, %v4430
        %v4432 = vsel %vm3448, %v4399, 0.0
        %v4433 = vadd.f32 %v4431, %v4432
        %v4434 = vsel %vm3448, %v4400, 0.0
        %v4435 = vadd.f32 %v4433, %v4434
        %v4436 = vsel %vm3448, %v4401, 0.0
        %v4437 = vadd.f32 %v4435, %v4436
        %v4438 = vsel %vm3448, %v4402, 0.0
        %v4439 = vadd.f32 %v4437, %v4438
        %v4440 = vsel %vm3448, %v4403, 0.0
        %v4441 = vadd.f32 %v4439, %v4440
        %v4442 = vsel %vm3448, %v4404, 0.0
        %v4443 = vadd.f32 %v4441, %v4442
        %v4444 = vsel %vm3448, %v4405, 0.0
        %v4445 = vadd.f32 %v4443, %v4444
        %v4446 = vsel %vm3448, %v4406, 0.0
        %v4447 = vadd.f32 %v4445, %v4446
        %v4448 = vsel %vm3448, %v4407, 0.0
        %v4449 = vadd.f32 %v4447, %v4448
        %v4450 = vsel %vm3448, %v4408, 0.0
        %v4451 = vadd.f32 %v4449, %v4450
        %v4452 = vsel %vm3448, %v4409, 0.0
        %v4453 = vadd.f32 %v4451, %v4452
        %v4454 = vsel %vm3448, %v4410, 0.0
        %v4455 = vadd.f32 %v4453, %v4454
        %v4456 = vsel %vm3448, %v4411, 0.0
        %v4457 = vadd.f32 %v4455, %v4456
        %v4458 = vsel %vm3448, %v4412, 0.0
        %v4459 = vadd.f32 %v4457, %v4458
        %v4460 = vsel %vm3448, %v4413, 0.0
        %v4461 = vadd.f32 %v4459, %v4460
        %v4462 = vsel %vm3448, %v4414, 0.0
        %v4463 = vadd.f32 %v4461, %v4462
        %v4464 = vsel %vm3448, %v4415, 0.0
        %v4465 = vadd.f32 %v4463, %v4464
        %v4466 = vsel %vm3448, %v4416, 0.0
        %v4467 = vadd.f32 %v4465, %v4466
        %v4468 = vsel %vm3448, %v4417, 0.0
        %v4469 = vadd.f32 %v4467, %v4468
        %v4470 = vsel %vm3448, %v4418, 0.0
        %v4471 = vadd.f32 %v4469, %v4470
        %v4472 = vsel %vm3448, %v4419, 0.0
        %v4473 = vadd.f32 %v4471, %v4472
        %v4474 = vsel %vm3448, %v4420, 0.0
        %v4475 = vadd.f32 %v4473, %v4474
        %v4476 = vsel %vm3448, %v4421, 0.0
        %v4477 = vadd.f32 %v4475, %v4476
        %v4478 = vsel %vm3448, %v4422, 0.0
        %v4479 = vadd.f32 %v4477, %v4478
        %v4480 = vsel %vm3448, %v4423, 0.0
        %v4481 = vadd.f32 %v4479, %v4480
        %v4482 = vsel %vm3448, %v4424, 0.0
        %v4483 = vadd.f32 %v4481, %v4482
        %v4484 = vsel %vm3448, %v4425, 0.0
        %v4485 = vadd.f32 %v4483, %v4484
        %v4486 = vsel %vm3448, %v4426, 0.0
        %v4487 = vadd.f32 %v4485, %v4486
        %v4488 = vsel %vm3448, %v4427, 0.0
        %v4489 = vadd.f32 %v4487, %v4488
        %v4490 = vsel %vm3448, %v4428, 0.0
        %v4491 = vadd.f32 %v4489, %v4490
        %v4492 = vrot.slane %v4491, 4
        %v4493 = vadd.f32 %v4491, %v4492
        %v4494 = vrot.slane %v4493, 2
        %v4495 = vadd.f32 %v4493, %v4494
        %v4496 = vrot.slane %v4495, 1
        %v4497 = vadd.f32 %v4495, %v4496
        %v4499 = vsel %vm3448, %v4497, 0
        %4501 = vmatprep.subr.mxu0 0.0
        %4502 = vmatpush1.msra.mxu0 0.0
        %4503 = vmatprep.subr.mxu0 0.0
        %4504 = vmatpush1.msra.mxu0 0.0
        %4505 = vmatprep.subr.mxu0 0.0
        %4506 = vmatpush1.msra.mxu0 0.0
        %4507 = vmatprep.subr.mxu0 0.0
        %4508 = vmatpush1.msra.mxu0 0.0
        %4509 = vmatprep.subr.mxu0 0.0
        %4510 = vmatpush1.msra.mxu0 0.0
        %4511 = vmatprep.subr.mxu0 0.0
        %4512 = vmatpush1.msra.mxu0 0.0
        %4513 = vmatprep.subr.mxu0 0.0
        %4514 = vmatpush1.msra.mxu0 0.0
        %4515 = vmatprep.subr.mxu0 0.0
        %4516 = vmatpush1.msra.mxu0 0.0
        %4517 = vmatprep.subr.mxu0 0.0
        %4518 = vmatpush1.msra.mxu0 %v4287
        %4519 = vmatprep.subr.mxu0 0.0
        %4520 = vmatpush1.msra.mxu0 %v4286
        %4521 = vmatprep.subr.mxu0 0.0
        %4522 = vmatpush1.msra.mxu0 %v4285
        %4523 = vmatprep.subr.mxu0 0.0
        %4524 = vmatpush1.msra.mxu0 %v4284
        %4525 = vmatprep.subr.mxu0 0.0
        %4526 = vmatpush1.msra.mxu0 %v4283
        %4527 = vmatprep.subr.mxu0 0.0
        %4528 = vmatpush1.msra.mxu0 %v4282
        %4529 = vmatprep.subr.mxu0 0.0
        %4530 = vmatpush1.msra.mxu0 %v4281
        %4531 = vmatprep.subr.mxu0 0.0
        %4532 = vmatpush1.msra.mxu0 %v4280
        %4533 = vmatprep.subr.mxu0 0.0
        %4534 = vmatpush2.msra.mxu0 0.0
        %4535 = vmatprep.subr.mxu0 0.0
        %4536 = vmatpush2.msra.mxu0 0.0
        %4537 = vmatprep.subr.mxu0 0.0
        %4538 = vmatpush2.msra.mxu0 0.0
        %4539 = vmatprep.subr.mxu0 0.0
        %4540 = vmatpush2.msra.mxu0 0.0
        %4541 = vmatprep.subr.mxu0 0.0
        %4542 = vmatpush2.msra.mxu0 0.0
        %4543 = vmatprep.subr.mxu0 0.0
        %4544 = vmatpush2.msra.mxu0 0.0
        %4545 = vmatprep.subr.mxu0 0.0
        %4546 = vmatpush2.msra.mxu0 0.0
        %4547 = vmatprep.subr.mxu0 0.0
        %4548 = vmatpush2.msra.mxu0 0.0
        %4549 = vmatprep.subr.mxu0 0.0
        %4550 = vmatpush2.msra.mxu0 0.0
        %4551 = vmatprep.subr.mxu0 0.0
        %4552 = vmatpush2.msra.mxu0 0.0
        %4553 = vmatprep.subr.mxu0 0.0
        %4554 = vmatpush2.msra.mxu0 0.0
        %4555 = vmatprep.subr.mxu0 0.0
        %4556 = vmatpush2.msra.mxu0 0.0
        %4557 = vmatprep.subr.mxu0 0.0
        %4558 = vmatpush2.msra.mxu0 0.0
        %4559 = vmatprep.subr.mxu0 0.0
        %4560 = vmatpush2.msra.mxu0 0.0
        %4561 = vmatprep.subr.mxu0 0.0
        %4562 = vmatpush2.msra.mxu0 0.0
        %4563 = vmatprep.subr.mxu0 0.0
        %4564 = vmatpush2.msra.mxu0 0.0
        %4565 = vmatprep.mubr.f32.mxu0 0.0
        %4566 = vmatmul.mubr.f32.gmra.mxu0 %v4499
        %v4567 = vpop.f32.mrf.mxu0
        %v4568 = vadd.f32 1e-06, %v4567
        %v4569 = vpop.f32.mrf.mxu0
        %4570 = vdwg.mxu0
        %v4571 = vrsqrt.pop %v4568
        %v4572 = vld [vmem:[%s6] sm:$0x1]
        %v4573 = vmul.f32 %v4571, %v4572
        %v4574 = vlaneseq
        %v4575 = vshrl.u32 %v4574, 7
        %v4576 = vsub.s32 0, %v4575
        %v4577 = vrot.slane %v4573, %v4576
        %v4578 = vmul.f32 %v4365, %v4577
        %v4579 = vmul.f32 %v4366, %v4577
        %v4580 = vmul.f32 %v4367, %v4577
        %v4581 = vmul.f32 %v4368, %v4577
        %v4582 = vmul.f32 %v4369, %v4577
        %v4583 = vmul.f32 %v4370, %v4577
        %v4584 = vmul.f32 %v4371, %v4577
        %v4585 = vmul.f32 %v4372, %v4577
        %v4586 = vmul.f32 %v4373, %v4577
        %v4587 = vmul.f32 %v4374, %v4577
        %v4588 = vmul.f32 %v4375, %v4577
        %v4589 = vmul.f32 %v4376, %v4577
        %v4590 = vmul.f32 %v4377, %v4577
        %v4591 = vmul.f32 %v4378, %v4577
        %v4592 = vmul.f32 %v4379, %v4577
        %v4593 = vmul.f32 %v4380, %v4577
        %v4594 = vmul.f32 %v4381, %v4577
        %v4595 = vmul.f32 %v4382, %v4577
        %v4596 = vmul.f32 %v4383, %v4577
        %v4597 = vmul.f32 %v4384, %v4577
        %v4598 = vmul.f32 %v4385, %v4577
        %v4599 = vmul.f32 %v4386, %v4577
        %v4600 = vmul.f32 %v4387, %v4577
        %v4601 = vmul.f32 %v4388, %v4577
        %v4602 = vmul.f32 %v4389, %v4577
        %v4603 = vmul.f32 %v4390, %v4577
        %v4604 = vmul.f32 %v4391, %v4577
        %v4605 = vmul.f32 %v4392, %v4577
        %v4606 = vmul.f32 %v4393, %v4577
        %v4607 = vmul.f32 %v4394, %v4577
        %v4608 = vmul.f32 %v4395, %v4577
        %v4609 = vmul.f32 %v4396, %v4577
        %v4610 = vld [vmem:[%s7] sm:$0x1]
        %v4612 = vlaneseq
        %v4613 = vshrl.u32 %v4612, 7
        %v4614 = vsub.s32 0, %v4613
        %v4615 = vrot.slane %v4610, %v4614
        %v4617 = vadd.f32 %v4578, %v4615
        %v4618 = vadd.f32 %v4579, %v4615
        %v4619 = vadd.f32 %v4580, %v4615
        %v4620 = vadd.f32 %v4581, %v4615
        %v4621 = vadd.f32 %v4582, %v4615
        %v4622 = vadd.f32 %v4583, %v4615
        %v4623 = vadd.f32 %v4584, %v4615
        %v4624 = vadd.f32 %v4585, %v4615
        %v4625 = vadd.f32 %v4586, %v4615
        %v4626 = vadd.f32 %v4587, %v4615
        %v4627 = vadd.f32 %v4588, %v4615
        %v4628 = vadd.f32 %v4589, %v4615
        %v4629 = vadd.f32 %v4590, %v4615
        %v4630 = vadd.f32 %v4591, %v4615
        %v4631 = vadd.f32 %v4592, %v4615
        %v4632 = vadd.f32 %v4593, %v4615
        %v4633 = vadd.f32 %v4594, %v4615
        %v4634 = vadd.f32 %v4595, %v4615
        %v4635 = vadd.f32 %v4596, %v4615
        %v4636 = vadd.f32 %v4597, %v4615
        %v4637 = vadd.f32 %v4598, %v4615
        %v4638 = vadd.f32 %v4599, %v4615
        %v4639 = vadd.f32 %v4600, %v4615
        %v4640 = vadd.f32 %v4601, %v4615
        %v4641 = vadd.f32 %v4602, %v4615
        %v4642 = vadd.f32 %v4603, %v4615
        %v4643 = vadd.f32 %v4604, %v4615
        %v4644 = vadd.f32 %v4605, %v4615
        %v4645 = vadd.f32 %v4606, %v4615
        %v4646 = vadd.f32 %v4607, %v4615
        %v4647 = vadd.f32 %v4608, %v4615
        %v4648 = vadd.f32 %v4609, %v4615
        %v4649 = vxor.u32 %v4617, 2147483648
        %v4650 = vxor.u32 %v4618, 2147483648
        %v4651 = vxor.u32 %v4619, 2147483648
        %v4652 = vxor.u32 %v4620, 2147483648
        %v4653 = vxor.u32 %v4621, 2147483648
        %v4654 = vxor.u32 %v4622, 2147483648
        %v4655 = vxor.u32 %v4623, 2147483648
        %v4656 = vxor.u32 %v4624, 2147483648
        %v4657 = vxor.u32 %v4625, 2147483648
        %v4658 = vxor.u32 %v4626, 2147483648
        %v4659 = vxor.u32 %v4627, 2147483648
        %v4660 = vxor.u32 %v4628, 2147483648
        %v4661 = vxor.u32 %v4629, 2147483648
        %v4662 = vxor.u32 %v4630, 2147483648
        %v4663 = vxor.u32 %v4631, 2147483648
        %v4664 = vxor.u32 %v4632, 2147483648
        %v4665 = vxor.u32 %v4633, 2147483648
        %v4666 = vxor.u32 %v4634, 2147483648
        %v4667 = vxor.u32 %v4635, 2147483648
        %v4668 = vxor.u32 %v4636, 2147483648
        %v4669 = vxor.u32 %v4637, 2147483648
        %v4670 = vxor.u32 %v4638, 2147483648
        %v4671 = vxor.u32 %v4639, 2147483648
        %v4672 = vxor.u32 %v4640, 2147483648
        %v4673 = vxor.u32 %v4641, 2147483648
        %v4674 = vxor.u32 %v4642, 2147483648
        %v4675 = vxor.u32 %v4643, 2147483648
        %v4676 = vxor.u32 %v4644, 2147483648
        %v4677 = vxor.u32 %v4645, 2147483648
        %v4678 = vxor.u32 %v4646, 2147483648
        %v4679 = vxor.u32 %v4647, 2147483648
        %v4680 = vxor.u32 %v4648, 2147483648
        %v4681 = vmul.f32 %v4649, 1.442695
        %v4682 = vpow.pop %v4681
        %v4683 = vmul.f32 %v4650, 1.442695
        %v4684 = vpow.pop %v4683
        %v4685 = vmul.f32 %v4651, 1.442695
        %v4686 = vpow.pop %v4685
        %v4687 = vmul.f32 %v4652, 1.442695
        %v4688 = vpow.pop %v4687
        %v4689 = vmul.f32 %v4653, 1.442695
        %v4690 = vpow.pop %v4689
        %v4691 = vmul.f32 %v4654, 1.442695
        %v4692 = vpow.pop %v4691
        %v4693 = vmul.f32 %v4655, 1.442695
        %v4694 = vpow.pop %v4693
        %v4695 = vmul.f32 %v4656, 1.442695
        %v4696 = vpow.pop %v4695
        %v4697 = vmul.f32 %v4657, 1.442695
        %v4698 = vpow.pop %v4697
        %v4699 = vmul.f32 %v4658, 1.442695
        %v4700 = vpow.pop %v4699
        %v4701 = vmul.f32 %v4659, 1.442695
        %v4702 = vpow.pop %v4701
        %v4703 = vmul.f32 %v4660, 1.442695
        %v4704 = vpow.pop %v4703
        %v4705 = vmul.f32 %v4661, 1.442695
        %v4706 = vpow.pop %v4705
        %v4707 = vmul.f32 %v4662, 1.442695
        %v4708 = vpow.pop %v4707
        %v4709 = vmul.f32 %v4663, 1.442695
        %v4710 = vpow.pop %v4709
        %v4711 = vmul.f32 %v4664, 1.442695
        %v4712 = vpow.pop %v4711
        %v4713 = vmul.f32 %v4665, 1.442695
        %v4714 = vpow.pop %v4713
        %v4715 = vmul.f32 %v4666, 1.442695
        %v4716 = vpow.pop %v4715
        %v4717 = vmul.f32 %v4667, 1.442695
        %v4718 = vpow.pop %v4717
        %v4719 = vmul.f32 %v4668, 1.442695
        %v4720 = vpow.pop %v4719
        %v4721 = vmul.f32 %v4669, 1.442695
        %v4722 = vpow.pop %v4721
        %v4723 = vmul.f32 %v4670, 1.442695
        %v4724 = vpow.pop %v4723
        %v4725 = vmul.f32 %v4671, 1.442695
        %v4726 = vpow.pop %v4725
        %v4727 = vmul.f32 %v4672, 1.442695
        %v4728 = vpow.pop %v4727
        %v4729 = vmul.f32 %v4673, 1.442695
        %v4730 = vpow.pop %v4729
        %v4731 = vmul.f32 %v4674, 1.442695
        %v4732 = vpow.pop %v4731
        %v4733 = vmul.f32 %v4675, 1.442695
        %v4734 = vpow.pop %v4733
        %v4735 = vmul.f32 %v4676, 1.442695
        %v4736 = vpow.pop %v4735
        %v4737 = vmul.f32 %v4677, 1.442695
        %v4738 = vpow.pop %v4737
        %v4739 = vmul.f32 %v4678, 1.442695
        %v4740 = vpow.pop %v4739
        %v4741 = vmul.f32 %v4679, 1.442695
        %v4742 = vpow.pop %v4741
        %v4743 = vmul.f32 %v4680, 1.442695
        %v4744 = vpow.pop %v4743
        %v4745 = vadd.f32 %v4682, 1.0
        %v4746 = vadd.f32 %v4684, 1.0
        %v4747 = vadd.f32 %v4686, 1.0
        %v4748 = vadd.f32 %v4688, 1.0
        %v4749 = vadd.f32 %v4690, 1.0
        %v4750 = vadd.f32 %v4692, 1.0
        %v4751 = vadd.f32 %v4694, 1.0
        %v4752 = vadd.f32 %v4696, 1.0
        %v4753 = vadd.f32 %v4698, 1.0
        %v4754 = vadd.f32 %v4700, 1.0
        %v4755 = vadd.f32 %v4702, 1.0
        %v4756 = vadd.f32 %v4704, 1.0
        %v4757 = vadd.f32 %v4706, 1.0
        %v4758 = vadd.f32 %v4708, 1.0
        %v4759 = vadd.f32 %v4710, 1.0
        %v4760 = vadd.f32 %v4712, 1.0
        %v4761 = vadd.f32 %v4714, 1.0
        %v4762 = vadd.f32 %v4716, 1.0
        %v4763 = vadd.f32 %v4718, 1.0
        %v4764 = vadd.f32 %v4720, 1.0
        %v4765 = vadd.f32 %v4722, 1.0
        %v4766 = vadd.f32 %v4724, 1.0
        %v4767 = vadd.f32 %v4726, 1.0
        %v4768 = vadd.f32 %v4728, 1.0
        %v4769 = vadd.f32 %v4730, 1.0
        %v4770 = vadd.f32 %v4732, 1.0
        %v4771 = vadd.f32 %v4734, 1.0
        %v4772 = vadd.f32 %v4736, 1.0
        %v4773 = vadd.f32 %v4738, 1.0
        %v4774 = vadd.f32 %v4740, 1.0
        %v4775 = vadd.f32 %v4742, 1.0
        %v4776 = vadd.f32 %v4744, 1.0
        %v4777 = vrcp.pop %v4745
        %v4778 = vmul.f32 1.0, %v4777
        %v4779 = vrcp.pop %v4746
        %v4780 = vmul.f32 1.0, %v4779
        %v4781 = vrcp.pop %v4747
        %v4782 = vmul.f32 1.0, %v4781
        %v4783 = vrcp.pop %v4748
        %v4784 = vmul.f32 1.0, %v4783
        %v4785 = vrcp.pop %v4749
        %v4786 = vmul.f32 1.0, %v4785
        %v4787 = vrcp.pop %v4750
        %v4788 = vmul.f32 1.0, %v4787
        %v4789 = vrcp.pop %v4751
        %v4790 = vmul.f32 1.0, %v4789
        %v4791 = vrcp.pop %v4752
        %v4792 = vmul.f32 1.0, %v4791
        %v4793 = vrcp.pop %v4753
        %v4794 = vmul.f32 1.0, %v4793
        %v4795 = vrcp.pop %v4754
        %v4796 = vmul.f32 1.0, %v4795
        %v4797 = vrcp.pop %v4755
        %v4798 = vmul.f32 1.0, %v4797
        %v4799 = vrcp.pop %v4756
        %v4800 = vmul.f32 1.0, %v4799
        %v4801 = vrcp.pop %v4757
        %v4802 = vmul.f32 1.0, %v4801
        %v4803 = vrcp.pop %v4758
        %v4804 = vmul.f32 1.0, %v4803
        %v4805 = vrcp.pop %v4759
        %v4806 = vmul.f32 1.0, %v4805
        %v4807 = vrcp.pop %v4760
        %v4808 = vmul.f32 1.0, %v4807
        %v4809 = vrcp.pop %v4761
        %v4810 = vmul.f32 1.0, %v4809
        %v4811 = vrcp.pop %v4762
        %v4812 = vmul.f32 1.0, %v4811
        %v4813 = vrcp.pop %v4763
        %v4814 = vmul.f32 1.0, %v4813
        %v4815 = vrcp.pop %v4764
        %v4816 = vmul.f32 1.0, %v4815
        %v4817 = vrcp.pop %v4765
        %v4818 = vmul.f32 1.0, %v4817
        %v4819 = vrcp.pop %v4766
        %v4820 = vmul.f32 1.0, %v4819
        %v4821 = vrcp.pop %v4767
        %v4822 = vmul.f32 1.0, %v4821
        %v4823 = vrcp.pop %v4768
        %v4824 = vmul.f32 1.0, %v4823
        %v4825 = vrcp.pop %v4769
        %v4826 = vmul.f32 1.0, %v4825
        %v4827 = vrcp.pop %v4770
        %v4828 = vmul.f32 1.0, %v4827
        %v4829 = vrcp.pop %v4771
        %v4830 = vmul.f32 1.0, %v4829
        %v4831 = vrcp.pop %v4772
        %v4832 = vmul.f32 1.0, %v4831
        %v4833 = vrcp.pop %v4773
        %v4834 = vmul.f32 1.0, %v4833
        %v4835 = vrcp.pop %v4774
        %v4836 = vmul.f32 1.0, %v4835
        %v4837 = vrcp.pop %v4775
        %v4838 = vmul.f32 1.0, %v4837
        %v4839 = vrcp.pop %v4776
        %v4840 = vmul.f32 1.0, %v4839
        %v4841 = vmul.f32 %v4617, %v4778
        %v4842 = vmul.f32 %v4618, %v4780
        %v4843 = vmul.f32 %v4619, %v4782
        %v4844 = vmul.f32 %v4620, %v4784
        %v4845 = vmul.f32 %v4621, %v4786
        %v4846 = vmul.f32 %v4622, %v4788
        %v4847 = vmul.f32 %v4623, %v4790
        %v4848 = vmul.f32 %v4624, %v4792
        %v4849 = vmul.f32 %v4625, %v4794
        %v4850 = vmul.f32 %v4626, %v4796
        %v4851 = vmul.f32 %v4627, %v4798
        %v4852 = vmul.f32 %v4628, %v4800
        %v4853 = vmul.f32 %v4629, %v4802
        %v4854 = vmul.f32 %v4630, %v4804
        %v4855 = vmul.f32 %v4631, %v4806
        %v4856 = vmul.f32 %v4632, %v4808
        %v4857 = vmul.f32 %v4633, %v4810
        %v4858 = vmul.f32 %v4634, %v4812
        %v4859 = vmul.f32 %v4635, %v4814
        %v4860 = vmul.f32 %v4636, %v4816
        %v4861 = vmul.f32 %v4637, %v4818
        %v4862 = vmul.f32 %v4638, %v4820
        %v4863 = vmul.f32 %v4639, %v4822
        %v4864 = vmul.f32 %v4640, %v4824
        %v4865 = vmul.f32 %v4641, %v4826
        %v4866 = vmul.f32 %v4642, %v4828
        %v4867 = vmul.f32 %v4643, %v4830
        %v4868 = vmul.f32 %v4644, %v4832
        %v4869 = vmul.f32 %v4645, %v4834
        %v4870 = vmul.f32 %v4646, %v4836
        %v4871 = vmul.f32 %v4647, %v4838
        %v4872 = vmul.f32 %v4648, %v4840
        %v4873 = vpack.c.bf16 %v4842, %v4841
        %v4874 = vpack.c.bf16 %v4844, %v4843
        %v4875 = vpack.c.bf16 %v4846, %v4845
        %v4876 = vpack.c.bf16 %v4848, %v4847
        %v4877 = vpack.c.bf16 %v4850, %v4849
        %v4878 = vpack.c.bf16 %v4852, %v4851
        %v4879 = vpack.c.bf16 %v4854, %v4853
        %v4880 = vpack.c.bf16 %v4856, %v4855
        %v4881 = vpack.c.bf16 %v4858, %v4857
        %v4882 = vpack.c.bf16 %v4860, %v4859
        %v4883 = vpack.c.bf16 %v4862, %v4861
        %v4884 = vpack.c.bf16 %v4864, %v4863
        %v4885 = vpack.c.bf16 %v4866, %v4865
        %v4886 = vpack.c.bf16 %v4868, %v4867
        %v4887 = vpack.c.bf16 %v4870, %v4869
        %v4888 = vpack.c.bf16 %v4872, %v4871
        %v4905 = vunpack.c.l.b16 %v4873
        %v4906 = vunpack.c.h.b16 %v4873
        %v4907 = vunpack.c.l.b16 %v4874
        %v4908 = vunpack.c.h.b16 %v4874
        %v4909 = vunpack.c.l.b16 %v4875
        %v4910 = vunpack.c.h.b16 %v4875
        %v4911 = vunpack.c.l.b16 %v4876
        %v4912 = vunpack.c.h.b16 %v4876
        %v4913 = vunpack.c.l.b16 %v4877
        %v4914 = vunpack.c.h.b16 %v4877
        %v4915 = vunpack.c.l.b16 %v4878
        %v4916 = vunpack.c.h.b16 %v4878
        %v4917 = vunpack.c.l.b16 %v4879
        %v4918 = vunpack.c.h.b16 %v4879
        %v4919 = vunpack.c.l.b16 %v4880
        %v4920 = vunpack.c.h.b16 %v4880
        %v4921 = vunpack.c.l.b16 %v4881
        %v4922 = vunpack.c.h.b16 %v4881
        %v4923 = vunpack.c.l.b16 %v4882
        %v4924 = vunpack.c.h.b16 %v4882
        %v4925 = vunpack.c.l.b16 %v4883
        %v4926 = vunpack.c.h.b16 %v4883
        %v4927 = vunpack.c.l.b16 %v4884
        %v4928 = vunpack.c.h.b16 %v4884
        %v4929 = vunpack.c.l.b16 %v4885
        %v4930 = vunpack.c.h.b16 %v4885
        %v4931 = vunpack.c.l.b16 %v4886
        %v4932 = vunpack.c.h.b16 %v4886
        %v4933 = vunpack.c.l.b16 %v4887
        %v4934 = vunpack.c.h.b16 %v4887
        %v4935 = vunpack.c.l.b16 %v4888
        %v4936 = vunpack.c.h.b16 %v4888
        %v4937 = vpack.c.b16 %v4905, %v4905
        %v4938 = vpack.c.b16 %v4906, %v4906
        %v4939 = vpack.c.b16 %v4907, %v4907
        %v4940 = vpack.c.b16 %v4908, %v4908
        %v4941 = vpack.c.b16 %v4909, %v4909
        %v4942 = vpack.c.b16 %v4910, %v4910
        %v4943 = vpack.c.b16 %v4911, %v4911
        %v4944 = vpack.c.b16 %v4912, %v4912
        %v4945 = vpack.c.b16 %v4913, %v4913
        %v4946 = vpack.c.b16 %v4914, %v4914
        %v4947 = vpack.c.b16 %v4915, %v4915
        %v4948 = vpack.c.b16 %v4916, %v4916
        %v4949 = vpack.c.b16 %v4917, %v4917
        %v4950 = vpack.c.b16 %v4918, %v4918
        %v4951 = vpack.c.b16 %v4919, %v4919
        %v4952 = vpack.c.b16 %v4920, %v4920
        %v4953 = vpack.c.b16 %v4921, %v4921
        %v4954 = vpack.c.b16 %v4922, %v4922
        %v4955 = vpack.c.b16 %v4923, %v4923
        %v4956 = vpack.c.b16 %v4924, %v4924
        %v4957 = vpack.c.b16 %v4925, %v4925
        %v4958 = vpack.c.b16 %v4926, %v4926
        %v4959 = vpack.c.b16 %v4927, %v4927
        %v4960 = vpack.c.b16 %v4928, %v4928
        %v4961 = vpack.c.b16 %v4929, %v4929
        %v4962 = vpack.c.b16 %v4930, %v4930
        %v4963 = vpack.c.b16 %v4931, %v4931
        %v4964 = vpack.c.b16 %v4932, %v4932
        %v4965 = vpack.c.b16 %v4933, %v4933
        %v4966 = vpack.c.b16 %v4934, %v4934
        %v4967 = vpack.c.b16 %v4935, %v4935
        %v4968 = vpack.c.b16 %v4936, %v4936
        %v4970 = vshrl.u32 %v4937, 16
        %v4972 = vrot.slane %v4970, 7
        %v4973 = vshll.u32 %v4937, 16
        %v4975 = vor.u32 %v4972, %v4973
        %v4976 = vrot.slane %v4972, 4
        %v4978 = vshrl.u32 %v4938, 16
        %v4980 = vrot.slane %v4978, 7
        %v4981 = vshll.u32 %v4938, 16
        %v4983 = vor.u32 %v4980, %v4981
        %v4984 = vsel %vm1342, %v4976, %v4983
        %v4985 = vrot.slane %v4980, 4
        %v4987 = vshrl.u32 %v4939, 16
        %v4989 = vrot.slane %v4987, 7
        %v4990 = vshll.u32 %v4939, 16
        %v4992 = vor.u32 %v4989, %v4990
        %v4993 = vrot.slane %v4989, 4
        %v4995 = vshrl.u32 %v4940, 16
        %v4997 = vrot.slane %v4995, 7
        %v4998 = vshll.u32 %v4940, 16
        %v5000 = vor.u32 %v4997, %v4998
        %v5001 = vsel %vm1342, %v4993, %v5000
        %v5002 = vrot.slane %v4997, 4
        %v5004 = vshrl.u32 %v4941, 16
        %v5006 = vrot.slane %v5004, 7
        %v5007 = vshll.u32 %v4941, 16
        %v5009 = vor.u32 %v5006, %v5007
        %v5010 = vrot.slane %v5006, 4
        %v5012 = vshrl.u32 %v4942, 16
        %v5014 = vrot.slane %v5012, 7
        %v5015 = vshll.u32 %v4942, 16
        %v5017 = vor.u32 %v5014, %v5015
        %v5018 = vsel %vm1342, %v5010, %v5017
        %v5019 = vrot.slane %v5014, 4
        %v5021 = vshrl.u32 %v4943, 16
        %v5023 = vrot.slane %v5021, 7
        %v5024 = vshll.u32 %v4943, 16
        %v5026 = vor.u32 %v5023, %v5024
        %v5027 = vrot.slane %v5023, 4
        %v5029 = vshrl.u32 %v4944, 16
        %v5031 = vrot.slane %v5029, 7
        %v5032 = vshll.u32 %v4944, 16
        %v5034 = vor.u32 %v5031, %v5032
        %v5035 = vsel %vm1342, %v5027, %v5034
        %v5036 = vrot.slane %v5031, 4
        %v5038 = vshrl.u32 %v4945, 16
        %v5040 = vrot.slane %v5038, 7
        %v5041 = vshll.u32 %v4945, 16
        %v5043 = vor.u32 %v5040, %v5041
        %v5044 = vrot.slane %v5040, 4
        %v5046 = vshrl.u32 %v4946, 16
        %v5048 = vrot.slane %v5046, 7
        %v5049 = vshll.u32 %v4946, 16
        %v5051 = vor.u32 %v5048, %v5049
        %v5052 = vsel %vm1342, %v5044, %v5051
        %v5053 = vrot.slane %v5048, 4
        %v5055 = vshrl.u32 %v4947, 16
        %v5057 = vrot.slane %v5055, 7
        %v5058 = vshll.u32 %v4947, 16
        %v5060 = vor.u32 %v5057, %v5058
        %v5061 = vrot.slane %v5057, 4
        %v5063 = vshrl.u32 %v4948, 16
        %v5065 = vrot.slane %v5063, 7
        %v5066 = vshll.u32 %v4948, 16
        %v5068 = vor.u32 %v5065, %v5066
        %v5069 = vsel %vm1342, %v5061, %v5068
        %v5070 = vrot.slane %v5065, 4
        %v5072 = vshrl.u32 %v4949, 16
        %v5074 = vrot.slane %v5072, 7
        %v5075 = vshll.u32 %v4949, 16
        %v5077 = vor.u32 %v5074, %v5075
        %v5078 = vrot.slane %v5074, 4
        %v5080 = vshrl.u32 %v4950, 16
        %v5082 = vrot.slane %v5080, 7
        %v5083 = vshll.u32 %v4950, 16
        %v5085 = vor.u32 %v5082, %v5083
        %v5086 = vsel %vm1342, %v5078, %v5085
        %v5087 = vrot.slane %v5082, 4
        %v5089 = vshrl.u32 %v4951, 16
        %v5091 = vrot.slane %v5089, 7
        %v5092 = vshll.u32 %v4951, 16
        %v5094 = vor.u32 %v5091, %v5092
        %v5095 = vrot.slane %v5091, 4
        %v5097 = vshrl.u32 %v4952, 16
        %v5099 = vrot.slane %v5097, 7
        %v5100 = vshll.u32 %v4952, 16
        %v5102 = vor.u32 %v5099, %v5100
        %v5103 = vsel %vm1342, %v5095, %v5102
        %v5104 = vrot.slane %v5099, 4
        %v5106 = vshrl.u32 %v4953, 16
        %v5108 = vrot.slane %v5106, 7
        %v5109 = vshll.u32 %v4953, 16
        %v5111 = vor.u32 %v5108, %v5109
        %v5112 = vrot.slane %v5108, 4
        %v5114 = vshrl.u32 %v4954, 16
        %v5116 = vrot.slane %v5114, 7
        %v5117 = vshll.u32 %v4954, 16
        %v5119 = vor.u32 %v5116, %v5117
        %v5120 = vsel %vm1342, %v5112, %v5119
        %v5121 = vrot.slane %v5116, 4
        %v5123 = vshrl.u32 %v4955, 16
        %v5125 = vrot.slane %v5123, 7
        %v5126 = vshll.u32 %v4955, 16
        %v5128 = vor.u32 %v5125, %v5126
        %v5129 = vrot.slane %v5125, 4
        %v5131 = vshrl.u32 %v4956, 16
        %v5133 = vrot.slane %v5131, 7
        %v5134 = vshll.u32 %v4956, 16
        %v5136 = vor.u32 %v5133, %v5134
        %v5137 = vsel %vm1342, %v5129, %v5136
        %v5138 = vrot.slane %v5133, 4
        %v5140 = vshrl.u32 %v4957, 16
        %v5142 = vrot.slane %v5140, 7
        %v5143 = vshll.u32 %v4957, 16
        %v5145 = vor.u32 %v5142, %v5143
        %v5146 = vrot.slane %v5142, 4
        %v5148 = vshrl.u32 %v4958, 16
        %v5150 = vrot.slane %v5148, 7
        %v5151 = vshll.u32 %v4958, 16
        %v5153 = vor.u32 %v5150, %v5151
        %v5154 = vsel %vm1342, %v5146, %v5153
        %v5155 = vrot.slane %v5150, 4
        %v5157 = vshrl.u32 %v4959, 16
        %v5159 = vrot.slane %v5157, 7
        %v5160 = vshll.u32 %v4959, 16
        %v5162 = vor.u32 %v5159, %v5160
        %v5163 = vrot.slane %v5159, 4
        %v5165 = vshrl.u32 %v4960, 16
        %v5167 = vrot.slane %v5165, 7
        %v5168 = vshll.u32 %v4960, 16
        %v5170 = vor.u32 %v5167, %v5168
        %v5171 = vsel %vm1342, %v5163, %v5170
        %v5172 = vrot.slane %v5167, 4
        %v5174 = vshrl.u32 %v4961, 16
        %v5176 = vrot.slane %v5174, 7
        %v5177 = vshll.u32 %v4961, 16
        %v5179 = vor.u32 %v5176, %v5177
        %v5180 = vrot.slane %v5176, 4
        %v5182 = vshrl.u32 %v4962, 16
        %v5184 = vrot.slane %v5182, 7
        %v5185 = vshll.u32 %v4962, 16
        %v5187 = vor.u32 %v5184, %v5185
        %v5188 = vsel %vm1342, %v5180, %v5187
        %v5189 = vrot.slane %v5184, 4
        %v5191 = vshrl.u32 %v4963, 16
        %v5193 = vrot.slane %v5191, 7
        %v5194 = vshll.u32 %v4963, 16
        %v5196 = vor.u32 %v5193, %v5194
        %v5197 = vrot.slane %v5193, 4
        %v5199 = vshrl.u32 %v4964, 16
        %v5201 = vrot.slane %v5199, 7
        %v5202 = vshll.u32 %v4964, 16
        %v5204 = vor.u32 %v5201, %v5202
        %v5205 = vsel %vm1342, %v5197, %v5204
        %v5206 = vrot.slane %v5201, 4
        %v5208 = vshrl.u32 %v4965, 16
        %v5210 = vrot.slane %v5208, 7
        %v5211 = vshll.u32 %v4965, 16
        %v5213 = vor.u32 %v5210, %v5211
        %v5214 = vrot.slane %v5210, 4
        %v5216 = vshrl.u32 %v4966, 16
        %v5218 = vrot.slane %v5216, 7
        %v5219 = vshll.u32 %v4966, 16
        %v5221 = vor.u32 %v5218, %v5219
        %v5222 = vsel %vm1342, %v5214, %v5221
        %v5223 = vrot.slane %v5218, 4
        %v5225 = vshrl.u32 %v4967, 16
        %v5227 = vrot.slane %v5225, 7
        %v5228 = vshll.u32 %v4967, 16
        %v5230 = vor.u32 %v5227, %v5228
        %v5231 = vrot.slane %v5227, 4
        %v5233 = vshrl.u32 %v4968, 16
        %v5235 = vrot.slane %v5233, 7
        %v5236 = vshll.u32 %v4968, 16
        %v5238 = vor.u32 %v5235, %v5236
        %v5239 = vsel %vm1342, %v5231, %v5238
        %v5240 = vrot.slane %v5235, 4
        %vm5289 = vcmask 519168
        %vm5290 = vmand %vm5289, %vm466
        %v5291 = vsel %vm5290, %v4975, %v1845
        %5292 = vst [vmem:[%s1663] sm:$0xf] %v5291
        %5293 = vst.msk [vmem:[%s1663 + $0x4] sm:$0xf] %vm400, %v4984
        %v5294 = vld [vmem:[%s1663 + $0x8] sm:$0x1]
        %v5295 = vsel %vm411, %v4985, %v5294
        %5296 = vst [vmem:[%s1663 + $0x8] sm:$0x1] %v5295
        %v5297 = vld [vmem:[%s1663 + $0xc] sm:$0xf]
        %v5298 = vsel %vm5290, %v4992, %v5297
        %5299 = vst [vmem:[%s1663 + $0xc] sm:$0xf] %v5298
        %5300 = vst.msk [vmem:[%s1663 + $0x10] sm:$0xf] %vm400, %v5001
        %v5301 = vld [vmem:[%s1663 + $0x14] sm:$0x1]
        %v5302 = vsel %vm411, %v5002, %v5301
        %5303 = vst [vmem:[%s1663 + $0x14] sm:$0x1] %v5302
        %v5304 = vld [vmem:[%s1663 + $0x18] sm:$0xf]
        %v5305 = vsel %vm5290, %v5009, %v5304
        %5306 = vst [vmem:[%s1663 + $0x18] sm:$0xf] %v5305
        %5307 = vst.msk [vmem:[%s1663 + $0x1c] sm:$0xf] %vm400, %v5018
        %v5308 = vld [vmem:[%s1663 + $0x20] sm:$0x1]
        %v5309 = vsel %vm411, %v5019, %v5308
        %5310 = vst [vmem:[%s1663 + $0x20] sm:$0x1] %v5309
        %v5311 = vld [vmem:[%s1663 + $0x24] sm:$0xf]
        %v5312 = vsel %vm5290, %v5026, %v5311
        %5313 = vst [vmem:[%s1663 + $0x24] sm:$0xf] %v5312
        %5314 = vst.msk [vmem:[%s1663 + $0x28] sm:$0xf] %vm400, %v5035
        %v5315 = vld [vmem:[%s1663 + $0x2c] sm:$0x1]
        %v5316 = vsel %vm411, %v5036, %v5315
        %5317 = vst [vmem:[%s1663 + $0x2c] sm:$0x1] %v5316
        %v5318 = vld [vmem:[%s1663 + $0x30] sm:$0xf]
        %v5319 = vsel %vm5290, %v5043, %v5318
        %5320 = vst [vmem:[%s1663 + $0x30] sm:$0xf] %v5319
        %5321 = vst.msk [vmem:[%s1663 + $0x34] sm:$0xf] %vm400, %v5052
        %v5322 = vld [vmem:[%s1663 + $0x38] sm:$0x1]
        %v5323 = vsel %vm411, %v5053, %v5322
        %5324 = vst [vmem:[%s1663 + $0x38] sm:$0x1] %v5323
        %v5325 = vld [vmem:[%s1663 + $0x3c] sm:$0xf]
        %v5326 = vsel %vm5290, %v5060, %v5325
        %5327 = vst [vmem:[%s1663 + $0x3c] sm:$0xf] %v5326
        %5328 = vst.msk [vmem:[%s1663 + $0x40] sm:$0xf] %vm400, %v5069
        %v5329 = vld [vmem:[%s1663 + $0x44] sm:$0x1]
        %v5330 = vsel %vm411, %v5070, %v5329
        %5331 = vst [vmem:[%s1663 + $0x44] sm:$0x1] %v5330
        %v5332 = vld [vmem:[%s1663 + $0x48] sm:$0xf]
        %v5333 = vsel %vm5290, %v5077, %v5332
        %5334 = vst [vmem:[%s1663 + $0x48] sm:$0xf] %v5333
        %5335 = vst.msk [vmem:[%s1663 + $0x4c] sm:$0xf] %vm400, %v5086
        %v5336 = vld [vmem:[%s1663 + $0x50] sm:$0x1]
        %v5337 = vsel %vm411, %v5087, %v5336
        %5338 = vst [vmem:[%s1663 + $0x50] sm:$0x1] %v5337
        %v5339 = vld [vmem:[%s1663 + $0x54] sm:$0xf]
        %v5340 = vsel %vm5290, %v5094, %v5339
        %5341 = vst [vmem:[%s1663 + $0x54] sm:$0xf] %v5340
        %5342 = vst.msk [vmem:[%s1663 + $0x58] sm:$0xf] %vm400, %v5103
        %v5343 = vld [vmem:[%s1663 + $0x5c] sm:$0x1]
        %v5344 = vsel %vm411, %v5104, %v5343
        %5345 = vst [vmem:[%s1663 + $0x5c] sm:$0x1] %v5344
        %v5346 = vld [vmem:[%s1663 + $0x60] sm:$0xf]
        %v5347 = vsel %vm5290, %v5111, %v5346
        %5348 = vst [vmem:[%s1663 + $0x60] sm:$0xf] %v5347
        %5349 = vst.msk [vmem:[%s1663 + $0x64] sm:$0xf] %vm400, %v5120
        %v5350 = vld [vmem:[%s1663 + $0x68] sm:$0x1]
        %v5351 = vsel %vm411, %v5121, %v5350
        %5352 = vst [vmem:[%s1663 + $0x68] sm:$0x1] %v5351
        %v5353 = vld [vmem:[%s1663 + $0x6c] sm:$0xf]
        %v5354 = vsel %vm5290, %v5128, %v5353
        %5355 = vst [vmem:[%s1663 + $0x6c] sm:$0xf] %v5354
        %5356 = vst.msk [vmem:[%s1663 + $0x70] sm:$0xf] %vm400, %v5137
        %v5357 = vld [vmem:[%s1663 + $0x74] sm:$0x1]
        %v5358 = vsel %vm411, %v5138, %v5357
        %5359 = vst [vmem:[%s1663 + $0x74] sm:$0x1] %v5358
        %v5360 = vld [vmem:[%s1663 + $0x78] sm:$0xf]
        %v5361 = vsel %vm5290, %v5145, %v5360
        %5362 = vst [vmem:[%s1663 + $0x78] sm:$0xf] %v5361
        %5363 = vst.msk [vmem:[%s1663 + $0x7c] sm:$0xf] %vm400, %v5154
        %v5364 = vld [vmem:[%s1663 + $0x80] sm:$0x1]
        %v5365 = vsel %vm411, %v5155, %v5364
        %5366 = vst [vmem:[%s1663 + $0x80] sm:$0x1] %v5365
        %v5367 = vld [vmem:[%s1663 + $0x84] sm:$0xf]
        %v5368 = vsel %vm5290, %v5162, %v5367
        %5369 = vst [vmem:[%s1663 + $0x84] sm:$0xf] %v5368
        %5370 = vst.msk [vmem:[%s1663 + $0x88] sm:$0xf] %vm400, %v5171
        %v5371 = vld [vmem:[%s1663 + $0x8c] sm:$0x1]
        %v5372 = vsel %vm411, %v5172, %v5371
        %5373 = vst [vmem:[%s1663 + $0x8c] sm:$0x1] %v5372
        %v5374 = vld [vmem:[%s1663 + $0x90] sm:$0xf]
        %v5375 = vsel %vm5290, %v5179, %v5374
        %5376 = vst [vmem:[%s1663 + $0x90] sm:$0xf] %v5375
        %5377 = vst.msk [vmem:[%s1663 + $0x94] sm:$0xf] %vm400, %v5188
        %v5378 = vld [vmem:[%s1663 + $0x98] sm:$0x1]
        %v5379 = vsel %vm411, %v5189, %v5378
        %5380 = vst [vmem:[%s1663 + $0x98] sm:$0x1] %v5379
        %v5381 = vld [vmem:[%s1663 + $0x9c] sm:$0xf]
        %v5382 = vsel %vm5290, %v5196, %v5381
        %5383 = vst [vmem:[%s1663 + $0x9c] sm:$0xf] %v5382
        %5384 = vst.msk [vmem:[%s1663 + $0xa0] sm:$0xf] %vm400, %v5205
        %v5385 = vld [vmem:[%s1663 + $0xa4] sm:$0x1]
        %v5386 = vsel %vm411, %v5206, %v5385
        %5387 = vst [vmem:[%s1663 + $0xa4] sm:$0x1] %v5386
        %v5388 = vld [vmem:[%s1663 + $0xa8] sm:$0xf]
        %v5389 = vsel %vm5290, %v5213, %v5388
        %5390 = vst [vmem:[%s1663 + $0xa8] sm:$0xf] %v5389
        %5391 = vst.msk [vmem:[%s1663 + $0xac] sm:$0xf] %vm400, %v5222
        %v5392 = vld [vmem:[%s1663 + $0xb0] sm:$0x1]
        %v5393 = vsel %vm411, %v5223, %v5392
        %5394 = vst [vmem:[%s1663 + $0xb0] sm:$0x1] %v5393
        %v5395 = vld [vmem:[%s1663 + $0xb4] sm:$0xf]
        %v5396 = vsel %vm5290, %v5230, %v5395
        %5397 = vst [vmem:[%s1663 + $0xb4] sm:$0xf] %v5396
        %5398 = vst.msk [vmem:[%s1663 + $0xb8] sm:$0xf] %vm400, %v5239
        %v5399 = vld [vmem:[%s1663 + $0xbc] sm:$0x1]
        %v5400 = vsel %vm411, %v5240, %v5399
        %5401 = vst [vmem:[%s1663 + $0xbc] sm:$0x1] %v5400
        %v5402 = vld [vmem:[#allocation2] sm:$0xf]
        %v5403 = vld [vmem:[#allocation2 + $0x4] sm:$0xf]
        %v5404 = vld [vmem:[#allocation2 + $0xc] sm:$0xf]
        %v5405 = vld [vmem:[#allocation2 + $0x10] sm:$0xf]
        %v5406 = vld [vmem:[#allocation2 + $0x18] sm:$0xf]
        %v5407 = vld [vmem:[#allocation2 + $0x1c] sm:$0xf]
        %v5408 = vld [vmem:[#allocation2 + $0x24] sm:$0xf]
        %v5409 = vld [vmem:[#allocation2 + $0x28] sm:$0xf]
        %v5410 = vld [vmem:[#allocation2 + $0x30] sm:$0xf]
        %v5411 = vld [vmem:[#allocation2 + $0x34] sm:$0xf]
        %v5412 = vld [vmem:[#allocation2 + $0x3c] sm:$0xf]
        %v5413 = vld [vmem:[#allocation2 + $0x40] sm:$0xf]
        %v5414 = vld [vmem:[#allocation2 + $0x48] sm:$0xf]
        %v5415 = vld [vmem:[#allocation2 + $0x4c] sm:$0xf]
        %v5416 = vld [vmem:[#allocation2 + $0x54] sm:$0xf]
        %v5417 = vld [vmem:[#allocation2 + $0x58] sm:$0xf]
        %v5418 = vld [vmem:[#allocation2 + $0x60] sm:$0xf]
        %v5419 = vld [vmem:[#allocation2 + $0x64] sm:$0xf]
        %v5420 = vld [vmem:[#allocation2 + $0x6c] sm:$0xf]
        %v5421 = vld [vmem:[#allocation2 + $0x70] sm:$0xf]
        %v5422 = vld [vmem:[#allocation2 + $0x78] sm:$0xf]
        %v5423 = vld [vmem:[#allocation2 + $0x7c] sm:$0xf]
        %v5424 = vld [vmem:[#allocation2 + $0x84] sm:$0xf]
        %v5425 = vld [vmem:[#allocation2 + $0x88] sm:$0xf]
        %v5426 = vld [vmem:[#allocation2 + $0x90] sm:$0xf]
        %v5427 = vld [vmem:[#allocation2 + $0x94] sm:$0xf]
        %v5428 = vld [vmem:[#allocation2 + $0x9c] sm:$0xf]
        %v5429 = vld [vmem:[#allocation2 + $0xa0] sm:$0xf]
        %v5430 = vld [vmem:[#allocation2 + $0xa8] sm:$0xf]
        %v5431 = vld [vmem:[#allocation2 + $0xac] sm:$0xf]
        %v5432 = vld [vmem:[#allocation2 + $0xb4] sm:$0xf]
        %v5433 = vld [vmem:[#allocation2 + $0xb8] sm:$0xf]
        %v5434 = vld [vmem:[#allocation2 + $0x8] sm:$0x1]
        %v5435 = vld [vmem:[#allocation2 + $0x14] sm:$0x1]
        %v5436 = vld [vmem:[#allocation2 + $0x20] sm:$0x1]
        %v5437 = vld [vmem:[#allocation2 + $0x2c] sm:$0x1]
        %v5438 = vld [vmem:[#allocation2 + $0x38] sm:$0x1]
        %v5439 = vld [vmem:[#allocation2 + $0x44] sm:$0x1]
        %v5440 = vld [vmem:[#allocation2 + $0x50] sm:$0x1]
        %v5441 = vld [vmem:[#allocation2 + $0x5c] sm:$0x1]
        %v5442 = vld [vmem:[#allocation2 + $0x68] sm:$0x1]
        %v5443 = vld [vmem:[#allocation2 + $0x74] sm:$0x1]
        %v5444 = vld [vmem:[#allocation2 + $0x80] sm:$0x1]
        %v5445 = vld [vmem:[#allocation2 + $0x8c] sm:$0x1]
        %v5446 = vld [vmem:[#allocation2 + $0x98] sm:$0x1]
        %v5447 = vld [vmem:[#allocation2 + $0xa4] sm:$0x1]
        %v5448 = vld [vmem:[#allocation2 + $0xb0] sm:$0x1]
        %v5449 = vld [vmem:[#allocation2 + $0xbc] sm:$0x1]
        %v5450 = vld [vmem:[#allocation2] sm:$0xe]
        %v5451 = vld [vmem:[#allocation2 + $0xc] sm:$0xe]
        %v5452 = vld [vmem:[#allocation2 + $0x18] sm:$0xe]
        %v5453 = vld [vmem:[#allocation2 + $0x24] sm:$0xe]
        %v5454 = vld [vmem:[#allocation2 + $0x30] sm:$0xe]
        %v5455 = vld [vmem:[#allocation2 + $0x3c] sm:$0xe]
        %v5456 = vld [vmem:[#allocation2 + $0x48] sm:$0xe]
        %v5457 = vld [vmem:[#allocation2 + $0x54] sm:$0xe]
        %v5458 = vld [vmem:[#allocation2 + $0x60] sm:$0xe]
        %v5459 = vld [vmem:[#allocation2 + $0x6c] sm:$0xe]
        %v5460 = vld [vmem:[#allocation2 + $0x78] sm:$0xe]
        %v5461 = vld [vmem:[#allocation2 + $0x84] sm:$0xe]
        %v5462 = vld [vmem:[#allocation2 + $0x90] sm:$0xe]
        %v5463 = vld [vmem:[#allocation2 + $0x9c] sm:$0xe]
        %v5464 = vld [vmem:[#allocation2 + $0xa8] sm:$0xe]
        %v5465 = vld [vmem:[#allocation2 + $0xb4] sm:$0xe]
        %v5466 = vld [vmem:[%s1663] sm:$0xf]
        %v5467 = vld [vmem:[%s1663 + $0x4] sm:$0xf]
        %v5468 = vld [vmem:[%s1663 + $0xc] sm:$0xf]
        %v5469 = vld [vmem:[%s1663 + $0x10] sm:$0xf]
        %v5470 = vld [vmem:[%s1663 + $0x18] sm:$0xf]
        %v5471 = vld [vmem:[%s1663 + $0x1c] sm:$0xf]
        %v5472 = vld [vmem:[%s1663 + $0x24] sm:$0xf]
        %v5473 = vld [vmem:[%s1663 + $0x28] sm:$0xf]
        %v5474 = vld [vmem:[%s1663 + $0x30] sm:$0xf]
        %v5475 = vld [vmem:[%s1663 + $0x34] sm:$0xf]
        %v5476 = vld [vmem:[%s1663 + $0x3c] sm:$0xf]
        %v5477 = vld [vmem:[%s1663 + $0x40] sm:$0xf]
        %v5478 = vld [vmem:[%s1663 + $0x48] sm:$0xf]
        %v5479 = vld [vmem:[%s1663 + $0x4c] sm:$0xf]
        %v5480 = vld [vmem:[%s1663 + $0x54] sm:$0xf]
        %v5481 = vld [vmem:[%s1663 + $0x58] sm:$0xf]
        %v5482 = vld [vmem:[%s1663 + $0x60] sm:$0xf]
        %v5483 = vld [vmem:[%s1663 + $0x64] sm:$0xf]
        %v5484 = vld [vmem:[%s1663 + $0x6c] sm:$0xf]
        %v5485 = vld [vmem:[%s1663 + $0x70] sm:$0xf]
        %v5486 = vld [vmem:[%s1663 + $0x78] sm:$0xf]
        %v5487 = vld [vmem:[%s1663 + $0x7c] sm:$0xf]
        %v5488 = vld [vmem:[%s1663 + $0x84] sm:$0xf]
        %v5489 = vld [vmem:[%s1663 + $0x88] sm:$0xf]
        %v5490 = vld [vmem:[%s1663 + $0x90] sm:$0xf]
        %v5491 = vld [vmem:[%s1663 + $0x94] sm:$0xf]
        %v5492 = vld [vmem:[%s1663 + $0x9c] sm:$0xf]
        %v5493 = vld [vmem:[%s1663 + $0xa0] sm:$0xf]
        %v5494 = vld [vmem:[%s1663 + $0xa8] sm:$0xf]
        %v5495 = vld [vmem:[%s1663 + $0xac] sm:$0xf]
        %v5496 = vld [vmem:[%s1663 + $0xb4] sm:$0xf]
        %v5497 = vld [vmem:[%s1663 + $0xb8] sm:$0xf]
        %v5498 = vld [vmem:[%s1663 + $0x8] sm:$0x1]
        %v5499 = vld [vmem:[%s1663 + $0x14] sm:$0x1]
        %v5500 = vld [vmem:[%s1663 + $0x20] sm:$0x1]
        %v5501 = vld [vmem:[%s1663 + $0x2c] sm:$0x1]
        %v5502 = vld [vmem:[%s1663 + $0x38] sm:$0x1]
        %v5503 = vld [vmem:[%s1663 + $0x44] sm:$0x1]
        %v5504 = vld [vmem:[%s1663 + $0x50] sm:$0x1]
        %v5505 = vld [vmem:[%s1663 + $0x5c] sm:$0x1]
        %v5506 = vld [vmem:[%s1663 + $0x68] sm:$0x1]
        %v5507 = vld [vmem:[%s1663 + $0x74] sm:$0x1]
        %v5508 = vld [vmem:[%s1663 + $0x80] sm:$0x1]
        %v5509 = vld [vmem:[%s1663 + $0x8c] sm:$0x1]
        %v5510 = vld [vmem:[%s1663 + $0x98] sm:$0x1]
        %v5511 = vld [vmem:[%s1663 + $0xa4] sm:$0x1]
        %v5512 = vld [vmem:[%s1663 + $0xb0] sm:$0x1]
        %v5513 = vld [vmem:[%s1663 + $0xbc] sm:$0x1]
        %v5514 = vld [vmem:[%s1663] sm:$0xe]
        %v5515 = vld [vmem:[%s1663 + $0xc] sm:$0xe]
        %v5516 = vld [vmem:[%s1663 + $0x18] sm:$0xe]
        %v5517 = vld [vmem:[%s1663 + $0x24] sm:$0xe]
        %v5518 = vld [vmem:[%s1663 + $0x30] sm:$0xe]
        %v5519 = vld [vmem:[%s1663 + $0x3c] sm:$0xe]
        %v5520 = vld [vmem:[%s1663 + $0x48] sm:$0xe]
        %v5521 = vld [vmem:[%s1663 + $0x54] sm:$0xe]
        %v5522 = vld [vmem:[%s1663 + $0x60] sm:$0xe]
        %v5523 = vld [vmem:[%s1663 + $0x6c] sm:$0xe]
        %v5524 = vld [vmem:[%s1663 + $0x78] sm:$0xe]
        %v5525 = vld [vmem:[%s1663 + $0x84] sm:$0xe]
        %v5526 = vld [vmem:[%s1663 + $0x90] sm:$0xe]
        %v5527 = vld [vmem:[%s1663 + $0x9c] sm:$0xe]
        %v5528 = vld [vmem:[%s1663 + $0xa8] sm:$0xe]
        %v5529 = vld [vmem:[%s1663 + $0xb4] sm:$0xe]
        %v5530 = vld [vmem:[%s1909] sm:$0xf]
        %v5531 = vld [vmem:[%s1909 + $0x4] sm:$0xf]
        %v5532 = vld [vmem:[%s1909 + $0xc] sm:$0xf]
        %v5533 = vld [vmem:[%s1909 + $0x10] sm:$0xf]
        %v5534 = vld [vmem:[%s1909 + $0x18] sm:$0xf]
        %v5535 = vld [vmem:[%s1909 + $0x1c] sm:$0xf]
        %v5536 = vld [vmem:[%s1909 + $0x24] sm:$0xf]
        %v5537 = vld [vmem:[%s1909 + $0x28] sm:$0xf]
        %v5538 = vld [vmem:[%s1909 + $0x30] sm:$0xf]
        %v5539 = vld [vmem:[%s1909 + $0x34] sm:$0xf]
        %v5540 = vld [vmem:[%s1909 + $0x3c] sm:$0xf]
        %v5541 = vld [vmem:[%s1909 + $0x40] sm:$0xf]
        %v5542 = vld [vmem:[%s1909 + $0x48] sm:$0xf]
        %v5543 = vld [vmem:[%s1909 + $0x4c] sm:$0xf]
        %v5544 = vld [vmem:[%s1909 + $0x54] sm:$0xf]
        %v5545 = vld [vmem:[%s1909 + $0x58] sm:$0xf]
        %v5546 = vld [vmem:[%s1909 + $0x60] sm:$0xf]
        %v5547 = vld [vmem:[%s1909 + $0x64] sm:$0xf]
        %v5548 = vld [vmem:[%s1909 + $0x6c] sm:$0xf]
        %v5549 = vld [vmem:[%s1909 + $0x70] sm:$0xf]
        %v5550 = vld [vmem:[%s1909 + $0x78] sm:$0xf]
        %v5551 = vld [vmem:[%s1909 + $0x7c] sm:$0xf]
        %v5552 = vld [vmem:[%s1909 + $0x84] sm:$0xf]
        %v5553 = vld [vmem:[%s1909 + $0x88] sm:$0xf]
        %v5554 = vld [vmem:[%s1909 + $0x90] sm:$0xf]
        %v5555 = vld [vmem:[%s1909 + $0x94] sm:$0xf]
        %v5556 = vld [vmem:[%s1909 + $0x9c] sm:$0xf]
        %v5557 = vld [vmem:[%s1909 + $0xa0] sm:$0xf]
        %v5558 = vld [vmem:[%s1909 + $0xa8] sm:$0xf]
        %v5559 = vld [vmem:[%s1909 + $0xac] sm:$0xf]
        %v5560 = vld [vmem:[%s1909 + $0xb4] sm:$0xf]
        %v5561 = vld [vmem:[%s1909 + $0xb8] sm:$0xf]
        %v5562 = vld [vmem:[%s1909 + $0x8] sm:$0x1]
        %v5563 = vld [vmem:[%s1909 + $0x14] sm:$0x1]
        %v5564 = vld [vmem:[%s1909 + $0x20] sm:$0x1]
        %v5565 = vld [vmem:[%s1909 + $0x2c] sm:$0x1]
        %v5566 = vld [vmem:[%s1909 + $0x38] sm:$0x1]
        %v5567 = vld [vmem:[%s1909 + $0x44] sm:$0x1]
        %v5568 = vld [vmem:[%s1909 + $0x50] sm:$0x1]
        %v5569 = vld [vmem:[%s1909 + $0x5c] sm:$0x1]
        %v5570 = vld [vmem:[%s1909 + $0x68] sm:$0x1]
        %v5571 = vld [vmem:[%s1909 + $0x74] sm:$0x1]
        %v5572 = vld [vmem:[%s1909 + $0x80] sm:$0x1]
        %v5573 = vld [vmem:[%s1909 + $0x8c] sm:$0x1]
        %v5574 = vld [vmem:[%s1909 + $0x98] sm:$0x1]
        %v5575 = vld [vmem:[%s1909 + $0xa4] sm:$0x1]
        %v5576 = vld [vmem:[%s1909 + $0xb0] sm:$0x1]
        %v5577 = vld [vmem:[%s1909 + $0xbc] sm:$0x1]
        %v5578 = vld [vmem:[%s1909] sm:$0xe]
        %v5579 = vld [vmem:[%s1909 + $0xc] sm:$0xe]
        %v5580 = vld [vmem:[%s1909 + $0x18] sm:$0xe]
        %v5581 = vld [vmem:[%s1909 + $0x24] sm:$0xe]
        %v5582 = vld [vmem:[%s1909 + $0x30] sm:$0xe]
        %v5583 = vld [vmem:[%s1909 + $0x3c] sm:$0xe]
        %v5584 = vld [vmem:[%s1909 + $0x48] sm:$0xe]
        %v5585 = vld [vmem:[%s1909 + $0x54] sm:$0xe]
        %v5586 = vld [vmem:[%s1909 + $0x60] sm:$0xe]
        %v5587 = vld [vmem:[%s1909 + $0x6c] sm:$0xe]
        %v5588 = vld [vmem:[%s1909 + $0x78] sm:$0xe]
        %v5589 = vld [vmem:[%s1909 + $0x84] sm:$0xe]
        %v5590 = vld [vmem:[%s1909 + $0x90] sm:$0xe]
        %v5591 = vld [vmem:[%s1909 + $0x9c] sm:$0xe]
        %v5592 = vld [vmem:[%s1909 + $0xa8] sm:$0xe]
        %v5593 = vld [vmem:[%s1909 + $0xb4] sm:$0xe]
        %v5626 = vunpack.c.l.b16 %v5402
        %v5627 = vunpack.c.l.b16 %v5403
        %v5628 = vunpack.c.l.b16 %v5404
        %v5629 = vunpack.c.l.b16 %v5405
        %v5630 = vunpack.c.l.b16 %v5406
        %v5631 = vunpack.c.l.b16 %v5407
        %v5632 = vunpack.c.l.b16 %v5408
        %v5633 = vunpack.c.l.b16 %v5409
        %v5634 = vunpack.c.l.b16 %v5410
        %v5635 = vunpack.c.l.b16 %v5411
        %v5636 = vunpack.c.l.b16 %v5412
        %v5637 = vunpack.c.l.b16 %v5413
        %v5638 = vunpack.c.l.b16 %v5414
        %v5639 = vunpack.c.l.b16 %v5415
        %v5640 = vunpack.c.l.b16 %v5416
        %v5641 = vunpack.c.l.b16 %v5417
        %v5642 = vunpack.c.l.b16 %v5418
        %v5643 = vunpack.c.l.b16 %v5419
        %v5644 = vunpack.c.l.b16 %v5420
        %v5645 = vunpack.c.l.b16 %v5421
        %v5646 = vunpack.c.l.b16 %v5422
        %v5647 = vunpack.c.l.b16 %v5423
        %v5648 = vunpack.c.l.b16 %v5424
        %v5649 = vunpack.c.l.b16 %v5425
        %v5650 = vunpack.c.l.b16 %v5426
        %v5651 = vunpack.c.l.b16 %v5427
        %v5652 = vunpack.c.l.b16 %v5428
        %v5653 = vunpack.c.l.b16 %v5429
        %v5654 = vunpack.c.l.b16 %v5430
        %v5655 = vunpack.c.l.b16 %v5431
        %v5656 = vunpack.c.l.b16 %v5432
        %v5657 = vunpack.c.l.b16 %v5433
        %v5658 = vpack.c.b16 %v5627, %v5626
        %v5659 = vpack.c.b16 %v5629, %v5628
        %v5660 = vpack.c.b16 %v5631, %v5630
        %v5661 = vpack.c.b16 %v5633, %v5632
        %v5662 = vpack.c.b16 %v5635, %v5634
        %v5663 = vpack.c.b16 %v5637, %v5636
        %v5664 = vpack.c.b16 %v5639, %v5638
        %v5665 = vpack.c.b16 %v5641, %v5640
        %v5666 = vpack.c.b16 %v5643, %v5642
        %v5667 = vpack.c.b16 %v5645, %v5644
        %v5668 = vpack.c.b16 %v5647, %v5646
        %v5669 = vpack.c.b16 %v5649, %v5648
        %v5670 = vpack.c.b16 %v5651, %v5650
        %v5671 = vpack.c.b16 %v5653, %v5652
        %v5672 = vpack.c.b16 %v5655, %v5654
        %v5673 = vpack.c.b16 %v5657, %v5656
        %v5690 = vunpack.c.l.b16 %v5434
        %v5691 = vunpack.c.l.b16 %v5435
        %v5692 = vunpack.c.l.b16 %v5436
        %v5693 = vunpack.c.l.b16 %v5437
        %v5694 = vunpack.c.l.b16 %v5438
        %v5695 = vunpack.c.l.b16 %v5439
        %v5696 = vunpack.c.l.b16 %v5440
        %v5697 = vunpack.c.l.b16 %v5441
        %v5698 = vunpack.c.l.b16 %v5442
        %v5699 = vunpack.c.l.b16 %v5443
        %v5700 = vunpack.c.l.b16 %v5444
        %v5701 = vunpack.c.l.b16 %v5445
        %v5702 = vunpack.c.l.b16 %v5446
        %v5703 = vunpack.c.l.b16 %v5447
        %v5704 = vunpack.c.l.b16 %v5448
        %v5705 = vunpack.c.l.b16 %v5449
        %v5706 = vpack.c.b16 %v5690, %v5690
        %v5707 = vpack.c.b16 %v5691, %v5691
        %v5708 = vpack.c.b16 %v5692, %v5692
        %v5709 = vpack.c.b16 %v5693, %v5693
        %v5710 = vpack.c.b16 %v5694, %v5694
        %v5711 = vpack.c.b16 %v5695, %v5695
        %v5712 = vpack.c.b16 %v5696, %v5696
        %v5713 = vpack.c.b16 %v5697, %v5697
        %v5714 = vpack.c.b16 %v5698, %v5698
        %v5715 = vpack.c.b16 %v5699, %v5699
        %v5716 = vpack.c.b16 %v5700, %v5700
        %v5717 = vpack.c.b16 %v5701, %v5701
        %v5718 = vpack.c.b16 %v5702, %v5702
        %v5719 = vpack.c.b16 %v5703, %v5703
        %v5720 = vpack.c.b16 %v5704, %v5704
        %v5721 = vpack.c.b16 %v5705, %v5705
        %v5723 = vshrl.u32 %v5658, 16
        %v5725 = vshll.u32 %v5658, 16
        %v5727 = vrot.slane %v5725, 1
        %v5728 = vor.u32 %v5723, %v5727
        %v5730 = vshll.u32 %v5706, 16
        %v5732 = vrot.slane %v5730, 1
        %v5733 = vsel %vm2102, %v5728, %v5732
        %v5735 = vshrl.u32 %v5659, 16
        %v5737 = vshll.u32 %v5659, 16
        %v5739 = vrot.slane %v5737, 1
        %v5740 = vor.u32 %v5735, %v5739
        %v5742 = vshll.u32 %v5707, 16
        %v5744 = vrot.slane %v5742, 1
        %v5745 = vsel %vm2102, %v5740, %v5744
        %v5747 = vshrl.u32 %v5660, 16
        %v5749 = vshll.u32 %v5660, 16
        %v5751 = vrot.slane %v5749, 1
        %v5752 = vor.u32 %v5747, %v5751
        %v5754 = vshll.u32 %v5708, 16
        %v5756 = vrot.slane %v5754, 1
        %v5757 = vsel %vm2102, %v5752, %v5756
        %v5759 = vshrl.u32 %v5661, 16
        %v5761 = vshll.u32 %v5661, 16
        %v5763 = vrot.slane %v5761, 1
        %v5764 = vor.u32 %v5759, %v5763
        %v5766 = vshll.u32 %v5709, 16
        %v5768 = vrot.slane %v5766, 1
        %v5769 = vsel %vm2102, %v5764, %v5768
        %v5771 = vshrl.u32 %v5662, 16
        %v5773 = vshll.u32 %v5662, 16
        %v5775 = vrot.slane %v5773, 1
        %v5776 = vor.u32 %v5771, %v5775
        %v5778 = vshll.u32 %v5710, 16
        %v5780 = vrot.slane %v5778, 1
        %v5781 = vsel %vm2102, %v5776, %v5780
        %v5783 = vshrl.u32 %v5663, 16
        %v5785 = vshll.u32 %v5663, 16
        %v5787 = vrot.slane %v5785, 1
        %v5788 = vor.u32 %v5783, %v5787
        %v5790 = vshll.u32 %v5711, 16
        %v5792 = vrot.slane %v5790, 1
        %v5793 = vsel %vm2102, %v5788, %v5792
        %v5795 = vshrl.u32 %v5664, 16
        %v5797 = vshll.u32 %v5664, 16
        %v5799 = vrot.slane %v5797, 1
        %v5800 = vor.u32 %v5795, %v5799
        %v5802 = vshll.u32 %v5712, 16
        %v5804 = vrot.slane %v5802, 1
        %v5805 = vsel %vm2102, %v5800, %v5804
        %v5807 = vshrl.u32 %v5665, 16
        %v5809 = vshll.u32 %v5665, 16
        %v5811 = vrot.slane %v5809, 1
        %v5812 = vor.u32 %v5807, %v5811
        %v5814 = vshll.u32 %v5713, 16
        %v5816 = vrot.slane %v5814, 1
        %v5817 = vsel %vm2102, %v5812, %v5816
        %v5819 = vshrl.u32 %v5666, 16
        %v5821 = vshll.u32 %v5666, 16
        %v5823 = vrot.slane %v5821, 1
        %v5824 = vor.u32 %v5819, %v5823
        %v5826 = vshll.u32 %v5714, 16
        %v5828 = vrot.slane %v5826, 1
        %v5829 = vsel %vm2102, %v5824, %v5828
        %v5831 = vshrl.u32 %v5667, 16
        %v5833 = vshll.u32 %v5667, 16
        %v5835 = vrot.slane %v5833, 1
        %v5836 = vor.u32 %v5831, %v5835
        %v5838 = vshll.u32 %v5715, 16
        %v5840 = vrot.slane %v5838, 1
        %v5841 = vsel %vm2102, %v5836, %v5840
        %v5843 = vshrl.u32 %v5668, 16
        %v5845 = vshll.u32 %v5668, 16
        %v5847 = vrot.slane %v5845, 1
        %v5848 = vor.u32 %v5843, %v5847
        %v5850 = vshll.u32 %v5716, 16
        %v5852 = vrot.slane %v5850, 1
        %v5853 = vsel %vm2102, %v5848, %v5852
        %v5855 = vshrl.u32 %v5669, 16
        %v5857 = vshll.u32 %v5669, 16
        %v5859 = vrot.slane %v5857, 1
        %v5860 = vor.u32 %v5855, %v5859
        %v5862 = vshll.u32 %v5717, 16
        %v5864 = vrot.slane %v5862, 1
        %v5865 = vsel %vm2102, %v5860, %v5864
        %v5867 = vshrl.u32 %v5670, 16
        %v5869 = vshll.u32 %v5670, 16
        %v5871 = vrot.slane %v5869, 1
        %v5872 = vor.u32 %v5867, %v5871
        %v5874 = vshll.u32 %v5718, 16
        %v5876 = vrot.slane %v5874, 1
        %v5877 = vsel %vm2102, %v5872, %v5876
        %v5879 = vshrl.u32 %v5671, 16
        %v5881 = vshll.u32 %v5671, 16
        %v5883 = vrot.slane %v5881, 1
        %v5884 = vor.u32 %v5879, %v5883
        %v5886 = vshll.u32 %v5719, 16
        %v5888 = vrot.slane %v5886, 1
        %v5889 = vsel %vm2102, %v5884, %v5888
        %v5891 = vshrl.u32 %v5672, 16
        %v5893 = vshll.u32 %v5672, 16
        %v5895 = vrot.slane %v5893, 1
        %v5896 = vor.u32 %v5891, %v5895
        %v5898 = vshll.u32 %v5720, 16
        %v5900 = vrot.slane %v5898, 1
        %v5901 = vsel %vm2102, %v5896, %v5900
        %v5903 = vshrl.u32 %v5673, 16
        %v5905 = vshll.u32 %v5673, 16
        %v5907 = vrot.slane %v5905, 1
        %v5908 = vor.u32 %v5903, %v5907
        %v5910 = vshll.u32 %v5721, 16
        %v5912 = vrot.slane %v5910, 1
        %v5913 = vsel %vm2102, %v5908, %v5912
        %5914 = vrot.lane.b32.xlu0 %v5733, 64
        %v5915 = vpop.permute.xlu0 %5914
        %5916 = vrot.lane.b32.xlu0 %v5745, 64
        %v5917 = vpop.permute.xlu0 %5916
        %5918 = vrot.lane.b32.xlu0 %v5757, 64
        %v5919 = vpop.permute.xlu0 %5918
        %5920 = vrot.lane.b32.xlu0 %v5769, 64
        %v5921 = vpop.permute.xlu0 %5920
        %5922 = vrot.lane.b32.xlu0 %v5781, 64
        %v5923 = vpop.permute.xlu0 %5922
        %5924 = vrot.lane.b32.xlu0 %v5793, 64
        %v5925 = vpop.permute.xlu0 %5924
        %5926 = vrot.lane.b32.xlu0 %v5805, 64
        %v5927 = vpop.permute.xlu0 %5926
        %5928 = vrot.lane.b32.xlu0 %v5817, 64
        %v5929 = vpop.permute.xlu0 %5928
        %5930 = vrot.lane.b32.xlu0 %v5829, 64
        %v5931 = vpop.permute.xlu0 %5930
        %5932 = vrot.lane.b32.xlu0 %v5841, 64
        %v5933 = vpop.permute.xlu0 %5932
        %5934 = vrot.lane.b32.xlu0 %v5853, 64
        %v5935 = vpop.permute.xlu0 %5934
        %5936 = vrot.lane.b32.xlu0 %v5865, 64
        %v5937 = vpop.permute.xlu0 %5936
        %5938 = vrot.lane.b32.xlu0 %v5877, 64
        %v5939 = vpop.permute.xlu0 %5938
        %5940 = vrot.lane.b32.xlu0 %v5889, 64
        %v5941 = vpop.permute.xlu0 %5940
        %5942 = vrot.lane.b32.xlu0 %v5901, 64
        %v5943 = vpop.permute.xlu0 %5942
        %5944 = vrot.lane.b32.xlu0 %v5913, 64
        %v5945 = vpop.permute.xlu0 %5944
        %v5962 = vunpack.c.l.b16 %v5450
        %v5963 = vunpack.c.l.b16 %v5451
        %v5964 = vunpack.c.l.b16 %v5452
        %v5965 = vunpack.c.l.b16 %v5453
        %v5966 = vunpack.c.l.b16 %v5454
        %v5967 = vunpack.c.l.b16 %v5455
        %v5968 = vunpack.c.l.b16 %v5456
        %v5969 = vunpack.c.l.b16 %v5457
        %v5970 = vunpack.c.l.b16 %v5458
        %v5971 = vunpack.c.l.b16 %v5459
        %v5972 = vunpack.c.l.b16 %v5460
        %v5973 = vunpack.c.l.b16 %v5461
        %v5974 = vunpack.c.l.b16 %v5462
        %v5975 = vunpack.c.l.b16 %v5463
        %v5976 = vunpack.c.l.b16 %v5464
        %v5977 = vunpack.c.l.b16 %v5465
        %v5978 = vpack.c.b16 %v5627, %v5962
        %v5979 = vpack.c.b16 %v5629, %v5963
        %v5980 = vpack.c.b16 %v5631, %v5964
        %v5981 = vpack.c.b16 %v5633, %v5965
        %v5982 = vpack.c.b16 %v5635, %v5966
        %v5983 = vpack.c.b16 %v5637, %v5967
        %v5984 = vpack.c.b16 %v5639, %v5968
        %v5985 = vpack.c.b16 %v5641, %v5969
        %v5986 = vpack.c.b16 %v5643, %v5970
        %v5987 = vpack.c.b16 %v5645, %v5971
        %v5988 = vpack.c.b16 %v5647, %v5972
        %v5989 = vpack.c.b16 %v5649, %v5973
        %v5990 = vpack.c.b16 %v5651, %v5974
        %v5991 = vpack.c.b16 %v5653, %v5975
        %v5992 = vpack.c.b16 %v5655, %v5976
        %v5993 = vpack.c.b16 %v5657, %v5977
        %v5994 = vrot.slane %v5978, 1
        %v5995 = vrot.slane %v5706, 1
        %v5996 = vsel %vm2375, %v5994, %v5995
        %v5997 = vrot.slane %v5979, 1
        %v5998 = vrot.slane %v5707, 1
        %v5999 = vsel %vm2375, %v5997, %v5998
        %v6000 = vrot.slane %v5980, 1
        %v6001 = vrot.slane %v5708, 1
        %v6002 = vsel %vm2375, %v6000, %v6001
        %v6003 = vrot.slane %v5981, 1
        %v6004 = vrot.slane %v5709, 1
        %v6005 = vsel %vm2375, %v6003, %v6004
        %v6006 = vrot.slane %v5982, 1
        %v6007 = vrot.slane %v5710, 1
        %v6008 = vsel %vm2375, %v6006, %v6007
        %v6009 = vrot.slane %v5983, 1
        %v6010 = vrot.slane %v5711, 1
        %v6011 = vsel %vm2375, %v6009, %v6010
        %v6012 = vrot.slane %v5984, 1
        %v6013 = vrot.slane %v5712, 1
        %v6014 = vsel %vm2375, %v6012, %v6013
        %v6015 = vrot.slane %v5985, 1
        %v6016 = vrot.slane %v5713, 1
        %v6017 = vsel %vm2375, %v6015, %v6016
        %v6018 = vrot.slane %v5986, 1
        %v6019 = vrot.slane %v5714, 1
        %v6020 = vsel %vm2375, %v6018, %v6019
        %v6021 = vrot.slane %v5987, 1
        %v6022 = vrot.slane %v5715, 1
        %v6023 = vsel %vm2375, %v6021, %v6022
        %v6024 = vrot.slane %v5988, 1
        %v6025 = vrot.slane %v5716, 1
        %v6026 = vsel %vm2375, %v6024, %v6025
        %v6027 = vrot.slane %v5989, 1
        %v6028 = vrot.slane %v5717, 1
        %v6029 = vsel %vm2375, %v6027, %v6028
        %v6030 = vrot.slane %v5990, 1
        %v6031 = vrot.slane %v5718, 1
        %v6032 = vsel %vm2375, %v6030, %v6031
        %v6033 = vrot.slane %v5991, 1
        %v6034 = vrot.slane %v5719, 1
        %v6035 = vsel %vm2375, %v6033, %v6034
        %v6036 = vrot.slane %v5992, 1
        %v6037 = vrot.slane %v5720, 1
        %v6038 = vsel %vm2375, %v6036, %v6037
        %v6039 = vrot.slane %v5993, 1
        %v6040 = vrot.slane %v5721, 1
        %v6041 = vsel %vm2375, %v6039, %v6040
        %v6074 = vunpack.c.l.b16 %v5466
        %v6075 = vunpack.c.l.b16 %v5467
        %v6076 = vunpack.c.l.b16 %v5468
        %v6077 = vunpack.c.l.b16 %v5469
        %v6078 = vunpack.c.l.b16 %v5470
        %v6079 = vunpack.c.l.b16 %v5471
        %v6080 = vunpack.c.l.b16 %v5472
        %v6081 = vunpack.c.l.b16 %v5473
        %v6082 = vunpack.c.l.b16 %v5474
        %v6083 = vunpack.c.l.b16 %v5475
        %v6084 = vunpack.c.l.b16 %v5476
        %v6085 = vunpack.c.l.b16 %v5477
        %v6086 = vunpack.c.l.b16 %v5478
        %v6087 = vunpack.c.l.b16 %v5479
        %v6088 = vunpack.c.l.b16 %v5480
        %v6089 = vunpack.c.l.b16 %v5481
        %v6090 = vunpack.c.l.b16 %v5482
        %v6091 = vunpack.c.l.b16 %v5483
        %v6092 = vunpack.c.l.b16 %v5484
        %v6093 = vunpack.c.l.b16 %v5485
        %v6094 = vunpack.c.l.b16 %v5486
        %v6095 = vunpack.c.l.b16 %v5487
        %v6096 = vunpack.c.l.b16 %v5488
        %v6097 = vunpack.c.l.b16 %v5489
        %v6098 = vunpack.c.l.b16 %v5490
        %v6099 = vunpack.c.l.b16 %v5491
        %v6100 = vunpack.c.l.b16 %v5492
        %v6101 = vunpack.c.l.b16 %v5493
        %v6102 = vunpack.c.l.b16 %v5494
        %v6103 = vunpack.c.l.b16 %v5495
        %v6104 = vunpack.c.l.b16 %v5496
        %v6105 = vunpack.c.l.b16 %v5497
        %v6106 = vpack.c.b16 %v6075, %v6074
        %v6107 = vpack.c.b16 %v6077, %v6076
        %v6108 = vpack.c.b16 %v6079, %v6078
        %v6109 = vpack.c.b16 %v6081, %v6080
        %v6110 = vpack.c.b16 %v6083, %v6082
        %v6111 = vpack.c.b16 %v6085, %v6084
        %v6112 = vpack.c.b16 %v6087, %v6086
        %v6113 = vpack.c.b16 %v6089, %v6088
        %v6114 = vpack.c.b16 %v6091, %v6090
        %v6115 = vpack.c.b16 %v6093, %v6092
        %v6116 = vpack.c.b16 %v6095, %v6094
        %v6117 = vpack.c.b16 %v6097, %v6096
        %v6118 = vpack.c.b16 %v6099, %v6098
        %v6119 = vpack.c.b16 %v6101, %v6100
        %v6120 = vpack.c.b16 %v6103, %v6102
        %v6121 = vpack.c.b16 %v6105, %v6104
        %6122 = vrot.lane.b32.xlu0 %v6106, 64
        %v6123 = vpop.permute.xlu0 %6122
        %6124 = vrot.lane.b32.xlu0 %v6107, 64
        %v6125 = vpop.permute.xlu0 %6124
        %6126 = vrot.lane.b32.xlu0 %v6108, 64
        %v6127 = vpop.permute.xlu0 %6126
        %6128 = vrot.lane.b32.xlu0 %v6109, 64
        %v6129 = vpop.permute.xlu0 %6128
        %6130 = vrot.lane.b32.xlu0 %v6110, 64
        %v6131 = vpop.permute.xlu0 %6130
        %6132 = vrot.lane.b32.xlu0 %v6111, 64
        %v6133 = vpop.permute.xlu0 %6132
        %6134 = vrot.lane.b32.xlu0 %v6112, 64
        %v6135 = vpop.permute.xlu0 %6134
        %6136 = vrot.lane.b32.xlu0 %v6113, 64
        %v6137 = vpop.permute.xlu0 %6136
        %6138 = vrot.lane.b32.xlu0 %v6114, 64
        %v6139 = vpop.permute.xlu0 %6138
        %6140 = vrot.lane.b32.xlu0 %v6115, 64
        %v6141 = vpop.permute.xlu0 %6140
        %6142 = vrot.lane.b32.xlu0 %v6116, 64
        %v6143 = vpop.permute.xlu0 %6142
        %6144 = vrot.lane.b32.xlu0 %v6117, 64
        %v6145 = vpop.permute.xlu0 %6144
        %6146 = vrot.lane.b32.xlu0 %v6118, 64
        %v6147 = vpop.permute.xlu0 %6146
        %6148 = vrot.lane.b32.xlu0 %v6119, 64
        %v6149 = vpop.permute.xlu0 %6148
        %6150 = vrot.lane.b32.xlu0 %v6120, 64
        %v6151 = vpop.permute.xlu0 %6150
        %6152 = vrot.lane.b32.xlu0 %v6121, 64
        %v6153 = vpop.permute.xlu0 %6152
        %v6170 = vunpack.c.l.b16 %v5498
        %v6171 = vunpack.c.l.b16 %v5499
        %v6172 = vunpack.c.l.b16 %v5500
        %v6173 = vunpack.c.l.b16 %v5501
        %v6174 = vunpack.c.l.b16 %v5502
        %v6175 = vunpack.c.l.b16 %v5503
        %v6176 = vunpack.c.l.b16 %v5504
        %v6177 = vunpack.c.l.b16 %v5505
        %v6178 = vunpack.c.l.b16 %v5506
        %v6179 = vunpack.c.l.b16 %v5507
        %v6180 = vunpack.c.l.b16 %v5508
        %v6181 = vunpack.c.l.b16 %v5509
        %v6182 = vunpack.c.l.b16 %v5510
        %v6183 = vunpack.c.l.b16 %v5511
        %v6184 = vunpack.c.l.b16 %v5512
        %v6185 = vunpack.c.l.b16 %v5513
        %v6186 = vpack.c.b16 %v6170, %v6170
        %v6187 = vpack.c.b16 %v6171, %v6171
        %v6188 = vpack.c.b16 %v6172, %v6172
        %v6189 = vpack.c.b16 %v6173, %v6173
        %v6190 = vpack.c.b16 %v6174, %v6174
        %v6191 = vpack.c.b16 %v6175, %v6175
        %v6192 = vpack.c.b16 %v6176, %v6176
        %v6193 = vpack.c.b16 %v6177, %v6177
        %v6194 = vpack.c.b16 %v6178, %v6178
        %v6195 = vpack.c.b16 %v6179, %v6179
        %v6196 = vpack.c.b16 %v6180, %v6180
        %v6197 = vpack.c.b16 %v6181, %v6181
        %v6198 = vpack.c.b16 %v6182, %v6182
        %v6199 = vpack.c.b16 %v6183, %v6183
        %v6200 = vpack.c.b16 %v6184, %v6184
        %v6201 = vpack.c.b16 %v6185, %v6185
        %v6203 = vshrl.u32 %v6106, 16
        %v6205 = vshll.u32 %v6106, 16
        %v6207 = vrot.slane %v6205, 1
        %v6208 = vor.u32 %v6203, %v6207
        %v6210 = vshll.u32 %v6186, 16
        %v6212 = vrot.slane %v6210, 1
        %v6213 = vsel %vm2102, %v6208, %v6212
        %v6215 = vshrl.u32 %v6107, 16
        %v6217 = vshll.u32 %v6107, 16
        %v6219 = vrot.slane %v6217, 1
        %v6220 = vor.u32 %v6215, %v6219
        %v6222 = vshll.u32 %v6187, 16
        %v6224 = vrot.slane %v6222, 1
        %v6225 = vsel %vm2102, %v6220, %v6224
        %v6227 = vshrl.u32 %v6108, 16
        %v6229 = vshll.u32 %v6108, 16
        %v6231 = vrot.slane %v6229, 1
        %v6232 = vor.u32 %v6227, %v6231
        %v6234 = vshll.u32 %v6188, 16
        %v6236 = vrot.slane %v6234, 1
        %v6237 = vsel %vm2102, %v6232, %v6236
        %v6239 = vshrl.u32 %v6109, 16
        %v6241 = vshll.u32 %v6109, 16
        %v6243 = vrot.slane %v6241, 1
        %v6244 = vor.u32 %v6239, %v6243
        %v6246 = vshll.u32 %v6189, 16
        %v6248 = vrot.slane %v6246, 1
        %v6249 = vsel %vm2102, %v6244, %v6248
        %v6251 = vshrl.u32 %v6110, 16
        %v6253 = vshll.u32 %v6110, 16
        %v6255 = vrot.slane %v6253, 1
        %v6256 = vor.u32 %v6251, %v6255
        %v6258 = vshll.u32 %v6190, 16
        %v6260 = vrot.slane %v6258, 1
        %v6261 = vsel %vm2102, %v6256, %v6260
        %v6263 = vshrl.u32 %v6111, 16
        %v6265 = vshll.u32 %v6111, 16
        %v6267 = vrot.slane %v6265, 1
        %v6268 = vor.u32 %v6263, %v6267
        %v6270 = vshll.u32 %v6191, 16
        %v6272 = vrot.slane %v6270, 1
        %v6273 = vsel %vm2102, %v6268, %v6272
        %v6275 = vshrl.u32 %v6112, 16
        %v6277 = vshll.u32 %v6112, 16
        %v6279 = vrot.slane %v6277, 1
        %v6280 = vor.u32 %v6275, %v6279
        %v6282 = vshll.u32 %v6192, 16
        %v6284 = vrot.slane %v6282, 1
        %v6285 = vsel %vm2102, %v6280, %v6284
        %v6287 = vshrl.u32 %v6113, 16
        %v6289 = vshll.u32 %v6113, 16
        %v6291 = vrot.slane %v6289, 1
        %v6292 = vor.u32 %v6287, %v6291
        %v6294 = vshll.u32 %v6193, 16
        %v6296 = vrot.slane %v6294, 1
        %v6297 = vsel %vm2102, %v6292, %v6296
        %v6299 = vshrl.u32 %v6114, 16
        %v6301 = vshll.u32 %v6114, 16
        %v6303 = vrot.slane %v6301, 1
        %v6304 = vor.u32 %v6299, %v6303
        %v6306 = vshll.u32 %v6194, 16
        %v6308 = vrot.slane %v6306, 1
        %v6309 = vsel %vm2102, %v6304, %v6308
        %v6311 = vshrl.u32 %v6115, 16
        %v6313 = vshll.u32 %v6115, 16
        %v6315 = vrot.slane %v6313, 1
        %v6316 = vor.u32 %v6311, %v6315
        %v6318 = vshll.u32 %v6195, 16
        %v6320 = vrot.slane %v6318, 1
        %v6321 = vsel %vm2102, %v6316, %v6320
        %v6323 = vshrl.u32 %v6116, 16
        %v6325 = vshll.u32 %v6116, 16
        %v6327 = vrot.slane %v6325, 1
        %v6328 = vor.u32 %v6323, %v6327
        %v6330 = vshll.u32 %v6196, 16
        %v6332 = vrot.slane %v6330, 1
        %v6333 = vsel %vm2102, %v6328, %v6332
        %v6335 = vshrl.u32 %v6117, 16
        %v6337 = vshll.u32 %v6117, 16
        %v6339 = vrot.slane %v6337, 1
        %v6340 = vor.u32 %v6335, %v6339
        %v6342 = vshll.u32 %v6197, 16
        %v6344 = vrot.slane %v6342, 1
        %v6345 = vsel %vm2102, %v6340, %v6344
        %v6347 = vshrl.u32 %v6118, 16
        %v6349 = vshll.u32 %v6118, 16
        %v6351 = vrot.slane %v6349, 1
        %v6352 = vor.u32 %v6347, %v6351
        %v6354 = vshll.u32 %v6198, 16
        %v6356 = vrot.slane %v6354, 1
        %v6357 = vsel %vm2102, %v6352, %v6356
        %v6359 = vshrl.u32 %v6119, 16
        %v6361 = vshll.u32 %v6119, 16
        %v6363 = vrot.slane %v6361, 1
        %v6364 = vor.u32 %v6359, %v6363
        %v6366 = vshll.u32 %v6199, 16
        %v6368 = vrot.slane %v6366, 1
        %v6369 = vsel %vm2102, %v6364, %v6368
        %v6371 = vshrl.u32 %v6120, 16
        %v6373 = vshll.u32 %v6120, 16
        %v6375 = vrot.slane %v6373, 1
        %v6376 = vor.u32 %v6371, %v6375
        %v6378 = vshll.u32 %v6200, 16
        %v6380 = vrot.slane %v6378, 1
        %v6381 = vsel %vm2102, %v6376, %v6380
        %v6383 = vshrl.u32 %v6121, 16
        %v6385 = vshll.u32 %v6121, 16
        %v6387 = vrot.slane %v6385, 1
        %v6388 = vor.u32 %v6383, %v6387
        %v6390 = vshll.u32 %v6201, 16
        %v6392 = vrot.slane %v6390, 1
        %v6393 = vsel %vm2102, %v6388, %v6392
        %v6410 = vunpack.c.l.b16 %v5514
        %v6411 = vunpack.c.l.b16 %v5515
        %v6412 = vunpack.c.l.b16 %v5516
        %v6413 = vunpack.c.l.b16 %v5517
        %v6414 = vunpack.c.l.b16 %v5518
        %v6415 = vunpack.c.l.b16 %v5519
        %v6416 = vunpack.c.l.b16 %v5520
        %v6417 = vunpack.c.l.b16 %v5521
        %v6418 = vunpack.c.l.b16 %v5522
        %v6419 = vunpack.c.l.b16 %v5523
        %v6420 = vunpack.c.l.b16 %v5524
        %v6421 = vunpack.c.l.b16 %v5525
        %v6422 = vunpack.c.l.b16 %v5526
        %v6423 = vunpack.c.l.b16 %v5527
        %v6424 = vunpack.c.l.b16 %v5528
        %v6425 = vunpack.c.l.b16 %v5529
        %v6426 = vpack.c.b16 %v6075, %v6410
        %v6427 = vpack.c.b16 %v6077, %v6411
        %v6428 = vpack.c.b16 %v6079, %v6412
        %v6429 = vpack.c.b16 %v6081, %v6413
        %v6430 = vpack.c.b16 %v6083, %v6414
        %v6431 = vpack.c.b16 %v6085, %v6415
        %v6432 = vpack.c.b16 %v6087, %v6416
        %v6433 = vpack.c.b16 %v6089, %v6417
        %v6434 = vpack.c.b16 %v6091, %v6418
        %v6435 = vpack.c.b16 %v6093, %v6419
        %v6436 = vpack.c.b16 %v6095, %v6420
        %v6437 = vpack.c.b16 %v6097, %v6421
        %v6438 = vpack.c.b16 %v6099, %v6422
        %v6439 = vpack.c.b16 %v6101, %v6423
        %v6440 = vpack.c.b16 %v6103, %v6424
        %v6441 = vpack.c.b16 %v6105, %v6425
        %v6442 = vrot.slane %v6426, 1
        %v6443 = vrot.slane %v6186, 1
        %v6444 = vsel %vm2375, %v6442, %v6443
        %v6445 = vrot.slane %v6427, 1
        %v6446 = vrot.slane %v6187, 1
        %v6447 = vsel %vm2375, %v6445, %v6446
        %v6448 = vrot.slane %v6428, 1
        %v6449 = vrot.slane %v6188, 1
        %v6450 = vsel %vm2375, %v6448, %v6449
        %v6451 = vrot.slane %v6429, 1
        %v6452 = vrot.slane %v6189, 1
        %v6453 = vsel %vm2375, %v6451, %v6452
        %v6454 = vrot.slane %v6430, 1
        %v6455 = vrot.slane %v6190, 1
        %v6456 = vsel %vm2375, %v6454, %v6455
        %v6457 = vrot.slane %v6431, 1
        %v6458 = vrot.slane %v6191, 1
        %v6459 = vsel %vm2375, %v6457, %v6458
        %v6460 = vrot.slane %v6432, 1
        %v6461 = vrot.slane %v6192, 1
        %v6462 = vsel %vm2375, %v6460, %v6461
        %v6463 = vrot.slane %v6433, 1
        %v6464 = vrot.slane %v6193, 1
        %v6465 = vsel %vm2375, %v6463, %v6464
        %v6466 = vrot.slane %v6434, 1
        %v6467 = vrot.slane %v6194, 1
        %v6468 = vsel %vm2375, %v6466, %v6467
        %v6469 = vrot.slane %v6435, 1
        %v6470 = vrot.slane %v6195, 1
        %v6471 = vsel %vm2375, %v6469, %v6470
        %v6472 = vrot.slane %v6436, 1
        %v6473 = vrot.slane %v6196, 1
        %v6474 = vsel %vm2375, %v6472, %v6473
        %v6475 = vrot.slane %v6437, 1
        %v6476 = vrot.slane %v6197, 1
        %v6477 = vsel %vm2375, %v6475, %v6476
        %v6478 = vrot.slane %v6438, 1
        %v6479 = vrot.slane %v6198, 1
        %v6480 = vsel %vm2375, %v6478, %v6479
        %v6481 = vrot.slane %v6439, 1
        %v6482 = vrot.slane %v6199, 1
        %v6483 = vsel %vm2375, %v6481, %v6482
        %v6484 = vrot.slane %v6440, 1
        %v6485 = vrot.slane %v6200, 1
        %v6486 = vsel %vm2375, %v6484, %v6485
        %v6487 = vrot.slane %v6441, 1
        %v6488 = vrot.slane %v6201, 1
        %v6489 = vsel %vm2375, %v6487, %v6488
        %6490 = vrot.lane.b32.xlu0 %v6444, 64
        %v6491 = vpop.permute.xlu0 %6490
        %6492 = vrot.lane.b32.xlu0 %v6447, 64
        %v6493 = vpop.permute.xlu0 %6492
        %6494 = vrot.lane.b32.xlu0 %v6450, 64
        %v6495 = vpop.permute.xlu0 %6494
        %6496 = vrot.lane.b32.xlu0 %v6453, 64
        %v6497 = vpop.permute.xlu0 %6496
        %6498 = vrot.lane.b32.xlu0 %v6456, 64
        %v6499 = vpop.permute.xlu0 %6498
        %6500 = vrot.lane.b32.xlu0 %v6459, 64
        %v6501 = vpop.permute.xlu0 %6500
        %6502 = vrot.lane.b32.xlu0 %v6462, 64
        %v6503 = vpop.permute.xlu0 %6502
        %6504 = vrot.lane.b32.xlu0 %v6465, 64
        %v6505 = vpop.permute.xlu0 %6504
        %6506 = vrot.lane.b32.xlu0 %v6468, 64
        %v6507 = vpop.permute.xlu0 %6506
        %6508 = vrot.lane.b32.xlu0 %v6471, 64
        %v6509 = vpop.permute.xlu0 %6508
        %6510 = vrot.lane.b32.xlu0 %v6474, 64
        %v6511 = vpop.permute.xlu0 %6510
        %6512 = vrot.lane.b32.xlu0 %v6477, 64
        %v6513 = vpop.permute.xlu0 %6512
        %6514 = vrot.lane.b32.xlu0 %v6480, 64
        %v6515 = vpop.permute.xlu0 %6514
        %6516 = vrot.lane.b32.xlu0 %v6483, 64
        %v6517 = vpop.permute.xlu0 %6516
        %6518 = vrot.lane.b32.xlu0 %v6486, 64
        %v6519 = vpop.permute.xlu0 %6518
        %6520 = vrot.lane.b32.xlu0 %v6489, 64
        %v6521 = vpop.permute.xlu0 %6520
        %v6554 = vunpack.c.l.b16 %v5530
        %v6555 = vunpack.c.l.b16 %v5531
        %v6556 = vunpack.c.l.b16 %v5532
        %v6557 = vunpack.c.l.b16 %v5533
        %v6558 = vunpack.c.l.b16 %v5534
        %v6559 = vunpack.c.l.b16 %v5535
        %v6560 = vunpack.c.l.b16 %v5536
        %v6561 = vunpack.c.l.b16 %v5537
        %v6562 = vunpack.c.l.b16 %v5538
        %v6563 = vunpack.c.l.b16 %v5539
        %v6564 = vunpack.c.l.b16 %v5540
        %v6565 = vunpack.c.l.b16 %v5541
        %v6566 = vunpack.c.l.b16 %v5542
        %v6567 = vunpack.c.l.b16 %v5543
        %v6568 = vunpack.c.l.b16 %v5544
        %v6569 = vunpack.c.l.b16 %v5545
        %v6570 = vunpack.c.l.b16 %v5546
        %v6571 = vunpack.c.l.b16 %v5547
        %v6572 = vunpack.c.l.b16 %v5548
        %v6573 = vunpack.c.l.b16 %v5549
        %v6574 = vunpack.c.l.b16 %v5550
        %v6575 = vunpack.c.l.b16 %v5551
        %v6576 = vunpack.c.l.b16 %v5552
        %v6577 = vunpack.c.l.b16 %v5553
        %v6578 = vunpack.c.l.b16 %v5554
        %v6579 = vunpack.c.l.b16 %v5555
        %v6580 = vunpack.c.l.b16 %v5556
        %v6581 = vunpack.c.l.b16 %v5557
        %v6582 = vunpack.c.l.b16 %v5558
        %v6583 = vunpack.c.l.b16 %v5559
        %v6584 = vunpack.c.l.b16 %v5560
        %v6585 = vunpack.c.l.b16 %v5561
        %v6586 = vpack.c.b16 %v6555, %v6554
        %v6587 = vpack.c.b16 %v6557, %v6556
        %v6588 = vpack.c.b16 %v6559, %v6558
        %v6589 = vpack.c.b16 %v6561, %v6560
        %v6590 = vpack.c.b16 %v6563, %v6562
        %v6591 = vpack.c.b16 %v6565, %v6564
        %v6592 = vpack.c.b16 %v6567, %v6566
        %v6593 = vpack.c.b16 %v6569, %v6568
        %v6594 = vpack.c.b16 %v6571, %v6570
        %v6595 = vpack.c.b16 %v6573, %v6572
        %v6596 = vpack.c.b16 %v6575, %v6574
        %v6597 = vpack.c.b16 %v6577, %v6576
        %v6598 = vpack.c.b16 %v6579, %v6578
        %v6599 = vpack.c.b16 %v6581, %v6580
        %v6600 = vpack.c.b16 %v6583, %v6582
        %v6601 = vpack.c.b16 %v6585, %v6584
        %v6618 = vunpack.c.l.b16 %v5562
        %v6619 = vunpack.c.l.b16 %v5563
        %v6620 = vunpack.c.l.b16 %v5564
        %v6621 = vunpack.c.l.b16 %v5565
        %v6622 = vunpack.c.l.b16 %v5566
        %v6623 = vunpack.c.l.b16 %v5567
        %v6624 = vunpack.c.l.b16 %v5568
        %v6625 = vunpack.c.l.b16 %v5569
        %v6626 = vunpack.c.l.b16 %v5570
        %v6627 = vunpack.c.l.b16 %v5571
        %v6628 = vunpack.c.l.b16 %v5572
        %v6629 = vunpack.c.l.b16 %v5573
        %v6630 = vunpack.c.l.b16 %v5574
        %v6631 = vunpack.c.l.b16 %v5575
        %v6632 = vunpack.c.l.b16 %v5576
        %v6633 = vunpack.c.l.b16 %v5577
        %v6634 = vpack.c.b16 %v6618, %v6618
        %v6635 = vpack.c.b16 %v6619, %v6619
        %v6636 = vpack.c.b16 %v6620, %v6620
        %v6637 = vpack.c.b16 %v6621, %v6621
        %v6638 = vpack.c.b16 %v6622, %v6622
        %v6639 = vpack.c.b16 %v6623, %v6623
        %v6640 = vpack.c.b16 %v6624, %v6624
        %v6641 = vpack.c.b16 %v6625, %v6625
        %v6642 = vpack.c.b16 %v6626, %v6626
        %v6643 = vpack.c.b16 %v6627, %v6627
        %v6644 = vpack.c.b16 %v6628, %v6628
        %v6645 = vpack.c.b16 %v6629, %v6629
        %v6646 = vpack.c.b16 %v6630, %v6630
        %v6647 = vpack.c.b16 %v6631, %v6631
        %v6648 = vpack.c.b16 %v6632, %v6632
        %v6649 = vpack.c.b16 %v6633, %v6633
        %v6651 = vshrl.u32 %v6586, 16
        %v6653 = vshll.u32 %v6586, 16
        %v6655 = vrot.slane %v6653, 1
        %v6656 = vor.u32 %v6651, %v6655
        %v6658 = vshll.u32 %v6634, 16
        %v6660 = vrot.slane %v6658, 1
        %v6661 = vsel %vm2102, %v6656, %v6660
        %v6663 = vshrl.u32 %v6587, 16
        %v6665 = vshll.u32 %v6587, 16
        %v6667 = vrot.slane %v6665, 1
        %v6668 = vor.u32 %v6663, %v6667
        %v6670 = vshll.u32 %v6635, 16
        %v6672 = vrot.slane %v6670, 1
        %v6673 = vsel %vm2102, %v6668, %v6672
        %v6675 = vshrl.u32 %v6588, 16
        %v6677 = vshll.u32 %v6588, 16
        %v6679 = vrot.slane %v6677, 1
        %v6680 = vor.u32 %v6675, %v6679
        %v6682 = vshll.u32 %v6636, 16
        %v6684 = vrot.slane %v6682, 1
        %v6685 = vsel %vm2102, %v6680, %v6684
        %v6687 = vshrl.u32 %v6589, 16
        %v6689 = vshll.u32 %v6589, 16
        %v6691 = vrot.slane %v6689, 1
        %v6692 = vor.u32 %v6687, %v6691
        %v6694 = vshll.u32 %v6637, 16
        %v6696 = vrot.slane %v6694, 1
        %v6697 = vsel %vm2102, %v6692, %v6696
        %v6699 = vshrl.u32 %v6590, 16
        %v6701 = vshll.u32 %v6590, 16
        %v6703 = vrot.slane %v6701, 1
        %v6704 = vor.u32 %v6699, %v6703
        %v6706 = vshll.u32 %v6638, 16
        %v6708 = vrot.slane %v6706, 1
        %v6709 = vsel %vm2102, %v6704, %v6708
        %v6711 = vshrl.u32 %v6591, 16
        %v6713 = vshll.u32 %v6591, 16
        %v6715 = vrot.slane %v6713, 1
        %v6716 = vor.u32 %v6711, %v6715
        %v6718 = vshll.u32 %v6639, 16
        %v6720 = vrot.slane %v6718, 1
        %v6721 = vsel %vm2102, %v6716, %v6720
        %v6723 = vshrl.u32 %v6592, 16
        %v6725 = vshll.u32 %v6592, 16
        %v6727 = vrot.slane %v6725, 1
        %v6728 = vor.u32 %v6723, %v6727
        %v6730 = vshll.u32 %v6640, 16
        %v6732 = vrot.slane %v6730, 1
        %v6733 = vsel %vm2102, %v6728, %v6732
        %v6735 = vshrl.u32 %v6593, 16
        %v6737 = vshll.u32 %v6593, 16
        %v6739 = vrot.slane %v6737, 1
        %v6740 = vor.u32 %v6735, %v6739
        %v6742 = vshll.u32 %v6641, 16
        %v6744 = vrot.slane %v6742, 1
        %v6745 = vsel %vm2102, %v6740, %v6744
        %v6747 = vshrl.u32 %v6594, 16
        %v6749 = vshll.u32 %v6594, 16
        %v6751 = vrot.slane %v6749, 1
        %v6752 = vor.u32 %v6747, %v6751
        %v6754 = vshll.u32 %v6642, 16
        %v6756 = vrot.slane %v6754, 1
        %v6757 = vsel %vm2102, %v6752, %v6756
        %v6759 = vshrl.u32 %v6595, 16
        %v6761 = vshll.u32 %v6595, 16
        %v6763 = vrot.slane %v6761, 1
        %v6764 = vor.u32 %v6759, %v6763
        %v6766 = vshll.u32 %v6643, 16
        %v6768 = vrot.slane %v6766, 1
        %v6769 = vsel %vm2102, %v6764, %v6768
        %v6771 = vshrl.u32 %v6596, 16
        %v6773 = vshll.u32 %v6596, 16
        %v6775 = vrot.slane %v6773, 1
        %v6776 = vor.u32 %v6771, %v6775
        %v6778 = vshll.u32 %v6644, 16
        %v6780 = vrot.slane %v6778, 1
        %v6781 = vsel %vm2102, %v6776, %v6780
        %v6783 = vshrl.u32 %v6597, 16
        %v6785 = vshll.u32 %v6597, 16
        %v6787 = vrot.slane %v6785, 1
        %v6788 = vor.u32 %v6783, %v6787
        %v6790 = vshll.u32 %v6645, 16
        %v6792 = vrot.slane %v6790, 1
        %v6793 = vsel %vm2102, %v6788, %v6792
        %v6795 = vshrl.u32 %v6598, 16
        %v6797 = vshll.u32 %v6598, 16
        %v6799 = vrot.slane %v6797, 1
        %v6800 = vor.u32 %v6795, %v6799
        %v6802 = vshll.u32 %v6646, 16
        %v6804 = vrot.slane %v6802, 1
        %v6805 = vsel %vm2102, %v6800, %v6804
        %v6807 = vshrl.u32 %v6599, 16
        %v6809 = vshll.u32 %v6599, 16
        %v6811 = vrot.slane %v6809, 1
        %v6812 = vor.u32 %v6807, %v6811
        %v6814 = vshll.u32 %v6647, 16
        %v6816 = vrot.slane %v6814, 1
        %v6817 = vsel %vm2102, %v6812, %v6816
        %v6819 = vshrl.u32 %v6600, 16
        %v6821 = vshll.u32 %v6600, 16
        %v6823 = vrot.slane %v6821, 1
        %v6824 = vor.u32 %v6819, %v6823
        %v6826 = vshll.u32 %v6648, 16
        %v6828 = vrot.slane %v6826, 1
        %v6829 = vsel %vm2102, %v6824, %v6828
        %v6831 = vshrl.u32 %v6601, 16
        %v6833 = vshll.u32 %v6601, 16
        %v6835 = vrot.slane %v6833, 1
        %v6836 = vor.u32 %v6831, %v6835
        %v6838 = vshll.u32 %v6649, 16
        %v6840 = vrot.slane %v6838, 1
        %v6841 = vsel %vm2102, %v6836, %v6840
        %6842 = vrot.lane.b32.xlu0 %v6661, 64
        %v6843 = vpop.permute.xlu0 %6842
        %6844 = vrot.lane.b32.xlu0 %v6673, 64
        %v6845 = vpop.permute.xlu0 %6844
        %6846 = vrot.lane.b32.xlu0 %v6685, 64
        %v6847 = vpop.permute.xlu0 %6846
        %6848 = vrot.lane.b32.xlu0 %v6697, 64
        %v6849 = vpop.permute.xlu0 %6848
        %6850 = vrot.lane.b32.xlu0 %v6709, 64
        %v6851 = vpop.permute.xlu0 %6850
        %6852 = vrot.lane.b32.xlu0 %v6721, 64
        %v6853 = vpop.permute.xlu0 %6852
        %6854 = vrot.lane.b32.xlu0 %v6733, 64
        %v6855 = vpop.permute.xlu0 %6854
        %6856 = vrot.lane.b32.xlu0 %v6745, 64
        %v6857 = vpop.permute.xlu0 %6856
        %6858 = vrot.lane.b32.xlu0 %v6757, 64
        %v6859 = vpop.permute.xlu0 %6858
        %6860 = vrot.lane.b32.xlu0 %v6769, 64
        %v6861 = vpop.permute.xlu0 %6860
        %6862 = vrot.lane.b32.xlu0 %v6781, 64
        %v6863 = vpop.permute.xlu0 %6862
        %6864 = vrot.lane.b32.xlu0 %v6793, 64
        %v6865 = vpop.permute.xlu0 %6864
        %6866 = vrot.lane.b32.xlu0 %v6805, 64
        %v6867 = vpop.permute.xlu0 %6866
        %6868 = vrot.lane.b32.xlu0 %v6817, 64
        %v6869 = vpop.permute.xlu0 %6868
        %6870 = vrot.lane.b32.xlu0 %v6829, 64
        %v6871 = vpop.permute.xlu0 %6870
        %6872 = vrot.lane.b32.xlu0 %v6841, 64
        %v6873 = vpop.permute.xlu0 %6872
        %v6890 = vunpack.c.l.b16 %v5578
        %v6891 = vunpack.c.l.b16 %v5579
        %v6892 = vunpack.c.l.b16 %v5580
        %v6893 = vunpack.c.l.b16 %v5581
        %v6894 = vunpack.c.l.b16 %v5582
        %v6895 = vunpack.c.l.b16 %v5583
        %v6896 = vunpack.c.l.b16 %v5584
        %v6897 = vunpack.c.l.b16 %v5585
        %v6898 = vunpack.c.l.b16 %v5586
        %v6899 = vunpack.c.l.b16 %v5587
        %v6900 = vunpack.c.l.b16 %v5588
        %v6901 = vunpack.c.l.b16 %v5589
        %v6902 = vunpack.c.l.b16 %v5590
        %v6903 = vunpack.c.l.b16 %v5591
        %v6904 = vunpack.c.l.b16 %v5592
        %v6905 = vunpack.c.l.b16 %v5593
        %v6906 = vpack.c.b16 %v6555, %v6890
        %v6907 = vpack.c.b16 %v6557, %v6891
        %v6908 = vpack.c.b16 %v6559, %v6892
        %v6909 = vpack.c.b16 %v6561, %v6893
        %v6910 = vpack.c.b16 %v6563, %v6894
        %v6911 = vpack.c.b16 %v6565, %v6895
        %v6912 = vpack.c.b16 %v6567, %v6896
        %v6913 = vpack.c.b16 %v6569, %v6897
        %v6914 = vpack.c.b16 %v6571, %v6898
        %v6915 = vpack.c.b16 %v6573, %v6899
        %v6916 = vpack.c.b16 %v6575, %v6900
        %v6917 = vpack.c.b16 %v6577, %v6901
        %v6918 = vpack.c.b16 %v6579, %v6902
        %v6919 = vpack.c.b16 %v6581, %v6903
        %v6920 = vpack.c.b16 %v6583, %v6904
        %v6921 = vpack.c.b16 %v6585, %v6905
        %v6922 = vrot.slane %v6906, 1
        %v6923 = vrot.slane %v6634, 1
        %v6924 = vsel %vm2375, %v6922, %v6923
        %v6925 = vrot.slane %v6907, 1
        %v6926 = vrot.slane %v6635, 1
        %v6927 = vsel %vm2375, %v6925, %v6926
        %v6928 = vrot.slane %v6908, 1
        %v6929 = vrot.slane %v6636, 1
        %v6930 = vsel %vm2375, %v6928, %v6929
        %v6931 = vrot.slane %v6909, 1
        %v6932 = vrot.slane %v6637, 1
        %v6933 = vsel %vm2375, %v6931, %v6932
        %v6934 = vrot.slane %v6910, 1
        %v6935 = vrot.slane %v6638, 1
        %v6936 = vsel %vm2375, %v6934, %v6935
        %v6937 = vrot.slane %v6911, 1
        %v6938 = vrot.slane %v6639, 1
        %v6939 = vsel %vm2375, %v6937, %v6938
        %v6940 = vrot.slane %v6912, 1
        %v6941 = vrot.slane %v6640, 1
        %v6942 = vsel %vm2375, %v6940, %v6941
        %v6943 = vrot.slane %v6913, 1
        %v6944 = vrot.slane %v6641, 1
        %v6945 = vsel %vm2375, %v6943, %v6944
        %v6946 = vrot.slane %v6914, 1
        %v6947 = vrot.slane %v6642, 1
        %v6948 = vsel %vm2375, %v6946, %v6947
        %v6949 = vrot.slane %v6915, 1
        %v6950 = vrot.slane %v6643, 1
        %v6951 = vsel %vm2375, %v6949, %v6950
        %v6952 = vrot.slane %v6916, 1
        %v6953 = vrot.slane %v6644, 1
        %v6954 = vsel %vm2375, %v6952, %v6953
        %v6955 = vrot.slane %v6917, 1
        %v6956 = vrot.slane %v6645, 1
        %v6957 = vsel %vm2375, %v6955, %v6956
        %v6958 = vrot.slane %v6918, 1
        %v6959 = vrot.slane %v6646, 1
        %v6960 = vsel %vm2375, %v6958, %v6959
        %v6961 = vrot.slane %v6919, 1
        %v6962 = vrot.slane %v6647, 1
        %v6963 = vsel %vm2375, %v6961, %v6962
        %v6964 = vrot.slane %v6920, 1
        %v6965 = vrot.slane %v6648, 1
        %v6966 = vsel %vm2375, %v6964, %v6965
        %v6967 = vrot.slane %v6921, 1
        %v6968 = vrot.slane %v6649, 1
        %v6969 = vsel %vm2375, %v6967, %v6968
        %v7002 = vunpack.c.l.b16 %v522
        %v7003 = vunpack.c.l.b16 %v523
        %v7004 = vunpack.c.l.b16 %v524
        %v7005 = vunpack.c.l.b16 %v525
        %v7006 = vunpack.c.l.b16 %v526
        %v7007 = vunpack.c.l.b16 %v527
        %v7008 = vunpack.c.l.b16 %v528
        %v7009 = vunpack.c.l.b16 %v529
        %v7010 = vunpack.c.l.b16 %v530
        %v7011 = vunpack.c.l.b16 %v531
        %v7012 = vunpack.c.l.b16 %v532
        %v7013 = vunpack.c.l.b16 %v533
        %v7014 = vunpack.c.l.b16 %v534
        %v7015 = vunpack.c.l.b16 %v535
        %v7016 = vunpack.c.l.b16 %v536
        %v7017 = vunpack.c.l.b16 %v537
        %v7018 = vunpack.c.l.b16 %v538
        %v7019 = vunpack.c.l.b16 %v539
        %v7020 = vunpack.c.l.b16 %v540
        %v7021 = vunpack.c.l.b16 %v541
        %v7022 = vunpack.c.l.b16 %v542
        %v7023 = vunpack.c.l.b16 %v543
        %v7024 = vunpack.c.l.b16 %v544
        %v7025 = vunpack.c.l.b16 %v545
        %v7026 = vunpack.c.l.b16 %v546
        %v7027 = vunpack.c.l.b16 %v547
        %v7028 = vunpack.c.l.b16 %v548
        %v7029 = vunpack.c.l.b16 %v549
        %v7030 = vunpack.c.l.b16 %v550
        %v7031 = vunpack.c.l.b16 %v551
        %v7032 = vunpack.c.l.b16 %v552
        %v7033 = vunpack.c.l.b16 %v553
        %v7034 = vpack.c.b16 %v7003, %v7002
        %v7035 = vpack.c.b16 %v7005, %v7004
        %v7036 = vpack.c.b16 %v7007, %v7006
        %v7037 = vpack.c.b16 %v7009, %v7008
        %v7038 = vpack.c.b16 %v7011, %v7010
        %v7039 = vpack.c.b16 %v7013, %v7012
        %v7040 = vpack.c.b16 %v7015, %v7014
        %v7041 = vpack.c.b16 %v7017, %v7016
        %v7042 = vpack.c.b16 %v7019, %v7018
        %v7043 = vpack.c.b16 %v7021, %v7020
        %v7044 = vpack.c.b16 %v7023, %v7022
        %v7045 = vpack.c.b16 %v7025, %v7024
        %v7046 = vpack.c.b16 %v7027, %v7026
        %v7047 = vpack.c.b16 %v7029, %v7028
        %v7048 = vpack.c.b16 %v7031, %v7030
        %v7049 = vpack.c.b16 %v7033, %v7032
        %7050 = vrot.lane.b32.xlu0 %v7034, 64
        %v7051 = vpop.permute.xlu0 %7050
        %7052 = vrot.lane.b32.xlu0 %v7035, 64
        %v7053 = vpop.permute.xlu0 %7052
        %7054 = vrot.lane.b32.xlu0 %v7036, 64
        %v7055 = vpop.permute.xlu0 %7054
        %7056 = vrot.lane.b32.xlu0 %v7037, 64
        %v7057 = vpop.permute.xlu0 %7056
        %7058 = vrot.lane.b32.xlu0 %v7038, 64
        %v7059 = vpop.permute.xlu0 %7058
        %7060 = vrot.lane.b32.xlu0 %v7039, 64
        %v7061 = vpop.permute.xlu0 %7060
        %7062 = vrot.lane.b32.xlu0 %v7040, 64
        %v7063 = vpop.permute.xlu0 %7062
        %7064 = vrot.lane.b32.xlu0 %v7041, 64
        %v7065 = vpop.permute.xlu0 %7064
        %7066 = vrot.lane.b32.xlu0 %v7042, 64
        %v7067 = vpop.permute.xlu0 %7066
        %7068 = vrot.lane.b32.xlu0 %v7043, 64
        %v7069 = vpop.permute.xlu0 %7068
        %7070 = vrot.lane.b32.xlu0 %v7044, 64
        %v7071 = vpop.permute.xlu0 %7070
        %7072 = vrot.lane.b32.xlu0 %v7045, 64
        %v7073 = vpop.permute.xlu0 %7072
        %7074 = vrot.lane.b32.xlu0 %v7046, 64
        %v7075 = vpop.permute.xlu0 %7074
        %7076 = vrot.lane.b32.xlu0 %v7047, 64
        %v7077 = vpop.permute.xlu0 %7076
        %7078 = vrot.lane.b32.xlu0 %v7048, 64
        %v7079 = vpop.permute.xlu0 %7078
        %7080 = vrot.lane.b32.xlu0 %v7049, 64
        %v7081 = vpop.permute.xlu0 %7080
        %v7083 = vsel %vm3448, %v5658, %v5915
        %v7086 = vsel %vm3448, %v5659, %v5917
        %v7089 = vsel %vm3448, %v5660, %v5919
        %v7092 = vsel %vm3448, %v5661, %v5921
        %v7095 = vsel %vm3448, %v5662, %v5923
        %v7098 = vsel %vm3448, %v5663, %v5925
        %v7101 = vsel %vm3448, %v5664, %v5927
        %v7104 = vsel %vm3448, %v5665, %v5929
        %v7107 = vsel %vm3448, %v5666, %v5931
        %v7110 = vsel %vm3448, %v5667, %v5933
        %v7113 = vsel %vm3448, %v5668, %v5935
        %v7116 = vsel %vm3448, %v5669, %v5937
        %v7119 = vsel %vm3448, %v5670, %v5939
        %v7122 = vsel %vm3448, %v5671, %v5941
        %v7125 = vsel %vm3448, %v5672, %v5943
        %v7128 = vsel %vm3448, %v5673, %v5945
        %v7132 = vsel %vm3448, %v5996, %v6123
        %v7136 = vsel %vm3448, %v5999, %v6125
        %v7140 = vsel %vm3448, %v6002, %v6127
        %v7144 = vsel %vm3448, %v6005, %v6129
        %v7148 = vsel %vm3448, %v6008, %v6131
        %v7152 = vsel %vm3448, %v6011, %v6133
        %v7156 = vsel %vm3448, %v6014, %v6135
        %v7160 = vsel %vm3448, %v6017, %v6137
        %v7164 = vsel %vm3448, %v6020, %v6139
        %v7168 = vsel %vm3448, %v6023, %v6141
        %v7172 = vsel %vm3448, %v6026, %v6143
        %v7176 = vsel %vm3448, %v6029, %v6145
        %v7180 = vsel %vm3448, %v6032, %v6147
        %v7184 = vsel %vm3448, %v6035, %v6149
        %v7188 = vsel %vm3448, %v6038, %v6151
        %v7192 = vsel %vm3448, %v6041, %v6153
        %v7196 = vsel %vm3448, %v6213, %v6491
        %v7200 = vsel %vm3448, %v6225, %v6493
        %v7204 = vsel %vm3448, %v6237, %v6495
        %v7208 = vsel %vm3448, %v6249, %v6497
        %v7212 = vsel %vm3448, %v6261, %v6499
        %v7216 = vsel %vm3448, %v6273, %v6501
        %v7220 = vsel %vm3448, %v6285, %v6503
        %v7224 = vsel %vm3448, %v6297, %v6505
        %v7228 = vsel %vm3448, %v6309, %v6507
        %v7232 = vsel %vm3448, %v6321, %v6509
        %v7236 = vsel %vm3448, %v6333, %v6511
        %v7240 = vsel %vm3448, %v6345, %v6513
        %v7244 = vsel %vm3448, %v6357, %v6515
        %v7248 = vsel %vm3448, %v6369, %v6517
        %v7252 = vsel %vm3448, %v6381, %v6519
        %v7256 = vsel %vm3448, %v6393, %v6521
        %v7259 = vsel %vm3448, %v6586, %v6843
        %v7262 = vsel %vm3448, %v6587, %v6845
        %v7265 = vsel %vm3448, %v6588, %v6847
        %v7268 = vsel %vm3448, %v6589, %v6849
        %v7271 = vsel %vm3448, %v6590, %v6851
        %v7274 = vsel %vm3448, %v6591, %v6853
        %v7277 = vsel %vm3448, %v6592, %v6855
        %v7280 = vsel %vm3448, %v6593, %v6857
        %v7283 = vsel %vm3448, %v6594, %v6859
        %v7286 = vsel %vm3448, %v6595, %v6861
        %v7289 = vsel %vm3448, %v6596, %v6863
        %v7292 = vsel %vm3448, %v6597, %v6865
        %v7295 = vsel %vm3448, %v6598, %v6867
        %v7298 = vsel %vm3448, %v6599, %v6869
        %v7301 = vsel %vm3448, %v6600, %v6871
        %v7304 = vsel %vm3448, %v6601, %v6873
        %v7308 = vsel %vm3448, %v6924, %v7051
        %v7311 = vsel %vm3448, %v6927, %v7053
        %v7314 = vsel %vm3448, %v6930, %v7055
        %v7317 = vsel %vm3448, %v6933, %v7057
        %v7320 = vsel %vm3448, %v6936, %v7059
        %v7323 = vsel %vm3448, %v6939, %v7061
        %v7326 = vsel %vm3448, %v6942, %v7063
        %v7329 = vsel %vm3448, %v6945, %v7065
        %v7332 = vsel %vm3448, %v6948, %v7067
        %v7335 = vsel %vm3448, %v6951, %v7069
        %v7338 = vsel %vm3448, %v6954, %v7071
        %v7341 = vsel %vm3448, %v6957, %v7073
        %v7344 = vsel %vm3448, %v6960, %v7075
        %v7347 = vsel %vm3448, %v6963, %v7077
        %v7350 = vsel %vm3448, %v6966, %v7079
        %v7353 = vsel %vm3448, %v6969, %v7081
        %v7354 = vld [vmem:[%s9] sm:$0xf]
        %v7355 = vld [vmem:[%s9 + $0x4] sm:$0xf]
        %v7356 = vld [vmem:[%s9 + $0x8] sm:$0xf]
        %v7357 = vld [vmem:[%s9 + $0xc] sm:$0xf]
        %v7358 = vld [vmem:[%s9 + $0x10] sm:$0xf]
        %v7359 = vld [vmem:[%s9 + $0x14] sm:$0xf]
        %v7360 = vld [vmem:[%s9 + $0x18] sm:$0xf]
        %v7361 = vld [vmem:[%s9 + $0x1c] sm:$0xf]
        %v7362 = vld [vmem:[%s9 + $0x20] sm:$0xf]
        %v7363 = vld [vmem:[%s9 + $0x24] sm:$0xf]
        %v7364 = vld [vmem:[%s9 + $0x28] sm:$0xf]
        %v7365 = vld [vmem:[%s9 + $0x2c] sm:$0xf]
        %v7366 = vld [vmem:[%s9 + $0x30] sm:$0xf]
        %v7367 = vld [vmem:[%s9 + $0x34] sm:$0xf]
        %v7368 = vld [vmem:[%s9 + $0x38] sm:$0xf]
        %v7369 = vld [vmem:[%s9 + $0x3c] sm:$0xf]
        %v7370 = vld [vmem:[%s9 + $0x40] sm:$0xf]
        %v7371 = vld [vmem:[%s9 + $0x44] sm:$0xf]
        %v7372 = vld [vmem:[%s9 + $0x48] sm:$0xf]
        %v7373 = vld [vmem:[%s9 + $0x4c] sm:$0xf]
        %v7374 = vld [vmem:[%s9 + $0x50] sm:$0xf]
        %v7375 = vld [vmem:[%s9 + $0x54] sm:$0xf]
        %v7376 = vld [vmem:[%s9 + $0x58] sm:$0xf]
        %v7377 = vld [vmem:[%s9 + $0x5c] sm:$0xf]
        %v7378 = vld [vmem:[%s9 + $0x60] sm:$0xf]
        %v7379 = vld [vmem:[%s9 + $0x64] sm:$0xf]
        %v7380 = vld [vmem:[%s9 + $0x68] sm:$0xf]
        %v7381 = vld [vmem:[%s9 + $0x6c] sm:$0xf]
        %v7382 = vld [vmem:[%s9 + $0x70] sm:$0xf]
        %v7383 = vld [vmem:[%s9 + $0x74] sm:$0xf]
        %v7384 = vld [vmem:[%s9 + $0x78] sm:$0xf]
        %v7385 = vld [vmem:[%s9 + $0x7c] sm:$0xf]
        %v7386 = vld [vmem:[%s9 + $0x80] sm:$0xf]
        %v7387 = vld [vmem:[%s9 + $0x84] sm:$0xf]
        %v7388 = vld [vmem:[%s9 + $0x88] sm:$0xf]
        %v7389 = vld [vmem:[%s9 + $0x8c] sm:$0xf]
        %v7390 = vld [vmem:[%s9 + $0x90] sm:$0xf]
        %v7391 = vld [vmem:[%s9 + $0x94] sm:$0xf]
        %v7392 = vld [vmem:[%s9 + $0x98] sm:$0xf]
        %v7393 = vld [vmem:[%s9 + $0x9c] sm:$0xf]
        %v7394 = vld [vmem:[%s9 + $0xa0] sm:$0xf]
        %v7395 = vld [vmem:[%s9 + $0xa4] sm:$0xf]
        %v7396 = vld [vmem:[%s9 + $0xa8] sm:$0xf]
        %v7397 = vld [vmem:[%s9 + $0xac] sm:$0xf]
        %v7398 = vld [vmem:[%s9 + $0xb0] sm:$0xf]
        %v7399 = vld [vmem:[%s9 + $0xb4] sm:$0xf]
        %v7400 = vld [vmem:[%s9 + $0xb8] sm:$0xf]
        %v7401 = vld [vmem:[%s9 + $0xbc] sm:$0xf]
        %v7402 = vld [vmem:[%s9 + $0xc0] sm:$0xf]
        %v7403 = vld [vmem:[%s9 + $0xc4] sm:$0xf]
        %v7404 = vld [vmem:[%s9 + $0xc8] sm:$0xf]
        %v7405 = vld [vmem:[%s9 + $0xcc] sm:$0xf]
        %v7406 = vld [vmem:[%s9 + $0xd0] sm:$0xf]
        %v7407 = vld [vmem:[%s9 + $0xd4] sm:$0xf]
        %v7408 = vld [vmem:[%s9 + $0xd8] sm:$0xf]
        %v7409 = vld [vmem:[%s9 + $0xdc] sm:$0xf]
        %v7410 = vld [vmem:[%s9 + $0xe0] sm:$0xf]
        %v7411 = vld [vmem:[%s9 + $0xe4] sm:$0xf]
        %v7412 = vld [vmem:[%s9 + $0xe8] sm:$0xf]
        %v7413 = vld [vmem:[%s9 + $0xec] sm:$0xf]
        %v7414 = vld [vmem:[%s9 + $0xf0] sm:$0xf]
        %v7415 = vld [vmem:[%s9 + $0xf4] sm:$0xf]
        %v7416 = vld [vmem:[%s9 + $0xf8] sm:$0xf]
        %v7417 = vld [vmem:[%s9 + $0xfc] sm:$0xf]
        %v7418 = vld [vmem:[%s9 + $0x100] sm:$0xf]
        %v7419 = vld [vmem:[%s9 + $0x104] sm:$0xf]
        %v7420 = vld [vmem:[%s9 + $0x108] sm:$0xf]
        %v7421 = vld [vmem:[%s9 + $0x10c] sm:$0xf]
        %v7422 = vld [vmem:[%s9 + $0x110] sm:$0xf]
        %v7423 = vld [vmem:[%s9 + $0x114] sm:$0xf]
        %v7424 = vld [vmem:[%s9 + $0x118] sm:$0xf]
        %v7425 = vld [vmem:[%s9 + $0x11c] sm:$0xf]
        %v7426 = vld [vmem:[%s9 + $0x120] sm:$0xf]
        %v7427 = vld [vmem:[%s9 + $0x124] sm:$0xf]
        %v7428 = vld [vmem:[%s9 + $0x128] sm:$0xf]
        %v7429 = vld [vmem:[%s9 + $0x12c] sm:$0xf]
        %v7506 = vunpack.c.l.b16 %v7354
        %v7507 = vunpack.c.l.b16 %v7355
        %v7508 = vunpack.c.l.b16 %v7356
        %v7509 = vunpack.c.l.b16 %v7357
        %v7510 = vunpack.c.l.b16 %v7358
        %v7511 = vunpack.c.l.b16 %v7359
        %v7512 = vunpack.c.l.b16 %v7360
        %v7513 = vunpack.c.l.b16 %v7361
        %v7514 = vunpack.c.l.b16 %v7362
        %v7515 = vunpack.c.l.b16 %v7363
        %v7516 = vunpack.c.l.b16 %v7364
        %v7517 = vunpack.c.l.b16 %v7365
        %v7518 = vunpack.c.l.b16 %v7366
        %v7519 = vunpack.c.l.b16 %v7367
        %v7520 = vunpack.c.l.b16 %v7368
        %v7521 = vunpack.c.l.b16 %v7369
        %v7522 = vunpack.c.l.b16 %v7370
        %v7523 = vunpack.c.l.b16 %v7371
        %v7524 = vunpack.c.l.b16 %v7372
        %v7525 = vunpack.c.l.b16 %v7373
        %v7526 = vunpack.c.l.b16 %v7374
        %v7527 = vunpack.c.l.b16 %v7375
        %v7528 = vunpack.c.l.b16 %v7376
        %v7529 = vunpack.c.l.b16 %v7377
        %v7530 = vunpack.c.l.b16 %v7378
        %v7531 = vunpack.c.l.b16 %v7379
        %v7532 = vunpack.c.l.b16 %v7380
        %v7533 = vunpack.c.l.b16 %v7381
        %v7534 = vunpack.c.l.b16 %v7382
        %v7535 = vunpack.c.l.b16 %v7383
        %v7536 = vunpack.c.l.b16 %v7384
        %v7537 = vunpack.c.l.b16 %v7385
        %v7538 = vunpack.c.l.b16 %v7386
        %v7539 = vunpack.c.l.b16 %v7387
        %v7540 = vunpack.c.l.b16 %v7388
        %v7541 = vunpack.c.l.b16 %v7389
        %v7542 = vunpack.c.l.b16 %v7390
        %v7543 = vunpack.c.l.b16 %v7391
        %v7544 = vunpack.c.l.b16 %v7392
        %v7545 = vunpack.c.l.b16 %v7393
        %v7546 = vunpack.c.l.b16 %v7394
        %v7547 = vunpack.c.l.b16 %v7395
        %v7548 = vunpack.c.l.b16 %v7396
        %v7549 = vunpack.c.l.b16 %v7397
        %v7550 = vunpack.c.l.b16 %v7398
        %v7551 = vunpack.c.l.b16 %v7399
        %v7552 = vunpack.c.l.b16 %v7400
        %v7553 = vunpack.c.l.b16 %v7401
        %v7554 = vunpack.c.l.b16 %v7402
        %v7555 = vunpack.c.l.b16 %v7403
        %v7556 = vunpack.c.l.b16 %v7404
        %v7557 = vunpack.c.l.b16 %v7405
        %v7558 = vunpack.c.l.b16 %v7406
        %v7559 = vunpack.c.l.b16 %v7407
        %v7560 = vunpack.c.l.b16 %v7408
        %v7561 = vunpack.c.l.b16 %v7409
        %v7562 = vunpack.c.l.b16 %v7410
        %v7563 = vunpack.c.l.b16 %v7411
        %v7564 = vunpack.c.l.b16 %v7412
        %v7565 = vunpack.c.l.b16 %v7413
        %v7566 = vunpack.c.l.b16 %v7414
        %v7567 = vunpack.c.l.b16 %v7415
        %v7568 = vunpack.c.l.b16 %v7416
        %v7569 = vunpack.c.l.b16 %v7417
        %v7570 = vunpack.c.l.b16 %v7418
        %v7571 = vunpack.c.l.b16 %v7419
        %v7572 = vunpack.c.l.b16 %v7420
        %v7573 = vunpack.c.l.b16 %v7421
        %v7574 = vunpack.c.l.b16 %v7422
        %v7575 = vunpack.c.l.b16 %v7423
        %v7576 = vunpack.c.l.b16 %v7424
        %v7577 = vunpack.c.l.b16 %v7425
        %v7578 = vunpack.c.l.b16 %v7426
        %v7579 = vunpack.c.l.b16 %v7427
        %v7580 = vunpack.c.l.b16 %v7428
        %v7581 = vunpack.c.l.b16 %v7429
        %v7582 = vpack.c.b16 %v7507, %v7506
        %v7583 = vpack.c.b16 %v7509, %v7508
        %v7584 = vpack.c.b16 %v7511, %v7510
        %v7585 = vpack.c.b16 %v7513, %v7512
        %v7586 = vpack.c.b16 %v7515, %v7514
        %v7587 = vpack.c.b16 %v7517, %v7516
        %v7588 = vpack.c.b16 %v7519, %v7518
        %v7589 = vpack.c.b16 %v7521, %v7520
        %v7590 = vpack.c.b16 %v7523, %v7522
        %v7591 = vpack.c.b16 %v7525, %v7524
        %v7592 = vpack.c.b16 %v7527, %v7526
        %v7593 = vpack.c.b16 %v7529, %v7528
        %v7594 = vpack.c.b16 %v7531, %v7530
        %v7595 = vpack.c.b16 %v7533, %v7532
        %v7596 = vpack.c.b16 %v7535, %v7534
        %v7597 = vpack.c.b16 %v7537, %v7536
        %v7598 = vpack.c.b16 %v7539, %v7538
        %v7599 = vpack.c.b16 %v7541, %v7540
        %v7600 = vpack.c.b16 %v7543, %v7542
        %v7601 = vpack.c.b16 %v7545, %v7544
        %v7602 = vpack.c.b16 %v7547, %v7546
        %v7603 = vpack.c.b16 %v7549, %v7548
        %v7604 = vpack.c.b16 %v7551, %v7550
        %v7605 = vpack.c.b16 %v7553, %v7552
        %v7606 = vpack.c.b16 %v7555, %v7554
        %v7607 = vpack.c.b16 %v7557, %v7556
        %v7608 = vpack.c.b16 %v7559, %v7558
        %v7609 = vpack.c.b16 %v7561, %v7560
        %v7610 = vpack.c.b16 %v7563, %v7562
        %v7611 = vpack.c.b16 %v7565, %v7564
        %v7612 = vpack.c.b16 %v7567, %v7566
        %v7613 = vpack.c.b16 %v7569, %v7568
        %v7614 = vpack.c.b16 %v7571, %v7570
        %v7615 = vpack.c.b16 %v7573, %v7572
        %v7616 = vpack.c.b16 %v7575, %v7574
        %v7617 = vpack.c.b16 %v7577, %v7576
        %v7618 = vpack.c.b16 %v7579, %v7578
        %v7619 = vpack.c.b16 %v7581, %v7580
        %v7658 = vsel %vm3481, %v7308, 0
        %v7660 = vsel %vm3481, %v7311, 0
        %v7662 = vsel %vm3481, %v7314, 0
        %v7664 = vsel %vm3481, %v7317, 0
        %v7666 = vsel %vm3481, %v7320, 0
        %v7668 = vsel %vm3481, %v7323, 0
        %v7670 = vsel %vm3481, %v7326, 0
        %v7672 = vsel %vm3481, %v7329, 0
        %v7674 = vsel %vm3481, %v7332, 0
        %v7676 = vsel %vm3481, %v7335, 0
        %v7678 = vsel %vm3481, %v7338, 0
        %v7680 = vsel %vm3481, %v7341, 0
        %v7682 = vsel %vm3481, %v7344, 0
        %v7684 = vsel %vm3481, %v7347, 0
        %v7686 = vsel %vm3481, %v7350, 0
        %v7688 = vsel %vm3481, %v7353, 0
        %7690 = vmatprep.subr.bf16.mxu0 0
        %7691 = vmatpush1.bf16.msra.mxu0 %v7589
        %7692 = vmatprep.subr.bf16.mxu0 0
        %7693 = vmatpush1.bf16.msra.mxu0 %v7588
        %7694 = vmatprep.subr.bf16.mxu0 0
        %7695 = vmatpush1.bf16.msra.mxu0 %v7587
        %7696 = vmatprep.subr.bf16.mxu0 0
        %7697 = vmatpush1.bf16.msra.mxu0 %v7586
        %7698 = vmatprep.subr.bf16.mxu0 0
        %7699 = vmatpush1.bf16.msra.mxu0 %v7585
        %7700 = vmatprep.subr.bf16.mxu0 0
        %7701 = vmatpush1.bf16.msra.mxu0 %v7584
        %7702 = vmatprep.subr.bf16.mxu0 0
        %7703 = vmatpush1.bf16.msra.mxu0 %v7583
        %7704 = vmatprep.subr.bf16.mxu0 0
        %7705 = vmatpush1.bf16.msra.mxu0 %v7582
        %7706 = vmatprep.subr.bf16.mxu0 0
        %7707 = vmatpush2.bf16.msra.mxu0 %v7597
        %7708 = vmatprep.subr.bf16.mxu0 0
        %7709 = vmatpush2.bf16.msra.mxu0 %v7596
        %7710 = vmatprep.subr.bf16.mxu0 0
        %7711 = vmatpush2.bf16.msra.mxu0 %v7595
        %7712 = vmatprep.subr.bf16.mxu0 0
        %7713 = vmatpush2.bf16.msra.mxu0 %v7594
        %7714 = vmatprep.subr.bf16.mxu0 0
        %7715 = vmatpush2.bf16.msra.mxu0 %v7593
        %7716 = vmatprep.subr.bf16.mxu0 0
        %7717 = vmatpush2.bf16.msra.mxu0 %v7592
        %7718 = vmatprep.subr.bf16.mxu0 0
        %7719 = vmatpush2.bf16.msra.mxu0 %v7591
        %7720 = vmatprep.subr.bf16.mxu0 0
        %7721 = vmatpush2.bf16.msra.mxu0 %v7590
        %7722 = vmatprep.mubr.bf16.mxu0 %v7132
        %7723 = vmatmul.mubr.bf16.gmra.mxu0 %v7083
        %v7724 = vpop.f32.mrf.mxu0
        %v7725 = vadd.f32 0.0, %v7724
        %v7726 = vpop.f32.mrf.mxu0
        %v7727 = vpop.f32.mrf.mxu0
        %v7728 = vadd.f32 0.0, %v7727
        %v7729 = vpop.f32.mrf.mxu0
        %7730 = vmatprep.mubr.bf16.mxu0 %v7136
        %7731 = vmatmul.mubr.bf16.gmra.mxu0 %v7086
        %v7732 = vpop.f32.mrf.mxu0
        %v7733 = vadd.f32 0.0, %v7732
        %v7734 = vpop.f32.mrf.mxu0
        %v7735 = vpop.f32.mrf.mxu0
        %v7736 = vadd.f32 0.0, %v7735
        %v7737 = vpop.f32.mrf.mxu0
        %7738 = vmatprep.mubr.bf16.mxu0 %v7140
        %7739 = vmatmul.mubr.bf16.gmra.mxu0 %v7089
        %v7740 = vpop.f32.mrf.mxu0
        %v7741 = vadd.f32 0.0, %v7740
        %v7742 = vpop.f32.mrf.mxu0
        %v7743 = vpop.f32.mrf.mxu0
        %v7744 = vadd.f32 0.0, %v7743
        %v7745 = vpop.f32.mrf.mxu0
        %7746 = vmatprep.mubr.bf16.mxu0 %v7144
        %7747 = vmatmul.mubr.bf16.gmra.mxu0 %v7092
        %v7748 = vpop.f32.mrf.mxu0
        %v7749 = vadd.f32 0.0, %v7748
        %v7750 = vpop.f32.mrf.mxu0
        %v7751 = vpop.f32.mrf.mxu0
        %v7752 = vadd.f32 0.0, %v7751
        %v7753 = vpop.f32.mrf.mxu0
        %7754 = vmatprep.mubr.bf16.mxu0 %v7148
        %7755 = vmatmul.mubr.bf16.gmra.mxu0 %v7095
        %v7756 = vpop.f32.mrf.mxu0
        %v7757 = vadd.f32 0.0, %v7756
        %v7758 = vpop.f32.mrf.mxu0
        %v7759 = vpop.f32.mrf.mxu0
        %v7760 = vadd.f32 0.0, %v7759
        %v7761 = vpop.f32.mrf.mxu0
        %7762 = vmatprep.mubr.bf16.mxu0 %v7152
        %7763 = vmatmul.mubr.bf16.gmra.mxu0 %v7098
        %v7764 = vpop.f32.mrf.mxu0
        %v7765 = vadd.f32 0.0, %v7764
        %v7766 = vpop.f32.mrf.mxu0
        %v7767 = vpop.f32.mrf.mxu0
        %v7768 = vadd.f32 0.0, %v7767
        %v7769 = vpop.f32.mrf.mxu0
        %7770 = vmatprep.mubr.bf16.mxu0 %v7156
        %7771 = vmatmul.mubr.bf16.gmra.mxu0 %v7101
        %v7772 = vpop.f32.mrf.mxu0
        %v7773 = vadd.f32 0.0, %v7772
        %v7774 = vpop.f32.mrf.mxu0
        %v7775 = vpop.f32.mrf.mxu0
        %v7776 = vadd.f32 0.0, %v7775
        %v7777 = vpop.f32.mrf.mxu0
        %7778 = vmatprep.mubr.bf16.mxu0 %v7160
        %7779 = vmatmul.mubr.bf16.gmra.mxu0 %v7104
        %v7780 = vpop.f32.mrf.mxu0
        %v7781 = vadd.f32 0.0, %v7780
        %v7782 = vpop.f32.mrf.mxu0
        %v7783 = vpop.f32.mrf.mxu0
        %v7784 = vadd.f32 0.0, %v7783
        %v7785 = vpop.f32.mrf.mxu0
        %7786 = vmatprep.mubr.bf16.mxu0 %v7164
        %7787 = vmatmul.mubr.bf16.gmra.mxu0 %v7107
        %v7788 = vpop.f32.mrf.mxu0
        %v7789 = vadd.f32 0.0, %v7788
        %v7790 = vpop.f32.mrf.mxu0
        %v7791 = vpop.f32.mrf.mxu0
        %v7792 = vadd.f32 0.0, %v7791
        %v7793 = vpop.f32.mrf.mxu0
        %7794 = vmatprep.mubr.bf16.mxu0 %v7168
        %7795 = vmatmul.mubr.bf16.gmra.mxu0 %v7110
        %v7796 = vpop.f32.mrf.mxu0
        %v7797 = vadd.f32 0.0, %v7796
        %v7798 = vpop.f32.mrf.mxu0
        %v7799 = vpop.f32.mrf.mxu0
        %v7800 = vadd.f32 0.0, %v7799
        %v7801 = vpop.f32.mrf.mxu0
        %7802 = vmatprep.mubr.bf16.mxu0 %v7172
        %7803 = vmatmul.mubr.bf16.gmra.mxu0 %v7113
        %v7804 = vpop.f32.mrf.mxu0
        %v7805 = vadd.f32 0.0, %v7804
        %v7806 = vpop.f32.mrf.mxu0
        %v7807 = vpop.f32.mrf.mxu0
        %v7808 = vadd.f32 0.0, %v7807
        %v7809 = vpop.f32.mrf.mxu0
        %7810 = vmatprep.mubr.bf16.mxu0 %v7176
        %7811 = vmatmul.mubr.bf16.gmra.mxu0 %v7116
        %v7812 = vpop.f32.mrf.mxu0
        %v7813 = vadd.f32 0.0, %v7812
        %v7814 = vpop.f32.mrf.mxu0
        %v7815 = vpop.f32.mrf.mxu0
        %v7816 = vadd.f32 0.0, %v7815
        %v7817 = vpop.f32.mrf.mxu0
        %7818 = vmatprep.mubr.bf16.mxu0 %v7180
        %7819 = vmatmul.mubr.bf16.gmra.mxu0 %v7119
        %v7820 = vpop.f32.mrf.mxu0
        %v7821 = vadd.f32 0.0, %v7820
        %v7822 = vpop.f32.mrf.mxu0
        %v7823 = vpop.f32.mrf.mxu0
        %v7824 = vadd.f32 0.0, %v7823
        %v7825 = vpop.f32.mrf.mxu0
        %7826 = vmatprep.mubr.bf16.mxu0 %v7184
        %7827 = vmatmul.mubr.bf16.gmra.mxu0 %v7122
        %v7828 = vpop.f32.mrf.mxu0
        %v7829 = vadd.f32 0.0, %v7828
        %v7830 = vpop.f32.mrf.mxu0
        %v7831 = vpop.f32.mrf.mxu0
        %v7832 = vadd.f32 0.0, %v7831
        %v7833 = vpop.f32.mrf.mxu0
        %7834 = vmatprep.mubr.bf16.mxu0 %v7188
        %7835 = vmatmul.mubr.bf16.gmra.mxu0 %v7125
        %v7836 = vpop.f32.mrf.mxu0
        %v7837 = vadd.f32 0.0, %v7836
        %v7838 = vpop.f32.mrf.mxu0
        %v7839 = vpop.f32.mrf.mxu0
        %v7840 = vadd.f32 0.0, %v7839
        %v7841 = vpop.f32.mrf.mxu0
        %7842 = vmatprep.mubr.bf16.mxu0 %v7192
        %7843 = vmatmul.mubr.bf16.gmra.mxu0 %v7128
        %v7844 = vpop.f32.mrf.mxu0
        %v7845 = vadd.f32 0.0, %v7844
        %v7846 = vpop.f32.mrf.mxu0
        %v7847 = vpop.f32.mrf.mxu0
        %v7848 = vadd.f32 0.0, %v7847
        %v7849 = vpop.f32.mrf.mxu0
        %7850 = vdwg.mxu0
        %7851 = vmatprep.subr.bf16.mxu0 0
        %7852 = vmatpush1.bf16.msra.mxu0 %v7605
        %7853 = vmatprep.subr.bf16.mxu0 0
        %7854 = vmatpush1.bf16.msra.mxu0 %v7604
        %7855 = vmatprep.subr.bf16.mxu0 0
        %7856 = vmatpush1.bf16.msra.mxu0 %v7603
        %7857 = vmatprep.subr.bf16.mxu0 0
        %7858 = vmatpush1.bf16.msra.mxu0 %v7602
        %7859 = vmatprep.subr.bf16.mxu0 0
        %7860 = vmatpush1.bf16.msra.mxu0 %v7601
        %7861 = vmatprep.subr.bf16.mxu0 0
        %7862 = vmatpush1.bf16.msra.mxu0 %v7600
        %7863 = vmatprep.subr.bf16.mxu0 0
        %7864 = vmatpush1.bf16.msra.mxu0 %v7599
        %7865 = vmatprep.subr.bf16.mxu0 0
        %7866 = vmatpush1.bf16.msra.mxu0 %v7598
        %7867 = vmatprep.subr.bf16.mxu0 0
        %7868 = vmatpush2.bf16.msra.mxu0 %v7613
        %7869 = vmatprep.subr.bf16.mxu0 0
        %7870 = vmatpush2.bf16.msra.mxu0 %v7612
        %7871 = vmatprep.subr.bf16.mxu0 0
        %7872 = vmatpush2.bf16.msra.mxu0 %v7611
        %7873 = vmatprep.subr.bf16.mxu0 0
        %7874 = vmatpush2.bf16.msra.mxu0 %v7610
        %7875 = vmatprep.subr.bf16.mxu0 0
        %7876 = vmatpush2.bf16.msra.mxu0 %v7609
        %7877 = vmatprep.subr.bf16.mxu0 0
        %7878 = vmatpush2.bf16.msra.mxu0 %v7608
        %7879 = vmatprep.subr.bf16.mxu0 0
        %7880 = vmatpush2.bf16.msra.mxu0 %v7607
        %7881 = vmatprep.subr.bf16.mxu0 0
        %7882 = vmatpush2.bf16.msra.mxu0 %v7606
        %7883 = vmatprep.mubr.bf16.mxu0 %v7259
        %7884 = vmatmul.mubr.bf16.gmra.mxu0 %v7196
        %v7885 = vpop.f32.mrf.mxu0
        %v7886 = vadd.f32 %v7725, %v7885
        %v7887 = vpop.f32.mrf.mxu0
        %v7888 = vpop.f32.mrf.mxu0
        %v7889 = vadd.f32 %v7728, %v7888
        %v7890 = vpop.f32.mrf.mxu0
        %7891 = vmatprep.mubr.bf16.mxu0 %v7262
        %7892 = vmatmul.mubr.bf16.gmra.mxu0 %v7200
        %v7893 = vpop.f32.mrf.mxu0
        %v7894 = vadd.f32 %v7733, %v7893
        %v7895 = vpop.f32.mrf.mxu0
        %v7896 = vpop.f32.mrf.mxu0
        %v7897 = vadd.f32 %v7736, %v7896
        %v7898 = vpop.f32.mrf.mxu0
        %7899 = vmatprep.mubr.bf16.mxu0 %v7265
        %7900 = vmatmul.mubr.bf16.gmra.mxu0 %v7204
        %v7901 = vpop.f32.mrf.mxu0
        %v7902 = vadd.f32 %v7741, %v7901
        %v7903 = vpop.f32.mrf.mxu0
        %v7904 = vpop.f32.mrf.mxu0
        %v7905 = vadd.f32 %v7744, %v7904
        %v7906 = vpop.f32.mrf.mxu0
        %7907 = vmatprep.mubr.bf16.mxu0 %v7268
        %7908 = vmatmul.mubr.bf16.gmra.mxu0 %v7208
        %v7909 = vpop.f32.mrf.mxu0
        %v7910 = vadd.f32 %v7749, %v7909
        %v7911 = vpop.f32.mrf.mxu0
        %v7912 = vpop.f32.mrf.mxu0
        %v7913 = vadd.f32 %v7752, %v7912
        %v7914 = vpop.f32.mrf.mxu0
        %7915 = vmatprep.mubr.bf16.mxu0 %v7271
        %7916 = vmatmul.mubr.bf16.gmra.mxu0 %v7212
        %v7917 = vpop.f32.mrf.mxu0
        %v7918 = vadd.f32 %v7757, %v7917
        %v7919 = vpop.f32.mrf.mxu0
        %v7920 = vpop.f32.mrf.mxu0
        %v7921 = vadd.f32 %v7760, %v7920
        %v7922 = vpop.f32.mrf.mxu0
        %7923 = vmatprep.mubr.bf16.mxu0 %v7274
        %7924 = vmatmul.mubr.bf16.gmra.mxu0 %v7216
        %v7925 = vpop.f32.mrf.mxu0
        %v7926 = vadd.f32 %v7765, %v7925
        %v7927 = vpop.f32.mrf.mxu0
        %v7928 = vpop.f32.mrf.mxu0
        %v7929 = vadd.f32 %v7768, %v7928
        %v7930 = vpop.f32.mrf.mxu0
        %7931 = vmatprep.mubr.bf16.mxu0 %v7277
        %7932 = vmatmul.mubr.bf16.gmra.mxu0 %v7220
        %v7933 = vpop.f32.mrf.mxu0
        %v7934 = vadd.f32 %v7773, %v7933
        %v7935 = vpop.f32.mrf.mxu0
        %v7936 = vpop.f32.mrf.mxu0
        %v7937 = vadd.f32 %v7776, %v7936
        %v7938 = vpop.f32.mrf.mxu0
        %7939 = vmatprep.mubr.bf16.mxu0 %v7280
        %7940 = vmatmul.mubr.bf16.gmra.mxu0 %v7224
        %v7941 = vpop.f32.mrf.mxu0
        %v7942 = vadd.f32 %v7781, %v7941
        %v7943 = vpop.f32.mrf.mxu0
        %v7944 = vpop.f32.mrf.mxu0
        %v7945 = vadd.f32 %v7784, %v7944
        %v7946 = vpop.f32.mrf.mxu0
        %7947 = vmatprep.mubr.bf16.mxu0 %v7283
        %7948 = vmatmul.mubr.bf16.gmra.mxu0 %v7228
        %v7949 = vpop.f32.mrf.mxu0
        %v7950 = vadd.f32 %v7789, %v7949
        %v7951 = vpop.f32.mrf.mxu0
        %v7952 = vpop.f32.mrf.mxu0
        %v7953 = vadd.f32 %v7792, %v7952
        %v7954 = vpop.f32.mrf.mxu0
        %7955 = vmatprep.mubr.bf16.mxu0 %v7286
        %7956 = vmatmul.mubr.bf16.gmra.mxu0 %v7232
        %v7957 = vpop.f32.mrf.mxu0
        %v7958 = vadd.f32 %v7797, %v7957
        %v7959 = vpop.f32.mrf.mxu0
        %v7960 = vpop.f32.mrf.mxu0
        %v7961 = vadd.f32 %v7800, %v7960
        %v7962 = vpop.f32.mrf.mxu0
        %7963 = vmatprep.mubr.bf16.mxu0 %v7289
        %7964 = vmatmul.mubr.bf16.gmra.mxu0 %v7236
        %v7965 = vpop.f32.mrf.mxu0
        %v7966 = vadd.f32 %v7805, %v7965
        %v7967 = vpop.f32.mrf.mxu0
        %v7968 = vpop.f32.mrf.mxu0
        %v7969 = vadd.f32 %v7808, %v7968
        %v7970 = vpop.f32.mrf.mxu0
        %7971 = vmatprep.mubr.bf16.mxu0 %v7292
        %7972 = vmatmul.mubr.bf16.gmra.mxu0 %v7240
        %v7973 = vpop.f32.mrf.mxu0
        %v7974 = vadd.f32 %v7813, %v7973
        %v7975 = vpop.f32.mrf.mxu0
        %v7976 = vpop.f32.mrf.mxu0
        %v7977 = vadd.f32 %v7816, %v7976
        %v7978 = vpop.f32.mrf.mxu0
        %7979 = vmatprep.mubr.bf16.mxu0 %v7295
        %7980 = vmatmul.mubr.bf16.gmra.mxu0 %v7244
        %v7981 = vpop.f32.mrf.mxu0
        %v7982 = vadd.f32 %v7821, %v7981
        %v7983 = vpop.f32.mrf.mxu0
        %v7984 = vpop.f32.mrf.mxu0
        %v7985 = vadd.f32 %v7824, %v7984
        %v7986 = vpop.f32.mrf.mxu0
        %7987 = vmatprep.mubr.bf16.mxu0 %v7298
        %7988 = vmatmul.mubr.bf16.gmra.mxu0 %v7248
        %v7989 = vpop.f32.mrf.mxu0
        %v7990 = vadd.f32 %v7829, %v7989
        %v7991 = vpop.f32.mrf.mxu0
        %v7992 = vpop.f32.mrf.mxu0
        %v7993 = vadd.f32 %v7832, %v7992
        %v7994 = vpop.f32.mrf.mxu0
        %7995 = vmatprep.mubr.bf16.mxu0 %v7301
        %7996 = vmatmul.mubr.bf16.gmra.mxu0 %v7252
        %v7997 = vpop.f32.mrf.mxu0
        %v7998 = vadd.f32 %v7837, %v7997
        %v7999 = vpop.f32.mrf.mxu0
        %v8000 = vpop.f32.mrf.mxu0
        %v8001 = vadd.f32 %v7840, %v8000
        %v8002 = vpop.f32.mrf.mxu0
        %8003 = vmatprep.mubr.bf16.mxu0 %v7304
        %8004 = vmatmul.mubr.bf16.gmra.mxu0 %v7256
        %v8005 = vpop.f32.mrf.mxu0
        %v8006 = vadd.f32 %v7845, %v8005
        %v8007 = vpop.f32.mrf.mxu0
        %v8008 = vpop.f32.mrf.mxu0
        %v8009 = vadd.f32 %v7848, %v8008
        %v8010 = vpop.f32.mrf.mxu0
        %8011 = vdwg.mxu0
        %8012 = vmatprep.subr.bf16.mxu0 0
        %8013 = vmatpush1.bf16.msra.mxu0 0
        %8014 = vmatprep.subr.bf16.mxu0 0
        %8015 = vmatpush1.bf16.msra.mxu0 0
        %8016 = vmatprep.subr.bf16.mxu0 0
        %8017 = vmatpush1.bf16.msra.mxu0 %v7619
        %8018 = vmatprep.subr.bf16.mxu0 0
        %8019 = vmatpush1.bf16.msra.mxu0 %v7618
        %8020 = vmatprep.subr.bf16.mxu0 0
        %8021 = vmatpush1.bf16.msra.mxu0 %v7617
        %8022 = vmatprep.subr.bf16.mxu0 0
        %8023 = vmatpush1.bf16.msra.mxu0 %v7616
        %8024 = vmatprep.subr.bf16.mxu0 0
        %8025 = vmatpush1.bf16.msra.mxu0 %v7615
        %8026 = vmatprep.subr.bf16.mxu0 0
        %8027 = vmatpush1.bf16.msra.mxu0 %v7614
        %8028 = vmatprep.subr.bf16.mxu0 0
        %8029 = vmatpush2.bf16.msra.mxu0 0
        %8030 = vmatprep.subr.bf16.mxu0 0
        %8031 = vmatpush2.bf16.msra.mxu0 0
        %8032 = vmatprep.subr.bf16.mxu0 0
        %8033 = vmatpush2.bf16.msra.mxu0 0
        %8034 = vmatprep.subr.bf16.mxu0 0
        %8035 = vmatpush2.bf16.msra.mxu0 0
        %8036 = vmatprep.subr.bf16.mxu0 0
        %8037 = vmatpush2.bf16.msra.mxu0 0
        %8038 = vmatprep.subr.bf16.mxu0 0
        %8039 = vmatpush2.bf16.msra.mxu0 0
        %8040 = vmatprep.subr.bf16.mxu0 0
        %8041 = vmatpush2.bf16.msra.mxu0 0
        %8042 = vmatprep.subr.bf16.mxu0 0
        %8043 = vmatpush2.bf16.msra.mxu0 0
        %8044 = vmatprep.mubr.bf16.mxu0 0
        %8045 = vmatmul.mubr.bf16.gmra.mxu0 %v7658
        %v8046 = vpop.f32.mrf.mxu0
        %v8047 = vadd.f32 %v7886, %v8046
        %v8048 = vpop.f32.mrf.mxu0
        %v8049 = vpop.f32.mrf.mxu0
        %v8050 = vadd.f32 %v7889, %v8049
        %v8051 = vpop.f32.mrf.mxu0
        %8052 = vmatprep.mubr.bf16.mxu0 0
        %8053 = vmatmul.mubr.bf16.gmra.mxu0 %v7660
        %v8054 = vpop.f32.mrf.mxu0
        %v8055 = vadd.f32 %v7894, %v8054
        %v8056 = vpop.f32.mrf.mxu0
        %v8057 = vpop.f32.mrf.mxu0
        %v8058 = vadd.f32 %v7897, %v8057
        %v8059 = vpop.f32.mrf.mxu0
        %8060 = vmatprep.mubr.bf16.mxu0 0
        %8061 = vmatmul.mubr.bf16.gmra.mxu0 %v7662
        %v8062 = vpop.f32.mrf.mxu0
        %v8063 = vadd.f32 %v7902, %v8062
        %v8064 = vpop.f32.mrf.mxu0
        %v8065 = vpop.f32.mrf.mxu0
        %v8066 = vadd.f32 %v7905, %v8065
        %v8067 = vpop.f32.mrf.mxu0
        %8068 = vmatprep.mubr.bf16.mxu0 0
        %8069 = vmatmul.mubr.bf16.gmra.mxu0 %v7664
        %v8070 = vpop.f32.mrf.mxu0
        %v8071 = vadd.f32 %v7910, %v8070
        %v8072 = vpop.f32.mrf.mxu0
        %v8073 = vpop.f32.mrf.mxu0
        %v8074 = vadd.f32 %v7913, %v8073
        %v8075 = vpop.f32.mrf.mxu0
        %8076 = vmatprep.mubr.bf16.mxu0 0
        %8077 = vmatmul.mubr.bf16.gmra.mxu0 %v7666
        %v8078 = vpop.f32.mrf.mxu0
        %v8079 = vadd.f32 %v7918, %v8078
        %v8080 = vpop.f32.mrf.mxu0
        %v8081 = vpop.f32.mrf.mxu0
        %v8082 = vadd.f32 %v7921, %v8081
        %v8083 = vpop.f32.mrf.mxu0
        %8084 = vmatprep.mubr.bf16.mxu0 0
        %8085 = vmatmul.mubr.bf16.gmra.mxu0 %v7668
        %v8086 = vpop.f32.mrf.mxu0
        %v8087 = vadd.f32 %v7926, %v8086
        %v8088 = vpop.f32.mrf.mxu0
        %v8089 = vpop.f32.mrf.mxu0
        %v8090 = vadd.f32 %v7929, %v8089
        %v8091 = vpop.f32.mrf.mxu0
        %8092 = vmatprep.mubr.bf16.mxu0 0
        %8093 = vmatmul.mubr.bf16.gmra.mxu0 %v7670
        %v8094 = vpop.f32.mrf.mxu0
        %v8095 = vadd.f32 %v7934, %v8094
        %v8096 = vpop.f32.mrf.mxu0
        %v8097 = vpop.f32.mrf.mxu0
        %v8098 = vadd.f32 %v7937, %v8097
        %v8099 = vpop.f32.mrf.mxu0
        %8100 = vmatprep.mubr.bf16.mxu0 0
        %8101 = vmatmul.mubr.bf16.gmra.mxu0 %v7672
        %v8102 = vpop.f32.mrf.mxu0
        %v8103 = vadd.f32 %v7942, %v8102
        %v8104 = vpop.f32.mrf.mxu0
        %v8105 = vpop.f32.mrf.mxu0
        %v8106 = vadd.f32 %v7945, %v8105
        %v8107 = vpop.f32.mrf.mxu0
        %8108 = vmatprep.mubr.bf16.mxu0 0
        %8109 = vmatmul.mubr.bf16.gmra.mxu0 %v7674
        %v8110 = vpop.f32.mrf.mxu0
        %v8111 = vadd.f32 %v7950, %v8110
        %v8112 = vpop.f32.mrf.mxu0
        %v8113 = vpop.f32.mrf.mxu0
        %v8114 = vadd.f32 %v7953, %v8113
        %v8115 = vpop.f32.mrf.mxu0
        %8116 = vmatprep.mubr.bf16.mxu0 0
        %8117 = vmatmul.mubr.bf16.gmra.mxu0 %v7676
        %v8118 = vpop.f32.mrf.mxu0
        %v8119 = vadd.f32 %v7958, %v8118
        %v8120 = vpop.f32.mrf.mxu0
        %v8121 = vpop.f32.mrf.mxu0
        %v8122 = vadd.f32 %v7961, %v8121
        %v8123 = vpop.f32.mrf.mxu0
        %8124 = vmatprep.mubr.bf16.mxu0 0
        %8125 = vmatmul.mubr.bf16.gmra.mxu0 %v7678
        %v8126 = vpop.f32.mrf.mxu0
        %v8127 = vadd.f32 %v7966, %v8126
        %v8128 = vpop.f32.mrf.mxu0
        %v8129 = vpop.f32.mrf.mxu0
        %v8130 = vadd.f32 %v7969, %v8129
        %v8131 = vpop.f32.mrf.mxu0
        %8132 = vmatprep.mubr.bf16.mxu0 0
        %8133 = vmatmul.mubr.bf16.gmra.mxu0 %v7680
        %v8134 = vpop.f32.mrf.mxu0
        %v8135 = vadd.f32 %v7974, %v8134
        %v8136 = vpop.f32.mrf.mxu0
        %v8137 = vpop.f32.mrf.mxu0
        %v8138 = vadd.f32 %v7977, %v8137
        %v8139 = vpop.f32.mrf.mxu0
        %8140 = vmatprep.mubr.bf16.mxu0 0
        %8141 = vmatmul.mubr.bf16.gmra.mxu0 %v7682
        %v8142 = vpop.f32.mrf.mxu0
        %v8143 = vadd.f32 %v7982, %v8142
        %v8144 = vpop.f32.mrf.mxu0
        %v8145 = vpop.f32.mrf.mxu0
        %v8146 = vadd.f32 %v7985, %v8145
        %v8147 = vpop.f32.mrf.mxu0
        %8148 = vmatprep.mubr.bf16.mxu0 0
        %8149 = vmatmul.mubr.bf16.gmra.mxu0 %v7684
        %v8150 = vpop.f32.mrf.mxu0
        %v8151 = vadd.f32 %v7990, %v8150
        %v8152 = vpop.f32.mrf.mxu0
        %v8153 = vpop.f32.mrf.mxu0
        %v8154 = vadd.f32 %v7993, %v8153
        %v8155 = vpop.f32.mrf.mxu0
        %8156 = vmatprep.mubr.bf16.mxu0 0
        %8157 = vmatmul.mubr.bf16.gmra.mxu0 %v7686
        %v8158 = vpop.f32.mrf.mxu0
        %v8159 = vadd.f32 %v7998, %v8158
        %v8160 = vpop.f32.mrf.mxu0
        %v8161 = vpop.f32.mrf.mxu0
        %v8162 = vadd.f32 %v8001, %v8161
        %v8163 = vpop.f32.mrf.mxu0
        %8164 = vmatprep.mubr.bf16.mxu0 0
        %8165 = vmatmul.mubr.bf16.gmra.mxu0 %v7688
        %v8166 = vpop.f32.mrf.mxu0
        %v8167 = vadd.f32 %v8006, %v8166
        %v8168 = vpop.f32.mrf.mxu0
        %v8169 = vpop.f32.mrf.mxu0
        %v8170 = vadd.f32 %v8009, %v8169
        %v8171 = vpop.f32.mrf.mxu0
        %8172 = vdwg.mxu0
        %v8173 = vld [vmem:[%s10] sm:$0x1]
        %v8175 = vlaneseq
        %v8176 = vshrl.u32 %v8175, 7
        %v8177 = vsub.s32 0, %v8176
        %v8178 = vrot.slane %v8173, %v8177
        %v8180 = vadd.f32 %v8047, %v8178
        %v8181 = vadd.f32 %v8050, %v8178
        %v8182 = vadd.f32 %v8055, %v8178
        %v8183 = vadd.f32 %v8058, %v8178
        %v8184 = vadd.f32 %v8063, %v8178
        %v8185 = vadd.f32 %v8066, %v8178
        %v8186 = vadd.f32 %v8071, %v8178
        %v8187 = vadd.f32 %v8074, %v8178
        %v8188 = vadd.f32 %v8079, %v8178
        %v8189 = vadd.f32 %v8082, %v8178
        %v8190 = vadd.f32 %v8087, %v8178
        %v8191 = vadd.f32 %v8090, %v8178
        %v8192 = vadd.f32 %v8095, %v8178
        %v8193 = vadd.f32 %v8098, %v8178
        %v8194 = vadd.f32 %v8103, %v8178
        %v8195 = vadd.f32 %v8106, %v8178
        %v8196 = vadd.f32 %v8111, %v8178
        %v8197 = vadd.f32 %v8114, %v8178
        %v8198 = vadd.f32 %v8119, %v8178
        %v8199 = vadd.f32 %v8122, %v8178
        %v8200 = vadd.f32 %v8127, %v8178
        %v8201 = vadd.f32 %v8130, %v8178
        %v8202 = vadd.f32 %v8135, %v8178
        %v8203 = vadd.f32 %v8138, %v8178
        %v8204 = vadd.f32 %v8143, %v8178
        %v8205 = vadd.f32 %v8146, %v8178
        %v8206 = vadd.f32 %v8151, %v8178
        %v8207 = vadd.f32 %v8154, %v8178
        %v8208 = vadd.f32 %v8159, %v8178
        %v8209 = vadd.f32 %v8162, %v8178
        %v8210 = vadd.f32 %v8167, %v8178
        %v8211 = vadd.f32 %v8170, %v8178
        %8212 = vst.msk [vmem:[%s390] sm:$0xff] %vm3448, %v8180
        %8213 = vst.msk [vmem:[%s390 + $0x8] sm:$0xff] %vm3448, %v8181
        %8214 = vst.msk [vmem:[%s390 + $0x10] sm:$0xff] %vm3448, %v8182
        %8215 = vst.msk [vmem:[%s390 + $0x18] sm:$0xff] %vm3448, %v8183
        %8216 = vst.msk [vmem:[%s390 + $0x20] sm:$0xff] %vm3448, %v8184
        %8217 = vst.msk [vmem:[%s390 + $0x28] sm:$0xff] %vm3448, %v8185
        %8218 = vst.msk [vmem:[%s390 + $0x30] sm:$0xff] %vm3448, %v8186
        %8219 = vst.msk [vmem:[%s390 + $0x38] sm:$0xff] %vm3448, %v8187
        %8220 = vst.msk [vmem:[%s390 + $0x40] sm:$0xff] %vm3448, %v8188
        %8221 = vst.msk [vmem:[%s390 + $0x48] sm:$0xff] %vm3448, %v8189
        %8222 = vst.msk [vmem:[%s390 + $0x50] sm:$0xff] %vm3448, %v8190
        %8223 = vst.msk [vmem:[%s390 + $0x58] sm:$0xff] %vm3448, %v8191
        %8224 = vst.msk [vmem:[%s390 + $0x60] sm:$0xff] %vm3448, %v8192
        %8225 = vst.msk [vmem:[%s390 + $0x68] sm:$0xff] %vm3448, %v8193
        %8226 = vst.msk [vmem:[%s390 + $0x70] sm:$0xff] %vm3448, %v8194
        %8227 = vst.msk [vmem:[%s390 + $0x78] sm:$0xff] %vm3448, %v8195
        %8228 = vst.msk [vmem:[%s390 + $0x80] sm:$0xff] %vm3448, %v8196
        %8229 = vst.msk [vmem:[%s390 + $0x88] sm:$0xff] %vm3448, %v8197
        %8230 = vst.msk [vmem:[%s390 + $0x90] sm:$0xff] %vm3448, %v8198
        %8231 = vst.msk [vmem:[%s390 + $0x98] sm:$0xff] %vm3448, %v8199
        %8232 = vst.msk [vmem:[%s390 + $0xa0] sm:$0xff] %vm3448, %v8200
        %8233 = vst.msk [vmem:[%s390 + $0xa8] sm:$0xff] %vm3448, %v8201
        %8234 = vst.msk [vmem:[%s390 + $0xb0] sm:$0xff] %vm3448, %v8202
        %8235 = vst.msk [vmem:[%s390 + $0xb8] sm:$0xff] %vm3448, %v8203
        %8236 = vst.msk [vmem:[%s390 + $0xc0] sm:$0xff] %vm3448, %v8204
        %8237 = vst.msk [vmem:[%s390 + $0xc8] sm:$0xff] %vm3448, %v8205
        %8238 = vst.msk [vmem:[%s390 + $0xd0] sm:$0xff] %vm3448, %v8206
        %8239 = vst.msk [vmem:[%s390 + $0xd8] sm:$0xff] %vm3448, %v8207
        %8240 = vst.msk [vmem:[%s390 + $0xe0] sm:$0xff] %vm3448, %v8208
        %8241 = vst.msk [vmem:[%s390 + $0xe8] sm:$0xff] %vm3448, %v8209
        %8242 = vst.msk [vmem:[%s390 + $0xf0] sm:$0xff] %vm3448, %v8210
        %8243 = vst.msk [vmem:[%s390 + $0xf8] sm:$0xff] %vm3448, %v8211
        %s8244 = sand.u32 %s274, 1
        %s8245 = scalar_lea.sflag [#allocation4], %s8244
        %s8246 = sand.u32 %s274, 1
        %s8247 = smul.addr %s8246, 256
        %s8248 = scalar_lea.vmem [#allocation3], %s8247
        // Predicated region
        $region65: #{tpu_custom_call.1} parent=63 // pred_check
          %p8249 = pneg %p284
        $region66: #{tpu_custom_call.1} parent=63 // pred_check_branch
          %8251 = sbr.rel (%p8249) target = $region68
        $region67: #{tpu_custom_call.1} parent=63 // pred_region
          %s8253 = ssub.s32 4096, 4096
          %8254 = vsyncadd %s8245, %s8253
          %s8255 = smul.addr %s25, 32
          %s8256 = smul.addr %s8255, 128
          %s8257 = scalar_lea.hbm %s11, %s8256
          %s8258 = sshll.u32 %s8248, 4
          %s8259 = int_to_ptr.vmem [resolvable:$true] %s8258
          %8264 = dma.vmem_to_hbm [thread:$0]  %s8259, 4096, %s8257, %s8245, 128, 128, 8
        $region68: #{tpu_custom_call.1} parent=63 // pred_fallthru
          _
      $region64: #{tpu_custom_call.1} parent=5 // pred_fallthru
        _
      %p8265 = scmp.le.s32.totalorder 2, %s20
      // Predicated region
      $region69: #{tpu_custom_call.1} parent=5 // pred_check
        %p8266 = pneg %p8265
      $region70: #{tpu_custom_call.1} parent=5 // pred_check_branch
        %8268 = sbr.rel (%p8266) target = $region72
      $region71: #{tpu_custom_call.1} parent=5 // pred_region
        %s8269 = ssub.s32 %s20, 2
        // Predicated region
        $region73: #{tpu_custom_call.1} parent=71 // pred_check
          %p8270 = pneg %p290
        $region74: #{tpu_custom_call.1} parent=71 // pred_check_branch
          %8272 = sbr.rel (%p8270) target = $region76
        $region75: #{tpu_custom_call.1} parent=71 // pred_region
          %s8273 = sand.u32 %s275, 1
          %s8274 = scalar_lea.sflag [#allocation4], %s8273
          %s8275 = sand.u32 %s275, 1
          %s8276 = smul.addr %s8275, 256
          %s8277 = scalar_lea.vmem [#allocation3], %s8276
          %8278 = dma.done %s8274, 4096
        $region76: #{tpu_custom_call.1} parent=71 // pred_fallthru
          _
      $region72: #{tpu_custom_call.1} parent=5 // pred_fallthru
        _
    $region6: #{tpu_custom_call.1} parent=1 // loop_footer
      %s24 = sadd.s32 1, %s20
    $region7: #{tpu_custom_call.1} parent=1 // loop_footer_branch
      %19 = sbr.rel target = $region3
    $region8: #{tpu_custom_call.1} parent=1 // loop_exit
      _
    %8279 = vsyncpa [#allocation4], 1
    %s8280 = scalar_lea.sflag [#allocation4], 1
    %8281 = vsyncpa %s8280, 1

</llo_original>
